<compile_context>
chip_gen: v7x
topology: tpu7x:2x2x1
jax: 0.10.0
libtpu: 0.0.40
codegen_flags: <defaults>
</compile_context>

<pallas_src>
import math

import jax
import jax.numpy as jnp
from jax.experimental import pallas as pl
from jax.experimental.pallas import tpu as pltpu


# ------------------------------- constants ---------------------------------

D_EMB = 128
N_HEADS = 8
DH = D_EMB // N_HEADS          # 16
FF = 1024
H2 = 256
VOCAB = 22
MAX_LEN = 45
PAD_ID = 21


# ------------------------------ Pallas kernels ------------------------------

def _layernorm(x, g, b, eps=1e-5):
    mu = jnp.mean(x, axis=-1, keepdims=True)
    var = jnp.mean(jnp.square(x - mu), axis=-1, keepdims=True)
    return (x - mu) * jax.lax.rsqrt(var + eps) * g + b


def _attn_block_kernel(x_ref, wq_ref, wk_ref, wv_ref, bq_ref, bk_ref, bv_ref,
                       wo_ref, bo_ref, bias_ref, o_ref, p_ref):
    """Fused MHA for one batch element.

    x:(1,L,D) f32; wq/wk/wv:(H,D,DH) bf16; bq/bk/bv:(H,1,DH) f32;
    wo:(H,DH,D) bf16; bo:(1,D) f32; bias:(1,1,L) f32 (key-padding, -1e30/0);
    o:(1,L,D) f32 lane-dense; p:(1,L,L) f32 head-averaged attention probs.
    """
    L = x_ref.shape[1]
    x = x_ref[0]                                   # (L, D) f32
    xb = x.astype(jnp.bfloat16)
    bias = bias_ref[0]                             # (1, L)
    scale = 1.0 / math.sqrt(DH)

    acc = jnp.zeros((L, D_EMB), jnp.float32) + bo_ref[...]     # out-proj bias
    p_acc = jnp.zeros((L, L), jnp.float32)

    for h in range(N_HEADS):                       # static unroll, H = 8
        q = (jnp.dot(xb, wq_ref[h], preferred_element_type=jnp.float32)
             + bq_ref[h]) * scale                                    # (L, DH)
        k = jnp.dot(xb, wk_ref[h], preferred_element_type=jnp.float32) + bk_ref[h]
        v = jnp.dot(xb, wv_ref[h], preferred_element_type=jnp.float32) + bv_ref[h]

        s = jnp.dot(q, k.T, preferred_element_type=jnp.float32) + bias   # (L, L)
        m = jnp.max(s, axis=-1, keepdims=True)
        e = jnp.exp(s - m)
        pr = e * pl.reciprocal(jnp.sum(e, axis=-1, keepdims=True), approx=True)
        p_acc = p_acc + pr

        o_h = jnp.dot(pr, v, preferred_element_type=jnp.float32)         # (L, DH)
        # concat(o_h) @ W_o  ==  sum_h o_h @ W_o[h*DH:(h+1)*DH]  (head-major slice)
        acc = acc + jnp.dot(o_h.astype(jnp.bfloat16), wo_ref[h],
                            preferred_element_type=jnp.float32)

    o_ref[0] = acc
    p_ref[0] = p_acc * (1.0 / N_HEADS)


def _tail_kernel(emb_ref, attn_ref, coff_ref, ln1g_ref, ln1b_ref,
                 w1_ref, b1_ref, w2_ref, b2_ref,
                 ln2g_ref, ln2b_ref, lnfg_ref, lnfb_ref, rep_ref):
    """Post-attention encoder tail + masked-mean pool for one batch element."""
    x0 = emb_ref[0] + attn_ref[0]                                    # (L, D)
    x1 = _layernorm(x0, ln1g_ref[...], ln1b_ref[...])
    h = jnp.dot(x1.astype(jnp.bfloat16), w1_ref[...],
                preferred_element_type=jnp.float32) + b1_ref[...]    # (L, FF)
    h = jnp.maximum(h, 0.0)
    y = jnp.dot(h.astype(jnp.bfloat16), w2_ref[...],
                preferred_element_type=jnp.float32) + b2_ref[...]    # (L, D)
    x2 = _layernorm(x1 + y, ln2g_ref[...], ln2b_ref[...])
    feat = _layernorm(x2, lnfg_ref[...], lnfb_ref[...])              # Concatfeature

    c = coff_ref[0]                                                  # (1, L)
    num = jnp.dot(c, feat, preferred_element_type=jnp.float32)       # (1, D)
    den = jnp.maximum(jnp.sum(c, axis=-1, keepdims=True), 1.0)       # all-pad guard
    rep_ref[0] = num / den


def _heads_kernel(rep_ref,
                  w1e_ref, s1e_ref, t1e_ref, w2e_ref, s2e_ref, t2e_ref,
                  wout_ref, bout_ref,
                  w1i_ref, s1i_ref, t1i_ref, w2i_ref, s2i_ref, t2i_ref,
                  wpe_ref, wpi_ref, bp_ref,
                  yel_ref, yim_ref):
    """Both EL and IM MLP heads (Linear+BN-eval+ReLU x2 + sigmoid outputs)."""
    r = rep_ref[...].astype(jnp.bfloat16)                            # (B, D)

    # EL head
    x1e = jnp.maximum(jnp.dot(r, w1e_ref[...], preferred_element_type=jnp.float32)
                      * s1e_ref[...] + t1e_ref[...], 0.0)            # (B, FF)
    x2e = jnp.maximum(jnp.dot(x1e.astype(jnp.bfloat16), w2e_ref[...],
                              preferred_element_type=jnp.float32)
                      * s2e_ref[...] + t2e_ref[...], 0.0)            # (B, 256)
    z_el = jnp.dot(x2e, wout_ref[...], preferred_element_type=jnp.float32) + bout_ref[...]
    y_el = 1.0 / (1.0 + jnp.exp(-z_el))                              # (B, 1)

    # IM head (concat [y_EL, x_IM] folded into a split predict_IM weight)
    x1i = jnp.maximum(jnp.dot(r, w1i_ref[...], preferred_element_type=jnp.float32)
                      * s1i_ref[...] + t1i_ref[...], 0.0)
    x2i = jnp.maximum(jnp.dot(x1i.astype(jnp.bfloat16), w2i_ref[...],
                              preferred_element_type=jnp.float32)
                      * s2i_ref[...] + t2i_ref[...], 0.0)
    z_im = (y_el * wpe_ref[...]
            + jnp.dot(x2i, wpi_ref[...], preferred_element_type=jnp.float32)
            + bp_ref[...])
    y_im = 1.0 / (1.0 + jnp.exp(-z_im))                              # (B, 1)

    yel_ref[...] = y_el
    yim_ref[...] = y_im


# ------------------------------ kernel wrappers ------------------------------

def attention_block(x, wq, wk, wv, bq, bk, bv, wo, bo, bias):
    B, L, D = x.shape
    c3 = lambda b: (0, 0, 0)
    out, probs = pl.pallas_call(
        _attn_block_kernel,
        grid=(B,),
        in_specs=[
            pl.BlockSpec((1, L, D), lambda b: (b, 0, 0)),
            pl.BlockSpec((N_HEADS, D, DH), c3),
            pl.BlockSpec((N_HEADS, D, DH), c3),
            pl.BlockSpec((N_HEADS, D, DH), c3),
            pl.BlockSpec((N_HEADS, 1, DH), c3),
            pl.BlockSpec((N_HEADS, 1, DH), c3),
            pl.BlockSpec((N_HEADS, 1, DH), c3),
            pl.BlockSpec((N_HEADS, DH, D), c3),
            pl.BlockSpec((1, D), lambda b: (0, 0)),
            pl.BlockSpec((1, 1, L), lambda b: (b, 0, 0)),
        ],
        out_specs=[
            pl.BlockSpec((1, L, D), lambda b: (b, 0, 0)),
            pl.BlockSpec((1, L, L), lambda b: (b, 0, 0)),
        ],
        out_shape=(jax.ShapeDtypeStruct((B, L, D), jnp.float32),
                   jax.ShapeDtypeStruct((B, L, L), jnp.float32)),
        compiler_params=pltpu.CompilerParams(dimension_semantics=("parallel",)),
    )(x, wq, wk, wv, bq, bk, bv, wo, bo, bias)
    return out, probs


def encoder_tail(emb, attn, coff, ln1g, ln1b, w1, b1, w2, b2,
                 ln2g, ln2b, lnfg, lnfb):
    B, L, D = emb.shape
    F = w1.shape[1]
    vec = lambda b: (0, 0)
    rep = pl.pallas_call(
        _tail_kernel,
        grid=(B,),
        in_specs=[
            pl.BlockSpec((1, L, D), lambda b: (b, 0, 0)),
            pl.BlockSpec((1, L, D), lambda b: (b, 0, 0)),
            pl.BlockSpec((1, 1, L), lambda b: (b, 0, 0)),
            pl.BlockSpec((1, D), vec), pl.BlockSpec((1, D), vec),
            pl.BlockSpec((D, F), vec), pl.BlockSpec((1, F), vec),
            pl.BlockSpec((F, D), vec), pl.BlockSpec((1, D), vec),
            pl.BlockSpec((1, D), vec), pl.BlockSpec((1, D), vec),
            pl.BlockSpec((1, D), vec), pl.BlockSpec((1, D), vec),
        ],
        out_specs=pl.BlockSpec((1, 1, D), lambda b: (b, 0, 0)),
        out_shape=jax.ShapeDtypeStruct((B, 1, D), jnp.float32),
        compiler_params=pltpu.CompilerParams(dimension_semantics=("parallel",)),
    )(emb, attn, coff, ln1g, ln1b, w1, b1, w2, b2, ln2g, ln2b, lnfg, lnfb)
    return rep.reshape(B, D)


def el_im_heads(rep, w1e, s1e, t1e, w2e, s2e, t2e, wout, bout,
                w1i, s1i, t1i, w2i, s2i, t2i, wpe, wpi, bp):
    # Single block: at demo sizes B is tiny; for large B this kernel should
    # gain an M-tiled "parallel" grid over rows of `rep`.
    B = rep.shape[0]
    return pl.pallas_call(
        _heads_kernel,
        out_shape=(jax.ShapeDtypeStruct((B, 1), jnp.float32),
                   jax.ShapeDtypeStruct((B, 1), jnp.float32)),
    )(rep, w1e, s1e, t1e, w2e, s2e, t2e, wout, bout,
      w1i, s1i, t1i, w2i, s2i, t2i, wpe, wpi, bp)


# --------------------------- parameters / folding ----------------------------

def init_params(key):
    ks = list(jax.random.split(key, 48))
    it = iter(ks)

    def nrm(shape, scale=0.05):
        return scale * jax.random.normal(next(it), shape, jnp.float32)

    def bn(n):
        return dict(gamma=1.0 + nrm((n,)), beta=nrm((n,)),
                    mean=nrm((n,)), var=1.0 + 0.1 * jnp.abs(nrm((n,))))

    p = {}
    p["embedding"] = nrm((VOCAB, D_EMB), 0.1)
    p["pos"] = jax.random.uniform(next(it), (MAX_LEN, D_EMB), jnp.float32)  # torch.rand
    # MultiheadAttention (in-proj stacked [q;k;v] in x@W form, out-proj)
    p["in_proj_w"] = nrm((D_EMB, 3 * D_EMB)); p["in_proj_b"] = nrm((3 * D_EMB,))
    p["out_proj_w"] = nrm((D_EMB, D_EMB));    p["out_proj_b"] = nrm((D_EMB,))
    # TransformerEncoderLayer norms + FFN, plus final encoder norm
    p["ln1_g"] = 1.0 + nrm((D_EMB,)); p["ln1_b"] = nrm((D_EMB,))
    p["ln2_g"] = 1.0 + nrm((D_EMB,)); p["ln2_b"] = nrm((D_EMB,))
    p["lnf_g"] = 1.0 + nrm((D_EMB,)); p["lnf_b"] = nrm((D_EMB,))
    p["ff1_w"] = nrm((D_EMB, FF)); p["ff1_b"] = nrm((FF,))
    p["ff2_w"] = nrm((FF, D_EMB)); p["ff2_b"] = nrm((D_EMB,))
    # EL head
    p["fc1_w"] = nrm((D_EMB, FF)); p["fc1_b"] = nrm((FF,)); p["bn1"] = bn(FF)
    p["fc2_w"] = nrm((FF, H2));    p["fc2_b"] = nrm((H2,)); p["bn2"] = bn(H2)
    p["out_w"] = nrm((H2, 1));     p["out_b"] = nrm((1,))
    # IM head
    p["fc1im_w"] = nrm((D_EMB, FF)); p["fc1im_b"] = nrm((FF,)); p["bn1im"] = bn(FF)
    p["fc2im_w"] = nrm((FF, H2));    p["fc2im_b"] = nrm((H2,)); p["bn2im"] = bn(H2)
    p["pred_im_w"] = nrm((H2 + 1, 1)); p["pred_im_b"] = nrm((1,))
    return p


def bn_fold(bn, lin_bias, eps=1e-5):
    """Fold eval-mode BatchNorm1d together with the preceding Linear bias."""
    s = bn["gamma"] * jax.lax.rsqrt(bn["var"] + eps)
    t = bn["beta"] - bn["mean"] * s + lin_bias * s
    return s.reshape(1, -1), t.reshape(1, -1)


# ---------------------------------- forward ----------------------------------

def forward(tokens, p):
    B, L = tokens.shape
    pad_mask = tokens == PAD_ID                                       # (B, L) bool

    # Embedding + positional encoding (plain-JAX gather glue).
    emb = p["embedding"][tokens] + p["pos"][:L][None, :, :]           # (B, L, D) f32

    # Head-major, bf16 attention weights (reshuffle on weights only — cheap).
    w_in = p["in_proj_w"].reshape(D_EMB, 3, N_HEADS, DH)
    wq = w_in[:, 0].transpose(1, 0, 2).astype(jnp.bfloat16)           # (H, D, DH)
    wk = w_in[:, 1].transpose(1, 0, 2).astype(jnp.bfloat16)
    wv = w_in[:, 2].transpose(1, 0, 2).astype(jnp.bfloat16)
    b_in = p["in_proj_b"].reshape(3, N_HEADS, 1, DH)
    bq, bk, bv = b_in[0], b_in[1], b_in[2]                            # (H, 1, DH)
    wo = p["out_proj_w"].reshape(N_HEADS, DH, D_EMB).astype(jnp.bfloat16)
    bo = p["out_proj_b"].reshape(1, D_EMB)
    bias = jnp.where(pad_mask, -1e30, 0.0).astype(jnp.float32).reshape(B, 1, L)

    # Fused self-attention block (also yields head-averaged attn weights).
    attn_out, attn_weights = attention_block(emb, wq, wk, wv, bq, bk, bv, wo, bo, bias)

    # Fused encoder tail: residual+LN1, FFN, residual+LN2, final LN, masked mean.
    coff = (1.0 - pad_mask.astype(jnp.float32)).reshape(B, 1, L)
    rep = encoder_tail(
        emb, attn_out, coff,
        p["ln1_g"].reshape(1, -1), p["ln1_b"].reshape(1, -1),
        p["ff1_w"].astype(jnp.bfloat16), p["ff1_b"].reshape(1, -1),
        p["ff2_w"].astype(jnp.bfloat16), p["ff2_b"].reshape(1, -1),
        p["ln2_g"].reshape(1, -1), p["ln2_b"].reshape(1, -1),
        p["lnf_g"].reshape(1, -1), p["lnf_b"].reshape(1, -1))         # (B, D)

    # Fused EL + IM heads (BN folded, concat folded into split predict_IM weight).
    s1e, t1e = bn_fold(p["bn1"], p["fc1_b"])
    s2e, t2e = bn_fold(p["bn2"], p["fc2_b"])
    s1i, t1i = bn_fold(p["bn1im"], p["fc1im_b"])
    s2i, t2i = bn_fold(p["bn2im"], p["fc2im_b"])
    wpe = p["pred_im_w"][:1].reshape(1, 1)       # weight hitting the y_EL column
    wpi = p["pred_im_w"][1:]                     # (256, 1)
    y_el, y_im = el_im_heads(
        rep,
        p["fc1_w"].astype(jnp.bfloat16), s1e, t1e,
        p["fc2_w"].astype(jnp.bfloat16), s2e, t2e,
        p["out_w"], p["out_b"].reshape(1, 1),
        p["fc1im_w"].astype(jnp.bfloat16), s1i, t1i,
        p["fc2im_w"].astype(jnp.bfloat16), s2i, t2i,
        wpe, wpi, p["pred_im_b"].reshape(1, 1))

    return attn_weights, y_el, y_im


# ----------------------------------- main ------------------------------------

if __name__ == "__main__":
    B, L = 2, 8
    key = jax.random.PRNGKey(0)
    kp, kt = jax.random.split(key)
    params = init_params(kp)

    tokens = jax.random.randint(kt, (B, L), 0, PAD_ID, dtype=jnp.int32)  # in [0, 21)
    tokens = tokens.at[1, -2:].set(PAD_ID)                               # pad tail of seq 1

    attn_w, y_el, y_im = jax.jit(forward)(tokens, params)
    jax.block_until_ready((attn_w, y_el, y_im))

    assert attn_w.shape == (B, L, L)
    assert y_el.shape == (B, 1) and y_im.shape == (B, 1)
    assert bool(jnp.all(jnp.isfinite(attn_w)))
    assert bool(jnp.all(jnp.isfinite(y_el))) and bool(jnp.all(jnp.isfinite(y_im)))
    print("KERNEL_OK")
</pallas_src>

<mosaic_0001>
module attributes {stable_mosaic.version = 11 : i64} {
  func.func @_attn_block_kernel(%arg0: i32, %arg1: memref<1x8x128xf32, #tpu.memory_space<vmem>>, %arg2: memref<8x128x16xbf16, #tpu.memory_space<vmem>>, %arg3: memref<8x128x16xbf16, #tpu.memory_space<vmem>>, %arg4: memref<8x128x16xbf16, #tpu.memory_space<vmem>>, %arg5: memref<8x1x16xf32, #tpu.memory_space<vmem>>, %arg6: memref<8x1x16xf32, #tpu.memory_space<vmem>>, %arg7: memref<8x1x16xf32, #tpu.memory_space<vmem>>, %arg8: memref<8x16x128xbf16, #tpu.memory_space<vmem>>, %arg9: memref<1x128xf32, #tpu.memory_space<vmem>>, %arg10: memref<1x1x8xf32, #tpu.memory_space<vmem>>, %arg11: memref<1x8x128xf32, #tpu.memory_space<vmem>>, %arg12: memref<1x8x8xf32, #tpu.memory_space<vmem>>) attributes {dimension_semantics = [#tpu.dimension_semantics<parallel>], iteration_bounds = array<i64: 2>, scalar_prefetch = 0 : i64, scratch_operands = 0 : i64, tpu.core_type = #tpu.core_type<tc>, window_params = [{transform_indices = @transform_0, window_bounds = array<i64: 1, 8, 128>}, {pipeline_mode = #tpu.pipeline_mode<synchronous>, transform_indices = @transform_1, window_bounds = array<i64: 8, 128, 16>}, {pipeline_mode = #tpu.pipeline_mode<synchronous>, transform_indices = @transform_2, window_bounds = array<i64: 8, 128, 16>}, {pipeline_mode = #tpu.pipeline_mode<synchronous>, transform_indices = @transform_3, window_bounds = array<i64: 8, 128, 16>}, {pipeline_mode = #tpu.pipeline_mode<synchronous>, transform_indices = @transform_4, window_bounds = array<i64: 8, 1, 16>}, {pipeline_mode = #tpu.pipeline_mode<synchronous>, transform_indices = @transform_5, window_bounds = array<i64: 8, 1, 16>}, {pipeline_mode = #tpu.pipeline_mode<synchronous>, transform_indices = @transform_6, window_bounds = array<i64: 8, 1, 16>}, {pipeline_mode = #tpu.pipeline_mode<synchronous>, transform_indices = @transform_7, window_bounds = array<i64: 8, 16, 128>}, {pipeline_mode = #tpu.pipeline_mode<synchronous>, transform_indices = @transform_8, window_bounds = array<i64: 1, 128>}, {transform_indices = @transform_9, window_bounds = array<i64: 1, 1, 8>}, {transform_indices = @transform_10, window_bounds = array<i64: 1, 8, 128>}, {transform_indices = @transform_11, window_bounds = array<i64: 1, 8, 8>}]} {
    %c0 = arith.constant 0 : index
    %c0_0 = arith.constant 0 : index
    %c0_1 = arith.constant 0 : index
    %0 = vector.load %arg1[%c0, %c0_0, %c0_1] : memref<1x8x128xf32, #tpu.memory_space<vmem>>, vector<1x8x128xf32>
    %1 = vector.shape_cast %0 : vector<1x8x128xf32> to vector<8x128xf32>
    %2 = arith.truncf %1 : vector<8x128xf32> to vector<8x128xbf16>
    %c0_2 = arith.constant 0 : index
    %c0_3 = arith.constant 0 : index
    %c0_4 = arith.constant 0 : index
    %3 = vector.load %arg10[%c0_2, %c0_3, %c0_4] : memref<1x1x8xf32, #tpu.memory_space<vmem>>, vector<1x1x8xf32>
    %4 = vector.shape_cast %3 : vector<1x1x8xf32> to vector<1x8xf32>
    %cst = arith.constant 0.000000e+00 : f32
    %5 = vector.broadcast %cst : f32 to vector<8x128xf32>
    %c0_5 = arith.constant 0 : index
    %c0_6 = arith.constant 0 : index
    %6 = vector.load %arg9[%c0_5, %c0_6] : memref<1x128xf32, #tpu.memory_space<vmem>>, vector<1x128xf32>
    %7 = vector.broadcast %6 : vector<1x128xf32> to vector<8x128xf32>
    %8 = arith.addf %5, %7 : vector<8x128xf32>
    %cst_7 = arith.constant 0.000000e+00 : f32
    %9 = vector.broadcast %cst_7 : f32 to vector<8x8xf32>
    %c0_8 = arith.constant 0 : index
    %c0_9 = arith.constant 0 : index
    %c0_10 = arith.constant 0 : index
    %10 = vector.load %arg2[%c0_8, %c0_9, %c0_10] : memref<8x128x16xbf16, #tpu.memory_space<vmem>>, vector<1x128x16xbf16>
    %11 = vector.shape_cast %10 : vector<1x128x16xbf16> to vector<128x16xbf16>
    %cst_11 = arith.constant dense<0.000000e+00> : vector<8x16xf32>
    %12 = tpu.matmul %2, %11, %cst_11 {dimension_numbers = #tpu.dot_dimension_numbers<[1], [0], [0], [1], [0, 0, 1, 1], [], []>} : vector<8x128xbf16>, vector<128x16xbf16>, vector<8x16xf32> -> vector<8x16xf32>
    %c0_12 = arith.constant 0 : index
    %c0_13 = arith.constant 0 : index
    %c0_14 = arith.constant 0 : index
    %13 = vector.load %arg5[%c0_12, %c0_13, %c0_14] : memref<8x1x16xf32, #tpu.memory_space<vmem>>, vector<1x1x16xf32>
    %14 = vector.shape_cast %13 : vector<1x1x16xf32> to vector<1x16xf32>
    %15 = vector.broadcast %14 : vector<1x16xf32> to vector<8x16xf32>
    %16 = arith.addf %12, %15 : vector<8x16xf32>
    %cst_15 = arith.constant 2.500000e-01 : f32
    %17 = vector.broadcast %cst_15 : f32 to vector<8x16xf32>
    %18 = arith.mulf %16, %17 : vector<8x16xf32>
    %c0_16 = arith.constant 0 : index
    %c0_17 = arith.constant 0 : index
    %c0_18 = arith.constant 0 : index
    %19 = vector.load %arg3[%c0_16, %c0_17, %c0_18] : memref<8x128x16xbf16, #tpu.memory_space<vmem>>, vector<1x128x16xbf16>
    %20 = vector.shape_cast %19 : vector<1x128x16xbf16> to vector<128x16xbf16>
    %cst_19 = arith.constant dense<0.000000e+00> : vector<8x16xf32>
    %21 = tpu.matmul %2, %20, %cst_19 {dimension_numbers = #tpu.dot_dimension_numbers<[1], [0], [0], [1], [0, 0, 1, 1], [], []>} : vector<8x128xbf16>, vector<128x16xbf16>, vector<8x16xf32> -> vector<8x16xf32>
    %c0_20 = arith.constant 0 : index
    %c0_21 = arith.constant 0 : index
    %c0_22 = arith.constant 0 : index
    %22 = vector.load %arg6[%c0_20, %c0_21, %c0_22] : memref<8x1x16xf32, #tpu.memory_space<vmem>>, vector<1x1x16xf32>
    %23 = vector.shape_cast %22 : vector<1x1x16xf32> to vector<1x16xf32>
    %24 = vector.broadcast %23 : vector<1x16xf32> to vector<8x16xf32>
    %25 = arith.addf %21, %24 : vector<8x16xf32>
    %c0_23 = arith.constant 0 : index
    %c0_24 = arith.constant 0 : index
    %c0_25 = arith.constant 0 : index
    %26 = vector.load %arg4[%c0_23, %c0_24, %c0_25] : memref<8x128x16xbf16, #tpu.memory_space<vmem>>, vector<1x128x16xbf16>
    %27 = vector.shape_cast %26 : vector<1x128x16xbf16> to vector<128x16xbf16>
    %cst_26 = arith.constant dense<0.000000e+00> : vector<8x16xf32>
    %28 = tpu.matmul %2, %27, %cst_26 {dimension_numbers = #tpu.dot_dimension_numbers<[1], [0], [0], [1], [0, 0, 1, 1], [], []>} : vector<8x128xbf16>, vector<128x16xbf16>, vector<8x16xf32> -> vector<8x16xf32>
    %c0_27 = arith.constant 0 : index
    %c0_28 = arith.constant 0 : index
    %c0_29 = arith.constant 0 : index
    %29 = vector.load %arg7[%c0_27, %c0_28, %c0_29] : memref<8x1x16xf32, #tpu.memory_space<vmem>>, vector<1x1x16xf32>
    %30 = vector.shape_cast %29 : vector<1x1x16xf32> to vector<1x16xf32>
    %31 = vector.broadcast %30 : vector<1x16xf32> to vector<8x16xf32>
    %32 = arith.addf %28, %31 : vector<8x16xf32>
    %33 = tpu.transpose %25, [1, 0] : vector<8x16xf32> -> vector<16x8xf32>
    %cst_30 = arith.constant dense<0.000000e+00> : vector<8x8xf32>
    %34 = tpu.matmul %18, %33, %cst_30 {dimension_numbers = #tpu.dot_dimension_numbers<[1], [0], [0], [1], [0, 0, 1, 1], [], []>} : vector<8x16xf32>, vector<16x8xf32>, vector<8x8xf32> -> vector<8x8xf32>
    %35 = vector.broadcast %4 : vector<1x8xf32> to vector<8x8xf32>
    %36 = arith.addf %34, %35 : vector<8x8xf32>
    %cst_31 = arith.constant dense<0xFF800000> : vector<8xf32>
    %37 = vector.multi_reduction <maximumf>, %36, %cst_31 [1] : vector<8x8xf32> to vector<8xf32>
    %38 = vector.shape_cast %37 : vector<8xf32> to vector<8x1xf32>
    %39 = vector.broadcast %38 : vector<8x1xf32> to vector<8x8xf32>
    %40 = arith.subf %36, %39 : vector<8x8xf32>
    %41 = math.exp %40 : vector<8x8xf32>
    %cst_32 = arith.constant dense<0.000000e+00> : vector<8xf32>
    %42 = vector.multi_reduction <add>, %41, %cst_32 [1] : vector<8x8xf32> to vector<8xf32>
    %43 = vector.shape_cast %42 : vector<8xf32> to vector<8x1xf32>
    %44 = tpu.reciprocal %43 {approx = true} : vector<8x1xf32> -> vector<8x1xf32>
    %45 = vector.broadcast %44 : vector<8x1xf32> to vector<8x8xf32>
    %46 = arith.mulf %41, %45 : vector<8x8xf32>
    %47 = arith.addf %9, %46 : vector<8x8xf32>
    %cst_33 = arith.constant dense<0.000000e+00> : vector<8x16xf32>
    %48 = tpu.matmul %46, %32, %cst_33 {dimension_numbers = #tpu.dot_dimension_numbers<[1], [0], [0], [1], [0, 0, 1, 1], [], []>} : vector<8x8xf32>, vector<8x16xf32>, vector<8x16xf32> -> vector<8x16xf32>
    %49 = arith.truncf %48 : vector<8x16xf32> to vector<8x16xbf16>
    %c0_34 = arith.constant 0 : index
    %c0_35 = arith.constant 0 : index
    %c0_36 = arith.constant 0 : index
    %50 = vector.load %arg8[%c0_34, %c0_35, %c0_36] : memref<8x16x128xbf16, #tpu.memory_space<vmem>>, vector<1x16x128xbf16>
    %51 = vector.shape_cast %50 : vector<1x16x128xbf16> to vector<16x128xbf16>
    %cst_37 = arith.constant dense<0.000000e+00> : vector<8x128xf32>
    %52 = tpu.matmul %49, %51, %cst_37 {dimension_numbers = #tpu.dot_dimension_numbers<[1], [0], [0], [1], [0, 0, 1, 1], [], []>} : vector<8x16xbf16>, vector<16x128xbf16>, vector<8x128xf32> -> vector<8x128xf32>
    %53 = arith.addf %8, %52 : vector<8x128xf32>
    %c1 = arith.constant 1 : index
    %c0_38 = arith.constant 0 : index
    %c0_39 = arith.constant 0 : index
    %54 = vector.load %arg2[%c1, %c0_38, %c0_39] : memref<8x128x16xbf16, #tpu.memory_space<vmem>>, vector<1x128x16xbf16>
    %55 = vector.shape_cast %54 : vector<1x128x16xbf16> to vector<128x16xbf16>
    %cst_40 = arith.constant dense<0.000000e+00> : vector<8x16xf32>
    %56 = tpu.matmul %2, %55, %cst_40 {dimension_numbers = #tpu.dot_dimension_numbers<[1], [0], [0], [1], [0, 0, 1, 1], [], []>} : vector<8x128xbf16>, vector<128x16xbf16>, vector<8x16xf32> -> vector<8x16xf32>
    %c1_41 = arith.constant 1 : index
    %c0_42 = arith.constant 0 : index
    %c0_43 = arith.constant 0 : index
    %57 = vector.load %arg5[%c1_41, %c0_42, %c0_43] : memref<8x1x16xf32, #tpu.memory_space<vmem>>, vector<1x1x16xf32>
    %58 = vector.shape_cast %57 : vector<1x1x16xf32> to vector<1x16xf32>
    %59 = vector.broadcast %58 : vector<1x16xf32> to vector<8x16xf32>
    %60 = arith.addf %56, %59 : vector<8x16xf32>
    %cst_44 = arith.constant 2.500000e-01 : f32
    %61 = vector.broadcast %cst_44 : f32 to vector<8x16xf32>
    %62 = arith.mulf %60, %61 : vector<8x16xf32>
    %c1_45 = arith.constant 1 : index
    %c0_46 = arith.constant 0 : index
    %c0_47 = arith.constant 0 : index
    %63 = vector.load %arg3[%c1_45, %c0_46, %c0_47] : memref<8x128x16xbf16, #tpu.memory_space<vmem>>, vector<1x128x16xbf16>
    %64 = vector.shape_cast %63 : vector<1x128x16xbf16> to vector<128x16xbf16>
    %cst_48 = arith.constant dense<0.000000e+00> : vector<8x16xf32>
    %65 = tpu.matmul %2, %64, %cst_48 {dimension_numbers = #tpu.dot_dimension_numbers<[1], [0], [0], [1], [0, 0, 1, 1], [], []>} : vector<8x128xbf16>, vector<128x16xbf16>, vector<8x16xf32> -> vector<8x16xf32>
    %c1_49 = arith.constant 1 : index
    %c0_50 = arith.constant 0 : index
    %c0_51 = arith.constant 0 : index
    %66 = vector.load %arg6[%c1_49, %c0_50, %c0_51] : memref<8x1x16xf32, #tpu.memory_space<vmem>>, vector<1x1x16xf32>
    %67 = vector.shape_cast %66 : vector<1x1x16xf32> to vector<1x16xf32>
    %68 = vector.broadcast %67 : vector<1x16xf32> to vector<8x16xf32>
    %69 = arith.addf %65, %68 : vector<8x16xf32>
    %c1_52 = arith.constant 1 : index
    %c0_53 = arith.constant 0 : index
    %c0_54 = arith.constant 0 : index
    %70 = vector.load %arg4[%c1_52, %c0_53, %c0_54] : memref<8x128x16xbf16, #tpu.memory_space<vmem>>, vector<1x128x16xbf16>
    %71 = vector.shape_cast %70 : vector<1x128x16xbf16> to vector<128x16xbf16>
    %cst_55 = arith.constant dense<0.000000e+00> : vector<8x16xf32>
    %72 = tpu.matmul %2, %71, %cst_55 {dimension_numbers = #tpu.dot_dimension_numbers<[1], [0], [0], [1], [0, 0, 1, 1], [], []>} : vector<8x128xbf16>, vector<128x16xbf16>, vector<8x16xf32> -> vector<8x16xf32>
    %c1_56 = arith.constant 1 : index
    %c0_57 = arith.constant 0 : index
    %c0_58 = arith.constant 0 : index
    %73 = vector.load %arg7[%c1_56, %c0_57, %c0_58] : memref<8x1x16xf32, #tpu.memory_space<vmem>>, vector<1x1x16xf32>
    %74 = vector.shape_cast %73 : vector<1x1x16xf32> to vector<1x16xf32>
    %75 = vector.broadcast %74 : vector<1x16xf32> to vector<8x16xf32>
    %76 = arith.addf %72, %75 : vector<8x16xf32>
    %77 = tpu.transpose %69, [1, 0] : vector<8x16xf32> -> vector<16x8xf32>
    %cst_59 = arith.constant dense<0.000000e+00> : vector<8x8xf32>
    %78 = tpu.matmul %62, %77, %cst_59 {dimension_numbers = #tpu.dot_dimension_numbers<[1], [0], [0], [1], [0, 0, 1, 1], [], []>} : vector<8x16xf32>, vector<16x8xf32>, vector<8x8xf32> -> vector<8x8xf32>
    %79 = vector.broadcast %4 : vector<1x8xf32> to vector<8x8xf32>
    %80 = arith.addf %78, %79 : vector<8x8xf32>
    %cst_60 = arith.constant dense<0xFF800000> : vector<8xf32>
    %81 = vector.multi_reduction <maximumf>, %80, %cst_60 [1] : vector<8x8xf32> to vector<8xf32>
    %82 = vector.shape_cast %81 : vector<8xf32> to vector<8x1xf32>
    %83 = vector.broadcast %82 : vector<8x1xf32> to vector<8x8xf32>
    %84 = arith.subf %80, %83 : vector<8x8xf32>
    %85 = math.exp %84 : vector<8x8xf32>
    %cst_61 = arith.constant dense<0.000000e+00> : vector<8xf32>
    %86 = vector.multi_reduction <add>, %85, %cst_61 [1] : vector<8x8xf32> to vector<8xf32>
    %87 = vector.shape_cast %86 : vector<8xf32> to vector<8x1xf32>
    %88 = tpu.reciprocal %87 {approx = true} : vector<8x1xf32> -> vector<8x1xf32>
    %89 = vector.broadcast %88 : vector<8x1xf32> to vector<8x8xf32>
    %90 = arith.mulf %85, %89 : vector<8x8xf32>
    %91 = arith.addf %47, %90 : vector<8x8xf32>
    %cst_62 = arith.constant dense<0.000000e+00> : vector<8x16xf32>
    %92 = tpu.matmul %90, %76, %cst_62 {dimension_numbers = #tpu.dot_dimension_numbers<[1], [0], [0], [1], [0, 0, 1, 1], [], []>} : vector<8x8xf32>, vector<8x16xf32>, vector<8x16xf32> -> vector<8x16xf32>
    %93 = arith.truncf %92 : vector<8x16xf32> to vector<8x16xbf16>
    %c1_63 = arith.constant 1 : index
    %c0_64 = arith.constant 0 : index
    %c0_65 = arith.constant 0 : index
    %94 = vector.load %arg8[%c1_63, %c0_64, %c0_65] : memref<8x16x128xbf16, #tpu.memory_space<vmem>>, vector<1x16x128xbf16>
    %95 = vector.shape_cast %94 : vector<1x16x128xbf16> to vector<16x128xbf16>
    %cst_66 = arith.constant dense<0.000000e+00> : vector<8x128xf32>
    %96 = tpu.matmul %93, %95, %cst_66 {dimension_numbers = #tpu.dot_dimension_numbers<[1], [0], [0], [1], [0, 0, 1, 1], [], []>} : vector<8x16xbf16>, vector<16x128xbf16>, vector<8x128xf32> -> vector<8x128xf32>
    %97 = arith.addf %53, %96 : vector<8x128xf32>
    %c2 = arith.constant 2 : index
    %c0_67 = arith.constant 0 : index
    %c0_68 = arith.constant 0 : index
    %98 = vector.load %arg2[%c2, %c0_67, %c0_68] : memref<8x128x16xbf16, #tpu.memory_space<vmem>>, vector<1x128x16xbf16>
    %99 = vector.shape_cast %98 : vector<1x128x16xbf16> to vector<128x16xbf16>
    %cst_69 = arith.constant dense<0.000000e+00> : vector<8x16xf32>
    %100 = tpu.matmul %2, %99, %cst_69 {dimension_numbers = #tpu.dot_dimension_numbers<[1], [0], [0], [1], [0, 0, 1, 1], [], []>} : vector<8x128xbf16>, vector<128x16xbf16>, vector<8x16xf32> -> vector<8x16xf32>
    %c2_70 = arith.constant 2 : index
    %c0_71 = arith.constant 0 : index
    %c0_72 = arith.constant 0 : index
    %101 = vector.load %arg5[%c2_70, %c0_71, %c0_72] : memref<8x1x16xf32, #tpu.memory_space<vmem>>, vector<1x1x16xf32>
    %102 = vector.shape_cast %101 : vector<1x1x16xf32> to vector<1x16xf32>
    %103 = vector.broadcast %102 : vector<1x16xf32> to vector<8x16xf32>
    %104 = arith.addf %100, %103 : vector<8x16xf32>
    %cst_73 = arith.constant 2.500000e-01 : f32
    %105 = vector.broadcast %cst_73 : f32 to vector<8x16xf32>
    %106 = arith.mulf %104, %105 : vector<8x16xf32>
    %c2_74 = arith.constant 2 : index
    %c0_75 = arith.constant 0 : index
    %c0_76 = arith.constant 0 : index
    %107 = vector.load %arg3[%c2_74, %c0_75, %c0_76] : memref<8x128x16xbf16, #tpu.memory_space<vmem>>, vector<1x128x16xbf16>
    %108 = vector.shape_cast %107 : vector<1x128x16xbf16> to vector<128x16xbf16>
    %cst_77 = arith.constant dense<0.000000e+00> : vector<8x16xf32>
    %109 = tpu.matmul %2, %108, %cst_77 {dimension_numbers = #tpu.dot_dimension_numbers<[1], [0], [0], [1], [0, 0, 1, 1], [], []>} : vector<8x128xbf16>, vector<128x16xbf16>, vector<8x16xf32> -> vector<8x16xf32>
    %c2_78 = arith.constant 2 : index
    %c0_79 = arith.constant 0 : index
    %c0_80 = arith.constant 0 : index
    %110 = vector.load %arg6[%c2_78, %c0_79, %c0_80] : memref<8x1x16xf32, #tpu.memory_space<vmem>>, vector<1x1x16xf32>
    %111 = vector.shape_cast %110 : vector<1x1x16xf32> to vector<1x16xf32>
    %112 = vector.broadcast %111 : vector<1x16xf32> to vector<8x16xf32>
    %113 = arith.addf %109, %112 : vector<8x16xf32>
    %c2_81 = arith.constant 2 : index
    %c0_82 = arith.constant 0 : index
    %c0_83 = arith.constant 0 : index
    %114 = vector.load %arg4[%c2_81, %c0_82, %c0_83] : memref<8x128x16xbf16, #tpu.memory_space<vmem>>, vector<1x128x16xbf16>
    %115 = vector.shape_cast %114 : vector<1x128x16xbf16> to vector<128x16xbf16>
    %cst_84 = arith.constant dense<0.000000e+00> : vector<8x16xf32>
    %116 = tpu.matmul %2, %115, %cst_84 {dimension_numbers = #tpu.dot_dimension_numbers<[1], [0], [0], [1], [0, 0, 1, 1], [], []>} : vector<8x128xbf16>, vector<128x16xbf16>, vector<8x16xf32> -> vector<8x16xf32>
    %c2_85 = arith.constant 2 : index
    %c0_86 = arith.constant 0 : index
    %c0_87 = arith.constant 0 : index
    %117 = vector.load %arg7[%c2_85, %c0_86, %c0_87] : memref<8x1x16xf32, #tpu.memory_space<vmem>>, vector<1x1x16xf32>
    %118 = vector.shape_cast %117 : vector<1x1x16xf32> to vector<1x16xf32>
    %119 = vector.broadcast %118 : vector<1x16xf32> to vector<8x16xf32>
    %120 = arith.addf %116, %119 : vector<8x16xf32>
    %121 = tpu.transpose %113, [1, 0] : vector<8x16xf32> -> vector<16x8xf32>
    %cst_88 = arith.constant dense<0.000000e+00> : vector<8x8xf32>
    %122 = tpu.matmul %106, %121, %cst_88 {dimension_numbers = #tpu.dot_dimension_numbers<[1], [0], [0], [1], [0, 0, 1, 1], [], []>} : vector<8x16xf32>, vector<16x8xf32>, vector<8x8xf32> -> vector<8x8xf32>
    %123 = vector.broadcast %4 : vector<1x8xf32> to vector<8x8xf32>
    %124 = arith.addf %122, %123 : vector<8x8xf32>
    %cst_89 = arith.constant dense<0xFF800000> : vector<8xf32>
    %125 = vector.multi_reduction <maximumf>, %124, %cst_89 [1] : vector<8x8xf32> to vector<8xf32>
    %126 = vector.shape_cast %125 : vector<8xf32> to vector<8x1xf32>
    %127 = vector.broadcast %126 : vector<8x1xf32> to vector<8x8xf32>
    %128 = arith.subf %124, %127 : vector<8x8xf32>
    %129 = math.exp %128 : vector<8x8xf32>
    %cst_90 = arith.constant dense<0.000000e+00> : vector<8xf32>
    %130 = vector.multi_reduction <add>, %129, %cst_90 [1] : vector<8x8xf32> to vector<8xf32>
    %131 = vector.shape_cast %130 : vector<8xf32> to vector<8x1xf32>
    %132 = tpu.reciprocal %131 {approx = true} : vector<8x1xf32> -> vector<8x1xf32>
    %133 = vector.broadcast %132 : vector<8x1xf32> to vector<8x8xf32>
    %134 = arith.mulf %129, %133 : vector<8x8xf32>
    %135 = arith.addf %91, %134 : vector<8x8xf32>
    %cst_91 = arith.constant dense<0.000000e+00> : vector<8x16xf32>
    %136 = tpu.matmul %134, %120, %cst_91 {dimension_numbers = #tpu.dot_dimension_numbers<[1], [0], [0], [1], [0, 0, 1, 1], [], []>} : vector<8x8xf32>, vector<8x16xf32>, vector<8x16xf32> -> vector<8x16xf32>
    %137 = arith.truncf %136 : vector<8x16xf32> to vector<8x16xbf16>
    %c2_92 = arith.constant 2 : index
    %c0_93 = arith.constant 0 : index
    %c0_94 = arith.constant 0 : index
    %138 = vector.load %arg8[%c2_92, %c0_93, %c0_94] : memref<8x16x128xbf16, #tpu.memory_space<vmem>>, vector<1x16x128xbf16>
    %139 = vector.shape_cast %138 : vector<1x16x128xbf16> to vector<16x128xbf16>
    %cst_95 = arith.constant dense<0.000000e+00> : vector<8x128xf32>
    %140 = tpu.matmul %137, %139, %cst_95 {dimension_numbers = #tpu.dot_dimension_numbers<[1], [0], [0], [1], [0, 0, 1, 1], [], []>} : vector<8x16xbf16>, vector<16x128xbf16>, vector<8x128xf32> -> vector<8x128xf32>
    %141 = arith.addf %97, %140 : vector<8x128xf32>
    %c3 = arith.constant 3 : index
    %c0_96 = arith.constant 0 : index
    %c0_97 = arith.constant 0 : index
    %142 = vector.load %arg2[%c3, %c0_96, %c0_97] : memref<8x128x16xbf16, #tpu.memory_space<vmem>>, vector<1x128x16xbf16>
    %143 = vector.shape_cast %142 : vector<1x128x16xbf16> to vector<128x16xbf16>
    %cst_98 = arith.constant dense<0.000000e+00> : vector<8x16xf32>
    %144 = tpu.matmul %2, %143, %cst_98 {dimension_numbers = #tpu.dot_dimension_numbers<[1], [0], [0], [1], [0, 0, 1, 1], [], []>} : vector<8x128xbf16>, vector<128x16xbf16>, vector<8x16xf32> -> vector<8x16xf32>
    %c3_99 = arith.constant 3 : index
    %c0_100 = arith.constant 0 : index
    %c0_101 = arith.constant 0 : index
    %145 = vector.load %arg5[%c3_99, %c0_100, %c0_101] : memref<8x1x16xf32, #tpu.memory_space<vmem>>, vector<1x1x16xf32>
    %146 = vector.shape_cast %145 : vector<1x1x16xf32> to vector<1x16xf32>
    %147 = vector.broadcast %146 : vector<1x16xf32> to vector<8x16xf32>
    %148 = arith.addf %144, %147 : vector<8x16xf32>
    %cst_102 = arith.constant 2.500000e-01 : f32
    %149 = vector.broadcast %cst_102 : f32 to vector<8x16xf32>
    %150 = arith.mulf %148, %149 : vector<8x16xf32>
    %c3_103 = arith.constant 3 : index
    %c0_104 = arith.constant 0 : index
    %c0_105 = arith.constant 0 : index
    %151 = vector.load %arg3[%c3_103, %c0_104, %c0_105] : memref<8x128x16xbf16, #tpu.memory_space<vmem>>, vector<1x128x16xbf16>
    %152 = vector.shape_cast %151 : vector<1x128x16xbf16> to vector<128x16xbf16>
    %cst_106 = arith.constant dense<0.000000e+00> : vector<8x16xf32>
    %153 = tpu.matmul %2, %152, %cst_106 {dimension_numbers = #tpu.dot_dimension_numbers<[1], [0], [0], [1], [0, 0, 1, 1], [], []>} : vector<8x128xbf16>, vector<128x16xbf16>, vector<8x16xf32> -> vector<8x16xf32>
    %c3_107 = arith.constant 3 : index
    %c0_108 = arith.constant 0 : index
    %c0_109 = arith.constant 0 : index
    %154 = vector.load %arg6[%c3_107, %c0_108, %c0_109] : memref<8x1x16xf32, #tpu.memory_space<vmem>>, vector<1x1x16xf32>
    %155 = vector.shape_cast %154 : vector<1x1x16xf32> to vector<1x16xf32>
    %156 = vector.broadcast %155 : vector<1x16xf32> to vector<8x16xf32>
    %157 = arith.addf %153, %156 : vector<8x16xf32>
    %c3_110 = arith.constant 3 : index
    %c0_111 = arith.constant 0 : index
    %c0_112 = arith.constant 0 : index
    %158 = vector.load %arg4[%c3_110, %c0_111, %c0_112] : memref<8x128x16xbf16, #tpu.memory_space<vmem>>, vector<1x128x16xbf16>
    %159 = vector.shape_cast %158 : vector<1x128x16xbf16> to vector<128x16xbf16>
    %cst_113 = arith.constant dense<0.000000e+00> : vector<8x16xf32>
    %160 = tpu.matmul %2, %159, %cst_113 {dimension_numbers = #tpu.dot_dimension_numbers<[1], [0], [0], [1], [0, 0, 1, 1], [], []>} : vector<8x128xbf16>, vector<128x16xbf16>, vector<8x16xf32> -> vector<8x16xf32>
    %c3_114 = arith.constant 3 : index
    %c0_115 = arith.constant 0 : index
    %c0_116 = arith.constant 0 : index
    %161 = vector.load %arg7[%c3_114, %c0_115, %c0_116] : memref<8x1x16xf32, #tpu.memory_space<vmem>>, vector<1x1x16xf32>
    %162 = vector.shape_cast %161 : vector<1x1x16xf32> to vector<1x16xf32>
    %163 = vector.broadcast %162 : vector<1x16xf32> to vector<8x16xf32>
    %164 = arith.addf %160, %163 : vector<8x16xf32>
    %165 = tpu.transpose %157, [1, 0] : vector<8x16xf32> -> vector<16x8xf32>
    %cst_117 = arith.constant dense<0.000000e+00> : vector<8x8xf32>
    %166 = tpu.matmul %150, %165, %cst_117 {dimension_numbers = #tpu.dot_dimension_numbers<[1], [0], [0], [1], [0, 0, 1, 1], [], []>} : vector<8x16xf32>, vector<16x8xf32>, vector<8x8xf32> -> vector<8x8xf32>
    %167 = vector.broadcast %4 : vector<1x8xf32> to vector<8x8xf32>
    %168 = arith.addf %166, %167 : vector<8x8xf32>
    %cst_118 = arith.constant dense<0xFF800000> : vector<8xf32>
    %169 = vector.multi_reduction <maximumf>, %168, %cst_118 [1] : vector<8x8xf32> to vector<8xf32>
    %170 = vector.shape_cast %169 : vector<8xf32> to vector<8x1xf32>
    %171 = vector.broadcast %170 : vector<8x1xf32> to vector<8x8xf32>
    %172 = arith.subf %168, %171 : vector<8x8xf32>
    %173 = math.exp %172 : vector<8x8xf32>
    %cst_119 = arith.constant dense<0.000000e+00> : vector<8xf32>
    %174 = vector.multi_reduction <add>, %173, %cst_119 [1] : vector<8x8xf32> to vector<8xf32>
    %175 = vector.shape_cast %174 : vector<8xf32> to vector<8x1xf32>
    %176 = tpu.reciprocal %175 {approx = true} : vector<8x1xf32> -> vector<8x1xf32>
    %177 = vector.broadcast %176 : vector<8x1xf32> to vector<8x8xf32>
    %178 = arith.mulf %173, %177 : vector<8x8xf32>
    %179 = arith.addf %135, %178 : vector<8x8xf32>
    %cst_120 = arith.constant dense<0.000000e+00> : vector<8x16xf32>
    %180 = tpu.matmul %178, %164, %cst_120 {dimension_numbers = #tpu.dot_dimension_numbers<[1], [0], [0], [1], [0, 0, 1, 1], [], []>} : vector<8x8xf32>, vector<8x16xf32>, vector<8x16xf32> -> vector<8x16xf32>
    %181 = arith.truncf %180 : vector<8x16xf32> to vector<8x16xbf16>
    %c3_121 = arith.constant 3 : index
    %c0_122 = arith.constant 0 : index
    %c0_123 = arith.constant 0 : index
    %182 = vector.load %arg8[%c3_121, %c0_122, %c0_123] : memref<8x16x128xbf16, #tpu.memory_space<vmem>>, vector<1x16x128xbf16>
    %183 = vector.shape_cast %182 : vector<1x16x128xbf16> to vector<16x128xbf16>
    %cst_124 = arith.constant dense<0.000000e+00> : vector<8x128xf32>
    %184 = tpu.matmul %181, %183, %cst_124 {dimension_numbers = #tpu.dot_dimension_numbers<[1], [0], [0], [1], [0, 0, 1, 1], [], []>} : vector<8x16xbf16>, vector<16x128xbf16>, vector<8x128xf32> -> vector<8x128xf32>
    %185 = arith.addf %141, %184 : vector<8x128xf32>
    %c4 = arith.constant 4 : index
    %c0_125 = arith.constant 0 : index
    %c0_126 = arith.constant 0 : index
    %186 = vector.load %arg2[%c4, %c0_125, %c0_126] : memref<8x128x16xbf16, #tpu.memory_space<vmem>>, vector<1x128x16xbf16>
    %187 = vector.shape_cast %186 : vector<1x128x16xbf16> to vector<128x16xbf16>
    %cst_127 = arith.constant dense<0.000000e+00> : vector<8x16xf32>
    %188 = tpu.matmul %2, %187, %cst_127 {dimension_numbers = #tpu.dot_dimension_numbers<[1], [0], [0], [1], [0, 0, 1, 1], [], []>} : vector<8x128xbf16>, vector<128x16xbf16>, vector<8x16xf32> -> vector<8x16xf32>
    %c4_128 = arith.constant 4 : index
    %c0_129 = arith.constant 0 : index
    %c0_130 = arith.constant 0 : index
    %189 = vector.load %arg5[%c4_128, %c0_129, %c0_130] : memref<8x1x16xf32, #tpu.memory_space<vmem>>, vector<1x1x16xf32>
    %190 = vector.shape_cast %189 : vector<1x1x16xf32> to vector<1x16xf32>
    %191 = vector.broadcast %190 : vector<1x16xf32> to vector<8x16xf32>
    %192 = arith.addf %188, %191 : vector<8x16xf32>
    %cst_131 = arith.constant 2.500000e-01 : f32
    %193 = vector.broadcast %cst_131 : f32 to vector<8x16xf32>
    %194 = arith.mulf %192, %193 : vector<8x16xf32>
    %c4_132 = arith.constant 4 : index
    %c0_133 = arith.constant 0 : index
    %c0_134 = arith.constant 0 : index
    %195 = vector.load %arg3[%c4_132, %c0_133, %c0_134] : memref<8x128x16xbf16, #tpu.memory_space<vmem>>, vector<1x128x16xbf16>
    %196 = vector.shape_cast %195 : vector<1x128x16xbf16> to vector<128x16xbf16>
    %cst_135 = arith.constant dense<0.000000e+00> : vector<8x16xf32>
    %197 = tpu.matmul %2, %196, %cst_135 {dimension_numbers = #tpu.dot_dimension_numbers<[1], [0], [0], [1], [0, 0, 1, 1], [], []>} : vector<8x128xbf16>, vector<128x16xbf16>, vector<8x16xf32> -> vector<8x16xf32>
    %c4_136 = arith.constant 4 : index
    %c0_137 = arith.constant 0 : index
    %c0_138 = arith.constant 0 : index
    %198 = vector.load %arg6[%c4_136, %c0_137, %c0_138] : memref<8x1x16xf32, #tpu.memory_space<vmem>>, vector<1x1x16xf32>
    %199 = vector.shape_cast %198 : vector<1x1x16xf32> to vector<1x16xf32>
    %200 = vector.broadcast %199 : vector<1x16xf32> to vector<8x16xf32>
    %201 = arith.addf %197, %200 : vector<8x16xf32>
    %c4_139 = arith.constant 4 : index
    %c0_140 = arith.constant 0 : index
    %c0_141 = arith.constant 0 : index
    %202 = vector.load %arg4[%c4_139, %c0_140, %c0_141] : memref<8x128x16xbf16, #tpu.memory_space<vmem>>, vector<1x128x16xbf16>
    %203 = vector.shape_cast %202 : vector<1x128x16xbf16> to vector<128x16xbf16>
    %cst_142 = arith.constant dense<0.000000e+00> : vector<8x16xf32>
    %204 = tpu.matmul %2, %203, %cst_142 {dimension_numbers = #tpu.dot_dimension_numbers<[1], [0], [0], [1], [0, 0, 1, 1], [], []>} : vector<8x128xbf16>, vector<128x16xbf16>, vector<8x16xf32> -> vector<8x16xf32>
    %c4_143 = arith.constant 4 : index
    %c0_144 = arith.constant 0 : index
    %c0_145 = arith.constant 0 : index
    %205 = vector.load %arg7[%c4_143, %c0_144, %c0_145] : memref<8x1x16xf32, #tpu.memory_space<vmem>>, vector<1x1x16xf32>
    %206 = vector.shape_cast %205 : vector<1x1x16xf32> to vector<1x16xf32>
    %207 = vector.broadcast %206 : vector<1x16xf32> to vector<8x16xf32>
    %208 = arith.addf %204, %207 : vector<8x16xf32>
    %209 = tpu.transpose %201, [1, 0] : vector<8x16xf32> -> vector<16x8xf32>
    %cst_146 = arith.constant dense<0.000000e+00> : vector<8x8xf32>
    %210 = tpu.matmul %194, %209, %cst_146 {dimension_numbers = #tpu.dot_dimension_numbers<[1], [0], [0], [1], [0, 0, 1, 1], [], []>} : vector<8x16xf32>, vector<16x8xf32>, vector<8x8xf32> -> vector<8x8xf32>
    %211 = vector.broadcast %4 : vector<1x8xf32> to vector<8x8xf32>
    %212 = arith.addf %210, %211 : vector<8x8xf32>
    %cst_147 = arith.constant dense<0xFF800000> : vector<8xf32>
    %213 = vector.multi_reduction <maximumf>, %212, %cst_147 [1] : vector<8x8xf32> to vector<8xf32>
    %214 = vector.shape_cast %213 : vector<8xf32> to vector<8x1xf32>
    %215 = vector.broadcast %214 : vector<8x1xf32> to vector<8x8xf32>
    %216 = arith.subf %212, %215 : vector<8x8xf32>
    %217 = math.exp %216 : vector<8x8xf32>
    %cst_148 = arith.constant dense<0.000000e+00> : vector<8xf32>
    %218 = vector.multi_reduction <add>, %217, %cst_148 [1] : vector<8x8xf32> to vector<8xf32>
    %219 = vector.shape_cast %218 : vector<8xf32> to vector<8x1xf32>
    %220 = tpu.reciprocal %219 {approx = true} : vector<8x1xf32> -> vector<8x1xf32>
    %221 = vector.broadcast %220 : vector<8x1xf32> to vector<8x8xf32>
    %222 = arith.mulf %217, %221 : vector<8x8xf32>
    %223 = arith.addf %179, %222 : vector<8x8xf32>
    %cst_149 = arith.constant dense<0.000000e+00> : vector<8x16xf32>
    %224 = tpu.matmul %222, %208, %cst_149 {dimension_numbers = #tpu.dot_dimension_numbers<[1], [0], [0], [1], [0, 0, 1, 1], [], []>} : vector<8x8xf32>, vector<8x16xf32>, vector<8x16xf32> -> vector<8x16xf32>
    %225 = arith.truncf %224 : vector<8x16xf32> to vector<8x16xbf16>
    %c4_150 = arith.constant 4 : index
    %c0_151 = arith.constant 0 : index
    %c0_152 = arith.constant 0 : index
    %226 = vector.load %arg8[%c4_150, %c0_151, %c0_152] : memref<8x16x128xbf16, #tpu.memory_space<vmem>>, vector<1x16x128xbf16>
    %227 = vector.shape_cast %226 : vector<1x16x128xbf16> to vector<16x128xbf16>
    %cst_153 = arith.constant dense<0.000000e+00> : vector<8x128xf32>
    %228 = tpu.matmul %225, %227, %cst_153 {dimension_numbers = #tpu.dot_dimension_numbers<[1], [0], [0], [1], [0, 0, 1, 1], [], []>} : vector<8x16xbf16>, vector<16x128xbf16>, vector<8x128xf32> -> vector<8x128xf32>
    %229 = arith.addf %185, %228 : vector<8x128xf32>
    %c5 = arith.constant 5 : index
    %c0_154 = arith.constant 0 : index
    %c0_155 = arith.constant 0 : index
    %230 = vector.load %arg2[%c5, %c0_154, %c0_155] : memref<8x128x16xbf16, #tpu.memory_space<vmem>>, vector<1x128x16xbf16>
    %231 = vector.shape_cast %230 : vector<1x128x16xbf16> to vector<128x16xbf16>
    %cst_156 = arith.constant dense<0.000000e+00> : vector<8x16xf32>
    %232 = tpu.matmul %2, %231, %cst_156 {dimension_numbers = #tpu.dot_dimension_numbers<[1], [0], [0], [1], [0, 0, 1, 1], [], []>} : vector<8x128xbf16>, vector<128x16xbf16>, vector<8x16xf32> -> vector<8x16xf32>
    %c5_157 = arith.constant 5 : index
    %c0_158 = arith.constant 0 : index
    %c0_159 = arith.constant 0 : index
    %233 = vector.load %arg5[%c5_157, %c0_158, %c0_159] : memref<8x1x16xf32, #tpu.memory_space<vmem>>, vector<1x1x16xf32>
    %234 = vector.shape_cast %233 : vector<1x1x16xf32> to vector<1x16xf32>
    %235 = vector.broadcast %234 : vector<1x16xf32> to vector<8x16xf32>
    %236 = arith.addf %232, %235 : vector<8x16xf32>
    %cst_160 = arith.constant 2.500000e-01 : f32
    %237 = vector.broadcast %cst_160 : f32 to vector<8x16xf32>
    %238 = arith.mulf %236, %237 : vector<8x16xf32>
    %c5_161 = arith.constant 5 : index
    %c0_162 = arith.constant 0 : index
    %c0_163 = arith.constant 0 : index
    %239 = vector.load %arg3[%c5_161, %c0_162, %c0_163] : memref<8x128x16xbf16, #tpu.memory_space<vmem>>, vector<1x128x16xbf16>
    %240 = vector.shape_cast %239 : vector<1x128x16xbf16> to vector<128x16xbf16>
    %cst_164 = arith.constant dense<0.000000e+00> : vector<8x16xf32>
    %241 = tpu.matmul %2, %240, %cst_164 {dimension_numbers = #tpu.dot_dimension_numbers<[1], [0], [0], [1], [0, 0, 1, 1], [], []>} : vector<8x128xbf16>, vector<128x16xbf16>, vector<8x16xf32> -> vector<8x16xf32>
    %c5_165 = arith.constant 5 : index
    %c0_166 = arith.constant 0 : index
    %c0_167 = arith.constant 0 : index
    %242 = vector.load %arg6[%c5_165, %c0_166, %c0_167] : memref<8x1x16xf32, #tpu.memory_space<vmem>>, vector<1x1x16xf32>
    %243 = vector.shape_cast %242 : vector<1x1x16xf32> to vector<1x16xf32>
    %244 = vector.broadcast %243 : vector<1x16xf32> to vector<8x16xf32>
    %245 = arith.addf %241, %244 : vector<8x16xf32>
    %c5_168 = arith.constant 5 : index
    %c0_169 = arith.constant 0 : index
    %c0_170 = arith.constant 0 : index
    %246 = vector.load %arg4[%c5_168, %c0_169, %c0_170] : memref<8x128x16xbf16, #tpu.memory_space<vmem>>, vector<1x128x16xbf16>
    %247 = vector.shape_cast %246 : vector<1x128x16xbf16> to vector<128x16xbf16>
    %cst_171 = arith.constant dense<0.000000e+00> : vector<8x16xf32>
    %248 = tpu.matmul %2, %247, %cst_171 {dimension_numbers = #tpu.dot_dimension_numbers<[1], [0], [0], [1], [0, 0, 1, 1], [], []>} : vector<8x128xbf16>, vector<128x16xbf16>, vector<8x16xf32> -> vector<8x16xf32>
    %c5_172 = arith.constant 5 : index
    %c0_173 = arith.constant 0 : index
    %c0_174 = arith.constant 0 : index
    %249 = vector.load %arg7[%c5_172, %c0_173, %c0_174] : memref<8x1x16xf32, #tpu.memory_space<vmem>>, vector<1x1x16xf32>
    %250 = vector.shape_cast %249 : vector<1x1x16xf32> to vector<1x16xf32>
    %251 = vector.broadcast %250 : vector<1x16xf32> to vector<8x16xf32>
    %252 = arith.addf %248, %251 : vector<8x16xf32>
    %253 = tpu.transpose %245, [1, 0] : vector<8x16xf32> -> vector<16x8xf32>
    %cst_175 = arith.constant dense<0.000000e+00> : vector<8x8xf32>
    %254 = tpu.matmul %238, %253, %cst_175 {dimension_numbers = #tpu.dot_dimension_numbers<[1], [0], [0], [1], [0, 0, 1, 1], [], []>} : vector<8x16xf32>, vector<16x8xf32>, vector<8x8xf32> -> vector<8x8xf32>
    %255 = vector.broadcast %4 : vector<1x8xf32> to vector<8x8xf32>
    %256 = arith.addf %254, %255 : vector<8x8xf32>
    %cst_176 = arith.constant dense<0xFF800000> : vector<8xf32>
    %257 = vector.multi_reduction <maximumf>, %256, %cst_176 [1] : vector<8x8xf32> to vector<8xf32>
    %258 = vector.shape_cast %257 : vector<8xf32> to vector<8x1xf32>
    %259 = vector.broadcast %258 : vector<8x1xf32> to vector<8x8xf32>
    %260 = arith.subf %256, %259 : vector<8x8xf32>
    %261 = math.exp %260 : vector<8x8xf32>
    %cst_177 = arith.constant dense<0.000000e+00> : vector<8xf32>
    %262 = vector.multi_reduction <add>, %261, %cst_177 [1] : vector<8x8xf32> to vector<8xf32>
    %263 = vector.shape_cast %262 : vector<8xf32> to vector<8x1xf32>
    %264 = tpu.reciprocal %263 {approx = true} : vector<8x1xf32> -> vector<8x1xf32>
    %265 = vector.broadcast %264 : vector<8x1xf32> to vector<8x8xf32>
    %266 = arith.mulf %261, %265 : vector<8x8xf32>
    %267 = arith.addf %223, %266 : vector<8x8xf32>
    %cst_178 = arith.constant dense<0.000000e+00> : vector<8x16xf32>
    %268 = tpu.matmul %266, %252, %cst_178 {dimension_numbers = #tpu.dot_dimension_numbers<[1], [0], [0], [1], [0, 0, 1, 1], [], []>} : vector<8x8xf32>, vector<8x16xf32>, vector<8x16xf32> -> vector<8x16xf32>
    %269 = arith.truncf %268 : vector<8x16xf32> to vector<8x16xbf16>
    %c5_179 = arith.constant 5 : index
    %c0_180 = arith.constant 0 : index
    %c0_181 = arith.constant 0 : index
    %270 = vector.load %arg8[%c5_179, %c0_180, %c0_181] : memref<8x16x128xbf16, #tpu.memory_space<vmem>>, vector<1x16x128xbf16>
    %271 = vector.shape_cast %270 : vector<1x16x128xbf16> to vector<16x128xbf16>
    %cst_182 = arith.constant dense<0.000000e+00> : vector<8x128xf32>
    %272 = tpu.matmul %269, %271, %cst_182 {dimension_numbers = #tpu.dot_dimension_numbers<[1], [0], [0], [1], [0, 0, 1, 1], [], []>} : vector<8x16xbf16>, vector<16x128xbf16>, vector<8x128xf32> -> vector<8x128xf32>
    %273 = arith.addf %229, %272 : vector<8x128xf32>
    %c6 = arith.constant 6 : index
    %c0_183 = arith.constant 0 : index
    %c0_184 = arith.constant 0 : index
    %274 = vector.load %arg2[%c6, %c0_183, %c0_184] : memref<8x128x16xbf16, #tpu.memory_space<vmem>>, vector<1x128x16xbf16>
    %275 = vector.shape_cast %274 : vector<1x128x16xbf16> to vector<128x16xbf16>
    %cst_185 = arith.constant dense<0.000000e+00> : vector<8x16xf32>
    %276 = tpu.matmul %2, %275, %cst_185 {dimension_numbers = #tpu.dot_dimension_numbers<[1], [0], [0], [1], [0, 0, 1, 1], [], []>} : vector<8x128xbf16>, vector<128x16xbf16>, vector<8x16xf32> -> vector<8x16xf32>
    %c6_186 = arith.constant 6 : index
    %c0_187 = arith.constant 0 : index
    %c0_188 = arith.constant 0 : index
    %277 = vector.load %arg5[%c6_186, %c0_187, %c0_188] : memref<8x1x16xf32, #tpu.memory_space<vmem>>, vector<1x1x16xf32>
    %278 = vector.shape_cast %277 : vector<1x1x16xf32> to vector<1x16xf32>
    %279 = vector.broadcast %278 : vector<1x16xf32> to vector<8x16xf32>
    %280 = arith.addf %276, %279 : vector<8x16xf32>
    %cst_189 = arith.constant 2.500000e-01 : f32
    %281 = vector.broadcast %cst_189 : f32 to vector<8x16xf32>
    %282 = arith.mulf %280, %281 : vector<8x16xf32>
    %c6_190 = arith.constant 6 : index
    %c0_191 = arith.constant 0 : index
    %c0_192 = arith.constant 0 : index
    %283 = vector.load %arg3[%c6_190, %c0_191, %c0_192] : memref<8x128x16xbf16, #tpu.memory_space<vmem>>, vector<1x128x16xbf16>
    %284 = vector.shape_cast %283 : vector<1x128x16xbf16> to vector<128x16xbf16>
    %cst_193 = arith.constant dense<0.000000e+00> : vector<8x16xf32>
    %285 = tpu.matmul %2, %284, %cst_193 {dimension_numbers = #tpu.dot_dimension_numbers<[1], [0], [0], [1], [0, 0, 1, 1], [], []>} : vector<8x128xbf16>, vector<128x16xbf16>, vector<8x16xf32> -> vector<8x16xf32>
    %c6_194 = arith.constant 6 : index
    %c0_195 = arith.constant 0 : index
    %c0_196 = arith.constant 0 : index
    %286 = vector.load %arg6[%c6_194, %c0_195, %c0_196] : memref<8x1x16xf32, #tpu.memory_space<vmem>>, vector<1x1x16xf32>
    %287 = vector.shape_cast %286 : vector<1x1x16xf32> to vector<1x16xf32>
    %288 = vector.broadcast %287 : vector<1x16xf32> to vector<8x16xf32>
    %289 = arith.addf %285, %288 : vector<8x16xf32>
    %c6_197 = arith.constant 6 : index
    %c0_198 = arith.constant 0 : index
    %c0_199 = arith.constant 0 : index
    %290 = vector.load %arg4[%c6_197, %c0_198, %c0_199] : memref<8x128x16xbf16, #tpu.memory_space<vmem>>, vector<1x128x16xbf16>
    %291 = vector.shape_cast %290 : vector<1x128x16xbf16> to vector<128x16xbf16>
    %cst_200 = arith.constant dense<0.000000e+00> : vector<8x16xf32>
    %292 = tpu.matmul %2, %291, %cst_200 {dimension_numbers = #tpu.dot_dimension_numbers<[1], [0], [0], [1], [0, 0, 1, 1], [], []>} : vector<8x128xbf16>, vector<128x16xbf16>, vector<8x16xf32> -> vector<8x16xf32>
    %c6_201 = arith.constant 6 : index
    %c0_202 = arith.constant 0 : index
    %c0_203 = arith.constant 0 : index
    %293 = vector.load %arg7[%c6_201, %c0_202, %c0_203] : memref<8x1x16xf32, #tpu.memory_space<vmem>>, vector<1x1x16xf32>
    %294 = vector.shape_cast %293 : vector<1x1x16xf32> to vector<1x16xf32>
    %295 = vector.broadcast %294 : vector<1x16xf32> to vector<8x16xf32>
    %296 = arith.addf %292, %295 : vector<8x16xf32>
    %297 = tpu.transpose %289, [1, 0] : vector<8x16xf32> -> vector<16x8xf32>
    %cst_204 = arith.constant dense<0.000000e+00> : vector<8x8xf32>
    %298 = tpu.matmul %282, %297, %cst_204 {dimension_numbers = #tpu.dot_dimension_numbers<[1], [0], [0], [1], [0, 0, 1, 1], [], []>} : vector<8x16xf32>, vector<16x8xf32>, vector<8x8xf32> -> vector<8x8xf32>
    %299 = vector.broadcast %4 : vector<1x8xf32> to vector<8x8xf32>
    %300 = arith.addf %298, %299 : vector<8x8xf32>
    %cst_205 = arith.constant dense<0xFF800000> : vector<8xf32>
    %301 = vector.multi_reduction <maximumf>, %300, %cst_205 [1] : vector<8x8xf32> to vector<8xf32>
    %302 = vector.shape_cast %301 : vector<8xf32> to vector<8x1xf32>
    %303 = vector.broadcast %302 : vector<8x1xf32> to vector<8x8xf32>
    %304 = arith.subf %300, %303 : vector<8x8xf32>
    %305 = math.exp %304 : vector<8x8xf32>
    %cst_206 = arith.constant dense<0.000000e+00> : vector<8xf32>
    %306 = vector.multi_reduction <add>, %305, %cst_206 [1] : vector<8x8xf32> to vector<8xf32>
    %307 = vector.shape_cast %306 : vector<8xf32> to vector<8x1xf32>
    %308 = tpu.reciprocal %307 {approx = true} : vector<8x1xf32> -> vector<8x1xf32>
    %309 = vector.broadcast %308 : vector<8x1xf32> to vector<8x8xf32>
    %310 = arith.mulf %305, %309 : vector<8x8xf32>
    %311 = arith.addf %267, %310 : vector<8x8xf32>
    %cst_207 = arith.constant dense<0.000000e+00> : vector<8x16xf32>
    %312 = tpu.matmul %310, %296, %cst_207 {dimension_numbers = #tpu.dot_dimension_numbers<[1], [0], [0], [1], [0, 0, 1, 1], [], []>} : vector<8x8xf32>, vector<8x16xf32>, vector<8x16xf32> -> vector<8x16xf32>
    %313 = arith.truncf %312 : vector<8x16xf32> to vector<8x16xbf16>
    %c6_208 = arith.constant 6 : index
    %c0_209 = arith.constant 0 : index
    %c0_210 = arith.constant 0 : index
    %314 = vector.load %arg8[%c6_208, %c0_209, %c0_210] : memref<8x16x128xbf16, #tpu.memory_space<vmem>>, vector<1x16x128xbf16>
    %315 = vector.shape_cast %314 : vector<1x16x128xbf16> to vector<16x128xbf16>
    %cst_211 = arith.constant dense<0.000000e+00> : vector<8x128xf32>
    %316 = tpu.matmul %313, %315, %cst_211 {dimension_numbers = #tpu.dot_dimension_numbers<[1], [0], [0], [1], [0, 0, 1, 1], [], []>} : vector<8x16xbf16>, vector<16x128xbf16>, vector<8x128xf32> -> vector<8x128xf32>
    %317 = arith.addf %273, %316 : vector<8x128xf32>
    %c7 = arith.constant 7 : index
    %c0_212 = arith.constant 0 : index
    %c0_213 = arith.constant 0 : index
    %318 = vector.load %arg2[%c7, %c0_212, %c0_213] : memref<8x128x16xbf16, #tpu.memory_space<vmem>>, vector<1x128x16xbf16>
    %319 = vector.shape_cast %318 : vector<1x128x16xbf16> to vector<128x16xbf16>
    %cst_214 = arith.constant dense<0.000000e+00> : vector<8x16xf32>
    %320 = tpu.matmul %2, %319, %cst_214 {dimension_numbers = #tpu.dot_dimension_numbers<[1], [0], [0], [1], [0, 0, 1, 1], [], []>} : vector<8x128xbf16>, vector<128x16xbf16>, vector<8x16xf32> -> vector<8x16xf32>
    %c7_215 = arith.constant 7 : index
    %c0_216 = arith.constant 0 : index
    %c0_217 = arith.constant 0 : index
    %321 = vector.load %arg5[%c7_215, %c0_216, %c0_217] : memref<8x1x16xf32, #tpu.memory_space<vmem>>, vector<1x1x16xf32>
    %322 = vector.shape_cast %321 : vector<1x1x16xf32> to vector<1x16xf32>
    %323 = vector.broadcast %322 : vector<1x16xf32> to vector<8x16xf32>
    %324 = arith.addf %320, %323 : vector<8x16xf32>
    %cst_218 = arith.constant 2.500000e-01 : f32
    %325 = vector.broadcast %cst_218 : f32 to vector<8x16xf32>
    %326 = arith.mulf %324, %325 : vector<8x16xf32>
    %c7_219 = arith.constant 7 : index
    %c0_220 = arith.constant 0 : index
    %c0_221 = arith.constant 0 : index
    %327 = vector.load %arg3[%c7_219, %c0_220, %c0_221] : memref<8x128x16xbf16, #tpu.memory_space<vmem>>, vector<1x128x16xbf16>
    %328 = vector.shape_cast %327 : vector<1x128x16xbf16> to vector<128x16xbf16>
    %cst_222 = arith.constant dense<0.000000e+00> : vector<8x16xf32>
    %329 = tpu.matmul %2, %328, %cst_222 {dimension_numbers = #tpu.dot_dimension_numbers<[1], [0], [0], [1], [0, 0, 1, 1], [], []>} : vector<8x128xbf16>, vector<128x16xbf16>, vector<8x16xf32> -> vector<8x16xf32>
    %c7_223 = arith.constant 7 : index
    %c0_224 = arith.constant 0 : index
    %c0_225 = arith.constant 0 : index
    %330 = vector.load %arg6[%c7_223, %c0_224, %c0_225] : memref<8x1x16xf32, #tpu.memory_space<vmem>>, vector<1x1x16xf32>
    %331 = vector.shape_cast %330 : vector<1x1x16xf32> to vector<1x16xf32>
    %332 = vector.broadcast %331 : vector<1x16xf32> to vector<8x16xf32>
    %333 = arith.addf %329, %332 : vector<8x16xf32>
    %c7_226 = arith.constant 7 : index
    %c0_227 = arith.constant 0 : index
    %c0_228 = arith.constant 0 : index
    %334 = vector.load %arg4[%c7_226, %c0_227, %c0_228] : memref<8x128x16xbf16, #tpu.memory_space<vmem>>, vector<1x128x16xbf16>
    %335 = vector.shape_cast %334 : vector<1x128x16xbf16> to vector<128x16xbf16>
    %cst_229 = arith.constant dense<0.000000e+00> : vector<8x16xf32>
    %336 = tpu.matmul %2, %335, %cst_229 {dimension_numbers = #tpu.dot_dimension_numbers<[1], [0], [0], [1], [0, 0, 1, 1], [], []>} : vector<8x128xbf16>, vector<128x16xbf16>, vector<8x16xf32> -> vector<8x16xf32>
    %c7_230 = arith.constant 7 : index
    %c0_231 = arith.constant 0 : index
    %c0_232 = arith.constant 0 : index
    %337 = vector.load %arg7[%c7_230, %c0_231, %c0_232] : memref<8x1x16xf32, #tpu.memory_space<vmem>>, vector<1x1x16xf32>
    %338 = vector.shape_cast %337 : vector<1x1x16xf32> to vector<1x16xf32>
    %339 = vector.broadcast %338 : vector<1x16xf32> to vector<8x16xf32>
    %340 = arith.addf %336, %339 : vector<8x16xf32>
    %341 = tpu.transpose %333, [1, 0] : vector<8x16xf32> -> vector<16x8xf32>
    %cst_233 = arith.constant dense<0.000000e+00> : vector<8x8xf32>
    %342 = tpu.matmul %326, %341, %cst_233 {dimension_numbers = #tpu.dot_dimension_numbers<[1], [0], [0], [1], [0, 0, 1, 1], [], []>} : vector<8x16xf32>, vector<16x8xf32>, vector<8x8xf32> -> vector<8x8xf32>
    %343 = vector.broadcast %4 : vector<1x8xf32> to vector<8x8xf32>
    %344 = arith.addf %342, %343 : vector<8x8xf32>
    %cst_234 = arith.constant dense<0xFF800000> : vector<8xf32>
    %345 = vector.multi_reduction <maximumf>, %344, %cst_234 [1] : vector<8x8xf32> to vector<8xf32>
    %346 = vector.shape_cast %345 : vector<8xf32> to vector<8x1xf32>
    %347 = vector.broadcast %346 : vector<8x1xf32> to vector<8x8xf32>
    %348 = arith.subf %344, %347 : vector<8x8xf32>
    %349 = math.exp %348 : vector<8x8xf32>
    %cst_235 = arith.constant dense<0.000000e+00> : vector<8xf32>
    %350 = vector.multi_reduction <add>, %349, %cst_235 [1] : vector<8x8xf32> to vector<8xf32>
    %351 = vector.shape_cast %350 : vector<8xf32> to vector<8x1xf32>
    %352 = tpu.reciprocal %351 {approx = true} : vector<8x1xf32> -> vector<8x1xf32>
    %353 = vector.broadcast %352 : vector<8x1xf32> to vector<8x8xf32>
    %354 = arith.mulf %349, %353 : vector<8x8xf32>
    %355 = arith.addf %311, %354 : vector<8x8xf32>
    %cst_236 = arith.constant dense<0.000000e+00> : vector<8x16xf32>
    %356 = tpu.matmul %354, %340, %cst_236 {dimension_numbers = #tpu.dot_dimension_numbers<[1], [0], [0], [1], [0, 0, 1, 1], [], []>} : vector<8x8xf32>, vector<8x16xf32>, vector<8x16xf32> -> vector<8x16xf32>
    %357 = arith.truncf %356 : vector<8x16xf32> to vector<8x16xbf16>
    %c7_237 = arith.constant 7 : index
    %c0_238 = arith.constant 0 : index
    %c0_239 = arith.constant 0 : index
    %358 = vector.load %arg8[%c7_237, %c0_238, %c0_239] : memref<8x16x128xbf16, #tpu.memory_space<vmem>>, vector<1x16x128xbf16>
    %359 = vector.shape_cast %358 : vector<1x16x128xbf16> to vector<16x128xbf16>
    %cst_240 = arith.constant dense<0.000000e+00> : vector<8x128xf32>
    %360 = tpu.matmul %357, %359, %cst_240 {dimension_numbers = #tpu.dot_dimension_numbers<[1], [0], [0], [1], [0, 0, 1, 1], [], []>} : vector<8x16xbf16>, vector<16x128xbf16>, vector<8x128xf32> -> vector<8x128xf32>
    %361 = arith.addf %317, %360 : vector<8x128xf32>
    %c0_241 = arith.constant 0 : index
    %c0_242 = arith.constant 0 : index
    %c0_243 = arith.constant 0 : index
    %362 = vector.load %arg11[%c0_241, %c0_242, %c0_243] : memref<1x8x128xf32, #tpu.memory_space<vmem>>, vector<1x8x128xf32>
    %363 = vector.shape_cast %362 : vector<1x8x128xf32> to vector<8x128xf32>
    %364 = vector.shape_cast %361 : vector<8x128xf32> to vector<1x8x128xf32>
    tpu.vector_store %arg11[%c0_241, %c0_242, %c0_243], %364 {strides = array<i32>} : memref<1x8x128xf32, #tpu.memory_space<vmem>>, vector<1x8x128xf32>,
    %cst_244 = arith.constant 1.250000e-01 : f32
    %365 = vector.broadcast %cst_244 : f32 to vector<8x8xf32>
    %366 = arith.mulf %355, %365 : vector<8x8xf32>
    %c0_245 = arith.constant 0 : index
    %c0_246 = arith.constant 0 : index
    %c0_247 = arith.constant 0 : index
    %367 = vector.load %arg12[%c0_245, %c0_246, %c0_247] : memref<1x8x8xf32, #tpu.memory_space<vmem>>, vector<1x8x8xf32>
    %368 = vector.shape_cast %367 : vector<1x8x8xf32> to vector<8x8xf32>
    %369 = vector.shape_cast %366 : vector<8x8xf32> to vector<1x8x8xf32>
    tpu.vector_store %arg12[%c0_245, %c0_246, %c0_247], %369 {strides = array<i32>} : memref<1x8x8xf32, #tpu.memory_space<vmem>>, vector<1x8x8xf32>,
    return
  }
  func.func @transform_0(%arg0: i32) -> (i32, i32, i32) {
    %c0_i32 = arith.constant 0 : i32
    %c0_i32_0 = arith.constant 0 : i32
    %c0_i32_1 = arith.constant 0 : i32
    return %arg0, %c0_i32, %c0_i32_0 : i32, i32, i32
  }
  func.func @transform_1(%arg0: i32) -> (i32, i32, i32) {
    %c0_i32 = arith.constant 0 : i32
    %c0_i32_0 = arith.constant 0 : i32
    %c0_i32_1 = arith.constant 0 : i32
    %c0_i32_2 = arith.constant 0 : i32
    return %c0_i32, %c0_i32_0, %c0_i32_1 : i32, i32, i32
  }
  func.func @transform_2(%arg0: i32) -> (i32, i32, i32) {
    %c0_i32 = arith.constant 0 : i32
    %c0_i32_0 = arith.constant 0 : i32
    %c0_i32_1 = arith.constant 0 : i32
    %c0_i32_2 = arith.constant 0 : i32
    return %c0_i32, %c0_i32_0, %c0_i32_1 : i32, i32, i32
  }
  func.func @transform_3(%arg0: i32) -> (i32, i32, i32) {
    %c0_i32 = arith.constant 0 : i32
    %c0_i32_0 = arith.constant 0 : i32
    %c0_i32_1 = arith.constant 0 : i32
    %c0_i32_2 = arith.constant 0 : i32
    return %c0_i32, %c0_i32_0, %c0_i32_1 : i32, i32, i32
  }
  func.func @transform_4(%arg0: i32) -> (i32, i32, i32) {
    %c0_i32 = arith.constant 0 : i32
    %c0_i32_0 = arith.constant 0 : i32
    %c0_i32_1 = arith.constant 0 : i32
    %c0_i32_2 = arith.constant 0 : i32
    return %c0_i32, %c0_i32_0, %c0_i32_1 : i32, i32, i32
  }
  func.func @transform_5(%arg0: i32) -> (i32, i32, i32) {
    %c0_i32 = arith.constant 0 : i32
    %c0_i32_0 = arith.constant 0 : i32
    %c0_i32_1 = arith.constant 0 : i32
    %c0_i32_2 = arith.constant 0 : i32
    return %c0_i32, %c0_i32_0, %c0_i32_1 : i32, i32, i32
  }
  func.func @transform_6(%arg0: i32) -> (i32, i32, i32) {
    %c0_i32 = arith.constant 0 : i32
    %c0_i32_0 = arith.constant 0 : i32
    %c0_i32_1 = arith.constant 0 : i32
    %c0_i32_2 = arith.constant 0 : i32
    return %c0_i32, %c0_i32_0, %c0_i32_1 : i32, i32, i32
  }
  func.func @transform_7(%arg0: i32) -> (i32, i32, i32) {
    %c0_i32 = arith.constant 0 : i32
    %c0_i32_0 = arith.constant 0 : i32
    %c0_i32_1 = arith.constant 0 : i32
    %c0_i32_2 = arith.constant 0 : i32
    return %c0_i32, %c0_i32_0, %c0_i32_1 : i32, i32, i32
  }
  func.func @transform_8(%arg0: i32) -> (i32, i32) {
    %c0_i32 = arith.constant 0 : i32
    %c0_i32_0 = arith.constant 0 : i32
    %c0_i32_1 = arith.constant 0 : i32
    return %c0_i32, %c0_i32_0 : i32, i32
  }
  func.func @transform_9(%arg0: i32) -> (i32, i32, i32) {
    %c0_i32 = arith.constant 0 : i32
    %c0_i32_0 = arith.constant 0 : i32
    %c0_i32_1 = arith.constant 0 : i32
    return %arg0, %c0_i32, %c0_i32_0 : i32, i32, i32
  }
  func.func @transform_10(%arg0: i32) -> (i32, i32, i32) {
    %c0_i32 = arith.constant 0 : i32
    %c0_i32_0 = arith.constant 0 : i32
    %c0_i32_1 = arith.constant 0 : i32
    return %arg0, %c0_i32, %c0_i32_0 : i32, i32, i32
  }
  func.func @transform_11(%arg0: i32) -> (i32, i32, i32) {
    %c0_i32 = arith.constant 0 : i32
    %c0_i32_0 = arith.constant 0 : i32
    %c0_i32_1 = arith.constant 0 : i32
    return %arg0, %c0_i32, %c0_i32_0 : i32, i32, i32
  }
}

module attributes {stable_mosaic.version = 11 : i64} {
  func.func @_heads_kernel(%arg0: memref<2x128xf32, #tpu.memory_space<vmem>>, %arg1: memref<128x1024xbf16, #tpu.memory_space<vmem>>, %arg2: memref<1x1024xf32, #tpu.memory_space<vmem>>, %arg3: memref<1x1024xf32, #tpu.memory_space<vmem>>, %arg4: memref<1024x256xbf16, #tpu.memory_space<vmem>>, %arg5: memref<1x256xf32, #tpu.memory_space<vmem>>, %arg6: memref<1x256xf32, #tpu.memory_space<vmem>>, %arg7: memref<256x1xf32, #tpu.memory_space<vmem>>, %arg8: memref<1x1xf32, #tpu.memory_space<vmem>>, %arg9: memref<128x1024xbf16, #tpu.memory_space<vmem>>, %arg10: memref<1x1024xf32, #tpu.memory_space<vmem>>, %arg11: memref<1x1024xf32, #tpu.memory_space<vmem>>, %arg12: memref<1024x256xbf16, #tpu.memory_space<vmem>>, %arg13: memref<1x256xf32, #tpu.memory_space<vmem>>, %arg14: memref<1x256xf32, #tpu.memory_space<vmem>>, %arg15: memref<1x1xf32, #tpu.memory_space<vmem>>, %arg16: memref<256x1xf32, #tpu.memory_space<vmem>>, %arg17: memref<1x1xf32, #tpu.memory_space<vmem>>, %arg18: memref<2x1xf32, #tpu.memory_space<vmem>>, %arg19: memref<2x1xf32, #tpu.memory_space<vmem>>) attributes {dimension_semantics = [], scalar_prefetch = 0 : i64, scratch_operands = 0 : i64, tpu.core_type = #tpu.core_type<tc>} {
    %c0 = arith.constant 0 : index
    %c0_0 = arith.constant 0 : index
    %0 = vector.load %arg0[%c0, %c0_0] : memref<2x128xf32, #tpu.memory_space<vmem>>, vector<2x128xf32>
    %1 = arith.truncf %0 : vector<2x128xf32> to vector<2x128xbf16>
    %c0_1 = arith.constant 0 : index
    %c0_2 = arith.constant 0 : index
    %2 = vector.load %arg1[%c0_1, %c0_2] : memref<128x1024xbf16, #tpu.memory_space<vmem>>, vector<128x1024xbf16>
    %cst = arith.constant dense<0.000000e+00> : vector<2x1024xf32>
    %3 = tpu.matmul %1, %2, %cst {dimension_numbers = #tpu.dot_dimension_numbers<[1], [0], [0], [1], [0, 0, 1, 1], [], []>} : vector<2x128xbf16>, vector<128x1024xbf16>, vector<2x1024xf32> -> vector<2x1024xf32>
    %c0_3 = arith.constant 0 : index
    %c0_4 = arith.constant 0 : index
    %4 = vector.load %arg2[%c0_3, %c0_4] : memref<1x1024xf32, #tpu.memory_space<vmem>>, vector<1x1024xf32>
    %5 = vector.broadcast %4 : vector<1x1024xf32> to vector<2x1024xf32>
    %6 = arith.mulf %3, %5 : vector<2x1024xf32>
    %c0_5 = arith.constant 0 : index
    %c0_6 = arith.constant 0 : index
    %7 = vector.load %arg3[%c0_5, %c0_6] : memref<1x1024xf32, #tpu.memory_space<vmem>>, vector<1x1024xf32>
    %8 = vector.broadcast %7 : vector<1x1024xf32> to vector<2x1024xf32>
    %9 = arith.addf %6, %8 : vector<2x1024xf32>
    %cst_7 = arith.constant 0.000000e+00 : f32
    %10 = vector.broadcast %cst_7 : f32 to vector<2x1024xf32>
    %11 = arith.maximumf %9, %10 : vector<2x1024xf32>
    %12 = arith.truncf %11 : vector<2x1024xf32> to vector<2x1024xbf16>
    %c0_8 = arith.constant 0 : index
    %c0_9 = arith.constant 0 : index
    %13 = vector.load %arg4[%c0_8, %c0_9] : memref<1024x256xbf16, #tpu.memory_space<vmem>>, vector<1024x256xbf16>
    %cst_10 = arith.constant dense<0.000000e+00> : vector<2x256xf32>
    %14 = tpu.matmul %12, %13, %cst_10 {dimension_numbers = #tpu.dot_dimension_numbers<[1], [0], [0], [1], [0, 0, 1, 1], [], []>} : vector<2x1024xbf16>, vector<1024x256xbf16>, vector<2x256xf32> -> vector<2x256xf32>
    %c0_11 = arith.constant 0 : index
    %c0_12 = arith.constant 0 : index
    %15 = vector.load %arg5[%c0_11, %c0_12] : memref<1x256xf32, #tpu.memory_space<vmem>>, vector<1x256xf32>
    %16 = vector.broadcast %15 : vector<1x256xf32> to vector<2x256xf32>
    %17 = arith.mulf %14, %16 : vector<2x256xf32>
    %c0_13 = arith.constant 0 : index
    %c0_14 = arith.constant 0 : index
    %18 = vector.load %arg6[%c0_13, %c0_14] : memref<1x256xf32, #tpu.memory_space<vmem>>, vector<1x256xf32>
    %19 = vector.broadcast %18 : vector<1x256xf32> to vector<2x256xf32>
    %20 = arith.addf %17, %19 : vector<2x256xf32>
    %cst_15 = arith.constant 0.000000e+00 : f32
    %21 = vector.broadcast %cst_15 : f32 to vector<2x256xf32>
    %22 = arith.maximumf %20, %21 : vector<2x256xf32>
    %c0_16 = arith.constant 0 : index
    %c0_17 = arith.constant 0 : index
    %23 = vector.load %arg7[%c0_16, %c0_17] : memref<256x1xf32, #tpu.memory_space<vmem>>, vector<256x1xf32>
    %cst_18 = arith.constant dense<0.000000e+00> : vector<2x1xf32>
    %24 = tpu.matmul %22, %23, %cst_18 {dimension_numbers = #tpu.dot_dimension_numbers<[1], [0], [0], [1], [0, 0, 1, 1], [], []>} : vector<2x256xf32>, vector<256x1xf32>, vector<2x1xf32> -> vector<2x1xf32>
    %c0_19 = arith.constant 0 : index
    %c0_20 = arith.constant 0 : index
    %25 = vector.load %arg8[%c0_19, %c0_20] : memref<1x1xf32, #tpu.memory_space<vmem>>, vector<1x1xf32>
    %26 = vector.broadcast %25 : vector<1x1xf32> to vector<2x1xf32>
    %27 = arith.addf %24, %26 : vector<2x1xf32>
    %cst_21 = arith.constant 0.000000e+00 : f32
    %28 = vector.broadcast %cst_21 : f32 to vector<2x1xf32>
    %29 = arith.subf %28, %27 : vector<2x1xf32>
    %30 = math.exp %29 : vector<2x1xf32>
    %cst_22 = arith.constant 1.000000e+00 : f32
    %31 = vector.broadcast %cst_22 : f32 to vector<2x1xf32>
    %32 = arith.addf %31, %30 : vector<2x1xf32>
    %cst_23 = arith.constant 1.000000e+00 : f32
    %33 = vector.broadcast %cst_23 : f32 to vector<2x1xf32>
    %34 = arith.divf %33, %32 : vector<2x1xf32>
    %c0_24 = arith.constant 0 : index
    %c0_25 = arith.constant 0 : index
    %35 = vector.load %arg9[%c0_24, %c0_25] : memref<128x1024xbf16, #tpu.memory_space<vmem>>, vector<128x1024xbf16>
    %cst_26 = arith.constant dense<0.000000e+00> : vector<2x1024xf32>
    %36 = tpu.matmul %1, %35, %cst_26 {dimension_numbers = #tpu.dot_dimension_numbers<[1], [0], [0], [1], [0, 0, 1, 1], [], []>} : vector<2x128xbf16>, vector<128x1024xbf16>, vector<2x1024xf32> -> vector<2x1024xf32>
    %c0_27 = arith.constant 0 : index
    %c0_28 = arith.constant 0 : index
    %37 = vector.load %arg10[%c0_27, %c0_28] : memref<1x1024xf32, #tpu.memory_space<vmem>>, vector<1x1024xf32>
    %38 = vector.broadcast %37 : vector<1x1024xf32> to vector<2x1024xf32>
    %39 = arith.mulf %36, %38 : vector<2x1024xf32>
    %c0_29 = arith.constant 0 : index
    %c0_30 = arith.constant 0 : index
    %40 = vector.load %arg11[%c0_29, %c0_30] : memref<1x1024xf32, #tpu.memory_space<vmem>>, vector<1x1024xf32>
    %41 = vector.broadcast %40 : vector<1x1024xf32> to vector<2x1024xf32>
    %42 = arith.addf %39, %41 : vector<2x1024xf32>
    %cst_31 = arith.constant 0.000000e+00 : f32
    %43 = vector.broadcast %cst_31 : f32 to vector<2x1024xf32>
    %44 = arith.maximumf %42, %43 : vector<2x1024xf32>
    %45 = arith.truncf %44 : vector<2x1024xf32> to vector<2x1024xbf16>
    %c0_32 = arith.constant 0 : index
    %c0_33 = arith.constant 0 : index
    %46 = vector.load %arg12[%c0_32, %c0_33] : memref<1024x256xbf16, #tpu.memory_space<vmem>>, vector<1024x256xbf16>
    %cst_34 = arith.constant dense<0.000000e+00> : vector<2x256xf32>
    %47 = tpu.matmul %45, %46, %cst_34 {dimension_numbers = #tpu.dot_dimension_numbers<[1], [0], [0], [1], [0, 0, 1, 1], [], []>} : vector<2x1024xbf16>, vector<1024x256xbf16>, vector<2x256xf32> -> vector<2x256xf32>
    %c0_35 = arith.constant 0 : index
    %c0_36 = arith.constant 0 : index
    %48 = vector.load %arg13[%c0_35, %c0_36] : memref<1x256xf32, #tpu.memory_space<vmem>>, vector<1x256xf32>
    %49 = vector.broadcast %48 : vector<1x256xf32> to vector<2x256xf32>
    %50 = arith.mulf %47, %49 : vector<2x256xf32>
    %c0_37 = arith.constant 0 : index
    %c0_38 = arith.constant 0 : index
    %51 = vector.load %arg14[%c0_37, %c0_38] : memref<1x256xf32, #tpu.memory_space<vmem>>, vector<1x256xf32>
    %52 = vector.broadcast %51 : vector<1x256xf32> to vector<2x256xf32>
    %53 = arith.addf %50, %52 : vector<2x256xf32>
    %cst_39 = arith.constant 0.000000e+00 : f32
    %54 = vector.broadcast %cst_39 : f32 to vector<2x256xf32>
    %55 = arith.maximumf %53, %54 : vector<2x256xf32>
    %c0_40 = arith.constant 0 : index
    %c0_41 = arith.constant 0 : index
    %56 = vector.load %arg15[%c0_40, %c0_41] : memref<1x1xf32, #tpu.memory_space<vmem>>, vector<1x1xf32>
    %57 = vector.broadcast %56 : vector<1x1xf32> to vector<2x1xf32>
    %58 = arith.mulf %34, %57 : vector<2x1xf32>
    %c0_42 = arith.constant 0 : index
    %c0_43 = arith.constant 0 : index
    %59 = vector.load %arg16[%c0_42, %c0_43] : memref<256x1xf32, #tpu.memory_space<vmem>>, vector<256x1xf32>
    %cst_44 = arith.constant dense<0.000000e+00> : vector<2x1xf32>
    %60 = tpu.matmul %55, %59, %cst_44 {dimension_numbers = #tpu.dot_dimension_numbers<[1], [0], [0], [1], [0, 0, 1, 1], [], []>} : vector<2x256xf32>, vector<256x1xf32>, vector<2x1xf32> -> vector<2x1xf32>
    %61 = arith.addf %58, %60 : vector<2x1xf32>
    %c0_45 = arith.constant 0 : index
    %c0_46 = arith.constant 0 : index
    %62 = vector.load %arg17[%c0_45, %c0_46] : memref<1x1xf32, #tpu.memory_space<vmem>>, vector<1x1xf32>
    %63 = vector.broadcast %62 : vector<1x1xf32> to vector<2x1xf32>
    %64 = arith.addf %61, %63 : vector<2x1xf32>
    %cst_47 = arith.constant 0.000000e+00 : f32
    %65 = vector.broadcast %cst_47 : f32 to vector<2x1xf32>
    %66 = arith.subf %65, %64 : vector<2x1xf32>
    %67 = math.exp %66 : vector<2x1xf32>
    %cst_48 = arith.constant 1.000000e+00 : f32
    %68 = vector.broadcast %cst_48 : f32 to vector<2x1xf32>
    %69 = arith.addf %68, %67 : vector<2x1xf32>
    %cst_49 = arith.constant 1.000000e+00 : f32
    %70 = vector.broadcast %cst_49 : f32 to vector<2x1xf32>
    %71 = arith.divf %70, %69 : vector<2x1xf32>
    %c0_50 = arith.constant 0 : index
    %c0_51 = arith.constant 0 : index
    %72 = vector.load %arg18[%c0_50, %c0_51] : memref<2x1xf32, #tpu.memory_space<vmem>>, vector<2x1xf32>
    tpu.vector_store %arg18[%c0_50, %c0_51], %34 {strides = array<i32>} : memref<2x1xf32, #tpu.memory_space<vmem>>, vector<2x1xf32>,
    %c0_52 = arith.constant 0 : index
    %c0_53 = arith.constant 0 : index
    %73 = vector.load %arg19[%c0_52, %c0_53] : memref<2x1xf32, #tpu.memory_space<vmem>>, vector<2x1xf32>
    tpu.vector_store %arg19[%c0_52, %c0_53], %71 {strides = array<i32>} : memref<2x1xf32, #tpu.memory_space<vmem>>, vector<2x1xf32>,
    return
  }
}

module attributes {stable_mosaic.version = 11 : i64} {
  func.func @_tail_kernel(%arg0: i32, %arg1: memref<1x8x128xf32, #tpu.memory_space<vmem>>, %arg2: memref<1x8x128xf32, #tpu.memory_space<vmem>>, %arg3: memref<1x1x8xf32, #tpu.memory_space<vmem>>, %arg4: memref<1x128xf32, #tpu.memory_space<vmem>>, %arg5: memref<1x128xf32, #tpu.memory_space<vmem>>, %arg6: memref<128x1024xbf16, #tpu.memory_space<vmem>>, %arg7: memref<1x1024xf32, #tpu.memory_space<vmem>>, %arg8: memref<1024x128xbf16, #tpu.memory_space<vmem>>, %arg9: memref<1x128xf32, #tpu.memory_space<vmem>>, %arg10: memref<1x128xf32, #tpu.memory_space<vmem>>, %arg11: memref<1x128xf32, #tpu.memory_space<vmem>>, %arg12: memref<1x128xf32, #tpu.memory_space<vmem>>, %arg13: memref<1x128xf32, #tpu.memory_space<vmem>>, %arg14: memref<1x1x128xf32, #tpu.memory_space<vmem>>) attributes {dimension_semantics = [#tpu.dimension_semantics<parallel>], iteration_bounds = array<i64: 2>, scalar_prefetch = 0 : i64, scratch_operands = 0 : i64, tpu.core_type = #tpu.core_type<tc>, window_params = [{transform_indices = @transform_0, window_bounds = array<i64: 1, 8, 128>}, {transform_indices = @transform_1, window_bounds = array<i64: 1, 8, 128>}, {transform_indices = @transform_2, window_bounds = array<i64: 1, 1, 8>}, {pipeline_mode = #tpu.pipeline_mode<synchronous>, transform_indices = @transform_3, window_bounds = array<i64: 1, 128>}, {pipeline_mode = #tpu.pipeline_mode<synchronous>, transform_indices = @transform_4, window_bounds = array<i64: 1, 128>}, {pipeline_mode = #tpu.pipeline_mode<synchronous>, transform_indices = @transform_5, window_bounds = array<i64: 128, 1024>}, {pipeline_mode = #tpu.pipeline_mode<synchronous>, transform_indices = @transform_6, window_bounds = array<i64: 1, 1024>}, {pipeline_mode = #tpu.pipeline_mode<synchronous>, transform_indices = @transform_7, window_bounds = array<i64: 1024, 128>}, {pipeline_mode = #tpu.pipeline_mode<synchronous>, transform_indices = @transform_8, window_bounds = array<i64: 1, 128>}, {pipeline_mode = #tpu.pipeline_mode<synchronous>, transform_indices = @transform_9, window_bounds = array<i64: 1, 128>}, {pipeline_mode = #tpu.pipeline_mode<synchronous>, transform_indices = @transform_10, window_bounds = array<i64: 1, 128>}, {pipeline_mode = #tpu.pipeline_mode<synchronous>, transform_indices = @transform_11, window_bounds = array<i64: 1, 128>}, {pipeline_mode = #tpu.pipeline_mode<synchronous>, transform_indices = @transform_12, window_bounds = array<i64: 1, 128>}, {transform_indices = @transform_13, window_bounds = array<i64: 1, 1, 128>}]} {
    %c0 = arith.constant 0 : index
    %c0_0 = arith.constant 0 : index
    %c0_1 = arith.constant 0 : index
    %0 = vector.load %arg1[%c0, %c0_0, %c0_1] : memref<1x8x128xf32, #tpu.memory_space<vmem>>, vector<1x8x128xf32>
    %1 = vector.shape_cast %0 : vector<1x8x128xf32> to vector<8x128xf32>
    %c0_2 = arith.constant 0 : index
    %c0_3 = arith.constant 0 : index
    %c0_4 = arith.constant 0 : index
    %2 = vector.load %arg2[%c0_2, %c0_3, %c0_4] : memref<1x8x128xf32, #tpu.memory_space<vmem>>, vector<1x8x128xf32>
    %3 = vector.shape_cast %2 : vector<1x8x128xf32> to vector<8x128xf32>
    %4 = arith.addf %1, %3 : vector<8x128xf32>
    %c0_5 = arith.constant 0 : index
    %c0_6 = arith.constant 0 : index
    %5 = vector.load %arg4[%c0_5, %c0_6] : memref<1x128xf32, #tpu.memory_space<vmem>>, vector<1x128xf32>
    %c0_7 = arith.constant 0 : index
    %c0_8 = arith.constant 0 : index
    %6 = vector.load %arg5[%c0_7, %c0_8] : memref<1x128xf32, #tpu.memory_space<vmem>>, vector<1x128xf32>
    %cst = arith.constant dense<0.000000e+00> : vector<8xf32>
    %7 = vector.multi_reduction <add>, %4, %cst [1] : vector<8x128xf32> to vector<8xf32>
    %8 = vector.shape_cast %7 : vector<8xf32> to vector<8x1xf32>
    %cst_9 = arith.constant 1.280000e+02 : f32
    %9 = vector.broadcast %cst_9 : f32 to vector<8x1xf32>
    %10 = arith.divf %8, %9 : vector<8x1xf32>
    %11 = vector.broadcast %10 : vector<8x1xf32> to vector<8x128xf32>
    %12 = arith.subf %4, %11 : vector<8x128xf32>
    %13 = arith.mulf %12, %12 : vector<8x128xf32>
    %cst_10 = arith.constant dense<0.000000e+00> : vector<8xf32>
    %14 = vector.multi_reduction <add>, %13, %cst_10 [1] : vector<8x128xf32> to vector<8xf32>
    %15 = vector.shape_cast %14 : vector<8xf32> to vector<8x1xf32>
    %cst_11 = arith.constant 1.280000e+02 : f32
    %16 = vector.broadcast %cst_11 : f32 to vector<8x1xf32>
    %17 = arith.divf %15, %16 : vector<8x1xf32>
    %18 = vector.broadcast %10 : vector<8x1xf32> to vector<8x128xf32>
    %19 = arith.subf %4, %18 : vector<8x128xf32>
    %cst_12 = arith.constant 9.99999974E-6 : f32
    %20 = vector.broadcast %cst_12 : f32 to vector<8x1xf32>
    %21 = arith.addf %17, %20 : vector<8x1xf32>
    %22 = math.rsqrt %21 : vector<8x1xf32>
    %23 = vector.broadcast %22 : vector<8x1xf32> to vector<8x128xf32>
    %24 = arith.mulf %19, %23 : vector<8x128xf32>
    %25 = vector.broadcast %5 : vector<1x128xf32> to vector<8x128xf32>
    %26 = arith.mulf %24, %25 : vector<8x128xf32>
    %27 = vector.broadcast %6 : vector<1x128xf32> to vector<8x128xf32>
    %28 = arith.addf %26, %27 : vector<8x128xf32>
    %29 = arith.truncf %28 : vector<8x128xf32> to vector<8x128xbf16>
    %c0_13 = arith.constant 0 : index
    %c0_14 = arith.constant 0 : index
    %30 = vector.load %arg6[%c0_13, %c0_14] : memref<128x1024xbf16, #tpu.memory_space<vmem>>, vector<128x1024xbf16>
    %cst_15 = arith.constant dense<0.000000e+00> : vector<8x1024xf32>
    %31 = tpu.matmul %29, %30, %cst_15 {dimension_numbers = #tpu.dot_dimension_numbers<[1], [0], [0], [1], [0, 0, 1, 1], [], []>} : vector<8x128xbf16>, vector<128x1024xbf16>, vector<8x1024xf32> -> vector<8x1024xf32>
    %c0_16 = arith.constant 0 : index
    %c0_17 = arith.constant 0 : index
    %32 = vector.load %arg7[%c0_16, %c0_17] : memref<1x1024xf32, #tpu.memory_space<vmem>>, vector<1x1024xf32>
    %33 = vector.broadcast %32 : vector<1x1024xf32> to vector<8x1024xf32>
    %34 = arith.addf %31, %33 : vector<8x1024xf32>
    %cst_18 = arith.constant 0.000000e+00 : f32
    %35 = vector.broadcast %cst_18 : f32 to vector<8x1024xf32>
    %36 = arith.maximumf %34, %35 : vector<8x1024xf32>
    %37 = arith.truncf %36 : vector<8x1024xf32> to vector<8x1024xbf16>
    %c0_19 = arith.constant 0 : index
    %c0_20 = arith.constant 0 : index
    %38 = vector.load %arg8[%c0_19, %c0_20] : memref<1024x128xbf16, #tpu.memory_space<vmem>>, vector<1024x128xbf16>
    %cst_21 = arith.constant dense<0.000000e+00> : vector<8x128xf32>
    %39 = tpu.matmul %37, %38, %cst_21 {dimension_numbers = #tpu.dot_dimension_numbers<[1], [0], [0], [1], [0, 0, 1, 1], [], []>} : vector<8x1024xbf16>, vector<1024x128xbf16>, vector<8x128xf32> -> vector<8x128xf32>
    %c0_22 = arith.constant 0 : index
    %c0_23 = arith.constant 0 : index
    %40 = vector.load %arg9[%c0_22, %c0_23] : memref<1x128xf32, #tpu.memory_space<vmem>>, vector<1x128xf32>
    %41 = vector.broadcast %40 : vector<1x128xf32> to vector<8x128xf32>
    %42 = arith.addf %39, %41 : vector<8x128xf32>
    %43 = arith.addf %28, %42 : vector<8x128xf32>
    %c0_24 = arith.constant 0 : index
    %c0_25 = arith.constant 0 : index
    %44 = vector.load %arg10[%c0_24, %c0_25] : memref<1x128xf32, #tpu.memory_space<vmem>>, vector<1x128xf32>
    %c0_26 = arith.constant 0 : index
    %c0_27 = arith.constant 0 : index
    %45 = vector.load %arg11[%c0_26, %c0_27] : memref<1x128xf32, #tpu.memory_space<vmem>>, vector<1x128xf32>
    %cst_28 = arith.constant dense<0.000000e+00> : vector<8xf32>
    %46 = vector.multi_reduction <add>, %43, %cst_28 [1] : vector<8x128xf32> to vector<8xf32>
    %47 = vector.shape_cast %46 : vector<8xf32> to vector<8x1xf32>
    %cst_29 = arith.constant 1.280000e+02 : f32
    %48 = vector.broadcast %cst_29 : f32 to vector<8x1xf32>
    %49 = arith.divf %47, %48 : vector<8x1xf32>
    %50 = vector.broadcast %49 : vector<8x1xf32> to vector<8x128xf32>
    %51 = arith.subf %43, %50 : vector<8x128xf32>
    %52 = arith.mulf %51, %51 : vector<8x128xf32>
    %cst_30 = arith.constant dense<0.000000e+00> : vector<8xf32>
    %53 = vector.multi_reduction <add>, %52, %cst_30 [1] : vector<8x128xf32> to vector<8xf32>
    %54 = vector.shape_cast %53 : vector<8xf32> to vector<8x1xf32>
    %cst_31 = arith.constant 1.280000e+02 : f32
    %55 = vector.broadcast %cst_31 : f32 to vector<8x1xf32>
    %56 = arith.divf %54, %55 : vector<8x1xf32>
    %57 = vector.broadcast %49 : vector<8x1xf32> to vector<8x128xf32>
    %58 = arith.subf %43, %57 : vector<8x128xf32>
    %cst_32 = arith.constant 9.99999974E-6 : f32
    %59 = vector.broadcast %cst_32 : f32 to vector<8x1xf32>
    %60 = arith.addf %56, %59 : vector<8x1xf32>
    %61 = math.rsqrt %60 : vector<8x1xf32>
    %62 = vector.broadcast %61 : vector<8x1xf32> to vector<8x128xf32>
    %63 = arith.mulf %58, %62 : vector<8x128xf32>
    %64 = vector.broadcast %44 : vector<1x128xf32> to vector<8x128xf32>
    %65 = arith.mulf %63, %64 : vector<8x128xf32>
    %66 = vector.broadcast %45 : vector<1x128xf32> to vector<8x128xf32>
    %67 = arith.addf %65, %66 : vector<8x128xf32>
    %c0_33 = arith.constant 0 : index
    %c0_34 = arith.constant 0 : index
    %68 = vector.load %arg12[%c0_33, %c0_34] : memref<1x128xf32, #tpu.memory_space<vmem>>, vector<1x128xf32>
    %c0_35 = arith.constant 0 : index
    %c0_36 = arith.constant 0 : index
    %69 = vector.load %arg13[%c0_35, %c0_36] : memref<1x128xf32, #tpu.memory_space<vmem>>, vector<1x128xf32>
    %cst_37 = arith.constant dense<0.000000e+00> : vector<8xf32>
    %70 = vector.multi_reduction <add>, %67, %cst_37 [1] : vector<8x128xf32> to vector<8xf32>
    %71 = vector.shape_cast %70 : vector<8xf32> to vector<8x1xf32>
    %cst_38 = arith.constant 1.280000e+02 : f32
    %72 = vector.broadcast %cst_38 : f32 to vector<8x1xf32>
    %73 = arith.divf %71, %72 : vector<8x1xf32>
    %74 = vector.broadcast %73 : vector<8x1xf32> to vector<8x128xf32>
    %75 = arith.subf %67, %74 : vector<8x128xf32>
    %76 = arith.mulf %75, %75 : vector<8x128xf32>
    %cst_39 = arith.constant dense<0.000000e+00> : vector<8xf32>
    %77 = vector.multi_reduction <add>, %76, %cst_39 [1] : vector<8x128xf32> to vector<8xf32>
    %78 = vector.shape_cast %77 : vector<8xf32> to vector<8x1xf32>
    %cst_40 = arith.constant 1.280000e+02 : f32
    %79 = vector.broadcast %cst_40 : f32 to vector<8x1xf32>
    %80 = arith.divf %78, %79 : vector<8x1xf32>
    %81 = vector.broadcast %73 : vector<8x1xf32> to vector<8x128xf32>
    %82 = arith.subf %67, %81 : vector<8x128xf32>
    %cst_41 = arith.constant 9.99999974E-6 : f32
    %83 = vector.broadcast %cst_41 : f32 to vector<8x1xf32>
    %84 = arith.addf %80, %83 : vector<8x1xf32>
    %85 = math.rsqrt %84 : vector<8x1xf32>
    %86 = vector.broadcast %85 : vector<8x1xf32> to vector<8x128xf32>
    %87 = arith.mulf %82, %86 : vector<8x128xf32>
    %88 = vector.broadcast %68 : vector<1x128xf32> to vector<8x128xf32>
    %89 = arith.mulf %87, %88 : vector<8x128xf32>
    %90 = vector.broadcast %69 : vector<1x128xf32> to vector<8x128xf32>
    %91 = arith.addf %89, %90 : vector<8x128xf32>
    %c0_42 = arith.constant 0 : index
    %c0_43 = arith.constant 0 : index
    %c0_44 = arith.constant 0 : index
    %92 = vector.load %arg3[%c0_42, %c0_43, %c0_44] : memref<1x1x8xf32, #tpu.memory_space<vmem>>, vector<1x1x8xf32>
    %93 = vector.shape_cast %92 : vector<1x1x8xf32> to vector<1x8xf32>
    %cst_45 = arith.constant dense<0.000000e+00> : vector<1x128xf32>
    %94 = tpu.matmul %93, %91, %cst_45 {dimension_numbers = #tpu.dot_dimension_numbers<[1], [0], [0], [1], [0, 0, 1, 1], [], []>} : vector<1x8xf32>, vector<8x128xf32>, vector<1x128xf32> -> vector<1x128xf32>
    %cst_46 = arith.constant dense<0.000000e+00> : vector<1xf32>
    %95 = vector.multi_reduction <add>, %93, %cst_46 [1] : vector<1x8xf32> to vector<1xf32>
    %96 = vector.shape_cast %95 : vector<1xf32> to vector<1x1xf32>
    %cst_47 = arith.constant 1.000000e+00 : f32
    %97 = vector.broadcast %cst_47 : f32 to vector<1x1xf32>
    %98 = arith.maximumf %96, %97 : vector<1x1xf32>
    %99 = vector.broadcast %98 : vector<1x1xf32> to vector<1x128xf32>
    %100 = arith.divf %94, %99 : vector<1x128xf32>
    %c0_48 = arith.constant 0 : index
    %c0_49 = arith.constant 0 : index
    %c0_50 = arith.constant 0 : index
    %101 = vector.load %arg14[%c0_48, %c0_49, %c0_50] : memref<1x1x128xf32, #tpu.memory_space<vmem>>, vector<1x1x128xf32>
    %102 = vector.shape_cast %101 : vector<1x1x128xf32> to vector<1x128xf32>
    %103 = vector.shape_cast %100 : vector<1x128xf32> to vector<1x1x128xf32>
    tpu.vector_store %arg14[%c0_48, %c0_49, %c0_50], %103 {strides = array<i32>} : memref<1x1x128xf32, #tpu.memory_space<vmem>>, vector<1x1x128xf32>,
    return
  }
  func.func @transform_0(%arg0: i32) -> (i32, i32, i32) {
    %c0_i32 = arith.constant 0 : i32
    %c0_i32_0 = arith.constant 0 : i32
    %c0_i32_1 = arith.constant 0 : i32
    return %arg0, %c0_i32, %c0_i32_0 : i32, i32, i32
  }
  func.func @transform_1(%arg0: i32) -> (i32, i32, i32) {
    %c0_i32 = arith.constant 0 : i32
    %c0_i32_0 = arith.constant 0 : i32
    %c0_i32_1 = arith.constant 0 : i32
    return %arg0, %c0_i32, %c0_i32_0 : i32, i32, i32
  }
  func.func @transform_2(%arg0: i32) -> (i32, i32, i32) {
    %c0_i32 = arith.constant 0 : i32
    %c0_i32_0 = arith.constant 0 : i32
    %c0_i32_1 = arith.constant 0 : i32
    return %arg0, %c0_i32, %c0_i32_0 : i32, i32, i32
  }
  func.func @transform_3(%arg0: i32) -> (i32, i32) {
    %c0_i32 = arith.constant 0 : i32
    %c0_i32_0 = arith.constant 0 : i32
    %c0_i32_1 = arith.constant 0 : i32
    return %c0_i32, %c0_i32_0 : i32, i32
  }
  func.func @transform_4(%arg0: i32) -> (i32, i32) {
    %c0_i32 = arith.constant 0 : i32
    %c0_i32_0 = arith.constant 0 : i32
    %c0_i32_1 = arith.constant 0 : i32
    return %c0_i32, %c0_i32_0 : i32, i32
  }
  func.func @transform_5(%arg0: i32) -> (i32, i32) {
    %c0_i32 = arith.constant 0 : i32
    %c0_i32_0 = arith.constant 0 : i32
    %c0_i32_1 = arith.constant 0 : i32
    return %c0_i32, %c0_i32_0 : i32, i32
  }
  func.func @transform_6(%arg0: i32) -> (i32, i32) {
    %c0_i32 = arith.constant 0 : i32
    %c0_i32_0 = arith.constant 0 : i32
    %c0_i32_1 = arith.constant 0 : i32
    return %c0_i32, %c0_i32_0 : i32, i32
  }
  func.func @transform_7(%arg0: i32) -> (i32, i32) {
    %c0_i32 = arith.constant 0 : i32
    %c0_i32_0 = arith.constant 0 : i32
    %c0_i32_1 = arith.constant 0 : i32
    return %c0_i32, %c0_i32_0 : i32, i32
  }
  func.func @transform_8(%arg0: i32) -> (i32, i32) {
    %c0_i32 = arith.constant 0 : i32
    %c0_i32_0 = arith.constant 0 : i32
    %c0_i32_1 = arith.constant 0 : i32
    return %c0_i32, %c0_i32_0 : i32, i32
  }
  func.func @transform_9(%arg0: i32) -> (i32, i32) {
    %c0_i32 = arith.constant 0 : i32
    %c0_i32_0 = arith.constant 0 : i32
    %c0_i32_1 = arith.constant 0 : i32
    return %c0_i32, %c0_i32_0 : i32, i32
  }
  func.func @transform_10(%arg0: i32) -> (i32, i32) {
    %c0_i32 = arith.constant 0 : i32
    %c0_i32_0 = arith.constant 0 : i32
    %c0_i32_1 = arith.constant 0 : i32
    return %c0_i32, %c0_i32_0 : i32, i32
  }
  func.func @transform_11(%arg0: i32) -> (i32, i32) {
    %c0_i32 = arith.constant 0 : i32
    %c0_i32_0 = arith.constant 0 : i32
    %c0_i32_1 = arith.constant 0 : i32
    return %c0_i32, %c0_i32_0 : i32, i32
  }
  func.func @transform_12(%arg0: i32) -> (i32, i32) {
    %c0_i32 = arith.constant 0 : i32
    %c0_i32_0 = arith.constant 0 : i32
    %c0_i32_1 = arith.constant 0 : i32
    return %c0_i32, %c0_i32_0 : i32, i32
  }
  func.func @transform_13(%arg0: i32) -> (i32, i32, i32) {
    %c0_i32 = arith.constant 0 : i32
    %c0_i32_0 = arith.constant 0 : i32
    %c0_i32_1 = arith.constant 0 : i32
    return %arg0, %c0_i32, %c0_i32_0 : i32, i32, i32
  }
}

</mosaic_0001>

<llo_original>
// kernel: forward.4
$region0: #{forward.4}
  #allocation0 [shape = 'u32[]', space=smem, size = 0x4, offset = 0x4, fixed_abs, tag = 'smem constant byte address 0x4 - core index']
  #allocation1 [shape = 'u32[144,128]{1,0:T(1,128)}', space=vmem, size = 0x12000, scoped, tag = 'internal scratch']
  %s0 = inlined_call_operand.vmem [shape: f32[2,8,128], index: 0, kind: input, shape index: {}]
  %s1 = inlined_call_operand.vmem [shape: f32[2,8,128], index: 1, kind: input, shape index: {}]
  %s2 = inlined_call_operand.vmem [shape: f32[2,1,8], index: 2, kind: input, shape index: {}]
  %s3 = inlined_call_operand.vmem [shape: f32[1,128], index: 3, kind: input, shape index: {}]
  %s4 = inlined_call_operand.vmem [shape: f32[1,128], index: 4, kind: input, shape index: {}]
  %s5 = inlined_call_operand.vmem [shape: bf16[128,1024], index: 5, kind: input, shape index: {}]
  %s6 = inlined_call_operand.vmem [shape: f32[1,1024], index: 6, kind: input, shape index: {}]
  %s7 = inlined_call_operand.vmem [shape: bf16[1024,128], index: 7, kind: input, shape index: {}]
  %s8 = inlined_call_operand.vmem [shape: f32[1,128], index: 8, kind: input, shape index: {}]
  %s9 = inlined_call_operand.vmem [shape: f32[1,128], index: 9, kind: input, shape index: {}]
  %s10 = inlined_call_operand.vmem [shape: f32[1,128], index: 10, kind: input, shape index: {}]
  %s11 = inlined_call_operand.vmem [shape: f32[1,128], index: 11, kind: input, shape index: {}]
  %s12 = inlined_call_operand.vmem [shape: f32[1,128], index: 12, kind: input, shape index: {}]
  %s13 = inlined_call_operand.vmem [shape: f32[2,1,128], index: 13, kind: output, shape index: {}]
  %s14 = sld [smem:[#allocation0]]
  $region85: #{forward.4} parent=0
    _
  %s16 = ssub.s32 1, %s14
  %s17 = scalar_select 0, %s16, %s14
  loop: start=0, step=1, limit=4
  $region2: #{forward.4} parent=0 // loop_pre_header
    _
  $region3: #{forward.4} parent=0 // loop_header
    %s19 = sphi 0, %s23
    %p20 = scmp.ge.s32.totalorder %s19, 4
    %s29 = sphi 0, %s31
    %s32 = sphi 0, %s29
    %s33 = sphi 0, %s32
    %s49 = sphi 0, %s33
    %s55 = sphi 0, %s57
    %s58 = sphi 0, %s55
    %s59 = sphi 0, %s58
    %s75 = sphi 0, %s59
    %s81 = sphi 0, %s83
    %s84 = sphi 0, %s81
    %s85 = sphi 0, %s84
    %s101 = sphi 0, %s85
    %s105 = sphi 0, %s105
    %s107 = sphi 0, %s105
    %s108 = sphi 0, %s107
    %s122 = sphi 0, %s108
    %s126 = sphi 0, %s126
    %s128 = sphi 0, %s126
    %s129 = sphi 0, %s128
    %s143 = sphi 0, %s129
    %s147 = sphi 0, %s147
    %s149 = sphi 0, %s147
    %s150 = sphi 0, %s149
    %s164 = sphi 0, %s150
    %s168 = sphi 0, %s168
    %s170 = sphi 0, %s168
    %s171 = sphi 0, %s170
    %s185 = sphi 0, %s171
    %s189 = sphi 0, %s189
    %s191 = sphi 0, %s189
    %s192 = sphi 0, %s191
    %s206 = sphi 0, %s192
    %s210 = sphi 0, %s210
    %s212 = sphi 0, %s210
    %s213 = sphi 0, %s212
    %s227 = sphi 0, %s213
    %s231 = sphi 0, %s231
    %s233 = sphi 0, %s231
    %s234 = sphi 0, %s233
    %s248 = sphi 0, %s234
    %s252 = sphi 0, %s252
    %s254 = sphi 0, %s252
    %s255 = sphi 0, %s254
    %s269 = sphi 0, %s255
    %s273 = sphi 0, %s273
    %s275 = sphi 0, %s273
    %s276 = sphi 0, %s275
    %s290 = sphi 0, %s276
    %s294 = sphi 0, %s294
    %s296 = sphi 0, %s294
    %s297 = sphi 0, %s296
    %s311 = sphi 0, %s297
    %s317 = sphi 0, %s319
    %s320 = sphi 0, %s317
    %s321 = sphi 0, %s320
    %s337 = sphi 0, %s321
  $region4: #{forward.4} parent=0 // loop_header_branch
    %22 = sbr.rel (%p20) target = $region8
  $region5: #{forward.4} parent=0 // loop_body
    %s24 = ssub.s32 %s19, 1
    %s25 = ssub.s32 %s19, 2
    %s26 = sadd.s32 %s19, 1
    %s27 = ssub.s32 %s19, %s26
    %p28 = scmp.eq.s32.totalorder %s27, 0
    %s30 = sadd.s32 %s29, 1
    %s31 = scalar_select %p28, %s29, %s30
    %p34 = pneg %p28
    %p35 = scmp.eq.s32.totalorder %s19, 1
    %p36 = por %p34, %p35
    %p37 = scmp.ne.s32.totalorder %s29, %s32
    %p38 = scmp.eq.s32.totalorder %s19, 0
    %p39 = por %p37, %p38
    %p40 = scmp.ne.s32.totalorder %s29, %s32
    %p41 = scmp.eq.s32.totalorder %s24, 1
    %p42 = por %p40, %p41
    %p43 = scmp.ne.s32.totalorder %s32, %s33
    %p44 = scmp.eq.s32.totalorder %s24, 0
    %p45 = por %p43, %p44
    %p46 = scmp.ne.s32.totalorder %s32, %s33
    %p47 = scmp.eq.s32.totalorder %s25, 1
    %p48 = por %p46, %p47
    %p50 = scmp.ne.s32.totalorder %s33, %s49
    %p51 = scmp.eq.s32.totalorder %s25, 0
    %p52 = por %p50, %p51
    %s53 = ssub.s32 %s19, %s26
    %p54 = scmp.eq.s32.totalorder %s53, 0
    %s56 = sadd.s32 %s55, 1
    %s57 = scalar_select %p54, %s55, %s56
    %p60 = pneg %p54
    %p61 = scmp.eq.s32.totalorder %s19, 1
    %p62 = por %p60, %p61
    %p63 = scmp.ne.s32.totalorder %s55, %s58
    %p64 = scmp.eq.s32.totalorder %s19, 0
    %p65 = por %p63, %p64
    %p66 = scmp.ne.s32.totalorder %s55, %s58
    %p67 = scmp.eq.s32.totalorder %s24, 1
    %p68 = por %p66, %p67
    %p69 = scmp.ne.s32.totalorder %s58, %s59
    %p70 = scmp.eq.s32.totalorder %s24, 0
    %p71 = por %p69, %p70
    %p72 = scmp.ne.s32.totalorder %s58, %s59
    %p73 = scmp.eq.s32.totalorder %s25, 1
    %p74 = por %p72, %p73
    %p76 = scmp.ne.s32.totalorder %s59, %s75
    %p77 = scmp.eq.s32.totalorder %s25, 0
    %p78 = por %p76, %p77
    %s79 = ssub.s32 %s19, %s26
    %p80 = scmp.eq.s32.totalorder %s79, 0
    %s82 = sadd.s32 %s81, 1
    %s83 = scalar_select %p80, %s81, %s82
    %p86 = pneg %p80
    %p87 = scmp.eq.s32.totalorder %s19, 1
    %p88 = por %p86, %p87
    %p89 = scmp.ne.s32.totalorder %s81, %s84
    %p90 = scmp.eq.s32.totalorder %s19, 0
    %p91 = por %p89, %p90
    %p92 = scmp.ne.s32.totalorder %s81, %s84
    %p93 = scmp.eq.s32.totalorder %s24, 1
    %p94 = por %p92, %p93
    %p95 = scmp.ne.s32.totalorder %s84, %s85
    %p96 = scmp.eq.s32.totalorder %s24, 0
    %p97 = por %p95, %p96
    %p98 = scmp.ne.s32.totalorder %s84, %s85
    %p99 = scmp.eq.s32.totalorder %s25, 1
    %p100 = por %p98, %p99
    %p102 = scmp.ne.s32.totalorder %s85, %s101
    %p103 = scmp.eq.s32.totalorder %s25, 0
    %p104 = por %p102, %p103
    %s106 = sadd.s32 %s105, 1
    %p109 = scmp.eq.s32.totalorder %s19, 1
    %p110 = scmp.ne.s32.totalorder %s105, %s107
    %p111 = scmp.eq.s32.totalorder %s19, 0
    %p112 = por %p110, %p111
    %p113 = scmp.ne.s32.totalorder %s105, %s107
    %p114 = scmp.eq.s32.totalorder %s24, 1
    %p115 = por %p113, %p114
    %p116 = scmp.ne.s32.totalorder %s107, %s108
    %p117 = scmp.eq.s32.totalorder %s24, 0
    %p118 = por %p116, %p117
    %p119 = scmp.ne.s32.totalorder %s107, %s108
    %p120 = scmp.eq.s32.totalorder %s25, 1
    %p121 = por %p119, %p120
    %p123 = scmp.ne.s32.totalorder %s108, %s122
    %p124 = scmp.eq.s32.totalorder %s25, 0
    %p125 = por %p123, %p124
    %s127 = sadd.s32 %s126, 1
    %p130 = scmp.eq.s32.totalorder %s19, 1
    %p131 = scmp.ne.s32.totalorder %s126, %s128
    %p132 = scmp.eq.s32.totalorder %s19, 0
    %p133 = por %p131, %p132
    %p134 = scmp.ne.s32.totalorder %s126, %s128
    %p135 = scmp.eq.s32.totalorder %s24, 1
    %p136 = por %p134, %p135
    %p137 = scmp.ne.s32.totalorder %s128, %s129
    %p138 = scmp.eq.s32.totalorder %s24, 0
    %p139 = por %p137, %p138
    %p140 = scmp.ne.s32.totalorder %s128, %s129
    %p141 = scmp.eq.s32.totalorder %s25, 1
    %p142 = por %p140, %p141
    %p144 = scmp.ne.s32.totalorder %s129, %s143
    %p145 = scmp.eq.s32.totalorder %s25, 0
    %p146 = por %p144, %p145
    %s148 = sadd.s32 %s147, 1
    %p151 = scmp.eq.s32.totalorder %s19, 1
    %p152 = scmp.ne.s32.totalorder %s147, %s149
    %p153 = scmp.eq.s32.totalorder %s19, 0
    %p154 = por %p152, %p153
    %p155 = scmp.ne.s32.totalorder %s147, %s149
    %p156 = scmp.eq.s32.totalorder %s24, 1
    %p157 = por %p155, %p156
    %p158 = scmp.ne.s32.totalorder %s149, %s150
    %p159 = scmp.eq.s32.totalorder %s24, 0
    %p160 = por %p158, %p159
    %p161 = scmp.ne.s32.totalorder %s149, %s150
    %p162 = scmp.eq.s32.totalorder %s25, 1
    %p163 = por %p161, %p162
    %p165 = scmp.ne.s32.totalorder %s150, %s164
    %p166 = scmp.eq.s32.totalorder %s25, 0
    %p167 = por %p165, %p166
    %s169 = sadd.s32 %s168, 1
    %p172 = scmp.eq.s32.totalorder %s19, 1
    %p173 = scmp.ne.s32.totalorder %s168, %s170
    %p174 = scmp.eq.s32.totalorder %s19, 0
    %p175 = por %p173, %p174
    %p176 = scmp.ne.s32.totalorder %s168, %s170
    %p177 = scmp.eq.s32.totalorder %s24, 1
    %p178 = por %p176, %p177
    %p179 = scmp.ne.s32.totalorder %s170, %s171
    %p180 = scmp.eq.s32.totalorder %s24, 0
    %p181 = por %p179, %p180
    %p182 = scmp.ne.s32.totalorder %s170, %s171
    %p183 = scmp.eq.s32.totalorder %s25, 1
    %p184 = por %p182, %p183
    %p186 = scmp.ne.s32.totalorder %s171, %s185
    %p187 = scmp.eq.s32.totalorder %s25, 0
    %p188 = por %p186, %p187
    %s190 = sadd.s32 %s189, 1
    %p193 = scmp.eq.s32.totalorder %s19, 1
    %p194 = scmp.ne.s32.totalorder %s189, %s191
    %p195 = scmp.eq.s32.totalorder %s19, 0
    %p196 = por %p194, %p195
    %p197 = scmp.ne.s32.totalorder %s189, %s191
    %p198 = scmp.eq.s32.totalorder %s24, 1
    %p199 = por %p197, %p198
    %p200 = scmp.ne.s32.totalorder %s191, %s192
    %p201 = scmp.eq.s32.totalorder %s24, 0
    %p202 = por %p200, %p201
    %p203 = scmp.ne.s32.totalorder %s191, %s192
    %p204 = scmp.eq.s32.totalorder %s25, 1
    %p205 = por %p203, %p204
    %p207 = scmp.ne.s32.totalorder %s192, %s206
    %p208 = scmp.eq.s32.totalorder %s25, 0
    %p209 = por %p207, %p208
    %s211 = sadd.s32 %s210, 1
    %p214 = scmp.eq.s32.totalorder %s19, 1
    %p215 = scmp.ne.s32.totalorder %s210, %s212
    %p216 = scmp.eq.s32.totalorder %s19, 0
    %p217 = por %p215, %p216
    %p218 = scmp.ne.s32.totalorder %s210, %s212
    %p219 = scmp.eq.s32.totalorder %s24, 1
    %p220 = por %p218, %p219
    %p221 = scmp.ne.s32.totalorder %s212, %s213
    %p222 = scmp.eq.s32.totalorder %s24, 0
    %p223 = por %p221, %p222
    %p224 = scmp.ne.s32.totalorder %s212, %s213
    %p225 = scmp.eq.s32.totalorder %s25, 1
    %p226 = por %p224, %p225
    %p228 = scmp.ne.s32.totalorder %s213, %s227
    %p229 = scmp.eq.s32.totalorder %s25, 0
    %p230 = por %p228, %p229
    %s232 = sadd.s32 %s231, 1
    %p235 = scmp.eq.s32.totalorder %s19, 1
    %p236 = scmp.ne.s32.totalorder %s231, %s233
    %p237 = scmp.eq.s32.totalorder %s19, 0
    %p238 = por %p236, %p237
    %p239 = scmp.ne.s32.totalorder %s231, %s233
    %p240 = scmp.eq.s32.totalorder %s24, 1
    %p241 = por %p239, %p240
    %p242 = scmp.ne.s32.totalorder %s233, %s234
    %p243 = scmp.eq.s32.totalorder %s24, 0
    %p244 = por %p242, %p243
    %p245 = scmp.ne.s32.totalorder %s233, %s234
    %p246 = scmp.eq.s32.totalorder %s25, 1
    %p247 = por %p245, %p246
    %p249 = scmp.ne.s32.totalorder %s234, %s248
    %p250 = scmp.eq.s32.totalorder %s25, 0
    %p251 = por %p249, %p250
    %s253 = sadd.s32 %s252, 1
    %p256 = scmp.eq.s32.totalorder %s19, 1
    %p257 = scmp.ne.s32.totalorder %s252, %s254
    %p258 = scmp.eq.s32.totalorder %s19, 0
    %p259 = por %p257, %p258
    %p260 = scmp.ne.s32.totalorder %s252, %s254
    %p261 = scmp.eq.s32.totalorder %s24, 1
    %p262 = por %p260, %p261
    %p263 = scmp.ne.s32.totalorder %s254, %s255
    %p264 = scmp.eq.s32.totalorder %s24, 0
    %p265 = por %p263, %p264
    %p266 = scmp.ne.s32.totalorder %s254, %s255
    %p267 = scmp.eq.s32.totalorder %s25, 1
    %p268 = por %p266, %p267
    %p270 = scmp.ne.s32.totalorder %s255, %s269
    %p271 = scmp.eq.s32.totalorder %s25, 0
    %p272 = por %p270, %p271
    %s274 = sadd.s32 %s273, 1
    %p277 = scmp.eq.s32.totalorder %s19, 1
    %p278 = scmp.ne.s32.totalorder %s273, %s275
    %p279 = scmp.eq.s32.totalorder %s19, 0
    %p280 = por %p278, %p279
    %p281 = scmp.ne.s32.totalorder %s273, %s275
    %p282 = scmp.eq.s32.totalorder %s24, 1
    %p283 = por %p281, %p282
    %p284 = scmp.ne.s32.totalorder %s275, %s276
    %p285 = scmp.eq.s32.totalorder %s24, 0
    %p286 = por %p284, %p285
    %p287 = scmp.ne.s32.totalorder %s275, %s276
    %p288 = scmp.eq.s32.totalorder %s25, 1
    %p289 = por %p287, %p288
    %p291 = scmp.ne.s32.totalorder %s276, %s290
    %p292 = scmp.eq.s32.totalorder %s25, 0
    %p293 = por %p291, %p292
    %s295 = sadd.s32 %s294, 1
    %p298 = scmp.eq.s32.totalorder %s19, 1
    %p299 = scmp.ne.s32.totalorder %s294, %s296
    %p300 = scmp.eq.s32.totalorder %s19, 0
    %p301 = por %p299, %p300
    %p302 = scmp.ne.s32.totalorder %s294, %s296
    %p303 = scmp.eq.s32.totalorder %s24, 1
    %p304 = por %p302, %p303
    %p305 = scmp.ne.s32.totalorder %s296, %s297
    %p306 = scmp.eq.s32.totalorder %s24, 0
    %p307 = por %p305, %p306
    %p308 = scmp.ne.s32.totalorder %s296, %s297
    %p309 = scmp.eq.s32.totalorder %s25, 1
    %p310 = por %p308, %p309
    %p312 = scmp.ne.s32.totalorder %s297, %s311
    %p313 = scmp.eq.s32.totalorder %s25, 0
    %p314 = por %p312, %p313
    %s315 = ssub.s32 %s19, %s26
    %p316 = scmp.eq.s32.totalorder %s315, 0
    %s318 = sadd.s32 %s317, 1
    %s319 = scalar_select %p316, %s317, %s318
    %p322 = pneg %p316
    %p323 = scmp.eq.s32.totalorder %s19, 1
    %p324 = por %p322, %p323
    %p325 = scmp.ne.s32.totalorder %s317, %s320
    %p326 = scmp.eq.s32.totalorder %s19, 0
    %p327 = por %p325, %p326
    %p328 = scmp.ne.s32.totalorder %s317, %s320
    %p329 = scmp.eq.s32.totalorder %s24, 1
    %p330 = por %p328, %p329
    %p331 = scmp.ne.s32.totalorder %s320, %s321
    %p332 = scmp.eq.s32.totalorder %s24, 0
    %p333 = por %p331, %p332
    %p334 = scmp.ne.s32.totalorder %s320, %s321
    %p335 = scmp.eq.s32.totalorder %s25, 1
    %p336 = por %p334, %p335
    %p338 = scmp.ne.s32.totalorder %s321, %s337
    %p339 = scmp.eq.s32.totalorder %s25, 0
    %p340 = por %p338, %p339
    %p341 = scmp.le.s32.totalorder 1, %s19
    %p342 = scmp.lt.s32.totalorder %s19, 3
    %p343 = pnand %p341, %p342
    %p344 = pneg %p343
    // Predicated region
    $region9: #{forward.4} parent=5 // pred_check
      _
    $region10: #{forward.4} parent=5 // pred_check_branch
      %346 = sbr.rel (%p343) target = $region12
    $region11: #{forward.4} parent=5 // pred_region
      %s347 = ssub.s32 %s19, 1
      // Predicated region
      $region13: #{forward.4} parent=11 // pred_check
        %p348 = pneg %p118
      $region14: #{forward.4} parent=11 // pred_check_branch
        %350 = sbr.rel (%p348) target = $region16
      $region15: #{forward.4} parent=11 // pred_region
        _
      $region16: #{forward.4} parent=11 // pred_fallthru
        _
      // Predicated region
      $region17: #{forward.4} parent=11 // pred_check
        %p351 = pneg %p139
      $region18: #{forward.4} parent=11 // pred_check_branch
        %353 = sbr.rel (%p351) target = $region20
      $region19: #{forward.4} parent=11 // pred_region
        _
      $region20: #{forward.4} parent=11 // pred_fallthru
        _
      // Predicated region
      $region21: #{forward.4} parent=11 // pred_check
        %p354 = pneg %p160
      $region22: #{forward.4} parent=11 // pred_check_branch
        %356 = sbr.rel (%p354) target = $region24
      $region23: #{forward.4} parent=11 // pred_region
        _
      $region24: #{forward.4} parent=11 // pred_fallthru
        _
      // Predicated region
      $region25: #{forward.4} parent=11 // pred_check
        %p357 = pneg %p181
      $region26: #{forward.4} parent=11 // pred_check_branch
        %359 = sbr.rel (%p357) target = $region28
      $region27: #{forward.4} parent=11 // pred_region
        _
      $region28: #{forward.4} parent=11 // pred_fallthru
        _
      // Predicated region
      $region29: #{forward.4} parent=11 // pred_check
        %p360 = pneg %p202
      $region30: #{forward.4} parent=11 // pred_check_branch
        %362 = sbr.rel (%p360) target = $region32
      $region31: #{forward.4} parent=11 // pred_region
        _
      $region32: #{forward.4} parent=11 // pred_fallthru
        _
      // Predicated region
      $region33: #{forward.4} parent=11 // pred_check
        %p363 = pneg %p223
      $region34: #{forward.4} parent=11 // pred_check_branch
        %365 = sbr.rel (%p363) target = $region36
      $region35: #{forward.4} parent=11 // pred_region
        _
      $region36: #{forward.4} parent=11 // pred_fallthru
        _
      // Predicated region
      $region37: #{forward.4} parent=11 // pred_check
        %p366 = pneg %p244
      $region38: #{forward.4} parent=11 // pred_check_branch
        %368 = sbr.rel (%p366) target = $region40
      $region39: #{forward.4} parent=11 // pred_region
        _
      $region40: #{forward.4} parent=11 // pred_fallthru
        _
      // Predicated region
      $region41: #{forward.4} parent=11 // pred_check
        %p369 = pneg %p265
      $region42: #{forward.4} parent=11 // pred_check_branch
        %371 = sbr.rel (%p369) target = $region44
      $region43: #{forward.4} parent=11 // pred_region
        _
      $region44: #{forward.4} parent=11 // pred_fallthru
        _
      // Predicated region
      $region45: #{forward.4} parent=11 // pred_check
        %p372 = pneg %p286
      $region46: #{forward.4} parent=11 // pred_check_branch
        %374 = sbr.rel (%p372) target = $region48
      $region47: #{forward.4} parent=11 // pred_region
        _
      $region48: #{forward.4} parent=11 // pred_fallthru
        _
      // Predicated region
      $region49: #{forward.4} parent=11 // pred_check
        %p375 = pneg %p307
      $region50: #{forward.4} parent=11 // pred_check_branch
        %377 = sbr.rel (%p375) target = $region52
      $region51: #{forward.4} parent=11 // pred_region
        _
      $region52: #{forward.4} parent=11 // pred_fallthru
        _
    $region12: #{forward.4} parent=5 // pred_fallthru
      _
    %p378 = scmp.lt.s32.totalorder %s19, 2
    // Predicated region
    $region53: #{forward.4} parent=5 // pred_check
      %p379 = pneg %p378
    $region54: #{forward.4} parent=5 // pred_check_branch
      %381 = sbr.rel (%p379) target = $region56
    $region55: #{forward.4} parent=5 // pred_region
      // Predicated region
      $region57: #{forward.4} parent=55 // pred_check
        %p382 = pneg %p39
      $region58: #{forward.4} parent=55 // pred_check_branch
        %384 = sbr.rel (%p382) target = $region60
      $region59: #{forward.4} parent=55 // pred_region
        %p385 = scmp.lt.s32.totalorder %s19, 1
        %s386 = scalar_select %p385, %s19, 1
        %s387 = smul.addr %s386, 8
        %s388 = scalar_lea.vmem %s0, %s387
      $region60: #{forward.4} parent=55 // pred_fallthru
        _
      // Predicated region
      $region61: #{forward.4} parent=55 // pred_check
        %p389 = pneg %p65
      $region62: #{forward.4} parent=55 // pred_check_branch
        %391 = sbr.rel (%p389) target = $region64
      $region63: #{forward.4} parent=55 // pred_region
        %p392 = scmp.lt.s32.totalorder %s19, 1
        %s393 = scalar_select %p392, %s19, 1
        %s394 = smul.addr %s393, 8
        %s395 = scalar_lea.vmem %s1, %s394
      $region64: #{forward.4} parent=55 // pred_fallthru
        _
      // Predicated region
      $region65: #{forward.4} parent=55 // pred_check
        %p396 = pneg %p91
      $region66: #{forward.4} parent=55 // pred_check_branch
        %398 = sbr.rel (%p396) target = $region68
      $region67: #{forward.4} parent=55 // pred_region
        %p399 = scmp.lt.s32.totalorder %s19, 1
        %s400 = scalar_select %p399, %s19, 1
        %s401 = scalar_lea.vmem %s2, %s400
      $region68: #{forward.4} parent=55 // pred_fallthru
        _
    $region56: #{forward.4} parent=5 // pred_fallthru
      _
    %p402 = scmp.le.s32.totalorder 1, %s19
    %p403 = scmp.lt.s32.totalorder %s19, 3
    %p404 = pnand %p402, %p403
    %p405 = pneg %p404
    // Predicated region
    $region69: #{forward.4} parent=5 // pred_check
      _
    $region70: #{forward.4} parent=5 // pred_check_branch
      %407 = sbr.rel (%p404) target = $region72
    $region71: #{forward.4} parent=5 // pred_region
      %s408 = ssub.s32 %s19, 1
      %p409 = scmp.lt.s32.totalorder %s24, 1
      %s410 = scalar_select %p409, %s24, 1
      %s411 = smul.addr %s410, 8
      %s412 = scalar_lea.vmem %s0, %s411
      %p413 = pneg %p45
      %p414 = pneg %p42
      %p415 = scmp.lt.s32.totalorder %s24, 1
      %s416 = scalar_select %p415, %s24, 1
      %s417 = smul.addr %s416, 8
      %s418 = scalar_lea.vmem %s1, %s417
      %p419 = pneg %p71
      %p420 = pneg %p68
      %p421 = scmp.lt.s32.totalorder %s24, 1
      %s422 = scalar_select %p421, %s24, 1
      %s423 = scalar_lea.vmem %s2, %s422
      %p424 = pneg %p97
      %p425 = pneg %p94
      %p426 = pneg %p118
      %p427 = pneg %p115
      %p428 = pneg %p139
      %p429 = pneg %p136
      %p430 = pneg %p160
      %p431 = pneg %p157
      %p432 = pneg %p181
      %p433 = pneg %p178
      %p434 = pneg %p202
      %p435 = pneg %p199
      %p436 = pneg %p223
      %p437 = pneg %p220
      %p438 = pneg %p244
      %p439 = pneg %p241
      %p440 = pneg %p265
      %p441 = pneg %p262
      %p442 = pneg %p286
      %p443 = pneg %p283
      %p444 = pneg %p307
      %p445 = pneg %p304
      %p446 = pneg %p333
      %p447 = pneg %p330
      %p448 = scmp.lt.s32.totalorder %s24, 1
      %s449 = scalar_select %p448, %s24, 1
      %s450 = scalar_lea.vmem %s13, %s449
      %p451 = scmp.lt.s32.totalorder %s24, 1
      %s452 = scalar_select %p451, %s24, 1
      %s453 = smul.addr %s452, 8
      %s454 = scalar_lea.vmem %s0, %s453
      %p455 = scmp.lt.s32.totalorder %s24, 1
      %s456 = scalar_select %p455, %s24, 1
      %s457 = smul.addr %s456, 8
      %s458 = scalar_lea.vmem %s1, %s457
      %p459 = scmp.lt.s32.totalorder %s24, 1
      %s460 = scalar_select %p459, %s24, 1
      %s461 = scalar_lea.vmem %s2, %s460
      %p462 = scmp.lt.s32.totalorder %s24, 1
      %s463 = scalar_select %p462, %s24, 1
      %s464 = scalar_lea.vmem %s13, %s463
      %v466 = vld [vmem:[%s454] sm:$0xff]
      %v467 = vld [vmem:[%s458] sm:$0xff]
      %v468 = vadd.f32 %v466, %v467
      %v469 = vld [vmem:[%s3] sm:$0x1]
      %v470 = vld [vmem:[%s4] sm:$0x1]
      %471 = vadd.xlane.f32.xlu0 %v468
      %v472 = vpop.xlane.xlu0 %471
      %v473 = vrcp.pop 128.0
      %v474 = vmul.f32 %v472, %v473
      %v475 = vsub.f32 %v468, %v474
      %v476 = vmul.f32 %v475, %v475
      %477 = vadd.xlane.f32.xlu0 %v476
      %v478 = vpop.xlane.xlu0 %477
      %v479 = vmul.f32 %v478, %v473
      %v480 = vadd.f32 %v479, 1e-05
      %v481 = vrsqrt.pop %v480
      %v482 = vmul.f32 %v475, %v481
      %v484 = vlaneseq
      %v485 = vshrl.u32 %v484, 7
      %v486 = vsub.s32 0, %v485
      %v487 = vrot.slane %v469, %v486
      %v489 = vmul.f32 %v482, %v487
      %v491 = vlaneseq
      %v492 = vshrl.u32 %v491, 7
      %v493 = vsub.s32 0, %v492
      %v494 = vrot.slane %v470, %v493
      %v496 = vadd.f32 %v489, %v494
      %v497 = vpack.c.bf16 %v496, %v496
      %v498 = vld [vmem:[%s5] sm:$0xff]
      %v499 = vld [vmem:[%s5 + $0x8] sm:$0xff]
      %v500 = vld [vmem:[%s5 + $0x10] sm:$0xff]
      %v501 = vld [vmem:[%s5 + $0x18] sm:$0xff]
      %v502 = vld [vmem:[%s5 + $0x20] sm:$0xff]
      %v503 = vld [vmem:[%s5 + $0x28] sm:$0xff]
      %v504 = vld [vmem:[%s5 + $0x30] sm:$0xff]
      %v505 = vld [vmem:[%s5 + $0x38] sm:$0xff]
      %v506 = vld [vmem:[%s5 + $0x40] sm:$0xff]
      %v507 = vld [vmem:[%s5 + $0x48] sm:$0xff]
      %v508 = vld [vmem:[%s5 + $0x50] sm:$0xff]
      %v509 = vld [vmem:[%s5 + $0x58] sm:$0xff]
      %v510 = vld [vmem:[%s5 + $0x60] sm:$0xff]
      %v511 = vld [vmem:[%s5 + $0x68] sm:$0xff]
      %v512 = vld [vmem:[%s5 + $0x70] sm:$0xff]
      %v513 = vld [vmem:[%s5 + $0x78] sm:$0xff]
      %v514 = vld [vmem:[%s5 + $0x80] sm:$0xff]
      %v515 = vld [vmem:[%s5 + $0x88] sm:$0xff]
      %v516 = vld [vmem:[%s5 + $0x90] sm:$0xff]
      %v517 = vld [vmem:[%s5 + $0x98] sm:$0xff]
      %v518 = vld [vmem:[%s5 + $0xa0] sm:$0xff]
      %v519 = vld [vmem:[%s5 + $0xa8] sm:$0xff]
      %v520 = vld [vmem:[%s5 + $0xb0] sm:$0xff]
      %v521 = vld [vmem:[%s5 + $0xb8] sm:$0xff]
      %v522 = vld [vmem:[%s5 + $0xc0] sm:$0xff]
      %v523 = vld [vmem:[%s5 + $0xc8] sm:$0xff]
      %v524 = vld [vmem:[%s5 + $0xd0] sm:$0xff]
      %v525 = vld [vmem:[%s5 + $0xd8] sm:$0xff]
      %v526 = vld [vmem:[%s5 + $0xe0] sm:$0xff]
      %v527 = vld [vmem:[%s5 + $0xe8] sm:$0xff]
      %v528 = vld [vmem:[%s5 + $0xf0] sm:$0xff]
      %v529 = vld [vmem:[%s5 + $0xf8] sm:$0xff]
      %v530 = vld [vmem:[%s5 + $0x100] sm:$0xff]
      %v531 = vld [vmem:[%s5 + $0x108] sm:$0xff]
      %v532 = vld [vmem:[%s5 + $0x110] sm:$0xff]
      %v533 = vld [vmem:[%s5 + $0x118] sm:$0xff]
      %v534 = vld [vmem:[%s5 + $0x120] sm:$0xff]
      %v535 = vld [vmem:[%s5 + $0x128] sm:$0xff]
      %v536 = vld [vmem:[%s5 + $0x130] sm:$0xff]
      %v537 = vld [vmem:[%s5 + $0x138] sm:$0xff]
      %v538 = vld [vmem:[%s5 + $0x140] sm:$0xff]
      %v539 = vld [vmem:[%s5 + $0x148] sm:$0xff]
      %v540 = vld [vmem:[%s5 + $0x150] sm:$0xff]
      %v541 = vld [vmem:[%s5 + $0x158] sm:$0xff]
      %v542 = vld [vmem:[%s5 + $0x160] sm:$0xff]
      %v543 = vld [vmem:[%s5 + $0x168] sm:$0xff]
      %v544 = vld [vmem:[%s5 + $0x170] sm:$0xff]
      %v545 = vld [vmem:[%s5 + $0x178] sm:$0xff]
      %v546 = vld [vmem:[%s5 + $0x180] sm:$0xff]
      %v547 = vld [vmem:[%s5 + $0x188] sm:$0xff]
      %v548 = vld [vmem:[%s5 + $0x190] sm:$0xff]
      %v549 = vld [vmem:[%s5 + $0x198] sm:$0xff]
      %v550 = vld [vmem:[%s5 + $0x1a0] sm:$0xff]
      %v551 = vld [vmem:[%s5 + $0x1a8] sm:$0xff]
      %v552 = vld [vmem:[%s5 + $0x1b0] sm:$0xff]
      %v553 = vld [vmem:[%s5 + $0x1b8] sm:$0xff]
      %v554 = vld [vmem:[%s5 + $0x1c0] sm:$0xff]
      %v555 = vld [vmem:[%s5 + $0x1c8] sm:$0xff]
      %v556 = vld [vmem:[%s5 + $0x1d0] sm:$0xff]
      %v557 = vld [vmem:[%s5 + $0x1d8] sm:$0xff]
      %v558 = vld [vmem:[%s5 + $0x1e0] sm:$0xff]
      %v559 = vld [vmem:[%s5 + $0x1e8] sm:$0xff]
      %v560 = vld [vmem:[%s5 + $0x1f0] sm:$0xff]
      %v561 = vld [vmem:[%s5 + $0x1f8] sm:$0xff]
      %v562 = vld [vmem:[%s6] sm:$0xff]
      %v564 = vlaneseq
      %v565 = vshrl.u32 %v564, 7
      %v566 = vsub.s32 0, %v565
      %v567 = vrot.slane %v562, %v566
      %v568 = vlaneseq
      %v569 = vshrl.u32 %v568, 7
      %v570 = vsub.s32 1, %v569
      %v571 = vrot.slane %v562, %v570
      %v572 = vlaneseq
      %v573 = vshrl.u32 %v572, 7
      %v574 = vsub.s32 2, %v573
      %v575 = vrot.slane %v562, %v574
      %v576 = vlaneseq
      %v577 = vshrl.u32 %v576, 7
      %v578 = vsub.s32 3, %v577
      %v579 = vrot.slane %v562, %v578
      %v580 = vlaneseq
      %v581 = vshrl.u32 %v580, 7
      %v582 = vsub.s32 4, %v581
      %v583 = vrot.slane %v562, %v582
      %v584 = vlaneseq
      %v585 = vshrl.u32 %v584, 7
      %v586 = vsub.s32 5, %v585
      %v587 = vrot.slane %v562, %v586
      %v588 = vlaneseq
      %v589 = vshrl.u32 %v588, 7
      %v590 = vsub.s32 6, %v589
      %v591 = vrot.slane %v562, %v590
      %v592 = vlaneseq
      %v593 = vshrl.u32 %v592, 7
      %v594 = vsub.s32 7, %v593
      %v595 = vrot.slane %v562, %v594
      %v668 = vunpack.c.l.b16 %v498
      %v669 = vunpack.c.h.b16 %v498
      %v670 = vunpack.c.l.b16 %v499
      %v671 = vunpack.c.h.b16 %v499
      %v672 = vunpack.c.l.b16 %v500
      %v673 = vunpack.c.h.b16 %v500
      %v674 = vunpack.c.l.b16 %v501
      %v675 = vunpack.c.h.b16 %v501
      %v676 = vunpack.c.l.b16 %v502
      %v677 = vunpack.c.h.b16 %v502
      %v678 = vunpack.c.l.b16 %v503
      %v679 = vunpack.c.h.b16 %v503
      %v680 = vunpack.c.l.b16 %v504
      %v681 = vunpack.c.h.b16 %v504
      %v682 = vunpack.c.l.b16 %v505
      %v683 = vunpack.c.h.b16 %v505
      %v684 = vunpack.c.l.b16 %v506
      %v685 = vunpack.c.h.b16 %v506
      %v686 = vunpack.c.l.b16 %v507
      %v687 = vunpack.c.h.b16 %v507
      %v688 = vunpack.c.l.b16 %v508
      %v689 = vunpack.c.h.b16 %v508
      %v690 = vunpack.c.l.b16 %v509
      %v691 = vunpack.c.h.b16 %v509
      %v692 = vunpack.c.l.b16 %v510
      %v693 = vunpack.c.h.b16 %v510
      %v694 = vunpack.c.l.b16 %v511
      %v695 = vunpack.c.h.b16 %v511
      %v696 = vunpack.c.l.b16 %v512
      %v697 = vunpack.c.h.b16 %v512
      %v698 = vunpack.c.l.b16 %v513
      %v699 = vunpack.c.h.b16 %v513
      %v700 = vunpack.c.l.b16 %v514
      %v701 = vunpack.c.h.b16 %v514
      %v702 = vunpack.c.l.b16 %v515
      %v703 = vunpack.c.h.b16 %v515
      %v704 = vunpack.c.l.b16 %v516
      %v705 = vunpack.c.h.b16 %v516
      %v706 = vunpack.c.l.b16 %v517
      %v707 = vunpack.c.h.b16 %v517
      %v708 = vunpack.c.l.b16 %v518
      %v709 = vunpack.c.h.b16 %v518
      %v710 = vunpack.c.l.b16 %v519
      %v711 = vunpack.c.h.b16 %v519
      %v712 = vunpack.c.l.b16 %v520
      %v713 = vunpack.c.h.b16 %v520
      %v714 = vunpack.c.l.b16 %v521
      %v715 = vunpack.c.h.b16 %v521
      %v716 = vunpack.c.l.b16 %v522
      %v717 = vunpack.c.h.b16 %v522
      %v718 = vunpack.c.l.b16 %v523
      %v719 = vunpack.c.h.b16 %v523
      %v720 = vunpack.c.l.b16 %v524
      %v721 = vunpack.c.h.b16 %v524
      %v722 = vunpack.c.l.b16 %v525
      %v723 = vunpack.c.h.b16 %v525
      %v724 = vunpack.c.l.b16 %v526
      %v725 = vunpack.c.h.b16 %v526
      %v726 = vunpack.c.l.b16 %v527
      %v727 = vunpack.c.h.b16 %v527
      %v728 = vunpack.c.l.b16 %v528
      %v729 = vunpack.c.h.b16 %v528
      %v730 = vunpack.c.l.b16 %v529
      %v731 = vunpack.c.h.b16 %v529
      %v732 = vunpack.c.l.b16 %v530
      %v733 = vunpack.c.h.b16 %v530
      %v734 = vunpack.c.l.b16 %v531
      %v735 = vunpack.c.h.b16 %v531
      %v736 = vunpack.c.l.b16 %v532
      %v737 = vunpack.c.h.b16 %v532
      %v738 = vunpack.c.l.b16 %v533
      %v739 = vunpack.c.h.b16 %v533
      %v740 = vunpack.c.l.b16 %v534
      %v741 = vunpack.c.h.b16 %v534
      %v742 = vunpack.c.l.b16 %v535
      %v743 = vunpack.c.h.b16 %v535
      %v744 = vunpack.c.l.b16 %v536
      %v745 = vunpack.c.h.b16 %v536
      %v746 = vunpack.c.l.b16 %v537
      %v747 = vunpack.c.h.b16 %v537
      %v748 = vunpack.c.l.b16 %v538
      %v749 = vunpack.c.h.b16 %v538
      %v750 = vunpack.c.l.b16 %v539
      %v751 = vunpack.c.h.b16 %v539
      %v752 = vunpack.c.l.b16 %v540
      %v753 = vunpack.c.h.b16 %v540
      %v754 = vunpack.c.l.b16 %v541
      %v755 = vunpack.c.h.b16 %v541
      %v756 = vunpack.c.l.b16 %v542
      %v757 = vunpack.c.h.b16 %v542
      %v758 = vunpack.c.l.b16 %v543
      %v759 = vunpack.c.h.b16 %v543
      %v760 = vunpack.c.l.b16 %v544
      %v761 = vunpack.c.h.b16 %v544
      %v762 = vunpack.c.l.b16 %v545
      %v763 = vunpack.c.h.b16 %v545
      %v764 = vunpack.c.l.b16 %v546
      %v765 = vunpack.c.h.b16 %v546
      %v766 = vunpack.c.l.b16 %v547
      %v767 = vunpack.c.h.b16 %v547
      %v768 = vunpack.c.l.b16 %v548
      %v769 = vunpack.c.h.b16 %v548
      %v770 = vunpack.c.l.b16 %v549
      %v771 = vunpack.c.h.b16 %v549
      %v772 = vunpack.c.l.b16 %v550
      %v773 = vunpack.c.h.b16 %v550
      %v774 = vunpack.c.l.b16 %v551
      %v775 = vunpack.c.h.b16 %v551
      %v776 = vunpack.c.l.b16 %v552
      %v777 = vunpack.c.h.b16 %v552
      %v778 = vunpack.c.l.b16 %v553
      %v779 = vunpack.c.h.b16 %v553
      %v780 = vunpack.c.l.b16 %v554
      %v781 = vunpack.c.h.b16 %v554
      %v782 = vunpack.c.l.b16 %v555
      %v783 = vunpack.c.h.b16 %v555
      %v784 = vunpack.c.l.b16 %v556
      %v785 = vunpack.c.h.b16 %v556
      %v786 = vunpack.c.l.b16 %v557
      %v787 = vunpack.c.h.b16 %v557
      %v788 = vunpack.c.l.b16 %v558
      %v789 = vunpack.c.h.b16 %v558
      %v790 = vunpack.c.l.b16 %v559
      %v791 = vunpack.c.h.b16 %v559
      %v792 = vunpack.c.l.b16 %v560
      %v793 = vunpack.c.h.b16 %v560
      %v794 = vunpack.c.l.b16 %v561
      %v795 = vunpack.c.h.b16 %v561
      %v796 = vpack.c.b16 %v676, %v668
      %v797 = vpack.c.b16 %v677, %v669
      %v798 = vpack.c.b16 %v678, %v670
      %v799 = vpack.c.b16 %v679, %v671
      %v800 = vpack.c.b16 %v680, %v672
      %v801 = vpack.c.b16 %v681, %v673
      %v802 = vpack.c.b16 %v682, %v674
      %v803 = vpack.c.b16 %v683, %v675
      %v804 = vpack.c.b16 %v692, %v684
      %v805 = vpack.c.b16 %v693, %v685
      %v806 = vpack.c.b16 %v694, %v686
      %v807 = vpack.c.b16 %v695, %v687
      %v808 = vpack.c.b16 %v696, %v688
      %v809 = vpack.c.b16 %v697, %v689
      %v810 = vpack.c.b16 %v698, %v690
      %v811 = vpack.c.b16 %v699, %v691
      %v812 = vpack.c.b16 %v708, %v700
      %v813 = vpack.c.b16 %v709, %v701
      %v814 = vpack.c.b16 %v710, %v702
      %v815 = vpack.c.b16 %v711, %v703
      %v816 = vpack.c.b16 %v712, %v704
      %v817 = vpack.c.b16 %v713, %v705
      %v818 = vpack.c.b16 %v714, %v706
      %v819 = vpack.c.b16 %v715, %v707
      %v820 = vpack.c.b16 %v724, %v716
      %v821 = vpack.c.b16 %v725, %v717
      %v822 = vpack.c.b16 %v726, %v718
      %v823 = vpack.c.b16 %v727, %v719
      %v824 = vpack.c.b16 %v728, %v720
      %v825 = vpack.c.b16 %v729, %v721
      %v826 = vpack.c.b16 %v730, %v722
      %v827 = vpack.c.b16 %v731, %v723
      %v828 = vpack.c.b16 %v740, %v732
      %v829 = vpack.c.b16 %v741, %v733
      %v830 = vpack.c.b16 %v742, %v734
      %v831 = vpack.c.b16 %v743, %v735
      %v832 = vpack.c.b16 %v744, %v736
      %v833 = vpack.c.b16 %v745, %v737
      %v834 = vpack.c.b16 %v746, %v738
      %v835 = vpack.c.b16 %v747, %v739
      %v836 = vpack.c.b16 %v756, %v748
      %v837 = vpack.c.b16 %v757, %v749
      %v838 = vpack.c.b16 %v758, %v750
      %v839 = vpack.c.b16 %v759, %v751
      %v840 = vpack.c.b16 %v760, %v752
      %v841 = vpack.c.b16 %v761, %v753
      %v842 = vpack.c.b16 %v762, %v754
      %v843 = vpack.c.b16 %v763, %v755
      %v844 = vpack.c.b16 %v772, %v764
      %v845 = vpack.c.b16 %v773, %v765
      %v846 = vpack.c.b16 %v774, %v766
      %v847 = vpack.c.b16 %v775, %v767
      %v848 = vpack.c.b16 %v776, %v768
      %v849 = vpack.c.b16 %v777, %v769
      %v850 = vpack.c.b16 %v778, %v770
      %v851 = vpack.c.b16 %v779, %v771
      %v852 = vpack.c.b16 %v788, %v780
      %v853 = vpack.c.b16 %v789, %v781
      %v854 = vpack.c.b16 %v790, %v782
      %v855 = vpack.c.b16 %v791, %v783
      %v856 = vpack.c.b16 %v792, %v784
      %v857 = vpack.c.b16 %v793, %v785
      %v858 = vpack.c.b16 %v794, %v786
      %v859 = vpack.c.b16 %v795, %v787
      %924 = vmatprep.subr.bf16.mxu0 %v797
      %925 = vmatpush1.bf16.msra.mxu0 %v796
      %926 = vmatprep.subr.bf16.mxu0 %v805
      %927 = vmatpush1.bf16.msra.mxu0 %v804
      %928 = vmatprep.subr.bf16.mxu0 %v813
      %929 = vmatpush1.bf16.msra.mxu0 %v812
      %930 = vmatprep.subr.bf16.mxu0 %v821
      %931 = vmatpush1.bf16.msra.mxu0 %v820
      %932 = vmatprep.subr.bf16.mxu0 %v829
      %933 = vmatpush1.bf16.msra.mxu0 %v828
      %934 = vmatprep.subr.bf16.mxu0 %v837
      %935 = vmatpush1.bf16.msra.mxu0 %v836
      %936 = vmatprep.subr.bf16.mxu0 %v845
      %937 = vmatpush1.bf16.msra.mxu0 %v844
      %938 = vmatprep.subr.bf16.mxu0 %v853
      %939 = vmatpush1.bf16.msra.mxu0 %v852
      %940 = vmatprep.subr.bf16.mxu0 0
      %941 = vmatpush1.bf16.msra.mxu0 0
      %942 = vmatprep.subr.bf16.mxu0 0
      %943 = vmatpush1.bf16.msra.mxu0 0
      %944 = vmatprep.subr.bf16.mxu0 0
      %945 = vmatpush1.bf16.msra.mxu0 0
      %946 = vmatprep.subr.bf16.mxu0 0
      %947 = vmatpush1.bf16.msra.mxu0 0
      %948 = vmatprep.subr.bf16.mxu0 0
      %949 = vmatpush1.bf16.msra.mxu0 0
      %950 = vmatprep.subr.bf16.mxu0 0
      %951 = vmatpush1.bf16.msra.mxu0 0
      %952 = vmatprep.subr.bf16.mxu0 0
      %953 = vmatpush1.bf16.msra.mxu0 0
      %954 = vmatprep.subr.bf16.mxu0 0
      %955 = vmatpush1.bf16.msra.mxu0 0
      %956 = vmatprep.mubr.bf16.mxu0 0
      %957 = vmatmul.mubr.bf16.gmra.mrb[0].mxu0 %v497
      %v958 = vpop.f32.mrb[0].mxu0
      %v959 = vadd.f32 %v567, %v958
      %v960 = vpop.f32.mrb[0].mxu0
      %v961 = vadd.f32 %v571, %v960
      %v962 = vpop.f32.mrb[0].mxu0
      %v963 = vpop.f32.mrb[0].mxu0
      %964 = vdwg.mxu0
      %965 = vmatprep.subr.bf16.mxu0 %v799
      %966 = vmatpush1.bf16.msra.mxu0 %v798
      %967 = vmatprep.subr.bf16.mxu0 %v807
      %968 = vmatpush1.bf16.msra.mxu0 %v806
      %969 = vmatprep.subr.bf16.mxu0 %v815
      %970 = vmatpush1.bf16.msra.mxu0 %v814
      %971 = vmatprep.subr.bf16.mxu0 %v823
      %972 = vmatpush1.bf16.msra.mxu0 %v822
      %973 = vmatprep.subr.bf16.mxu0 %v831
      %974 = vmatpush1.bf16.msra.mxu0 %v830
      %975 = vmatprep.subr.bf16.mxu0 %v839
      %976 = vmatpush1.bf16.msra.mxu0 %v838
      %977 = vmatprep.subr.bf16.mxu0 %v847
      %978 = vmatpush1.bf16.msra.mxu0 %v846
      %979 = vmatprep.subr.bf16.mxu0 %v855
      %980 = vmatpush1.bf16.msra.mxu0 %v854
      %981 = vmatprep.subr.bf16.mxu0 0
      %982 = vmatpush1.bf16.msra.mxu0 0
      %983 = vmatprep.subr.bf16.mxu0 0
      %984 = vmatpush1.bf16.msra.mxu0 0
      %985 = vmatprep.subr.bf16.mxu0 0
      %986 = vmatpush1.bf16.msra.mxu0 0
      %987 = vmatprep.subr.bf16.mxu0 0
      %988 = vmatpush1.bf16.msra.mxu0 0
      %989 = vmatprep.subr.bf16.mxu0 0
      %990 = vmatpush1.bf16.msra.mxu0 0
      %991 = vmatprep.subr.bf16.mxu0 0
      %992 = vmatpush1.bf16.msra.mxu0 0
      %993 = vmatprep.subr.bf16.mxu0 0
      %994 = vmatpush1.bf16.msra.mxu0 0
      %995 = vmatprep.subr.bf16.mxu0 0
      %996 = vmatpush1.bf16.msra.mxu0 0
      %997 = vmatprep.mubr.bf16.mxu0 0
      %998 = vmatmul.mubr.bf16.gmra.mrb[0].mxu0 %v497
      %v999 = vpop.f32.mrb[0].mxu0
      %v1000 = vadd.f32 %v575, %v999
      %v1001 = vpop.f32.mrb[0].mxu0
      %v1002 = vadd.f32 %v579, %v1001
      %v1003 = vpop.f32.mrb[0].mxu0
      %v1004 = vpop.f32.mrb[0].mxu0
      %1005 = vdwg.mxu0
      %1006 = vmatprep.subr.bf16.mxu0 %v801
      %1007 = vmatpush1.bf16.msra.mxu0 %v800
      %1008 = vmatprep.subr.bf16.mxu0 %v809
      %1009 = vmatpush1.bf16.msra.mxu0 %v808
      %1010 = vmatprep.subr.bf16.mxu0 %v817
      %1011 = vmatpush1.bf16.msra.mxu0 %v816
      %1012 = vmatprep.subr.bf16.mxu0 %v825
      %1013 = vmatpush1.bf16.msra.mxu0 %v824
      %1014 = vmatprep.subr.bf16.mxu0 %v833
      %1015 = vmatpush1.bf16.msra.mxu0 %v832
      %1016 = vmatprep.subr.bf16.mxu0 %v841
      %1017 = vmatpush1.bf16.msra.mxu0 %v840
      %1018 = vmatprep.subr.bf16.mxu0 %v849
      %1019 = vmatpush1.bf16.msra.mxu0 %v848
      %1020 = vmatprep.subr.bf16.mxu0 %v857
      %1021 = vmatpush1.bf16.msra.mxu0 %v856
      %1022 = vmatprep.subr.bf16.mxu0 0
      %1023 = vmatpush1.bf16.msra.mxu0 0
      %1024 = vmatprep.subr.bf16.mxu0 0
      %1025 = vmatpush1.bf16.msra.mxu0 0
      %1026 = vmatprep.subr.bf16.mxu0 0
      %1027 = vmatpush1.bf16.msra.mxu0 0
      %1028 = vmatprep.subr.bf16.mxu0 0
      %1029 = vmatpush1.bf16.msra.mxu0 0
      %1030 = vmatprep.subr.bf16.mxu0 0
      %1031 = vmatpush1.bf16.msra.mxu0 0
      %1032 = vmatprep.subr.bf16.mxu0 0
      %1033 = vmatpush1.bf16.msra.mxu0 0
      %1034 = vmatprep.subr.bf16.mxu0 0
      %1035 = vmatpush1.bf16.msra.mxu0 0
      %1036 = vmatprep.subr.bf16.mxu0 0
      %1037 = vmatpush1.bf16.msra.mxu0 0
      %1038 = vmatprep.mubr.bf16.mxu0 0
      %1039 = vmatmul.mubr.bf16.gmra.mrb[0].mxu0 %v497
      %v1040 = vpop.f32.mrb[0].mxu0
      %v1041 = vadd.f32 %v583, %v1040
      %v1042 = vpop.f32.mrb[0].mxu0
      %v1043 = vadd.f32 %v587, %v1042
      %v1044 = vpop.f32.mrb[0].mxu0
      %v1045 = vpop.f32.mrb[0].mxu0
      %1046 = vdwg.mxu0
      %1047 = vmatprep.subr.bf16.mxu0 %v803
      %1048 = vmatpush1.bf16.msra.mxu0 %v802
      %1049 = vmatprep.subr.bf16.mxu0 %v811
      %1050 = vmatpush1.bf16.msra.mxu0 %v810
      %1051 = vmatprep.subr.bf16.mxu0 %v819
      %1052 = vmatpush1.bf16.msra.mxu0 %v818
      %1053 = vmatprep.subr.bf16.mxu0 %v827
      %1054 = vmatpush1.bf16.msra.mxu0 %v826
      %1055 = vmatprep.subr.bf16.mxu0 %v835
      %1056 = vmatpush1.bf16.msra.mxu0 %v834
      %1057 = vmatprep.subr.bf16.mxu0 %v843
      %1058 = vmatpush1.bf16.msra.mxu0 %v842
      %1059 = vmatprep.subr.bf16.mxu0 %v851
      %1060 = vmatpush1.bf16.msra.mxu0 %v850
      %1061 = vmatprep.subr.bf16.mxu0 %v859
      %1062 = vmatpush1.bf16.msra.mxu0 %v858
      %1063 = vmatprep.subr.bf16.mxu0 0
      %1064 = vmatpush1.bf16.msra.mxu0 0
      %1065 = vmatprep.subr.bf16.mxu0 0
      %1066 = vmatpush1.bf16.msra.mxu0 0
      %1067 = vmatprep.subr.bf16.mxu0 0
      %1068 = vmatpush1.bf16.msra.mxu0 0
      %1069 = vmatprep.subr.bf16.mxu0 0
      %1070 = vmatpush1.bf16.msra.mxu0 0
      %1071 = vmatprep.subr.bf16.mxu0 0
      %1072 = vmatpush1.bf16.msra.mxu0 0
      %1073 = vmatprep.subr.bf16.mxu0 0
      %1074 = vmatpush1.bf16.msra.mxu0 0
      %1075 = vmatprep.subr.bf16.mxu0 0
      %1076 = vmatpush1.bf16.msra.mxu0 0
      %1077 = vmatprep.subr.bf16.mxu0 0
      %1078 = vmatpush1.bf16.msra.mxu0 0
      %1079 = vmatprep.mubr.bf16.mxu0 0
      %1080 = vmatmul.mubr.bf16.gmra.mrb[0].mxu0 %v497
      %v1081 = vpop.f32.mrb[0].mxu0
      %v1082 = vadd.f32 %v591, %v1081
      %v1083 = vpop.f32.mrb[0].mxu0
      %v1084 = vadd.f32 %v595, %v1083
      %v1085 = vpop.f32.mrb[0].mxu0
      %v1086 = vpop.f32.mrb[0].mxu0
      %1087 = vdwg.mxu0
      %v1088 = vmax.f32 %v959, 0.0
      %v1089 = vmax.f32 %v961, 0.0
      %v1090 = vmax.f32 %v1000, 0.0
      %v1091 = vmax.f32 %v1002, 0.0
      %v1092 = vmax.f32 %v1041, 0.0
      %v1093 = vmax.f32 %v1043, 0.0
      %v1094 = vmax.f32 %v1082, 0.0
      %v1095 = vmax.f32 %v1084, 0.0
      %v1096 = vpack.c.bf16 %v1088, %v1088
      %v1097 = vpack.c.bf16 %v1089, %v1089
      %v1098 = vpack.c.bf16 %v1090, %v1090
      %v1099 = vpack.c.bf16 %v1091, %v1091
      %v1100 = vpack.c.bf16 %v1092, %v1092
      %v1101 = vpack.c.bf16 %v1093, %v1093
      %v1102 = vpack.c.bf16 %v1094, %v1094
      %v1103 = vpack.c.bf16 %v1095, %v1095
      %v1104 = vld [vmem:[%s7] sm:$0xf]
      %v1105 = vld [vmem:[%s7 + $0x4] sm:$0xf]
      %v1106 = vld [vmem:[%s7 + $0x8] sm:$0xf]
      %v1107 = vld [vmem:[%s7 + $0xc] sm:$0xf]
      %v1108 = vld [vmem:[%s7 + $0x10] sm:$0xf]
      %v1109 = vld [vmem:[%s7 + $0x14] sm:$0xf]
      %v1110 = vld [vmem:[%s7 + $0x18] sm:$0xf]
      %v1111 = vld [vmem:[%s7 + $0x1c] sm:$0xf]
      %v1112 = vld [vmem:[%s7 + $0x20] sm:$0xf]
      %v1113 = vld [vmem:[%s7 + $0x24] sm:$0xf]
      %v1114 = vld [vmem:[%s7 + $0x28] sm:$0xf]
      %v1115 = vld [vmem:[%s7 + $0x2c] sm:$0xf]
      %v1116 = vld [vmem:[%s7 + $0x30] sm:$0xf]
      %v1117 = vld [vmem:[%s7 + $0x34] sm:$0xf]
      %v1118 = vld [vmem:[%s7 + $0x38] sm:$0xf]
      %v1119 = vld [vmem:[%s7 + $0x3c] sm:$0xf]
      %v1120 = vld [vmem:[%s7 + $0x40] sm:$0xf]
      %v1121 = vld [vmem:[%s7 + $0x44] sm:$0xf]
      %v1122 = vld [vmem:[%s7 + $0x48] sm:$0xf]
      %v1123 = vld [vmem:[%s7 + $0x4c] sm:$0xf]
      %v1124 = vld [vmem:[%s7 + $0x50] sm:$0xf]
      %v1125 = vld [vmem:[%s7 + $0x54] sm:$0xf]
      %v1126 = vld [vmem:[%s7 + $0x58] sm:$0xf]
      %v1127 = vld [vmem:[%s7 + $0x5c] sm:$0xf]
      %v1128 = vld [vmem:[%s7 + $0x60] sm:$0xf]
      %v1129 = vld [vmem:[%s7 + $0x64] sm:$0xf]
      %v1130 = vld [vmem:[%s7 + $0x68] sm:$0xf]
      %v1131 = vld [vmem:[%s7 + $0x6c] sm:$0xf]
      %v1132 = vld [vmem:[%s7 + $0x70] sm:$0xf]
      %v1133 = vld [vmem:[%s7 + $0x74] sm:$0xf]
      %v1134 = vld [vmem:[%s7 + $0x78] sm:$0xf]
      %v1135 = vld [vmem:[%s7 + $0x7c] sm:$0xf]
      %v1136 = vld [vmem:[%s7 + $0x80] sm:$0xf]
      %v1137 = vld [vmem:[%s7 + $0x84] sm:$0xf]
      %v1138 = vld [vmem:[%s7 + $0x88] sm:$0xf]
      %v1139 = vld [vmem:[%s7 + $0x8c] sm:$0xf]
      %v1140 = vld [vmem:[%s7 + $0x90] sm:$0xf]
      %v1141 = vld [vmem:[%s7 + $0x94] sm:$0xf]
      %v1142 = vld [vmem:[%s7 + $0x98] sm:$0xf]
      %v1143 = vld [vmem:[%s7 + $0x9c] sm:$0xf]
      %v1144 = vld [vmem:[%s7 + $0xa0] sm:$0xf]
      %v1145 = vld [vmem:[%s7 + $0xa4] sm:$0xf]
      %v1146 = vld [vmem:[%s7 + $0xa8] sm:$0xf]
      %v1147 = vld [vmem:[%s7 + $0xac] sm:$0xf]
      %v1148 = vld [vmem:[%s7 + $0xb0] sm:$0xf]
      %v1149 = vld [vmem:[%s7 + $0xb4] sm:$0xf]
      %v1150 = vld [vmem:[%s7 + $0xb8] sm:$0xf]
      %v1151 = vld [vmem:[%s7 + $0xbc] sm:$0xf]
      %v1152 = vld [vmem:[%s7 + $0xc0] sm:$0xf]
      %v1153 = vld [vmem:[%s7 + $0xc4] sm:$0xf]
      %v1154 = vld [vmem:[%s7 + $0xc8] sm:$0xf]
      %v1155 = vld [vmem:[%s7 + $0xcc] sm:$0xf]
      %v1156 = vld [vmem:[%s7 + $0xd0] sm:$0xf]
      %v1157 = vld [vmem:[%s7 + $0xd4] sm:$0xf]
      %v1158 = vld [vmem:[%s7 + $0xd8] sm:$0xf]
      %v1159 = vld [vmem:[%s7 + $0xdc] sm:$0xf]
      %v1160 = vld [vmem:[%s7 + $0xe0] sm:$0xf]
      %v1161 = vld [vmem:[%s7 + $0xe4] sm:$0xf]
      %v1162 = vld [vmem:[%s7 + $0xe8] sm:$0xf]
      %v1163 = vld [vmem:[%s7 + $0xec] sm:$0xf]
      %v1164 = vld [vmem:[%s7 + $0xf0] sm:$0xf]
      %v1165 = vld [vmem:[%s7 + $0xf4] sm:$0xf]
      %v1166 = vld [vmem:[%s7 + $0xf8] sm:$0xf]
      %v1167 = vld [vmem:[%s7 + $0xfc] sm:$0xf]
      %v1168 = vld [vmem:[%s7 + $0x100] sm:$0xf]
      %v1169 = vld [vmem:[%s7 + $0x104] sm:$0xf]
      %v1170 = vld [vmem:[%s7 + $0x108] sm:$0xf]
      %v1171 = vld [vmem:[%s7 + $0x10c] sm:$0xf]
      %v1172 = vld [vmem:[%s7 + $0x110] sm:$0xf]
      %v1173 = vld [vmem:[%s7 + $0x114] sm:$0xf]
      %v1174 = vld [vmem:[%s7 + $0x118] sm:$0xf]
      %v1175 = vld [vmem:[%s7 + $0x11c] sm:$0xf]
      %v1176 = vld [vmem:[%s7 + $0x120] sm:$0xf]
      %v1177 = vld [vmem:[%s7 + $0x124] sm:$0xf]
      %v1178 = vld [vmem:[%s7 + $0x128] sm:$0xf]
      %v1179 = vld [vmem:[%s7 + $0x12c] sm:$0xf]
      %v1180 = vld [vmem:[%s7 + $0x130] sm:$0xf]
      %v1181 = vld [vmem:[%s7 + $0x134] sm:$0xf]
      %v1182 = vld [vmem:[%s7 + $0x138] sm:$0xf]
      %v1183 = vld [vmem:[%s7 + $0x13c] sm:$0xf]
      %v1184 = vld [vmem:[%s7 + $0x140] sm:$0xf]
      %v1185 = vld [vmem:[%s7 + $0x144] sm:$0xf]
      %v1186 = vld [vmem:[%s7 + $0x148] sm:$0xf]
      %v1187 = vld [vmem:[%s7 + $0x14c] sm:$0xf]
      %v1188 = vld [vmem:[%s7 + $0x150] sm:$0xf]
      %v1189 = vld [vmem:[%s7 + $0x154] sm:$0xf]
      %v1190 = vld [vmem:[%s7 + $0x158] sm:$0xf]
      %v1191 = vld [vmem:[%s7 + $0x15c] sm:$0xf]
      %v1192 = vld [vmem:[%s7 + $0x160] sm:$0xf]
      %v1193 = vld [vmem:[%s7 + $0x164] sm:$0xf]
      %v1194 = vld [vmem:[%s7 + $0x168] sm:$0xf]
      %v1195 = vld [vmem:[%s7 + $0x16c] sm:$0xf]
      %v1196 = vld [vmem:[%s7 + $0x170] sm:$0xf]
      %v1197 = vld [vmem:[%s7 + $0x174] sm:$0xf]
      %v1198 = vld [vmem:[%s7 + $0x178] sm:$0xf]
      %v1199 = vld [vmem:[%s7 + $0x17c] sm:$0xf]
      %v1200 = vld [vmem:[%s7 + $0x180] sm:$0xf]
      %v1201 = vld [vmem:[%s7 + $0x184] sm:$0xf]
      %v1202 = vld [vmem:[%s7 + $0x188] sm:$0xf]
      %v1203 = vld [vmem:[%s7 + $0x18c] sm:$0xf]
      %v1204 = vld [vmem:[%s7 + $0x190] sm:$0xf]
      %v1205 = vld [vmem:[%s7 + $0x194] sm:$0xf]
      %v1206 = vld [vmem:[%s7 + $0x198] sm:$0xf]
      %v1207 = vld [vmem:[%s7 + $0x19c] sm:$0xf]
      %v1208 = vld [vmem:[%s7 + $0x1a0] sm:$0xf]
      %v1209 = vld [vmem:[%s7 + $0x1a4] sm:$0xf]
      %v1210 = vld [vmem:[%s7 + $0x1a8] sm:$0xf]
      %v1211 = vld [vmem:[%s7 + $0x1ac] sm:$0xf]
      %v1212 = vld [vmem:[%s7 + $0x1b0] sm:$0xf]
      %v1213 = vld [vmem:[%s7 + $0x1b4] sm:$0xf]
      %v1214 = vld [vmem:[%s7 + $0x1b8] sm:$0xf]
      %v1215 = vld [vmem:[%s7 + $0x1bc] sm:$0xf]
      %v1216 = vld [vmem:[%s7 + $0x1c0] sm:$0xf]
      %v1217 = vld [vmem:[%s7 + $0x1c4] sm:$0xf]
      %v1218 = vld [vmem:[%s7 + $0x1c8] sm:$0xf]
      %v1219 = vld [vmem:[%s7 + $0x1cc] sm:$0xf]
      %v1220 = vld [vmem:[%s7 + $0x1d0] sm:$0xf]
      %v1221 = vld [vmem:[%s7 + $0x1d4] sm:$0xf]
      %v1222 = vld [vmem:[%s7 + $0x1d8] sm:$0xf]
      %v1223 = vld [vmem:[%s7 + $0x1dc] sm:$0xf]
      %v1224 = vld [vmem:[%s7 + $0x1e0] sm:$0xf]
      %v1225 = vld [vmem:[%s7 + $0x1e4] sm:$0xf]
      %v1226 = vld [vmem:[%s7 + $0x1e8] sm:$0xf]
      %v1227 = vld [vmem:[%s7 + $0x1ec] sm:$0xf]
      %v1228 = vld [vmem:[%s7 + $0x1f0] sm:$0xf]
      %v1229 = vld [vmem:[%s7 + $0x1f4] sm:$0xf]
      %v1230 = vld [vmem:[%s7 + $0x1f8] sm:$0xf]
      %v1231 = vld [vmem:[%s7 + $0x1fc] sm:$0xf]
      %v1232 = vld [vmem:[%s8] sm:$0x1]
      %v1234 = vlaneseq
      %v1235 = vshrl.u32 %v1234, 7
      %v1236 = vsub.s32 0, %v1235
      %v1237 = vrot.slane %v1232, %v1236
      %v1367 = vunpack.c.l.b16 %v1104
      %v1368 = vunpack.c.l.b16 %v1105
      %v1369 = vunpack.c.l.b16 %v1106
      %v1370 = vunpack.c.l.b16 %v1107
      %v1371 = vunpack.c.l.b16 %v1108
      %v1372 = vunpack.c.l.b16 %v1109
      %v1373 = vunpack.c.l.b16 %v1110
      %v1374 = vunpack.c.l.b16 %v1111
      %v1375 = vunpack.c.l.b16 %v1112
      %v1376 = vunpack.c.l.b16 %v1113
      %v1377 = vunpack.c.l.b16 %v1114
      %v1378 = vunpack.c.l.b16 %v1115
      %v1379 = vunpack.c.l.b16 %v1116
      %v1380 = vunpack.c.l.b16 %v1117
      %v1381 = vunpack.c.l.b16 %v1118
      %v1382 = vunpack.c.l.b16 %v1119
      %v1383 = vunpack.c.l.b16 %v1120
      %v1384 = vunpack.c.l.b16 %v1121
      %v1385 = vunpack.c.l.b16 %v1122
      %v1386 = vunpack.c.l.b16 %v1123
      %v1387 = vunpack.c.l.b16 %v1124
      %v1388 = vunpack.c.l.b16 %v1125
      %v1389 = vunpack.c.l.b16 %v1126
      %v1390 = vunpack.c.l.b16 %v1127
      %v1391 = vunpack.c.l.b16 %v1128
      %v1392 = vunpack.c.l.b16 %v1129
      %v1393 = vunpack.c.l.b16 %v1130
      %v1394 = vunpack.c.l.b16 %v1131
      %v1395 = vunpack.c.l.b16 %v1132
      %v1396 = vunpack.c.l.b16 %v1133
      %v1397 = vunpack.c.l.b16 %v1134
      %v1398 = vunpack.c.l.b16 %v1135
      %v1399 = vunpack.c.l.b16 %v1136
      %v1400 = vunpack.c.l.b16 %v1137
      %v1401 = vunpack.c.l.b16 %v1138
      %v1402 = vunpack.c.l.b16 %v1139
      %v1403 = vunpack.c.l.b16 %v1140
      %v1404 = vunpack.c.l.b16 %v1141
      %v1405 = vunpack.c.l.b16 %v1142
      %v1406 = vunpack.c.l.b16 %v1143
      %v1407 = vunpack.c.l.b16 %v1144
      %v1408 = vunpack.c.l.b16 %v1145
      %v1409 = vunpack.c.l.b16 %v1146
      %v1410 = vunpack.c.l.b16 %v1147
      %v1411 = vunpack.c.l.b16 %v1148
      %v1412 = vunpack.c.l.b16 %v1149
      %v1413 = vunpack.c.l.b16 %v1150
      %v1414 = vunpack.c.l.b16 %v1151
      %v1415 = vunpack.c.l.b16 %v1152
      %v1416 = vunpack.c.l.b16 %v1153
      %v1417 = vunpack.c.l.b16 %v1154
      %v1418 = vunpack.c.l.b16 %v1155
      %v1419 = vunpack.c.l.b16 %v1156
      %v1420 = vunpack.c.l.b16 %v1157
      %v1421 = vunpack.c.l.b16 %v1158
      %v1422 = vunpack.c.l.b16 %v1159
      %v1423 = vunpack.c.l.b16 %v1160
      %v1424 = vunpack.c.l.b16 %v1161
      %v1425 = vunpack.c.l.b16 %v1162
      %v1426 = vunpack.c.l.b16 %v1163
      %v1427 = vunpack.c.l.b16 %v1164
      %v1428 = vunpack.c.l.b16 %v1165
      %v1429 = vunpack.c.l.b16 %v1166
      %v1430 = vunpack.c.l.b16 %v1167
      %v1431 = vunpack.c.l.b16 %v1168
      %v1432 = vunpack.c.l.b16 %v1169
      %v1433 = vunpack.c.l.b16 %v1170
      %v1434 = vunpack.c.l.b16 %v1171
      %v1435 = vunpack.c.l.b16 %v1172
      %v1436 = vunpack.c.l.b16 %v1173
      %v1437 = vunpack.c.l.b16 %v1174
      %v1438 = vunpack.c.l.b16 %v1175
      %v1439 = vunpack.c.l.b16 %v1176
      %v1440 = vunpack.c.l.b16 %v1177
      %v1441 = vunpack.c.l.b16 %v1178
      %v1442 = vunpack.c.l.b16 %v1179
      %v1443 = vunpack.c.l.b16 %v1180
      %v1444 = vunpack.c.l.b16 %v1181
      %v1445 = vunpack.c.l.b16 %v1182
      %v1446 = vunpack.c.l.b16 %v1183
      %v1447 = vunpack.c.l.b16 %v1184
      %v1448 = vunpack.c.l.b16 %v1185
      %v1449 = vunpack.c.l.b16 %v1186
      %v1450 = vunpack.c.l.b16 %v1187
      %v1451 = vunpack.c.l.b16 %v1188
      %v1452 = vunpack.c.l.b16 %v1189
      %v1453 = vunpack.c.l.b16 %v1190
      %v1454 = vunpack.c.l.b16 %v1191
      %v1455 = vunpack.c.l.b16 %v1192
      %v1456 = vunpack.c.l.b16 %v1193
      %v1457 = vunpack.c.l.b16 %v1194
      %v1458 = vunpack.c.l.b16 %v1195
      %v1459 = vunpack.c.l.b16 %v1196
      %v1460 = vunpack.c.l.b16 %v1197
      %v1461 = vunpack.c.l.b16 %v1198
      %v1462 = vunpack.c.l.b16 %v1199
      %v1463 = vunpack.c.l.b16 %v1200
      %v1464 = vunpack.c.l.b16 %v1201
      %v1465 = vunpack.c.l.b16 %v1202
      %v1466 = vunpack.c.l.b16 %v1203
      %v1467 = vunpack.c.l.b16 %v1204
      %v1468 = vunpack.c.l.b16 %v1205
      %v1469 = vunpack.c.l.b16 %v1206
      %v1470 = vunpack.c.l.b16 %v1207
      %v1471 = vunpack.c.l.b16 %v1208
      %v1472 = vunpack.c.l.b16 %v1209
      %v1473 = vunpack.c.l.b16 %v1210
      %v1474 = vunpack.c.l.b16 %v1211
      %v1475 = vunpack.c.l.b16 %v1212
      %v1476 = vunpack.c.l.b16 %v1213
      %v1477 = vunpack.c.l.b16 %v1214
      %v1478 = vunpack.c.l.b16 %v1215
      %v1479 = vunpack.c.l.b16 %v1216
      %v1480 = vunpack.c.l.b16 %v1217
      %v1481 = vunpack.c.l.b16 %v1218
      %v1482 = vunpack.c.l.b16 %v1219
      %v1483 = vunpack.c.l.b16 %v1220
      %v1484 = vunpack.c.l.b16 %v1221
      %v1485 = vunpack.c.l.b16 %v1222
      %v1486 = vunpack.c.l.b16 %v1223
      %v1487 = vunpack.c.l.b16 %v1224
      %v1488 = vunpack.c.l.b16 %v1225
      %v1489 = vunpack.c.l.b16 %v1226
      %v1490 = vunpack.c.l.b16 %v1227
      %v1491 = vunpack.c.l.b16 %v1228
      %v1492 = vunpack.c.l.b16 %v1229
      %v1493 = vunpack.c.l.b16 %v1230
      %v1494 = vunpack.c.l.b16 %v1231
      %v1495 = vpack.c.b16 %v1368, %v1367
      %v1496 = vpack.c.b16 %v1370, %v1369
      %v1497 = vpack.c.b16 %v1372, %v1371
      %v1498 = vpack.c.b16 %v1374, %v1373
      %v1499 = vpack.c.b16 %v1376, %v1375
      %v1500 = vpack.c.b16 %v1378, %v1377
      %v1501 = vpack.c.b16 %v1380, %v1379
      %v1502 = vpack.c.b16 %v1382, %v1381
      %v1503 = vpack.c.b16 %v1384, %v1383
      %v1504 = vpack.c.b16 %v1386, %v1385
      %v1505 = vpack.c.b16 %v1388, %v1387
      %v1506 = vpack.c.b16 %v1390, %v1389
      %v1507 = vpack.c.b16 %v1392, %v1391
      %v1508 = vpack.c.b16 %v1394, %v1393
      %v1509 = vpack.c.b16 %v1396, %v1395
      %v1510 = vpack.c.b16 %v1398, %v1397
      %v1511 = vpack.c.b16 %v1400, %v1399
      %v1512 = vpack.c.b16 %v1402, %v1401
      %v1513 = vpack.c.b16 %v1404, %v1403
      %v1514 = vpack.c.b16 %v1406, %v1405
      %v1515 = vpack.c.b16 %v1408, %v1407
      %v1516 = vpack.c.b16 %v1410, %v1409
      %v1517 = vpack.c.b16 %v1412, %v1411
      %v1518 = vpack.c.b16 %v1414, %v1413
      %v1519 = vpack.c.b16 %v1416, %v1415
      %v1520 = vpack.c.b16 %v1418, %v1417
      %v1521 = vpack.c.b16 %v1420, %v1419
      %v1522 = vpack.c.b16 %v1422, %v1421
      %v1523 = vpack.c.b16 %v1424, %v1423
      %v1524 = vpack.c.b16 %v1426, %v1425
      %v1525 = vpack.c.b16 %v1428, %v1427
      %v1526 = vpack.c.b16 %v1430, %v1429
      %v1527 = vpack.c.b16 %v1432, %v1431
      %v1528 = vpack.c.b16 %v1434, %v1433
      %v1529 = vpack.c.b16 %v1436, %v1435
      %v1530 = vpack.c.b16 %v1438, %v1437
      %v1531 = vpack.c.b16 %v1440, %v1439
      %v1532 = vpack.c.b16 %v1442, %v1441
      %v1533 = vpack.c.b16 %v1444, %v1443
      %v1534 = vpack.c.b16 %v1446, %v1445
      %v1535 = vpack.c.b16 %v1448, %v1447
      %v1536 = vpack.c.b16 %v1450, %v1449
      %v1537 = vpack.c.b16 %v1452, %v1451
      %v1538 = vpack.c.b16 %v1454, %v1453
      %v1539 = vpack.c.b16 %v1456, %v1455
      %v1540 = vpack.c.b16 %v1458, %v1457
      %v1541 = vpack.c.b16 %v1460, %v1459
      %v1542 = vpack.c.b16 %v1462, %v1461
      %v1543 = vpack.c.b16 %v1464, %v1463
      %v1544 = vpack.c.b16 %v1466, %v1465
      %v1545 = vpack.c.b16 %v1468, %v1467
      %v1546 = vpack.c.b16 %v1470, %v1469
      %v1547 = vpack.c.b16 %v1472, %v1471
      %v1548 = vpack.c.b16 %v1474, %v1473
      %v1549 = vpack.c.b16 %v1476, %v1475
      %v1550 = vpack.c.b16 %v1478, %v1477
      %v1551 = vpack.c.b16 %v1480, %v1479
      %v1552 = vpack.c.b16 %v1482, %v1481
      %v1553 = vpack.c.b16 %v1484, %v1483
      %v1554 = vpack.c.b16 %v1486, %v1485
      %v1555 = vpack.c.b16 %v1488, %v1487
      %v1556 = vpack.c.b16 %v1490, %v1489
      %v1557 = vpack.c.b16 %v1492, %v1491
      %v1558 = vpack.c.b16 %v1494, %v1493
      %1623 = vmatprep.subr.bf16.mxu0 0
      %1624 = vmatpush1.bf16.msra.mxu0 %v1495
      %1625 = vmatprep.subr.bf16.mxu0 0
      %1626 = vmatpush1.bf16.msra.mxu0 %v1496
      %1627 = vmatprep.subr.bf16.mxu0 0
      %1628 = vmatpush1.bf16.msra.mxu0 %v1497
      %1629 = vmatprep.subr.bf16.mxu0 0
      %1630 = vmatpush1.bf16.msra.mxu0 %v1498
      %1631 = vmatprep.subr.bf16.mxu0 0
      %1632 = vmatpush1.bf16.msra.mxu0 %v1499
      %1633 = vmatprep.subr.bf16.mxu0 0
      %1634 = vmatpush1.bf16.msra.mxu0 %v1500
      %1635 = vmatprep.subr.bf16.mxu0 0
      %1636 = vmatpush1.bf16.msra.mxu0 %v1501
      %1637 = vmatprep.subr.bf16.mxu0 0
      %1638 = vmatpush1.bf16.msra.mxu0 %v1502
      %1639 = vmatprep.subr.bf16.mxu0 0
      %1640 = vmatpush1.bf16.msra.mxu0 %v1503
      %1641 = vmatprep.subr.bf16.mxu0 0
      %1642 = vmatpush1.bf16.msra.mxu0 %v1504
      %1643 = vmatprep.subr.bf16.mxu0 0
      %1644 = vmatpush1.bf16.msra.mxu0 %v1505
      %1645 = vmatprep.subr.bf16.mxu0 0
      %1646 = vmatpush1.bf16.msra.mxu0 %v1506
      %1647 = vmatprep.subr.bf16.mxu0 0
      %1648 = vmatpush1.bf16.msra.mxu0 %v1507
      %1649 = vmatprep.subr.bf16.mxu0 0
      %1650 = vmatpush1.bf16.msra.mxu0 %v1508
      %1651 = vmatprep.subr.bf16.mxu0 0
      %1652 = vmatpush1.bf16.msra.mxu0 %v1509
      %1653 = vmatprep.subr.bf16.mxu0 0
      %1654 = vmatpush1.bf16.msra.mxu0 %v1510
      %1655 = vmatprep.mubr.bf16.mxu0 %v1097
      %1656 = vmatmul.mubr.bf16.gmra.mrb[0].mxu0 %v1096
      %v1657 = vpop.f32.mrb[0].mxu0
      %v1658 = vadd.f32 %v1237, %v1657
      %v1659 = vpop.f32.mrb[0].mxu0
      %v1660 = vpop.f32.mrb[0].mxu0
      %v1661 = vpop.f32.mrb[0].mxu0
      %1662 = vdwg.mxu0
      %1663 = vmatprep.subr.bf16.mxu0 0
      %1664 = vmatpush1.bf16.msra.mxu0 %v1511
      %1665 = vmatprep.subr.bf16.mxu0 0
      %1666 = vmatpush1.bf16.msra.mxu0 %v1512
      %1667 = vmatprep.subr.bf16.mxu0 0
      %1668 = vmatpush1.bf16.msra.mxu0 %v1513
      %1669 = vmatprep.subr.bf16.mxu0 0
      %1670 = vmatpush1.bf16.msra.mxu0 %v1514
      %1671 = vmatprep.subr.bf16.mxu0 0
      %1672 = vmatpush1.bf16.msra.mxu0 %v1515
      %1673 = vmatprep.subr.bf16.mxu0 0
      %1674 = vmatpush1.bf16.msra.mxu0 %v1516
      %1675 = vmatprep.subr.bf16.mxu0 0
      %1676 = vmatpush1.bf16.msra.mxu0 %v1517
      %1677 = vmatprep.subr.bf16.mxu0 0
      %1678 = vmatpush1.bf16.msra.mxu0 %v1518
      %1679 = vmatprep.subr.bf16.mxu0 0
      %1680 = vmatpush1.bf16.msra.mxu0 %v1519
      %1681 = vmatprep.subr.bf16.mxu0 0
      %1682 = vmatpush1.bf16.msra.mxu0 %v1520
      %1683 = vmatprep.subr.bf16.mxu0 0
      %1684 = vmatpush1.bf16.msra.mxu0 %v1521
      %1685 = vmatprep.subr.bf16.mxu0 0
      %1686 = vmatpush1.bf16.msra.mxu0 %v1522
      %1687 = vmatprep.subr.bf16.mxu0 0
      %1688 = vmatpush1.bf16.msra.mxu0 %v1523
      %1689 = vmatprep.subr.bf16.mxu0 0
      %1690 = vmatpush1.bf16.msra.mxu0 %v1524
      %1691 = vmatprep.subr.bf16.mxu0 0
      %1692 = vmatpush1.bf16.msra.mxu0 %v1525
      %1693 = vmatprep.subr.bf16.mxu0 0
      %1694 = vmatpush1.bf16.msra.mxu0 %v1526
      %1695 = vmatprep.mubr.bf16.mxu0 %v1099
      %1696 = vmatmul.mubr.bf16.gmra.mrb[0].mxu0 %v1098
      %v1697 = vpop.f32.mrb[0].mxu0
      %v1698 = vadd.f32 %v1658, %v1697
      %v1699 = vpop.f32.mrb[0].mxu0
      %v1700 = vpop.f32.mrb[0].mxu0
      %v1701 = vpop.f32.mrb[0].mxu0
      %1702 = vdwg.mxu0
      %1703 = vmatprep.subr.bf16.mxu0 0
      %1704 = vmatpush1.bf16.msra.mxu0 %v1527
      %1705 = vmatprep.subr.bf16.mxu0 0
      %1706 = vmatpush1.bf16.msra.mxu0 %v1528
      %1707 = vmatprep.subr.bf16.mxu0 0
      %1708 = vmatpush1.bf16.msra.mxu0 %v1529
      %1709 = vmatprep.subr.bf16.mxu0 0
      %1710 = vmatpush1.bf16.msra.mxu0 %v1530
      %1711 = vmatprep.subr.bf16.mxu0 0
      %1712 = vmatpush1.bf16.msra.mxu0 %v1531
      %1713 = vmatprep.subr.bf16.mxu0 0
      %1714 = vmatpush1.bf16.msra.mxu0 %v1532
      %1715 = vmatprep.subr.bf16.mxu0 0
      %1716 = vmatpush1.bf16.msra.mxu0 %v1533
      %1717 = vmatprep.subr.bf16.mxu0 0
      %1718 = vmatpush1.bf16.msra.mxu0 %v1534
      %1719 = vmatprep.subr.bf16.mxu0 0
      %1720 = vmatpush1.bf16.msra.mxu0 %v1535
      %1721 = vmatprep.subr.bf16.mxu0 0
      %1722 = vmatpush1.bf16.msra.mxu0 %v1536
      %1723 = vmatprep.subr.bf16.mxu0 0
      %1724 = vmatpush1.bf16.msra.mxu0 %v1537
      %1725 = vmatprep.subr.bf16.mxu0 0
      %1726 = vmatpush1.bf16.msra.mxu0 %v1538
      %1727 = vmatprep.subr.bf16.mxu0 0
      %1728 = vmatpush1.bf16.msra.mxu0 %v1539
      %1729 = vmatprep.subr.bf16.mxu0 0
      %1730 = vmatpush1.bf16.msra.mxu0 %v1540
      %1731 = vmatprep.subr.bf16.mxu0 0
      %1732 = vmatpush1.bf16.msra.mxu0 %v1541
      %1733 = vmatprep.subr.bf16.mxu0 0
      %1734 = vmatpush1.bf16.msra.mxu0 %v1542
      %1735 = vmatprep.mubr.bf16.mxu0 %v1101
      %1736 = vmatmul.mubr.bf16.gmra.mrb[0].mxu0 %v1100
      %v1737 = vpop.f32.mrb[0].mxu0
      %v1738 = vadd.f32 %v1698, %v1737
      %v1739 = vpop.f32.mrb[0].mxu0
      %v1740 = vpop.f32.mrb[0].mxu0
      %v1741 = vpop.f32.mrb[0].mxu0
      %1742 = vdwg.mxu0
      %1743 = vmatprep.subr.bf16.mxu0 0
      %1744 = vmatpush1.bf16.msra.mxu0 %v1543
      %1745 = vmatprep.subr.bf16.mxu0 0
      %1746 = vmatpush1.bf16.msra.mxu0 %v1544
      %1747 = vmatprep.subr.bf16.mxu0 0
      %1748 = vmatpush1.bf16.msra.mxu0 %v1545
      %1749 = vmatprep.subr.bf16.mxu0 0
      %1750 = vmatpush1.bf16.msra.mxu0 %v1546
      %1751 = vmatprep.subr.bf16.mxu0 0
      %1752 = vmatpush1.bf16.msra.mxu0 %v1547
      %1753 = vmatprep.subr.bf16.mxu0 0
      %1754 = vmatpush1.bf16.msra.mxu0 %v1548
      %1755 = vmatprep.subr.bf16.mxu0 0
      %1756 = vmatpush1.bf16.msra.mxu0 %v1549
      %1757 = vmatprep.subr.bf16.mxu0 0
      %1758 = vmatpush1.bf16.msra.mxu0 %v1550
      %1759 = vmatprep.subr.bf16.mxu0 0
      %1760 = vmatpush1.bf16.msra.mxu0 %v1551
      %1761 = vmatprep.subr.bf16.mxu0 0
      %1762 = vmatpush1.bf16.msra.mxu0 %v1552
      %1763 = vmatprep.subr.bf16.mxu0 0
      %1764 = vmatpush1.bf16.msra.mxu0 %v1553
      %1765 = vmatprep.subr.bf16.mxu0 0
      %1766 = vmatpush1.bf16.msra.mxu0 %v1554
      %1767 = vmatprep.subr.bf16.mxu0 0
      %1768 = vmatpush1.bf16.msra.mxu0 %v1555
      %1769 = vmatprep.subr.bf16.mxu0 0
      %1770 = vmatpush1.bf16.msra.mxu0 %v1556
      %1771 = vmatprep.subr.bf16.mxu0 0
      %1772 = vmatpush1.bf16.msra.mxu0 %v1557
      %1773 = vmatprep.subr.bf16.mxu0 0
      %1774 = vmatpush1.bf16.msra.mxu0 %v1558
      %1775 = vmatprep.mubr.bf16.mxu0 %v1103
      %1776 = vmatmul.mubr.bf16.gmra.mrb[0].mxu0 %v1102
      %v1777 = vpop.f32.mrb[0].mxu0
      %v1778 = vadd.f32 %v1738, %v1777
      %v1779 = vpop.f32.mrb[0].mxu0
      %v1780 = vpop.f32.mrb[0].mxu0
      %v1781 = vpop.f32.mrb[0].mxu0
      %1782 = vdwg.mxu0
      %v1783 = vadd.f32 %v496, %v1778
      %v1784 = vld [vmem:[%s9] sm:$0x1]
      %v1785 = vld [vmem:[%s10] sm:$0x1]
      %1786 = vadd.xlane.f32.xlu0 %v1783
      %v1787 = vpop.xlane.xlu0 %1786
      %v1788 = vmul.f32 %v1787, %v473
      %v1789 = vsub.f32 %v1783, %v1788
      %v1790 = vmul.f32 %v1789, %v1789
      %1791 = vadd.xlane.f32.xlu0 %v1790
      %v1792 = vpop.xlane.xlu0 %1791
      %v1793 = vmul.f32 %v1792, %v473
      %v1794 = vadd.f32 %v1793, 1e-05
      %v1795 = vrsqrt.pop %v1794
      %v1796 = vmul.f32 %v1789, %v1795
      %v1798 = vlaneseq
      %v1799 = vshrl.u32 %v1798, 7
      %v1800 = vsub.s32 0, %v1799
      %v1801 = vrot.slane %v1784, %v1800
      %v1803 = vmul.f32 %v1796, %v1801
      %v1805 = vlaneseq
      %v1806 = vshrl.u32 %v1805, 7
      %v1807 = vsub.s32 0, %v1806
      %v1808 = vrot.slane %v1785, %v1807
      %v1810 = vadd.f32 %v1803, %v1808
      %v1811 = vld [vmem:[%s11] sm:$0x1]
      %v1812 = vld [vmem:[%s12] sm:$0x1]
      %1813 = vadd.xlane.f32.xlu0 %v1810
      %v1814 = vpop.xlane.xlu0 %1813
      %v1815 = vmul.f32 %v1814, %v473
      %v1816 = vsub.f32 %v1810, %v1815
      %v1817 = vmul.f32 %v1816, %v1816
      %1818 = vadd.xlane.f32.xlu0 %v1817
      %v1819 = vpop.xlane.xlu0 %1818
      %v1820 = vmul.f32 %v1819, %v473
      %v1821 = vadd.f32 %v1820, 1e-05
      %v1822 = vrsqrt.pop %v1821
      %v1823 = vmul.f32 %v1816, %v1822
      %v1825 = vlaneseq
      %v1826 = vshrl.u32 %v1825, 7
      %v1827 = vsub.s32 0, %v1826
      %v1828 = vrot.slane %v1811, %v1827
      %v1830 = vmul.f32 %v1823, %v1828
      %v1832 = vlaneseq
      %v1833 = vshrl.u32 %v1832, 7
      %v1834 = vsub.s32 0, %v1833
      %v1835 = vrot.slane %v1812, %v1834
      %v1837 = vadd.f32 %v1830, %v1835
      %v1838 = vld [vmem:[%s461] sm:$0x1]
      %vm1839 = vcmask 64512
      %v1841 = vsel %vm1839, %v1838, 0
      %1843 = vmatprep.subr.mxu0 0.0
      %1844 = vmatpush1.msra.mxu0 %v1837
      %1845 = vmatprep.subr.mxu0 0.0
      %1846 = vmatpush1.msra.mxu0 0.0
      %1847 = vmatprep.subr.mxu0 0.0
      %1848 = vmatpush1.msra.mxu0 0.0
      %1849 = vmatprep.subr.mxu0 0.0
      %1850 = vmatpush1.msra.mxu0 0.0
      %1851 = vmatprep.subr.mxu0 0.0
      %1852 = vmatpush1.msra.mxu0 0.0
      %1853 = vmatprep.subr.mxu0 0.0
      %1854 = vmatpush1.msra.mxu0 0.0
      %1855 = vmatprep.subr.mxu0 0.0
      %1856 = vmatpush1.msra.mxu0 0.0
      %1857 = vmatprep.subr.mxu0 0.0
      %1858 = vmatpush1.msra.mxu0 0.0
      %1859 = vmatprep.subr.mxu0 0.0
      %1860 = vmatpush1.msra.mxu0 0.0
      %1861 = vmatprep.subr.mxu0 0.0
      %1862 = vmatpush1.msra.mxu0 0.0
      %1863 = vmatprep.subr.mxu0 0.0
      %1864 = vmatpush1.msra.mxu0 0.0
      %1865 = vmatprep.subr.mxu0 0.0
      %1866 = vmatpush1.msra.mxu0 0.0
      %1867 = vmatprep.subr.mxu0 0.0
      %1868 = vmatpush1.msra.mxu0 0.0
      %1869 = vmatprep.subr.mxu0 0.0
      %1870 = vmatpush1.msra.mxu0 0.0
      %1871 = vmatprep.subr.mxu0 0.0
      %1872 = vmatpush1.msra.mxu0 0.0
      %1873 = vmatprep.subr.mxu0 0.0
      %1874 = vmatpush1.msra.mxu0 0.0
      %1875 = vmatprep.subr.mxu0 0.0
      %1876 = vmatpush1.msra.mxu0 0.0
      %1877 = vmatprep.subr.mxu0 0.0
      %1878 = vmatpush1.msra.mxu0 0.0
      %1879 = vmatprep.subr.mxu0 0.0
      %1880 = vmatpush1.msra.mxu0 0.0
      %1881 = vmatprep.subr.mxu0 0.0
      %1882 = vmatpush1.msra.mxu0 0.0
      %1883 = vmatprep.subr.mxu0 0.0
      %1884 = vmatpush1.msra.mxu0 0.0
      %1885 = vmatprep.subr.mxu0 0.0
      %1886 = vmatpush1.msra.mxu0 0.0
      %1887 = vmatprep.subr.mxu0 0.0
      %1888 = vmatpush1.msra.mxu0 0.0
      %1889 = vmatprep.subr.mxu0 0.0
      %1890 = vmatpush1.msra.mxu0 0.0
      %1891 = vmatprep.subr.mxu0 0.0
      %1892 = vmatpush1.msra.mxu0 0.0
      %1893 = vmatprep.subr.mxu0 0.0
      %1894 = vmatpush1.msra.mxu0 0.0
      %1895 = vmatprep.subr.mxu0 0.0
      %1896 = vmatpush1.msra.mxu0 0.0
      %1897 = vmatprep.subr.mxu0 0.0
      %1898 = vmatpush1.msra.mxu0 0.0
      %1899 = vmatprep.subr.mxu0 0.0
      %1900 = vmatpush1.msra.mxu0 0.0
      %1901 = vmatprep.subr.mxu0 0.0
      %1902 = vmatpush1.msra.mxu0 0.0
      %1903 = vmatprep.subr.mxu0 0.0
      %1904 = vmatpush1.msra.mxu0 0.0
      %1905 = vmatprep.subr.mxu0 0.0
      %1906 = vmatpush1.msra.mxu0 0.0
      %1907 = vmatprep.mubr.f32.mxu0 0.0
      %1908 = vmatmul.mubr.f32.gmra.mrb[0].mxu0 %v1841
      %v1909 = vpop.f32.mrb[0].mxu0
      %v1910 = vadd.f32 0.0, %v1909
      %v1911 = vpop.f32.mrb[0].mxu0
      %1912 = vdwg.mxu0
      %vm1913 = vcmask 57344
      %v1914 = vsel %vm1913, %v1838, 0.0
      %1915 = vadd.xlane.f32.xlu0 %v1914
      %v1916 = vpop.xlane.xlu0 %1915
      %v1917 = vmax.f32 %v1916, 1.0
      %v1918 = vrcp.pop %v1917
      %v1919 = vmul.f32 %v1910, %v1918
      %1920 = vst [vmem:[%s464] sm:$0x1] %v1919
      %p1921 = scmp.lt.s32.totalorder %s24, 1
      %s1922 = scalar_select %p1921, %s24, 1
      %s1923 = scalar_lea.vmem %s13, %s1922
      // Predicated region
      $region73: #{forward.4} parent=71 // pred_check
        %p1924 = pneg %p330
      $region74: #{forward.4} parent=71 // pred_check_branch
        %1926 = sbr.rel (%p1924) target = $region76
      $region75: #{forward.4} parent=71 // pred_region
        _
      $region76: #{forward.4} parent=71 // pred_fallthru
        _
    $region72: #{forward.4} parent=5 // pred_fallthru
      _
    %p1927 = scmp.le.s32.totalorder 2, %s19
    // Predicated region
    $region77: #{forward.4} parent=5 // pred_check
      %p1928 = pneg %p1927
    $region78: #{forward.4} parent=5 // pred_check_branch
      %1930 = sbr.rel (%p1928) target = $region80
    $region79: #{forward.4} parent=5 // pred_region
      %s1931 = ssub.s32 %s19, 2
      // Predicated region
      $region81: #{forward.4} parent=79 // pred_check
        %p1932 = pneg %p336
      $region82: #{forward.4} parent=79 // pred_check_branch
        %1934 = sbr.rel (%p1932) target = $region84
      $region83: #{forward.4} parent=79 // pred_region
        %p1935 = scmp.lt.s32.totalorder %s25, 1
        %s1936 = scalar_select %p1935, %s25, 1
        %s1937 = scalar_lea.vmem %s13, %s1936
      $region84: #{forward.4} parent=79 // pred_fallthru
        _
    $region80: #{forward.4} parent=5 // pred_fallthru
      _
  $region6: #{forward.4} parent=0 // loop_footer
    %s23 = sadd.s32 1, %s19
  $region7: #{forward.4} parent=0 // loop_footer_branch
    %18 = sbr.rel target = $region3
  $region8: #{forward.4} parent=0 // loop_exit
    _

// kernel: forward.5
$region0: #{forward.5}
  #allocation0 [shape = 'u32[]', space=smem, size = 0x4, offset = 0x4, fixed_abs, tag = 'smem constant byte address 0x4 - core index']
  #allocation1 [shape = 'u32[144,128]{1,0:T(1,128)}', space=vmem, size = 0x12000, scoped, tag = 'internal scratch']
  #allocation2 [shape = 'f32[1,1]{1,0:T(1,128)S(1)}', space=vmem, size = 0x200, scoped, tag = 'scoped memory for forward.5']
  #allocation3 [shape = 'f32[1,1]{1,0:T(1,128)S(1)}', space=vmem, size = 0x200, scoped, tag = 'scoped memory for forward.5']
  #allocation4 [shape = 'f32[1,1]{1,0:T(1,128)S(1)}', space=vmem, size = 0x200, scoped, tag = 'scoped memory for forward.5']
  %s0 = inlined_call_operand.vmem [shape: f32[2,128], index: 0, kind: input, shape index: {}]
  %s1 = inlined_call_operand.vmem [shape: bf16[128,1024], index: 1, kind: input, shape index: {}]
  %s2 = inlined_call_operand.vmem [shape: f32[1,1024], index: 2, kind: input, shape index: {}]
  %s3 = inlined_call_operand.vmem [shape: f32[1,1024], index: 3, kind: input, shape index: {}]
  %s4 = inlined_call_operand.vmem [shape: bf16[1024,256], index: 4, kind: input, shape index: {}]
  %s5 = inlined_call_operand.vmem [shape: f32[1,256], index: 5, kind: input, shape index: {}]
  %s6 = inlined_call_operand.vmem [shape: f32[1,256], index: 6, kind: input, shape index: {}]
  %s7 = inlined_call_operand.vmem [shape: f32[256,1], index: 7, kind: input, shape index: {}]
  %s8 = inlined_call_operand.<no memory space> [shape: f32[1,1], index: 8, kind: input, shape index: {}]
  %s9 = inlined_call_operand.vmem [shape: bf16[128,1024], index: 9, kind: input, shape index: {}]
  %s10 = inlined_call_operand.vmem [shape: f32[1,1024], index: 10, kind: input, shape index: {}]
  %s11 = inlined_call_operand.vmem [shape: f32[1,1024], index: 11, kind: input, shape index: {}]
  %s12 = inlined_call_operand.vmem [shape: bf16[1024,256], index: 12, kind: input, shape index: {}]
  %s13 = inlined_call_operand.vmem [shape: f32[1,256], index: 13, kind: input, shape index: {}]
  %s14 = inlined_call_operand.vmem [shape: f32[1,256], index: 14, kind: input, shape index: {}]
  %s15 = inlined_call_operand.<no memory space> [shape: f32[1,1], index: 15, kind: input, shape index: {}]
  %s16 = inlined_call_operand.vmem [shape: f32[256,1], index: 16, kind: input, shape index: {}]
  %s17 = inlined_call_operand.<no memory space> [shape: f32[1,1], index: 17, kind: input, shape index: {}]
  %s18 = inlined_call_operand.vmem [shape: f32[2,1], index: 18, kind: output, shape index: {0}]
  %s19 = inlined_call_operand.vmem [shape: f32[2,1], index: 19, kind: output, shape index: {1}]
  %20 = xla_tuple %s18, %s19
  %s21 = sld [smem:[#allocation0]]
  $region90: #{forward.5} parent=0
    _
  %s23 = ssub.s32 1, %s21
  %s24 = scalar_select 0, %s23, %s21
  %v25 = vstv %s8
  %26 = vst [vmem:[#allocation2] sm:$0x1] %v25
  %v27 = vstv %s15
  %28 = vst [vmem:[#allocation3] sm:$0x1] %v27
  %v29 = vstv %s17
  %30 = vst [vmem:[#allocation4] sm:$0x1] %v29
  // Predicated region
  $region2: #{forward.5} parent=0 // pred_check
    _
  $region3: #{forward.5} parent=0 // pred_check_branch
    %32 = sbr.rel (0) target = $region5
  $region4: #{forward.5} parent=0 // pred_region
    _
  $region5: #{forward.5} parent=0 // pred_fallthru
    _
  // Predicated region
  $region6: #{forward.5} parent=0 // pred_check
    _
  $region7: #{forward.5} parent=0 // pred_check_branch
    %34 = sbr.rel (0) target = $region9
  $region8: #{forward.5} parent=0 // pred_region
    _
  $region9: #{forward.5} parent=0 // pred_fallthru
    _
  // Predicated region
  $region10: #{forward.5} parent=0 // pred_check
    _
  $region11: #{forward.5} parent=0 // pred_check_branch
    %36 = sbr.rel (0) target = $region13
  $region12: #{forward.5} parent=0 // pred_region
    _
  $region13: #{forward.5} parent=0 // pred_fallthru
    _
  // Predicated region
  $region14: #{forward.5} parent=0 // pred_check
    _
  $region15: #{forward.5} parent=0 // pred_check_branch
    %38 = sbr.rel (0) target = $region17
  $region16: #{forward.5} parent=0 // pred_region
    _
  $region17: #{forward.5} parent=0 // pred_fallthru
    _
  // Predicated region
  $region18: #{forward.5} parent=0 // pred_check
    _
  $region19: #{forward.5} parent=0 // pred_check_branch
    %40 = sbr.rel (0) target = $region21
  $region20: #{forward.5} parent=0 // pred_region
    _
  $region21: #{forward.5} parent=0 // pred_fallthru
    _
  // Predicated region
  $region22: #{forward.5} parent=0 // pred_check
    _
  $region23: #{forward.5} parent=0 // pred_check_branch
    %42 = sbr.rel (0) target = $region25
  $region24: #{forward.5} parent=0 // pred_region
    _
  $region25: #{forward.5} parent=0 // pred_fallthru
    _
  // Predicated region
  $region26: #{forward.5} parent=0 // pred_check
    _
  $region27: #{forward.5} parent=0 // pred_check_branch
    %44 = sbr.rel (0) target = $region29
  $region28: #{forward.5} parent=0 // pred_region
    _
  $region29: #{forward.5} parent=0 // pred_fallthru
    _
  // Predicated region
  $region30: #{forward.5} parent=0 // pred_check
    _
  $region31: #{forward.5} parent=0 // pred_check_branch
    %46 = sbr.rel (0) target = $region33
  $region32: #{forward.5} parent=0 // pred_region
    _
  $region33: #{forward.5} parent=0 // pred_fallthru
    _
  // Predicated region
  $region34: #{forward.5} parent=0 // pred_check
    _
  $region35: #{forward.5} parent=0 // pred_check_branch
    %48 = sbr.rel (0) target = $region37
  $region36: #{forward.5} parent=0 // pred_region
    _
  $region37: #{forward.5} parent=0 // pred_fallthru
    _
  // Predicated region
  $region38: #{forward.5} parent=0 // pred_check
    _
  $region39: #{forward.5} parent=0 // pred_check_branch
    %50 = sbr.rel (0) target = $region41
  $region40: #{forward.5} parent=0 // pred_region
    _
  $region41: #{forward.5} parent=0 // pred_fallthru
    _
  // Predicated region
  $region42: #{forward.5} parent=0 // pred_check
    _
  $region43: #{forward.5} parent=0 // pred_check_branch
    %52 = sbr.rel (0) target = $region45
  $region44: #{forward.5} parent=0 // pred_region
    _
  $region45: #{forward.5} parent=0 // pred_fallthru
    _
  // Predicated region
  $region46: #{forward.5} parent=0 // pred_check
    _
  $region47: #{forward.5} parent=0 // pred_check_branch
    %54 = sbr.rel (0) target = $region49
  $region48: #{forward.5} parent=0 // pred_region
    _
  $region49: #{forward.5} parent=0 // pred_fallthru
    _
  // Predicated region
  $region50: #{forward.5} parent=0 // pred_check
    _
  $region51: #{forward.5} parent=0 // pred_check_branch
    %56 = sbr.rel (0) target = $region53
  $region52: #{forward.5} parent=0 // pred_region
    _
  $region53: #{forward.5} parent=0 // pred_fallthru
    _
  // Predicated region
  $region54: #{forward.5} parent=0 // pred_check
    _
  $region55: #{forward.5} parent=0 // pred_check_branch
    %58 = sbr.rel (0) target = $region57
  $region56: #{forward.5} parent=0 // pred_region
    _
  $region57: #{forward.5} parent=0 // pred_fallthru
    _
  // Predicated region
  $region58: #{forward.5} parent=0 // pred_check
    _
  $region59: #{forward.5} parent=0 // pred_check_branch
    %60 = sbr.rel (0) target = $region61
  $region60: #{forward.5} parent=0 // pred_region
    _
  $region61: #{forward.5} parent=0 // pred_fallthru
    _
  // Predicated region
  $region62: #{forward.5} parent=0 // pred_check
    _
  $region63: #{forward.5} parent=0 // pred_check_branch
    %62 = sbr.rel (0) target = $region65
  $region64: #{forward.5} parent=0 // pred_region
    _
  $region65: #{forward.5} parent=0 // pred_fallthru
    _
  // Predicated region
  $region66: #{forward.5} parent=0 // pred_check
    _
  $region67: #{forward.5} parent=0 // pred_check_branch
    %64 = sbr.rel (0) target = $region69
  $region68: #{forward.5} parent=0 // pred_region
    _
  $region69: #{forward.5} parent=0 // pred_fallthru
    _
  // Predicated region
  $region70: #{forward.5} parent=0 // pred_check
    _
  $region71: #{forward.5} parent=0 // pred_check_branch
    %66 = sbr.rel (0) target = $region73
  $region72: #{forward.5} parent=0 // pred_region
    _
  $region73: #{forward.5} parent=0 // pred_fallthru
    _
  %v68 = vld [vmem:[%s0] sm:$0x3]
  %v69 = vpack.c.bf16 %v68, %v68
  %v70 = vld [vmem:[%s1] sm:$0xff]
  %v71 = vld [vmem:[%s1 + $0x8] sm:$0xff]
  %v72 = vld [vmem:[%s1 + $0x10] sm:$0xff]
  %v73 = vld [vmem:[%s1 + $0x18] sm:$0xff]
  %v74 = vld [vmem:[%s1 + $0x20] sm:$0xff]
  %v75 = vld [vmem:[%s1 + $0x28] sm:$0xff]
  %v76 = vld [vmem:[%s1 + $0x30] sm:$0xff]
  %v77 = vld [vmem:[%s1 + $0x38] sm:$0xff]
  %v78 = vld [vmem:[%s1 + $0x40] sm:$0xff]
  %v79 = vld [vmem:[%s1 + $0x48] sm:$0xff]
  %v80 = vld [vmem:[%s1 + $0x50] sm:$0xff]
  %v81 = vld [vmem:[%s1 + $0x58] sm:$0xff]
  %v82 = vld [vmem:[%s1 + $0x60] sm:$0xff]
  %v83 = vld [vmem:[%s1 + $0x68] sm:$0xff]
  %v84 = vld [vmem:[%s1 + $0x70] sm:$0xff]
  %v85 = vld [vmem:[%s1 + $0x78] sm:$0xff]
  %v86 = vld [vmem:[%s1 + $0x80] sm:$0xff]
  %v87 = vld [vmem:[%s1 + $0x88] sm:$0xff]
  %v88 = vld [vmem:[%s1 + $0x90] sm:$0xff]
  %v89 = vld [vmem:[%s1 + $0x98] sm:$0xff]
  %v90 = vld [vmem:[%s1 + $0xa0] sm:$0xff]
  %v91 = vld [vmem:[%s1 + $0xa8] sm:$0xff]
  %v92 = vld [vmem:[%s1 + $0xb0] sm:$0xff]
  %v93 = vld [vmem:[%s1 + $0xb8] sm:$0xff]
  %v94 = vld [vmem:[%s1 + $0xc0] sm:$0xff]
  %v95 = vld [vmem:[%s1 + $0xc8] sm:$0xff]
  %v96 = vld [vmem:[%s1 + $0xd0] sm:$0xff]
  %v97 = vld [vmem:[%s1 + $0xd8] sm:$0xff]
  %v98 = vld [vmem:[%s1 + $0xe0] sm:$0xff]
  %v99 = vld [vmem:[%s1 + $0xe8] sm:$0xff]
  %v100 = vld [vmem:[%s1 + $0xf0] sm:$0xff]
  %v101 = vld [vmem:[%s1 + $0xf8] sm:$0xff]
  %v102 = vld [vmem:[%s1 + $0x100] sm:$0xff]
  %v103 = vld [vmem:[%s1 + $0x108] sm:$0xff]
  %v104 = vld [vmem:[%s1 + $0x110] sm:$0xff]
  %v105 = vld [vmem:[%s1 + $0x118] sm:$0xff]
  %v106 = vld [vmem:[%s1 + $0x120] sm:$0xff]
  %v107 = vld [vmem:[%s1 + $0x128] sm:$0xff]
  %v108 = vld [vmem:[%s1 + $0x130] sm:$0xff]
  %v109 = vld [vmem:[%s1 + $0x138] sm:$0xff]
  %v110 = vld [vmem:[%s1 + $0x140] sm:$0xff]
  %v111 = vld [vmem:[%s1 + $0x148] sm:$0xff]
  %v112 = vld [vmem:[%s1 + $0x150] sm:$0xff]
  %v113 = vld [vmem:[%s1 + $0x158] sm:$0xff]
  %v114 = vld [vmem:[%s1 + $0x160] sm:$0xff]
  %v115 = vld [vmem:[%s1 + $0x168] sm:$0xff]
  %v116 = vld [vmem:[%s1 + $0x170] sm:$0xff]
  %v117 = vld [vmem:[%s1 + $0x178] sm:$0xff]
  %v118 = vld [vmem:[%s1 + $0x180] sm:$0xff]
  %v119 = vld [vmem:[%s1 + $0x188] sm:$0xff]
  %v120 = vld [vmem:[%s1 + $0x190] sm:$0xff]
  %v121 = vld [vmem:[%s1 + $0x198] sm:$0xff]
  %v122 = vld [vmem:[%s1 + $0x1a0] sm:$0xff]
  %v123 = vld [vmem:[%s1 + $0x1a8] sm:$0xff]
  %v124 = vld [vmem:[%s1 + $0x1b0] sm:$0xff]
  %v125 = vld [vmem:[%s1 + $0x1b8] sm:$0xff]
  %v126 = vld [vmem:[%s1 + $0x1c0] sm:$0xff]
  %v127 = vld [vmem:[%s1 + $0x1c8] sm:$0xff]
  %v128 = vld [vmem:[%s1 + $0x1d0] sm:$0xff]
  %v129 = vld [vmem:[%s1 + $0x1d8] sm:$0xff]
  %v130 = vld [vmem:[%s1 + $0x1e0] sm:$0xff]
  %v131 = vld [vmem:[%s1 + $0x1e8] sm:$0xff]
  %v132 = vld [vmem:[%s1 + $0x1f0] sm:$0xff]
  %v133 = vld [vmem:[%s1 + $0x1f8] sm:$0xff]
  %v198 = vunpack.c.l.b16 %v70
  %v199 = vunpack.c.h.b16 %v70
  %v200 = vunpack.c.l.b16 %v71
  %v201 = vunpack.c.h.b16 %v71
  %v202 = vunpack.c.l.b16 %v72
  %v203 = vunpack.c.h.b16 %v72
  %v204 = vunpack.c.l.b16 %v73
  %v205 = vunpack.c.h.b16 %v73
  %v206 = vunpack.c.l.b16 %v74
  %v207 = vunpack.c.h.b16 %v74
  %v208 = vunpack.c.l.b16 %v75
  %v209 = vunpack.c.h.b16 %v75
  %v210 = vunpack.c.l.b16 %v76
  %v211 = vunpack.c.h.b16 %v76
  %v212 = vunpack.c.l.b16 %v77
  %v213 = vunpack.c.h.b16 %v77
  %v214 = vunpack.c.l.b16 %v78
  %v215 = vunpack.c.h.b16 %v78
  %v216 = vunpack.c.l.b16 %v79
  %v217 = vunpack.c.h.b16 %v79
  %v218 = vunpack.c.l.b16 %v80
  %v219 = vunpack.c.h.b16 %v80
  %v220 = vunpack.c.l.b16 %v81
  %v221 = vunpack.c.h.b16 %v81
  %v222 = vunpack.c.l.b16 %v82
  %v223 = vunpack.c.h.b16 %v82
  %v224 = vunpack.c.l.b16 %v83
  %v225 = vunpack.c.h.b16 %v83
  %v226 = vunpack.c.l.b16 %v84
  %v227 = vunpack.c.h.b16 %v84
  %v228 = vunpack.c.l.b16 %v85
  %v229 = vunpack.c.h.b16 %v85
  %v230 = vunpack.c.l.b16 %v86
  %v231 = vunpack.c.h.b16 %v86
  %v232 = vunpack.c.l.b16 %v87
  %v233 = vunpack.c.h.b16 %v87
  %v234 = vunpack.c.l.b16 %v88
  %v235 = vunpack.c.h.b16 %v88
  %v236 = vunpack.c.l.b16 %v89
  %v237 = vunpack.c.h.b16 %v89
  %v238 = vunpack.c.l.b16 %v90
  %v239 = vunpack.c.h.b16 %v90
  %v240 = vunpack.c.l.b16 %v91
  %v241 = vunpack.c.h.b16 %v91
  %v242 = vunpack.c.l.b16 %v92
  %v243 = vunpack.c.h.b16 %v92
  %v244 = vunpack.c.l.b16 %v93
  %v245 = vunpack.c.h.b16 %v93
  %v246 = vunpack.c.l.b16 %v94
  %v247 = vunpack.c.h.b16 %v94
  %v248 = vunpack.c.l.b16 %v95
  %v249 = vunpack.c.h.b16 %v95
  %v250 = vunpack.c.l.b16 %v96
  %v251 = vunpack.c.h.b16 %v96
  %v252 = vunpack.c.l.b16 %v97
  %v253 = vunpack.c.h.b16 %v97
  %v254 = vunpack.c.l.b16 %v98
  %v255 = vunpack.c.h.b16 %v98
  %v256 = vunpack.c.l.b16 %v99
  %v257 = vunpack.c.h.b16 %v99
  %v258 = vunpack.c.l.b16 %v100
  %v259 = vunpack.c.h.b16 %v100
  %v260 = vunpack.c.l.b16 %v101
  %v261 = vunpack.c.h.b16 %v101
  %v262 = vunpack.c.l.b16 %v102
  %v263 = vunpack.c.h.b16 %v102
  %v264 = vunpack.c.l.b16 %v103
  %v265 = vunpack.c.h.b16 %v103
  %v266 = vunpack.c.l.b16 %v104
  %v267 = vunpack.c.h.b16 %v104
  %v268 = vunpack.c.l.b16 %v105
  %v269 = vunpack.c.h.b16 %v105
  %v270 = vunpack.c.l.b16 %v106
  %v271 = vunpack.c.h.b16 %v106
  %v272 = vunpack.c.l.b16 %v107
  %v273 = vunpack.c.h.b16 %v107
  %v274 = vunpack.c.l.b16 %v108
  %v275 = vunpack.c.h.b16 %v108
  %v276 = vunpack.c.l.b16 %v109
  %v277 = vunpack.c.h.b16 %v109
  %v278 = vunpack.c.l.b16 %v110
  %v279 = vunpack.c.h.b16 %v110
  %v280 = vunpack.c.l.b16 %v111
  %v281 = vunpack.c.h.b16 %v111
  %v282 = vunpack.c.l.b16 %v112
  %v283 = vunpack.c.h.b16 %v112
  %v284 = vunpack.c.l.b16 %v113
  %v285 = vunpack.c.h.b16 %v113
  %v286 = vunpack.c.l.b16 %v114
  %v287 = vunpack.c.h.b16 %v114
  %v288 = vunpack.c.l.b16 %v115
  %v289 = vunpack.c.h.b16 %v115
  %v290 = vunpack.c.l.b16 %v116
  %v291 = vunpack.c.h.b16 %v116
  %v292 = vunpack.c.l.b16 %v117
  %v293 = vunpack.c.h.b16 %v117
  %v294 = vunpack.c.l.b16 %v118
  %v295 = vunpack.c.h.b16 %v118
  %v296 = vunpack.c.l.b16 %v119
  %v297 = vunpack.c.h.b16 %v119
  %v298 = vunpack.c.l.b16 %v120
  %v299 = vunpack.c.h.b16 %v120
  %v300 = vunpack.c.l.b16 %v121
  %v301 = vunpack.c.h.b16 %v121
  %v302 = vunpack.c.l.b16 %v122
  %v303 = vunpack.c.h.b16 %v122
  %v304 = vunpack.c.l.b16 %v123
  %v305 = vunpack.c.h.b16 %v123
  %v306 = vunpack.c.l.b16 %v124
  %v307 = vunpack.c.h.b16 %v124
  %v308 = vunpack.c.l.b16 %v125
  %v309 = vunpack.c.h.b16 %v125
  %v310 = vunpack.c.l.b16 %v126
  %v311 = vunpack.c.h.b16 %v126
  %v312 = vunpack.c.l.b16 %v127
  %v313 = vunpack.c.h.b16 %v127
  %v314 = vunpack.c.l.b16 %v128
  %v315 = vunpack.c.h.b16 %v128
  %v316 = vunpack.c.l.b16 %v129
  %v317 = vunpack.c.h.b16 %v129
  %v318 = vunpack.c.l.b16 %v130
  %v319 = vunpack.c.h.b16 %v130
  %v320 = vunpack.c.l.b16 %v131
  %v321 = vunpack.c.h.b16 %v131
  %v322 = vunpack.c.l.b16 %v132
  %v323 = vunpack.c.h.b16 %v132
  %v324 = vunpack.c.l.b16 %v133
  %v325 = vunpack.c.h.b16 %v133
  %v326 = vpack.c.b16 %v206, %v198
  %v327 = vpack.c.b16 %v207, %v199
  %v328 = vpack.c.b16 %v208, %v200
  %v329 = vpack.c.b16 %v209, %v201
  %v330 = vpack.c.b16 %v210, %v202
  %v331 = vpack.c.b16 %v211, %v203
  %v332 = vpack.c.b16 %v212, %v204
  %v333 = vpack.c.b16 %v213, %v205
  %v334 = vpack.c.b16 %v222, %v214
  %v335 = vpack.c.b16 %v223, %v215
  %v336 = vpack.c.b16 %v224, %v216
  %v337 = vpack.c.b16 %v225, %v217
  %v338 = vpack.c.b16 %v226, %v218
  %v339 = vpack.c.b16 %v227, %v219
  %v340 = vpack.c.b16 %v228, %v220
  %v341 = vpack.c.b16 %v229, %v221
  %v342 = vpack.c.b16 %v238, %v230
  %v343 = vpack.c.b16 %v239, %v231
  %v344 = vpack.c.b16 %v240, %v232
  %v345 = vpack.c.b16 %v241, %v233
  %v346 = vpack.c.b16 %v242, %v234
  %v347 = vpack.c.b16 %v243, %v235
  %v348 = vpack.c.b16 %v244, %v236
  %v349 = vpack.c.b16 %v245, %v237
  %v350 = vpack.c.b16 %v254, %v246
  %v351 = vpack.c.b16 %v255, %v247
  %v352 = vpack.c.b16 %v256, %v248
  %v353 = vpack.c.b16 %v257, %v249
  %v354 = vpack.c.b16 %v258, %v250
  %v355 = vpack.c.b16 %v259, %v251
  %v356 = vpack.c.b16 %v260, %v252
  %v357 = vpack.c.b16 %v261, %v253
  %v358 = vpack.c.b16 %v270, %v262
  %v359 = vpack.c.b16 %v271, %v263
  %v360 = vpack.c.b16 %v272, %v264
  %v361 = vpack.c.b16 %v273, %v265
  %v362 = vpack.c.b16 %v274, %v266
  %v363 = vpack.c.b16 %v275, %v267
  %v364 = vpack.c.b16 %v276, %v268
  %v365 = vpack.c.b16 %v277, %v269
  %v366 = vpack.c.b16 %v286, %v278
  %v367 = vpack.c.b16 %v287, %v279
  %v368 = vpack.c.b16 %v288, %v280
  %v369 = vpack.c.b16 %v289, %v281
  %v370 = vpack.c.b16 %v290, %v282
  %v371 = vpack.c.b16 %v291, %v283
  %v372 = vpack.c.b16 %v292, %v284
  %v373 = vpack.c.b16 %v293, %v285
  %v374 = vpack.c.b16 %v302, %v294
  %v375 = vpack.c.b16 %v303, %v295
  %v376 = vpack.c.b16 %v304, %v296
  %v377 = vpack.c.b16 %v305, %v297
  %v378 = vpack.c.b16 %v306, %v298
  %v379 = vpack.c.b16 %v307, %v299
  %v380 = vpack.c.b16 %v308, %v300
  %v381 = vpack.c.b16 %v309, %v301
  %v382 = vpack.c.b16 %v318, %v310
  %v383 = vpack.c.b16 %v319, %v311
  %v384 = vpack.c.b16 %v320, %v312
  %v385 = vpack.c.b16 %v321, %v313
  %v386 = vpack.c.b16 %v322, %v314
  %v387 = vpack.c.b16 %v323, %v315
  %v388 = vpack.c.b16 %v324, %v316
  %v389 = vpack.c.b16 %v325, %v317
  %454 = vmatprep.subr.bf16.mxu0 %v327
  %455 = vmatpush1.bf16.msra.mxu0 %v326
  %456 = vmatprep.subr.bf16.mxu0 %v335
  %457 = vmatpush1.bf16.msra.mxu0 %v334
  %458 = vmatprep.subr.bf16.mxu0 %v343
  %459 = vmatpush1.bf16.msra.mxu0 %v342
  %460 = vmatprep.subr.bf16.mxu0 %v351
  %461 = vmatpush1.bf16.msra.mxu0 %v350
  %462 = vmatprep.subr.bf16.mxu0 %v359
  %463 = vmatpush1.bf16.msra.mxu0 %v358
  %464 = vmatprep.subr.bf16.mxu0 %v367
  %465 = vmatpush1.bf16.msra.mxu0 %v366
  %466 = vmatprep.subr.bf16.mxu0 %v375
  %467 = vmatpush1.bf16.msra.mxu0 %v374
  %468 = vmatprep.subr.bf16.mxu0 %v383
  %469 = vmatpush1.bf16.msra.mxu0 %v382
  %470 = vmatprep.subr.bf16.mxu0 0
  %471 = vmatpush1.bf16.msra.mxu0 0
  %472 = vmatprep.subr.bf16.mxu0 0
  %473 = vmatpush1.bf16.msra.mxu0 0
  %474 = vmatprep.subr.bf16.mxu0 0
  %475 = vmatpush1.bf16.msra.mxu0 0
  %476 = vmatprep.subr.bf16.mxu0 0
  %477 = vmatpush1.bf16.msra.mxu0 0
  %478 = vmatprep.subr.bf16.mxu0 0
  %479 = vmatpush1.bf16.msra.mxu0 0
  %480 = vmatprep.subr.bf16.mxu0 0
  %481 = vmatpush1.bf16.msra.mxu0 0
  %482 = vmatprep.subr.bf16.mxu0 0
  %483 = vmatpush1.bf16.msra.mxu0 0
  %484 = vmatprep.subr.bf16.mxu0 0
  %485 = vmatpush1.bf16.msra.mxu0 0
  %486 = vmatprep.mubr.bf16.mxu0 0
  %487 = vmatmul.mubr.bf16.gmra.mrb[0].mxu0 %v69
  %v488 = vpop.f32.mrb[0].mxu0
  %v489 = vadd.f32 0.0, %v488
  %v490 = vpop.f32.mrb[0].mxu0
  %v491 = vadd.f32 0.0, %v490
  %v492 = vpop.f32.mrb[0].mxu0
  %v493 = vpop.f32.mrb[0].mxu0
  %494 = vdwg.mxu0
  %495 = vmatprep.subr.bf16.mxu0 %v329
  %496 = vmatpush1.bf16.msra.mxu0 %v328
  %497 = vmatprep.subr.bf16.mxu0 %v337
  %498 = vmatpush1.bf16.msra.mxu0 %v336
  %499 = vmatprep.subr.bf16.mxu0 %v345
  %500 = vmatpush1.bf16.msra.mxu0 %v344
  %501 = vmatprep.subr.bf16.mxu0 %v353
  %502 = vmatpush1.bf16.msra.mxu0 %v352
  %503 = vmatprep.subr.bf16.mxu0 %v361
  %504 = vmatpush1.bf16.msra.mxu0 %v360
  %505 = vmatprep.subr.bf16.mxu0 %v369
  %506 = vmatpush1.bf16.msra.mxu0 %v368
  %507 = vmatprep.subr.bf16.mxu0 %v377
  %508 = vmatpush1.bf16.msra.mxu0 %v376
  %509 = vmatprep.subr.bf16.mxu0 %v385
  %510 = vmatpush1.bf16.msra.mxu0 %v384
  %511 = vmatprep.subr.bf16.mxu0 0
  %512 = vmatpush1.bf16.msra.mxu0 0
  %513 = vmatprep.subr.bf16.mxu0 0
  %514 = vmatpush1.bf16.msra.mxu0 0
  %515 = vmatprep.subr.bf16.mxu0 0
  %516 = vmatpush1.bf16.msra.mxu0 0
  %517 = vmatprep.subr.bf16.mxu0 0
  %518 = vmatpush1.bf16.msra.mxu0 0
  %519 = vmatprep.subr.bf16.mxu0 0
  %520 = vmatpush1.bf16.msra.mxu0 0
  %521 = vmatprep.subr.bf16.mxu0 0
  %522 = vmatpush1.bf16.msra.mxu0 0
  %523 = vmatprep.subr.bf16.mxu0 0
  %524 = vmatpush1.bf16.msra.mxu0 0
  %525 = vmatprep.subr.bf16.mxu0 0
  %526 = vmatpush1.bf16.msra.mxu0 0
  %527 = vmatprep.mubr.bf16.mxu0 0
  %528 = vmatmul.mubr.bf16.gmra.mrb[0].mxu0 %v69
  %v529 = vpop.f32.mrb[0].mxu0
  %v530 = vadd.f32 0.0, %v529
  %v531 = vpop.f32.mrb[0].mxu0
  %v532 = vadd.f32 0.0, %v531
  %v533 = vpop.f32.mrb[0].mxu0
  %v534 = vpop.f32.mrb[0].mxu0
  %535 = vdwg.mxu0
  %536 = vmatprep.subr.bf16.mxu0 %v331
  %537 = vmatpush1.bf16.msra.mxu0 %v330
  %538 = vmatprep.subr.bf16.mxu0 %v339
  %539 = vmatpush1.bf16.msra.mxu0 %v338
  %540 = vmatprep.subr.bf16.mxu0 %v347
  %541 = vmatpush1.bf16.msra.mxu0 %v346
  %542 = vmatprep.subr.bf16.mxu0 %v355
  %543 = vmatpush1.bf16.msra.mxu0 %v354
  %544 = vmatprep.subr.bf16.mxu0 %v363
  %545 = vmatpush1.bf16.msra.mxu0 %v362
  %546 = vmatprep.subr.bf16.mxu0 %v371
  %547 = vmatpush1.bf16.msra.mxu0 %v370
  %548 = vmatprep.subr.bf16.mxu0 %v379
  %549 = vmatpush1.bf16.msra.mxu0 %v378
  %550 = vmatprep.subr.bf16.mxu0 %v387
  %551 = vmatpush1.bf16.msra.mxu0 %v386
  %552 = vmatprep.subr.bf16.mxu0 0
  %553 = vmatpush1.bf16.msra.mxu0 0
  %554 = vmatprep.subr.bf16.mxu0 0
  %555 = vmatpush1.bf16.msra.mxu0 0
  %556 = vmatprep.subr.bf16.mxu0 0
  %557 = vmatpush1.bf16.msra.mxu0 0
  %558 = vmatprep.subr.bf16.mxu0 0
  %559 = vmatpush1.bf16.msra.mxu0 0
  %560 = vmatprep.subr.bf16.mxu0 0
  %561 = vmatpush1.bf16.msra.mxu0 0
  %562 = vmatprep.subr.bf16.mxu0 0
  %563 = vmatpush1.bf16.msra.mxu0 0
  %564 = vmatprep.subr.bf16.mxu0 0
  %565 = vmatpush1.bf16.msra.mxu0 0
  %566 = vmatprep.subr.bf16.mxu0 0
  %567 = vmatpush1.bf16.msra.mxu0 0
  %568 = vmatprep.mubr.bf16.mxu0 0
  %569 = vmatmul.mubr.bf16.gmra.mrb[0].mxu0 %v69
  %v570 = vpop.f32.mrb[0].mxu0
  %v571 = vadd.f32 0.0, %v570
  %v572 = vpop.f32.mrb[0].mxu0
  %v573 = vadd.f32 0.0, %v572
  %v574 = vpop.f32.mrb[0].mxu0
  %v575 = vpop.f32.mrb[0].mxu0
  %576 = vdwg.mxu0
  %577 = vmatprep.subr.bf16.mxu0 %v333
  %578 = vmatpush1.bf16.msra.mxu0 %v332
  %579 = vmatprep.subr.bf16.mxu0 %v341
  %580 = vmatpush1.bf16.msra.mxu0 %v340
  %581 = vmatprep.subr.bf16.mxu0 %v349
  %582 = vmatpush1.bf16.msra.mxu0 %v348
  %583 = vmatprep.subr.bf16.mxu0 %v357
  %584 = vmatpush1.bf16.msra.mxu0 %v356
  %585 = vmatprep.subr.bf16.mxu0 %v365
  %586 = vmatpush1.bf16.msra.mxu0 %v364
  %587 = vmatprep.subr.bf16.mxu0 %v373
  %588 = vmatpush1.bf16.msra.mxu0 %v372
  %589 = vmatprep.subr.bf16.mxu0 %v381
  %590 = vmatpush1.bf16.msra.mxu0 %v380
  %591 = vmatprep.subr.bf16.mxu0 %v389
  %592 = vmatpush1.bf16.msra.mxu0 %v388
  %593 = vmatprep.subr.bf16.mxu0 0
  %594 = vmatpush1.bf16.msra.mxu0 0
  %595 = vmatprep.subr.bf16.mxu0 0
  %596 = vmatpush1.bf16.msra.mxu0 0
  %597 = vmatprep.subr.bf16.mxu0 0
  %598 = vmatpush1.bf16.msra.mxu0 0
  %599 = vmatprep.subr.bf16.mxu0 0
  %600 = vmatpush1.bf16.msra.mxu0 0
  %601 = vmatprep.subr.bf16.mxu0 0
  %602 = vmatpush1.bf16.msra.mxu0 0
  %603 = vmatprep.subr.bf16.mxu0 0
  %604 = vmatpush1.bf16.msra.mxu0 0
  %605 = vmatprep.subr.bf16.mxu0 0
  %606 = vmatpush1.bf16.msra.mxu0 0
  %607 = vmatprep.subr.bf16.mxu0 0
  %608 = vmatpush1.bf16.msra.mxu0 0
  %609 = vmatprep.mubr.bf16.mxu0 0
  %610 = vmatmul.mubr.bf16.gmra.mrb[0].mxu0 %v69
  %v611 = vpop.f32.mrb[0].mxu0
  %v612 = vadd.f32 0.0, %v611
  %v613 = vpop.f32.mrb[0].mxu0
  %v614 = vadd.f32 0.0, %v613
  %v615 = vpop.f32.mrb[0].mxu0
  %v616 = vpop.f32.mrb[0].mxu0
  %617 = vdwg.mxu0
  %v618 = vld [vmem:[%s2] sm:$0xff]
  %v620 = vlaneseq
  %v621 = vshrl.u32 %v620, 7
  %v622 = vsub.s32 0, %v621
  %v623 = vrot.slane %v618, %v622
  %v624 = vlaneseq
  %v625 = vshrl.u32 %v624, 7
  %v626 = vsub.s32 1, %v625
  %v627 = vrot.slane %v618, %v626
  %v628 = vlaneseq
  %v629 = vshrl.u32 %v628, 7
  %v630 = vsub.s32 2, %v629
  %v631 = vrot.slane %v618, %v630
  %v632 = vlaneseq
  %v633 = vshrl.u32 %v632, 7
  %v634 = vsub.s32 3, %v633
  %v635 = vrot.slane %v618, %v634
  %v636 = vlaneseq
  %v637 = vshrl.u32 %v636, 7
  %v638 = vsub.s32 4, %v637
  %v639 = vrot.slane %v618, %v638
  %v640 = vlaneseq
  %v641 = vshrl.u32 %v640, 7
  %v642 = vsub.s32 5, %v641
  %v643 = vrot.slane %v618, %v642
  %v644 = vlaneseq
  %v645 = vshrl.u32 %v644, 7
  %v646 = vsub.s32 6, %v645
  %v647 = vrot.slane %v618, %v646
  %v648 = vlaneseq
  %v649 = vshrl.u32 %v648, 7
  %v650 = vsub.s32 7, %v649
  %v651 = vrot.slane %v618, %v650
  %v660 = vmul.f32 %v489, %v623
  %v661 = vmul.f32 %v491, %v627
  %v662 = vmul.f32 %v530, %v631
  %v663 = vmul.f32 %v532, %v635
  %v664 = vmul.f32 %v571, %v639
  %v665 = vmul.f32 %v573, %v643
  %v666 = vmul.f32 %v612, %v647
  %v667 = vmul.f32 %v614, %v651
  %v668 = vld [vmem:[%s3] sm:$0xff]
  %v670 = vlaneseq
  %v671 = vshrl.u32 %v670, 7
  %v672 = vsub.s32 0, %v671
  %v673 = vrot.slane %v668, %v672
  %v674 = vlaneseq
  %v675 = vshrl.u32 %v674, 7
  %v676 = vsub.s32 1, %v675
  %v677 = vrot.slane %v668, %v676
  %v678 = vlaneseq
  %v679 = vshrl.u32 %v678, 7
  %v680 = vsub.s32 2, %v679
  %v681 = vrot.slane %v668, %v680
  %v682 = vlaneseq
  %v683 = vshrl.u32 %v682, 7
  %v684 = vsub.s32 3, %v683
  %v685 = vrot.slane %v668, %v684
  %v686 = vlaneseq
  %v687 = vshrl.u32 %v686, 7
  %v688 = vsub.s32 4, %v687
  %v689 = vrot.slane %v668, %v688
  %v690 = vlaneseq
  %v691 = vshrl.u32 %v690, 7
  %v692 = vsub.s32 5, %v691
  %v693 = vrot.slane %v668, %v692
  %v694 = vlaneseq
  %v695 = vshrl.u32 %v694, 7
  %v696 = vsub.s32 6, %v695
  %v697 = vrot.slane %v668, %v696
  %v698 = vlaneseq
  %v699 = vshrl.u32 %v698, 7
  %v700 = vsub.s32 7, %v699
  %v701 = vrot.slane %v668, %v700
  %v710 = vadd.f32 %v660, %v673
  %v711 = vadd.f32 %v661, %v677
  %v712 = vadd.f32 %v662, %v681
  %v713 = vadd.f32 %v663, %v685
  %v714 = vadd.f32 %v664, %v689
  %v715 = vadd.f32 %v665, %v693
  %v716 = vadd.f32 %v666, %v697
  %v717 = vadd.f32 %v667, %v701
  %v718 = vmax.f32 %v710, 0.0
  %v719 = vmax.f32 %v711, 0.0
  %v720 = vmax.f32 %v712, 0.0
  %v721 = vmax.f32 %v713, 0.0
  %v722 = vmax.f32 %v714, 0.0
  %v723 = vmax.f32 %v715, 0.0
  %v724 = vmax.f32 %v716, 0.0
  %v725 = vmax.f32 %v717, 0.0
  %v726 = vpack.c.bf16 %v718, %v718
  %v727 = vpack.c.bf16 %v719, %v719
  %v728 = vpack.c.bf16 %v720, %v720
  %v729 = vpack.c.bf16 %v721, %v721
  %v730 = vpack.c.bf16 %v722, %v722
  %v731 = vpack.c.bf16 %v723, %v723
  %v732 = vpack.c.bf16 %v724, %v724
  %v733 = vpack.c.bf16 %v725, %v725
  %v734 = vld [vmem:[%s4] sm:$0xff]
  %v735 = vld [vmem:[%s4 + $0x8] sm:$0xff]
  %v736 = vld [vmem:[%s4 + $0x10] sm:$0xff]
  %v737 = vld [vmem:[%s4 + $0x18] sm:$0xff]
  %v738 = vld [vmem:[%s4 + $0x20] sm:$0xff]
  %v739 = vld [vmem:[%s4 + $0x28] sm:$0xff]
  %v740 = vld [vmem:[%s4 + $0x30] sm:$0xff]
  %v741 = vld [vmem:[%s4 + $0x38] sm:$0xff]
  %v742 = vld [vmem:[%s4 + $0x40] sm:$0xff]
  %v743 = vld [vmem:[%s4 + $0x48] sm:$0xff]
  %v744 = vld [vmem:[%s4 + $0x50] sm:$0xff]
  %v745 = vld [vmem:[%s4 + $0x58] sm:$0xff]
  %v746 = vld [vmem:[%s4 + $0x60] sm:$0xff]
  %v747 = vld [vmem:[%s4 + $0x68] sm:$0xff]
  %v748 = vld [vmem:[%s4 + $0x70] sm:$0xff]
  %v749 = vld [vmem:[%s4 + $0x78] sm:$0xff]
  %v750 = vld [vmem:[%s4 + $0x80] sm:$0xff]
  %v751 = vld [vmem:[%s4 + $0x88] sm:$0xff]
  %v752 = vld [vmem:[%s4 + $0x90] sm:$0xff]
  %v753 = vld [vmem:[%s4 + $0x98] sm:$0xff]
  %v754 = vld [vmem:[%s4 + $0xa0] sm:$0xff]
  %v755 = vld [vmem:[%s4 + $0xa8] sm:$0xff]
  %v756 = vld [vmem:[%s4 + $0xb0] sm:$0xff]
  %v757 = vld [vmem:[%s4 + $0xb8] sm:$0xff]
  %v758 = vld [vmem:[%s4 + $0xc0] sm:$0xff]
  %v759 = vld [vmem:[%s4 + $0xc8] sm:$0xff]
  %v760 = vld [vmem:[%s4 + $0xd0] sm:$0xff]
  %v761 = vld [vmem:[%s4 + $0xd8] sm:$0xff]
  %v762 = vld [vmem:[%s4 + $0xe0] sm:$0xff]
  %v763 = vld [vmem:[%s4 + $0xe8] sm:$0xff]
  %v764 = vld [vmem:[%s4 + $0xf0] sm:$0xff]
  %v765 = vld [vmem:[%s4 + $0xf8] sm:$0xff]
  %v766 = vld [vmem:[%s4 + $0x100] sm:$0xff]
  %v767 = vld [vmem:[%s4 + $0x108] sm:$0xff]
  %v768 = vld [vmem:[%s4 + $0x110] sm:$0xff]
  %v769 = vld [vmem:[%s4 + $0x118] sm:$0xff]
  %v770 = vld [vmem:[%s4 + $0x120] sm:$0xff]
  %v771 = vld [vmem:[%s4 + $0x128] sm:$0xff]
  %v772 = vld [vmem:[%s4 + $0x130] sm:$0xff]
  %v773 = vld [vmem:[%s4 + $0x138] sm:$0xff]
  %v774 = vld [vmem:[%s4 + $0x140] sm:$0xff]
  %v775 = vld [vmem:[%s4 + $0x148] sm:$0xff]
  %v776 = vld [vmem:[%s4 + $0x150] sm:$0xff]
  %v777 = vld [vmem:[%s4 + $0x158] sm:$0xff]
  %v778 = vld [vmem:[%s4 + $0x160] sm:$0xff]
  %v779 = vld [vmem:[%s4 + $0x168] sm:$0xff]
  %v780 = vld [vmem:[%s4 + $0x170] sm:$0xff]
  %v781 = vld [vmem:[%s4 + $0x178] sm:$0xff]
  %v782 = vld [vmem:[%s4 + $0x180] sm:$0xff]
  %v783 = vld [vmem:[%s4 + $0x188] sm:$0xff]
  %v784 = vld [vmem:[%s4 + $0x190] sm:$0xff]
  %v785 = vld [vmem:[%s4 + $0x198] sm:$0xff]
  %v786 = vld [vmem:[%s4 + $0x1a0] sm:$0xff]
  %v787 = vld [vmem:[%s4 + $0x1a8] sm:$0xff]
  %v788 = vld [vmem:[%s4 + $0x1b0] sm:$0xff]
  %v789 = vld [vmem:[%s4 + $0x1b8] sm:$0xff]
  %v790 = vld [vmem:[%s4 + $0x1c0] sm:$0xff]
  %v791 = vld [vmem:[%s4 + $0x1c8] sm:$0xff]
  %v792 = vld [vmem:[%s4 + $0x1d0] sm:$0xff]
  %v793 = vld [vmem:[%s4 + $0x1d8] sm:$0xff]
  %v794 = vld [vmem:[%s4 + $0x1e0] sm:$0xff]
  %v795 = vld [vmem:[%s4 + $0x1e8] sm:$0xff]
  %v796 = vld [vmem:[%s4 + $0x1f0] sm:$0xff]
  %v797 = vld [vmem:[%s4 + $0x1f8] sm:$0xff]
  %v798 = vld [vmem:[%s4 + $0x200] sm:$0xff]
  %v799 = vld [vmem:[%s4 + $0x208] sm:$0xff]
  %v800 = vld [vmem:[%s4 + $0x210] sm:$0xff]
  %v801 = vld [vmem:[%s4 + $0x218] sm:$0xff]
  %v802 = vld [vmem:[%s4 + $0x220] sm:$0xff]
  %v803 = vld [vmem:[%s4 + $0x228] sm:$0xff]
  %v804 = vld [vmem:[%s4 + $0x230] sm:$0xff]
  %v805 = vld [vmem:[%s4 + $0x238] sm:$0xff]
  %v806 = vld [vmem:[%s4 + $0x240] sm:$0xff]
  %v807 = vld [vmem:[%s4 + $0x248] sm:$0xff]
  %v808 = vld [vmem:[%s4 + $0x250] sm:$0xff]
  %v809 = vld [vmem:[%s4 + $0x258] sm:$0xff]
  %v810 = vld [vmem:[%s4 + $0x260] sm:$0xff]
  %v811 = vld [vmem:[%s4 + $0x268] sm:$0xff]
  %v812 = vld [vmem:[%s4 + $0x270] sm:$0xff]
  %v813 = vld [vmem:[%s4 + $0x278] sm:$0xff]
  %v814 = vld [vmem:[%s4 + $0x280] sm:$0xff]
  %v815 = vld [vmem:[%s4 + $0x288] sm:$0xff]
  %v816 = vld [vmem:[%s4 + $0x290] sm:$0xff]
  %v817 = vld [vmem:[%s4 + $0x298] sm:$0xff]
  %v818 = vld [vmem:[%s4 + $0x2a0] sm:$0xff]
  %v819 = vld [vmem:[%s4 + $0x2a8] sm:$0xff]
  %v820 = vld [vmem:[%s4 + $0x2b0] sm:$0xff]
  %v821 = vld [vmem:[%s4 + $0x2b8] sm:$0xff]
  %v822 = vld [vmem:[%s4 + $0x2c0] sm:$0xff]
  %v823 = vld [vmem:[%s4 + $0x2c8] sm:$0xff]
  %v824 = vld [vmem:[%s4 + $0x2d0] sm:$0xff]
  %v825 = vld [vmem:[%s4 + $0x2d8] sm:$0xff]
  %v826 = vld [vmem:[%s4 + $0x2e0] sm:$0xff]
  %v827 = vld [vmem:[%s4 + $0x2e8] sm:$0xff]
  %v828 = vld [vmem:[%s4 + $0x2f0] sm:$0xff]
  %v829 = vld [vmem:[%s4 + $0x2f8] sm:$0xff]
  %v830 = vld [vmem:[%s4 + $0x300] sm:$0xff]
  %v831 = vld [vmem:[%s4 + $0x308] sm:$0xff]
  %v832 = vld [vmem:[%s4 + $0x310] sm:$0xff]
  %v833 = vld [vmem:[%s4 + $0x318] sm:$0xff]
  %v834 = vld [vmem:[%s4 + $0x320] sm:$0xff]
  %v835 = vld [vmem:[%s4 + $0x328] sm:$0xff]
  %v836 = vld [vmem:[%s4 + $0x330] sm:$0xff]
  %v837 = vld [vmem:[%s4 + $0x338] sm:$0xff]
  %v838 = vld [vmem:[%s4 + $0x340] sm:$0xff]
  %v839 = vld [vmem:[%s4 + $0x348] sm:$0xff]
  %v840 = vld [vmem:[%s4 + $0x350] sm:$0xff]
  %v841 = vld [vmem:[%s4 + $0x358] sm:$0xff]
  %v842 = vld [vmem:[%s4 + $0x360] sm:$0xff]
  %v843 = vld [vmem:[%s4 + $0x368] sm:$0xff]
  %v844 = vld [vmem:[%s4 + $0x370] sm:$0xff]
  %v845 = vld [vmem:[%s4 + $0x378] sm:$0xff]
  %v846 = vld [vmem:[%s4 + $0x380] sm:$0xff]
  %v847 = vld [vmem:[%s4 + $0x388] sm:$0xff]
  %v848 = vld [vmem:[%s4 + $0x390] sm:$0xff]
  %v849 = vld [vmem:[%s4 + $0x398] sm:$0xff]
  %v850 = vld [vmem:[%s4 + $0x3a0] sm:$0xff]
  %v851 = vld [vmem:[%s4 + $0x3a8] sm:$0xff]
  %v852 = vld [vmem:[%s4 + $0x3b0] sm:$0xff]
  %v853 = vld [vmem:[%s4 + $0x3b8] sm:$0xff]
  %v854 = vld [vmem:[%s4 + $0x3c0] sm:$0xff]
  %v855 = vld [vmem:[%s4 + $0x3c8] sm:$0xff]
  %v856 = vld [vmem:[%s4 + $0x3d0] sm:$0xff]
  %v857 = vld [vmem:[%s4 + $0x3d8] sm:$0xff]
  %v858 = vld [vmem:[%s4 + $0x3e0] sm:$0xff]
  %v859 = vld [vmem:[%s4 + $0x3e8] sm:$0xff]
  %v860 = vld [vmem:[%s4 + $0x3f0] sm:$0xff]
  %v861 = vld [vmem:[%s4 + $0x3f8] sm:$0xff]
  %v990 = vunpack.c.l.b16 %v734
  %v991 = vunpack.c.h.b16 %v734
  %v992 = vunpack.c.l.b16 %v735
  %v993 = vunpack.c.h.b16 %v735
  %v994 = vunpack.c.l.b16 %v736
  %v995 = vunpack.c.h.b16 %v736
  %v996 = vunpack.c.l.b16 %v737
  %v997 = vunpack.c.h.b16 %v737
  %v998 = vunpack.c.l.b16 %v738
  %v999 = vunpack.c.h.b16 %v738
  %v1000 = vunpack.c.l.b16 %v739
  %v1001 = vunpack.c.h.b16 %v739
  %v1002 = vunpack.c.l.b16 %v740
  %v1003 = vunpack.c.h.b16 %v740
  %v1004 = vunpack.c.l.b16 %v741
  %v1005 = vunpack.c.h.b16 %v741
  %v1006 = vunpack.c.l.b16 %v742
  %v1007 = vunpack.c.h.b16 %v742
  %v1008 = vunpack.c.l.b16 %v743
  %v1009 = vunpack.c.h.b16 %v743
  %v1010 = vunpack.c.l.b16 %v744
  %v1011 = vunpack.c.h.b16 %v744
  %v1012 = vunpack.c.l.b16 %v745
  %v1013 = vunpack.c.h.b16 %v745
  %v1014 = vunpack.c.l.b16 %v746
  %v1015 = vunpack.c.h.b16 %v746
  %v1016 = vunpack.c.l.b16 %v747
  %v1017 = vunpack.c.h.b16 %v747
  %v1018 = vunpack.c.l.b16 %v748
  %v1019 = vunpack.c.h.b16 %v748
  %v1020 = vunpack.c.l.b16 %v749
  %v1021 = vunpack.c.h.b16 %v749
  %v1022 = vunpack.c.l.b16 %v750
  %v1023 = vunpack.c.h.b16 %v750
  %v1024 = vunpack.c.l.b16 %v751
  %v1025 = vunpack.c.h.b16 %v751
  %v1026 = vunpack.c.l.b16 %v752
  %v1027 = vunpack.c.h.b16 %v752
  %v1028 = vunpack.c.l.b16 %v753
  %v1029 = vunpack.c.h.b16 %v753
  %v1030 = vunpack.c.l.b16 %v754
  %v1031 = vunpack.c.h.b16 %v754
  %v1032 = vunpack.c.l.b16 %v755
  %v1033 = vunpack.c.h.b16 %v755
  %v1034 = vunpack.c.l.b16 %v756
  %v1035 = vunpack.c.h.b16 %v756
  %v1036 = vunpack.c.l.b16 %v757
  %v1037 = vunpack.c.h.b16 %v757
  %v1038 = vunpack.c.l.b16 %v758
  %v1039 = vunpack.c.h.b16 %v758
  %v1040 = vunpack.c.l.b16 %v759
  %v1041 = vunpack.c.h.b16 %v759
  %v1042 = vunpack.c.l.b16 %v760
  %v1043 = vunpack.c.h.b16 %v760
  %v1044 = vunpack.c.l.b16 %v761
  %v1045 = vunpack.c.h.b16 %v761
  %v1046 = vunpack.c.l.b16 %v762
  %v1047 = vunpack.c.h.b16 %v762
  %v1048 = vunpack.c.l.b16 %v763
  %v1049 = vunpack.c.h.b16 %v763
  %v1050 = vunpack.c.l.b16 %v764
  %v1051 = vunpack.c.h.b16 %v764
  %v1052 = vunpack.c.l.b16 %v765
  %v1053 = vunpack.c.h.b16 %v765
  %v1054 = vunpack.c.l.b16 %v766
  %v1055 = vunpack.c.h.b16 %v766
  %v1056 = vunpack.c.l.b16 %v767
  %v1057 = vunpack.c.h.b16 %v767
  %v1058 = vunpack.c.l.b16 %v768
  %v1059 = vunpack.c.h.b16 %v768
  %v1060 = vunpack.c.l.b16 %v769
  %v1061 = vunpack.c.h.b16 %v769
  %v1062 = vunpack.c.l.b16 %v770
  %v1063 = vunpack.c.h.b16 %v770
  %v1064 = vunpack.c.l.b16 %v771
  %v1065 = vunpack.c.h.b16 %v771
  %v1066 = vunpack.c.l.b16 %v772
  %v1067 = vunpack.c.h.b16 %v772
  %v1068 = vunpack.c.l.b16 %v773
  %v1069 = vunpack.c.h.b16 %v773
  %v1070 = vunpack.c.l.b16 %v774
  %v1071 = vunpack.c.h.b16 %v774
  %v1072 = vunpack.c.l.b16 %v775
  %v1073 = vunpack.c.h.b16 %v775
  %v1074 = vunpack.c.l.b16 %v776
  %v1075 = vunpack.c.h.b16 %v776
  %v1076 = vunpack.c.l.b16 %v777
  %v1077 = vunpack.c.h.b16 %v777
  %v1078 = vunpack.c.l.b16 %v778
  %v1079 = vunpack.c.h.b16 %v778
  %v1080 = vunpack.c.l.b16 %v779
  %v1081 = vunpack.c.h.b16 %v779
  %v1082 = vunpack.c.l.b16 %v780
  %v1083 = vunpack.c.h.b16 %v780
  %v1084 = vunpack.c.l.b16 %v781
  %v1085 = vunpack.c.h.b16 %v781
  %v1086 = vunpack.c.l.b16 %v782
  %v1087 = vunpack.c.h.b16 %v782
  %v1088 = vunpack.c.l.b16 %v783
  %v1089 = vunpack.c.h.b16 %v783
  %v1090 = vunpack.c.l.b16 %v784
  %v1091 = vunpack.c.h.b16 %v784
  %v1092 = vunpack.c.l.b16 %v785
  %v1093 = vunpack.c.h.b16 %v785
  %v1094 = vunpack.c.l.b16 %v786
  %v1095 = vunpack.c.h.b16 %v786
  %v1096 = vunpack.c.l.b16 %v787
  %v1097 = vunpack.c.h.b16 %v787
  %v1098 = vunpack.c.l.b16 %v788
  %v1099 = vunpack.c.h.b16 %v788
  %v1100 = vunpack.c.l.b16 %v789
  %v1101 = vunpack.c.h.b16 %v789
  %v1102 = vunpack.c.l.b16 %v790
  %v1103 = vunpack.c.h.b16 %v790
  %v1104 = vunpack.c.l.b16 %v791
  %v1105 = vunpack.c.h.b16 %v791
  %v1106 = vunpack.c.l.b16 %v792
  %v1107 = vunpack.c.h.b16 %v792
  %v1108 = vunpack.c.l.b16 %v793
  %v1109 = vunpack.c.h.b16 %v793
  %v1110 = vunpack.c.l.b16 %v794
  %v1111 = vunpack.c.h.b16 %v794
  %v1112 = vunpack.c.l.b16 %v795
  %v1113 = vunpack.c.h.b16 %v795
  %v1114 = vunpack.c.l.b16 %v796
  %v1115 = vunpack.c.h.b16 %v796
  %v1116 = vunpack.c.l.b16 %v797
  %v1117 = vunpack.c.h.b16 %v797
  %v1118 = vunpack.c.l.b16 %v798
  %v1119 = vunpack.c.h.b16 %v798
  %v1120 = vunpack.c.l.b16 %v799
  %v1121 = vunpack.c.h.b16 %v799
  %v1122 = vunpack.c.l.b16 %v800
  %v1123 = vunpack.c.h.b16 %v800
  %v1124 = vunpack.c.l.b16 %v801
  %v1125 = vunpack.c.h.b16 %v801
  %v1126 = vunpack.c.l.b16 %v802
  %v1127 = vunpack.c.h.b16 %v802
  %v1128 = vunpack.c.l.b16 %v803
  %v1129 = vunpack.c.h.b16 %v803
  %v1130 = vunpack.c.l.b16 %v804
  %v1131 = vunpack.c.h.b16 %v804
  %v1132 = vunpack.c.l.b16 %v805
  %v1133 = vunpack.c.h.b16 %v805
  %v1134 = vunpack.c.l.b16 %v806
  %v1135 = vunpack.c.h.b16 %v806
  %v1136 = vunpack.c.l.b16 %v807
  %v1137 = vunpack.c.h.b16 %v807
  %v1138 = vunpack.c.l.b16 %v808
  %v1139 = vunpack.c.h.b16 %v808
  %v1140 = vunpack.c.l.b16 %v809
  %v1141 = vunpack.c.h.b16 %v809
  %v1142 = vunpack.c.l.b16 %v810
  %v1143 = vunpack.c.h.b16 %v810
  %v1144 = vunpack.c.l.b16 %v811
  %v1145 = vunpack.c.h.b16 %v811
  %v1146 = vunpack.c.l.b16 %v812
  %v1147 = vunpack.c.h.b16 %v812
  %v1148 = vunpack.c.l.b16 %v813
  %v1149 = vunpack.c.h.b16 %v813
  %v1150 = vunpack.c.l.b16 %v814
  %v1151 = vunpack.c.h.b16 %v814
  %v1152 = vunpack.c.l.b16 %v815
  %v1153 = vunpack.c.h.b16 %v815
  %v1154 = vunpack.c.l.b16 %v816
  %v1155 = vunpack.c.h.b16 %v816
  %v1156 = vunpack.c.l.b16 %v817
  %v1157 = vunpack.c.h.b16 %v817
  %v1158 = vunpack.c.l.b16 %v818
  %v1159 = vunpack.c.h.b16 %v818
  %v1160 = vunpack.c.l.b16 %v819
  %v1161 = vunpack.c.h.b16 %v819
  %v1162 = vunpack.c.l.b16 %v820
  %v1163 = vunpack.c.h.b16 %v820
  %v1164 = vunpack.c.l.b16 %v821
  %v1165 = vunpack.c.h.b16 %v821
  %v1166 = vunpack.c.l.b16 %v822
  %v1167 = vunpack.c.h.b16 %v822
  %v1168 = vunpack.c.l.b16 %v823
  %v1169 = vunpack.c.h.b16 %v823
  %v1170 = vunpack.c.l.b16 %v824
  %v1171 = vunpack.c.h.b16 %v824
  %v1172 = vunpack.c.l.b16 %v825
  %v1173 = vunpack.c.h.b16 %v825
  %v1174 = vunpack.c.l.b16 %v826
  %v1175 = vunpack.c.h.b16 %v826
  %v1176 = vunpack.c.l.b16 %v827
  %v1177 = vunpack.c.h.b16 %v827
  %v1178 = vunpack.c.l.b16 %v828
  %v1179 = vunpack.c.h.b16 %v828
  %v1180 = vunpack.c.l.b16 %v829
  %v1181 = vunpack.c.h.b16 %v829
  %v1182 = vunpack.c.l.b16 %v830
  %v1183 = vunpack.c.h.b16 %v830
  %v1184 = vunpack.c.l.b16 %v831
  %v1185 = vunpack.c.h.b16 %v831
  %v1186 = vunpack.c.l.b16 %v832
  %v1187 = vunpack.c.h.b16 %v832
  %v1188 = vunpack.c.l.b16 %v833
  %v1189 = vunpack.c.h.b16 %v833
  %v1190 = vunpack.c.l.b16 %v834
  %v1191 = vunpack.c.h.b16 %v834
  %v1192 = vunpack.c.l.b16 %v835
  %v1193 = vunpack.c.h.b16 %v835
  %v1194 = vunpack.c.l.b16 %v836
  %v1195 = vunpack.c.h.b16 %v836
  %v1196 = vunpack.c.l.b16 %v837
  %v1197 = vunpack.c.h.b16 %v837
  %v1198 = vunpack.c.l.b16 %v838
  %v1199 = vunpack.c.h.b16 %v838
  %v1200 = vunpack.c.l.b16 %v839
  %v1201 = vunpack.c.h.b16 %v839
  %v1202 = vunpack.c.l.b16 %v840
  %v1203 = vunpack.c.h.b16 %v840
  %v1204 = vunpack.c.l.b16 %v841
  %v1205 = vunpack.c.h.b16 %v841
  %v1206 = vunpack.c.l.b16 %v842
  %v1207 = vunpack.c.h.b16 %v842
  %v1208 = vunpack.c.l.b16 %v843
  %v1209 = vunpack.c.h.b16 %v843
  %v1210 = vunpack.c.l.b16 %v844
  %v1211 = vunpack.c.h.b16 %v844
  %v1212 = vunpack.c.l.b16 %v845
  %v1213 = vunpack.c.h.b16 %v845
  %v1214 = vunpack.c.l.b16 %v846
  %v1215 = vunpack.c.h.b16 %v846
  %v1216 = vunpack.c.l.b16 %v847
  %v1217 = vunpack.c.h.b16 %v847
  %v1218 = vunpack.c.l.b16 %v848
  %v1219 = vunpack.c.h.b16 %v848
  %v1220 = vunpack.c.l.b16 %v849
  %v1221 = vunpack.c.h.b16 %v849
  %v1222 = vunpack.c.l.b16 %v850
  %v1223 = vunpack.c.h.b16 %v850
  %v1224 = vunpack.c.l.b16 %v851
  %v1225 = vunpack.c.h.b16 %v851
  %v1226 = vunpack.c.l.b16 %v852
  %v1227 = vunpack.c.h.b16 %v852
  %v1228 = vunpack.c.l.b16 %v853
  %v1229 = vunpack.c.h.b16 %v853
  %v1230 = vunpack.c.l.b16 %v854
  %v1231 = vunpack.c.h.b16 %v854
  %v1232 = vunpack.c.l.b16 %v855
  %v1233 = vunpack.c.h.b16 %v855
  %v1234 = vunpack.c.l.b16 %v856
  %v1235 = vunpack.c.h.b16 %v856
  %v1236 = vunpack.c.l.b16 %v857
  %v1237 = vunpack.c.h.b16 %v857
  %v1238 = vunpack.c.l.b16 %v858
  %v1239 = vunpack.c.h.b16 %v858
  %v1240 = vunpack.c.l.b16 %v859
  %v1241 = vunpack.c.h.b16 %v859
  %v1242 = vunpack.c.l.b16 %v860
  %v1243 = vunpack.c.h.b16 %v860
  %v1244 = vunpack.c.l.b16 %v861
  %v1245 = vunpack.c.h.b16 %v861
  %v1246 = vpack.c.b16 %v992, %v990
  %v1247 = vpack.c.b16 %v993, %v991
  %v1248 = vpack.c.b16 %v996, %v994
  %v1249 = vpack.c.b16 %v997, %v995
  %v1250 = vpack.c.b16 %v1000, %v998
  %v1251 = vpack.c.b16 %v1001, %v999
  %v1252 = vpack.c.b16 %v1004, %v1002
  %v1253 = vpack.c.b16 %v1005, %v1003
  %v1254 = vpack.c.b16 %v1008, %v1006
  %v1255 = vpack.c.b16 %v1009, %v1007
  %v1256 = vpack.c.b16 %v1012, %v1010
  %v1257 = vpack.c.b16 %v1013, %v1011
  %v1258 = vpack.c.b16 %v1016, %v1014
  %v1259 = vpack.c.b16 %v1017, %v1015
  %v1260 = vpack.c.b16 %v1020, %v1018
  %v1261 = vpack.c.b16 %v1021, %v1019
  %v1262 = vpack.c.b16 %v1024, %v1022
  %v1263 = vpack.c.b16 %v1025, %v1023
  %v1264 = vpack.c.b16 %v1028, %v1026
  %v1265 = vpack.c.b16 %v1029, %v1027
  %v1266 = vpack.c.b16 %v1032, %v1030
  %v1267 = vpack.c.b16 %v1033, %v1031
  %v1268 = vpack.c.b16 %v1036, %v1034
  %v1269 = vpack.c.b16 %v1037, %v1035
  %v1270 = vpack.c.b16 %v1040, %v1038
  %v1271 = vpack.c.b16 %v1041, %v1039
  %v1272 = vpack.c.b16 %v1044, %v1042
  %v1273 = vpack.c.b16 %v1045, %v1043
  %v1274 = vpack.c.b16 %v1048, %v1046
  %v1275 = vpack.c.b16 %v1049, %v1047
  %v1276 = vpack.c.b16 %v1052, %v1050
  %v1277 = vpack.c.b16 %v1053, %v1051
  %v1278 = vpack.c.b16 %v1056, %v1054
  %v1279 = vpack.c.b16 %v1057, %v1055
  %v1280 = vpack.c.b16 %v1060, %v1058
  %v1281 = vpack.c.b16 %v1061, %v1059
  %v1282 = vpack.c.b16 %v1064, %v1062
  %v1283 = vpack.c.b16 %v1065, %v1063
  %v1284 = vpack.c.b16 %v1068, %v1066
  %v1285 = vpack.c.b16 %v1069, %v1067
  %v1286 = vpack.c.b16 %v1072, %v1070
  %v1287 = vpack.c.b16 %v1073, %v1071
  %v1288 = vpack.c.b16 %v1076, %v1074
  %v1289 = vpack.c.b16 %v1077, %v1075
  %v1290 = vpack.c.b16 %v1080, %v1078
  %v1291 = vpack.c.b16 %v1081, %v1079
  %v1292 = vpack.c.b16 %v1084, %v1082
  %v1293 = vpack.c.b16 %v1085, %v1083
  %v1294 = vpack.c.b16 %v1088, %v1086
  %v1295 = vpack.c.b16 %v1089, %v1087
  %v1296 = vpack.c.b16 %v1092, %v1090
  %v1297 = vpack.c.b16 %v1093, %v1091
  %v1298 = vpack.c.b16 %v1096, %v1094
  %v1299 = vpack.c.b16 %v1097, %v1095
  %v1300 = vpack.c.b16 %v1100, %v1098
  %v1301 = vpack.c.b16 %v1101, %v1099
  %v1302 = vpack.c.b16 %v1104, %v1102
  %v1303 = vpack.c.b16 %v1105, %v1103
  %v1304 = vpack.c.b16 %v1108, %v1106
  %v1305 = vpack.c.b16 %v1109, %v1107
  %v1306 = vpack.c.b16 %v1112, %v1110
  %v1307 = vpack.c.b16 %v1113, %v1111
  %v1308 = vpack.c.b16 %v1116, %v1114
  %v1309 = vpack.c.b16 %v1117, %v1115
  %v1310 = vpack.c.b16 %v1120, %v1118
  %v1311 = vpack.c.b16 %v1121, %v1119
  %v1312 = vpack.c.b16 %v1124, %v1122
  %v1313 = vpack.c.b16 %v1125, %v1123
  %v1314 = vpack.c.b16 %v1128, %v1126
  %v1315 = vpack.c.b16 %v1129, %v1127
  %v1316 = vpack.c.b16 %v1132, %v1130
  %v1317 = vpack.c.b16 %v1133, %v1131
  %v1318 = vpack.c.b16 %v1136, %v1134
  %v1319 = vpack.c.b16 %v1137, %v1135
  %v1320 = vpack.c.b16 %v1140, %v1138
  %v1321 = vpack.c.b16 %v1141, %v1139
  %v1322 = vpack.c.b16 %v1144, %v1142
  %v1323 = vpack.c.b16 %v1145, %v1143
  %v1324 = vpack.c.b16 %v1148, %v1146
  %v1325 = vpack.c.b16 %v1149, %v1147
  %v1326 = vpack.c.b16 %v1152, %v1150
  %v1327 = vpack.c.b16 %v1153, %v1151
  %v1328 = vpack.c.b16 %v1156, %v1154
  %v1329 = vpack.c.b16 %v1157, %v1155
  %v1330 = vpack.c.b16 %v1160, %v1158
  %v1331 = vpack.c.b16 %v1161, %v1159
  %v1332 = vpack.c.b16 %v1164, %v1162
  %v1333 = vpack.c.b16 %v1165, %v1163
  %v1334 = vpack.c.b16 %v1168, %v1166
  %v1335 = vpack.c.b16 %v1169, %v1167
  %v1336 = vpack.c.b16 %v1172, %v1170
  %v1337 = vpack.c.b16 %v1173, %v1171
  %v1338 = vpack.c.b16 %v1176, %v1174
  %v1339 = vpack.c.b16 %v1177, %v1175
  %v1340 = vpack.c.b16 %v1180, %v1178
  %v1341 = vpack.c.b16 %v1181, %v1179
  %v1342 = vpack.c.b16 %v1184, %v1182
  %v1343 = vpack.c.b16 %v1185, %v1183
  %v1344 = vpack.c.b16 %v1188, %v1186
  %v1345 = vpack.c.b16 %v1189, %v1187
  %v1346 = vpack.c.b16 %v1192, %v1190
  %v1347 = vpack.c.b16 %v1193, %v1191
  %v1348 = vpack.c.b16 %v1196, %v1194
  %v1349 = vpack.c.b16 %v1197, %v1195
  %v1350 = vpack.c.b16 %v1200, %v1198
  %v1351 = vpack.c.b16 %v1201, %v1199
  %v1352 = vpack.c.b16 %v1204, %v1202
  %v1353 = vpack.c.b16 %v1205, %v1203
  %v1354 = vpack.c.b16 %v1208, %v1206
  %v1355 = vpack.c.b16 %v1209, %v1207
  %v1356 = vpack.c.b16 %v1212, %v1210
  %v1357 = vpack.c.b16 %v1213, %v1211
  %v1358 = vpack.c.b16 %v1216, %v1214
  %v1359 = vpack.c.b16 %v1217, %v1215
  %v1360 = vpack.c.b16 %v1220, %v1218
  %v1361 = vpack.c.b16 %v1221, %v1219
  %v1362 = vpack.c.b16 %v1224, %v1222
  %v1363 = vpack.c.b16 %v1225, %v1223
  %v1364 = vpack.c.b16 %v1228, %v1226
  %v1365 = vpack.c.b16 %v1229, %v1227
  %v1366 = vpack.c.b16 %v1232, %v1230
  %v1367 = vpack.c.b16 %v1233, %v1231
  %v1368 = vpack.c.b16 %v1236, %v1234
  %v1369 = vpack.c.b16 %v1237, %v1235
  %v1370 = vpack.c.b16 %v1240, %v1238
  %v1371 = vpack.c.b16 %v1241, %v1239
  %v1372 = vpack.c.b16 %v1244, %v1242
  %v1373 = vpack.c.b16 %v1245, %v1243
  %1502 = vmatprep.subr.bf16.mxu0 %v1247
  %1503 = vmatpush1.bf16.msra.mxu0 %v1246
  %1504 = vmatprep.subr.bf16.mxu0 %v1249
  %1505 = vmatpush1.bf16.msra.mxu0 %v1248
  %1506 = vmatprep.subr.bf16.mxu0 %v1251
  %1507 = vmatpush1.bf16.msra.mxu0 %v1250
  %1508 = vmatprep.subr.bf16.mxu0 %v1253
  %1509 = vmatpush1.bf16.msra.mxu0 %v1252
  %1510 = vmatprep.subr.bf16.mxu0 %v1255
  %1511 = vmatpush1.bf16.msra.mxu0 %v1254
  %1512 = vmatprep.subr.bf16.mxu0 %v1257
  %1513 = vmatpush1.bf16.msra.mxu0 %v1256
  %1514 = vmatprep.subr.bf16.mxu0 %v1259
  %1515 = vmatpush1.bf16.msra.mxu0 %v1258
  %1516 = vmatprep.subr.bf16.mxu0 %v1261
  %1517 = vmatpush1.bf16.msra.mxu0 %v1260
  %1518 = vmatprep.subr.bf16.mxu0 %v1263
  %1519 = vmatpush1.bf16.msra.mxu0 %v1262
  %1520 = vmatprep.subr.bf16.mxu0 %v1265
  %1521 = vmatpush1.bf16.msra.mxu0 %v1264
  %1522 = vmatprep.subr.bf16.mxu0 %v1267
  %1523 = vmatpush1.bf16.msra.mxu0 %v1266
  %1524 = vmatprep.subr.bf16.mxu0 %v1269
  %1525 = vmatpush1.bf16.msra.mxu0 %v1268
  %1526 = vmatprep.subr.bf16.mxu0 %v1271
  %1527 = vmatpush1.bf16.msra.mxu0 %v1270
  %1528 = vmatprep.subr.bf16.mxu0 %v1273
  %1529 = vmatpush1.bf16.msra.mxu0 %v1272
  %1530 = vmatprep.subr.bf16.mxu0 %v1275
  %1531 = vmatpush1.bf16.msra.mxu0 %v1274
  %1532 = vmatprep.subr.bf16.mxu0 %v1277
  %1533 = vmatpush1.bf16.msra.mxu0 %v1276
  %1534 = vmatprep.mubr.bf16.mxu0 %v727
  %1535 = vmatmul.mubr.bf16.gmra.mrb[0].mxu0 %v726
  %v1536 = vpop.f32.mrb[0].mxu0
  %v1537 = vadd.f32 0.0, %v1536
  %v1538 = vpop.f32.mrb[0].mxu0
  %v1539 = vadd.f32 0.0, %v1538
  %v1540 = vpop.f32.mrb[0].mxu0
  %v1541 = vpop.f32.mrb[0].mxu0
  %1542 = vdwg.mxu0
  %1543 = vmatprep.subr.bf16.mxu0 %v1279
  %1544 = vmatpush1.bf16.msra.mxu0 %v1278
  %1545 = vmatprep.subr.bf16.mxu0 %v1281
  %1546 = vmatpush1.bf16.msra.mxu0 %v1280
  %1547 = vmatprep.subr.bf16.mxu0 %v1283
  %1548 = vmatpush1.bf16.msra.mxu0 %v1282
  %1549 = vmatprep.subr.bf16.mxu0 %v1285
  %1550 = vmatpush1.bf16.msra.mxu0 %v1284
  %1551 = vmatprep.subr.bf16.mxu0 %v1287
  %1552 = vmatpush1.bf16.msra.mxu0 %v1286
  %1553 = vmatprep.subr.bf16.mxu0 %v1289
  %1554 = vmatpush1.bf16.msra.mxu0 %v1288
  %1555 = vmatprep.subr.bf16.mxu0 %v1291
  %1556 = vmatpush1.bf16.msra.mxu0 %v1290
  %1557 = vmatprep.subr.bf16.mxu0 %v1293
  %1558 = vmatpush1.bf16.msra.mxu0 %v1292
  %1559 = vmatprep.subr.bf16.mxu0 %v1295
  %1560 = vmatpush1.bf16.msra.mxu0 %v1294
  %1561 = vmatprep.subr.bf16.mxu0 %v1297
  %1562 = vmatpush1.bf16.msra.mxu0 %v1296
  %1563 = vmatprep.subr.bf16.mxu0 %v1299
  %1564 = vmatpush1.bf16.msra.mxu0 %v1298
  %1565 = vmatprep.subr.bf16.mxu0 %v1301
  %1566 = vmatpush1.bf16.msra.mxu0 %v1300
  %1567 = vmatprep.subr.bf16.mxu0 %v1303
  %1568 = vmatpush1.bf16.msra.mxu0 %v1302
  %1569 = vmatprep.subr.bf16.mxu0 %v1305
  %1570 = vmatpush1.bf16.msra.mxu0 %v1304
  %1571 = vmatprep.subr.bf16.mxu0 %v1307
  %1572 = vmatpush1.bf16.msra.mxu0 %v1306
  %1573 = vmatprep.subr.bf16.mxu0 %v1309
  %1574 = vmatpush1.bf16.msra.mxu0 %v1308
  %1575 = vmatprep.mubr.bf16.mxu0 %v729
  %1576 = vmatmul.mubr.bf16.gmra.mrb[0].mxu0 %v728
  %v1577 = vpop.f32.mrb[0].mxu0
  %v1578 = vadd.f32 %v1537, %v1577
  %v1579 = vpop.f32.mrb[0].mxu0
  %v1580 = vadd.f32 %v1539, %v1579
  %v1581 = vpop.f32.mrb[0].mxu0
  %v1582 = vpop.f32.mrb[0].mxu0
  %1583 = vdwg.mxu0
  %1584 = vmatprep.subr.bf16.mxu0 %v1311
  %1585 = vmatpush1.bf16.msra.mxu0 %v1310
  %1586 = vmatprep.subr.bf16.mxu0 %v1313
  %1587 = vmatpush1.bf16.msra.mxu0 %v1312
  %1588 = vmatprep.subr.bf16.mxu0 %v1315
  %1589 = vmatpush1.bf16.msra.mxu0 %v1314
  %1590 = vmatprep.subr.bf16.mxu0 %v1317
  %1591 = vmatpush1.bf16.msra.mxu0 %v1316
  %1592 = vmatprep.subr.bf16.mxu0 %v1319
  %1593 = vmatpush1.bf16.msra.mxu0 %v1318
  %1594 = vmatprep.subr.bf16.mxu0 %v1321
  %1595 = vmatpush1.bf16.msra.mxu0 %v1320
  %1596 = vmatprep.subr.bf16.mxu0 %v1323
  %1597 = vmatpush1.bf16.msra.mxu0 %v1322
  %1598 = vmatprep.subr.bf16.mxu0 %v1325
  %1599 = vmatpush1.bf16.msra.mxu0 %v1324
  %1600 = vmatprep.subr.bf16.mxu0 %v1327
  %1601 = vmatpush1.bf16.msra.mxu0 %v1326
  %1602 = vmatprep.subr.bf16.mxu0 %v1329
  %1603 = vmatpush1.bf16.msra.mxu0 %v1328
  %1604 = vmatprep.subr.bf16.mxu0 %v1331
  %1605 = vmatpush1.bf16.msra.mxu0 %v1330
  %1606 = vmatprep.subr.bf16.mxu0 %v1333
  %1607 = vmatpush1.bf16.msra.mxu0 %v1332
  %1608 = vmatprep.subr.bf16.mxu0 %v1335
  %1609 = vmatpush1.bf16.msra.mxu0 %v1334
  %1610 = vmatprep.subr.bf16.mxu0 %v1337
  %1611 = vmatpush1.bf16.msra.mxu0 %v1336
  %1612 = vmatprep.subr.bf16.mxu0 %v1339
  %1613 = vmatpush1.bf16.msra.mxu0 %v1338
  %1614 = vmatprep.subr.bf16.mxu0 %v1341
  %1615 = vmatpush1.bf16.msra.mxu0 %v1340
  %1616 = vmatprep.mubr.bf16.mxu0 %v731
  %1617 = vmatmul.mubr.bf16.gmra.mrb[0].mxu0 %v730
  %v1618 = vpop.f32.mrb[0].mxu0
  %v1619 = vadd.f32 %v1578, %v1618
  %v1620 = vpop.f32.mrb[0].mxu0
  %v1621 = vadd.f32 %v1580, %v1620
  %v1622 = vpop.f32.mrb[0].mxu0
  %v1623 = vpop.f32.mrb[0].mxu0
  %1624 = vdwg.mxu0
  %1625 = vmatprep.subr.bf16.mxu0 %v1343
  %1626 = vmatpush1.bf16.msra.mxu0 %v1342
  %1627 = vmatprep.subr.bf16.mxu0 %v1345
  %1628 = vmatpush1.bf16.msra.mxu0 %v1344
  %1629 = vmatprep.subr.bf16.mxu0 %v1347
  %1630 = vmatpush1.bf16.msra.mxu0 %v1346
  %1631 = vmatprep.subr.bf16.mxu0 %v1349
  %1632 = vmatpush1.bf16.msra.mxu0 %v1348
  %1633 = vmatprep.subr.bf16.mxu0 %v1351
  %1634 = vmatpush1.bf16.msra.mxu0 %v1350
  %1635 = vmatprep.subr.bf16.mxu0 %v1353
  %1636 = vmatpush1.bf16.msra.mxu0 %v1352
  %1637 = vmatprep.subr.bf16.mxu0 %v1355
  %1638 = vmatpush1.bf16.msra.mxu0 %v1354
  %1639 = vmatprep.subr.bf16.mxu0 %v1357
  %1640 = vmatpush1.bf16.msra.mxu0 %v1356
  %1641 = vmatprep.subr.bf16.mxu0 %v1359
  %1642 = vmatpush1.bf16.msra.mxu0 %v1358
  %1643 = vmatprep.subr.bf16.mxu0 %v1361
  %1644 = vmatpush1.bf16.msra.mxu0 %v1360
  %1645 = vmatprep.subr.bf16.mxu0 %v1363
  %1646 = vmatpush1.bf16.msra.mxu0 %v1362
  %1647 = vmatprep.subr.bf16.mxu0 %v1365
  %1648 = vmatpush1.bf16.msra.mxu0 %v1364
  %1649 = vmatprep.subr.bf16.mxu0 %v1367
  %1650 = vmatpush1.bf16.msra.mxu0 %v1366
  %1651 = vmatprep.subr.bf16.mxu0 %v1369
  %1652 = vmatpush1.bf16.msra.mxu0 %v1368
  %1653 = vmatprep.subr.bf16.mxu0 %v1371
  %1654 = vmatpush1.bf16.msra.mxu0 %v1370
  %1655 = vmatprep.subr.bf16.mxu0 %v1373
  %1656 = vmatpush1.bf16.msra.mxu0 %v1372
  %1657 = vmatprep.mubr.bf16.mxu0 %v733
  %1658 = vmatmul.mubr.bf16.gmra.mrb[0].mxu0 %v732
  %v1659 = vpop.f32.mrb[0].mxu0
  %v1660 = vadd.f32 %v1619, %v1659
  %v1661 = vpop.f32.mrb[0].mxu0
  %v1662 = vadd.f32 %v1621, %v1661
  %v1663 = vpop.f32.mrb[0].mxu0
  %v1664 = vpop.f32.mrb[0].mxu0
  %1665 = vdwg.mxu0
  %v1666 = vld [vmem:[%s5] sm:$0x3]
  %v1668 = vlaneseq
  %v1669 = vshrl.u32 %v1668, 7
  %v1670 = vsub.s32 0, %v1669
  %v1671 = vrot.slane %v1666, %v1670
  %v1672 = vlaneseq
  %v1673 = vshrl.u32 %v1672, 7
  %v1674 = vsub.s32 1, %v1673
  %v1675 = vrot.slane %v1666, %v1674
  %v1678 = vmul.f32 %v1660, %v1671
  %v1679 = vmul.f32 %v1662, %v1675
  %v1680 = vld [vmem:[%s6] sm:$0x3]
  %v1682 = vlaneseq
  %v1683 = vshrl.u32 %v1682, 7
  %v1684 = vsub.s32 0, %v1683
  %v1685 = vrot.slane %v1680, %v1684
  %v1686 = vlaneseq
  %v1687 = vshrl.u32 %v1686, 7
  %v1688 = vsub.s32 1, %v1687
  %v1689 = vrot.slane %v1680, %v1688
  %v1692 = vadd.f32 %v1678, %v1685
  %v1693 = vadd.f32 %v1679, %v1689
  %v1694 = vmax.f32 %v1692, 0.0
  %v1695 = vmax.f32 %v1693, 0.0
  %v1696 = vld [vmem:[%s7] sm:$0xff]
  %v1697 = vld [vmem:[%s7 + $0x8] sm:$0xff]
  %v1698 = vld [vmem:[%s7 + $0x10] sm:$0xff]
  %v1699 = vld [vmem:[%s7 + $0x18] sm:$0xff]
  %v1700 = vld [vmem:[%s7 + $0x20] sm:$0xff]
  %v1701 = vld [vmem:[%s7 + $0x28] sm:$0xff]
  %v1702 = vld [vmem:[%s7 + $0x30] sm:$0xff]
  %v1703 = vld [vmem:[%s7 + $0x38] sm:$0xff]
  %v1704 = vld [vmem:[%s7 + $0x40] sm:$0xff]
  %v1705 = vld [vmem:[%s7 + $0x48] sm:$0xff]
  %v1706 = vld [vmem:[%s7 + $0x50] sm:$0xff]
  %v1707 = vld [vmem:[%s7 + $0x58] sm:$0xff]
  %v1708 = vld [vmem:[%s7 + $0x60] sm:$0xff]
  %v1709 = vld [vmem:[%s7 + $0x68] sm:$0xff]
  %v1710 = vld [vmem:[%s7 + $0x70] sm:$0xff]
  %v1711 = vld [vmem:[%s7 + $0x78] sm:$0xff]
  %v1712 = vld [vmem:[%s7 + $0x80] sm:$0xff]
  %v1713 = vld [vmem:[%s7 + $0x88] sm:$0xff]
  %v1714 = vld [vmem:[%s7 + $0x90] sm:$0xff]
  %v1715 = vld [vmem:[%s7 + $0x98] sm:$0xff]
  %v1716 = vld [vmem:[%s7 + $0xa0] sm:$0xff]
  %v1717 = vld [vmem:[%s7 + $0xa8] sm:$0xff]
  %v1718 = vld [vmem:[%s7 + $0xb0] sm:$0xff]
  %v1719 = vld [vmem:[%s7 + $0xb8] sm:$0xff]
  %v1720 = vld [vmem:[%s7 + $0xc0] sm:$0xff]
  %v1721 = vld [vmem:[%s7 + $0xc8] sm:$0xff]
  %v1722 = vld [vmem:[%s7 + $0xd0] sm:$0xff]
  %v1723 = vld [vmem:[%s7 + $0xd8] sm:$0xff]
  %v1724 = vld [vmem:[%s7 + $0xe0] sm:$0xff]
  %v1725 = vld [vmem:[%s7 + $0xe8] sm:$0xff]
  %v1726 = vld [vmem:[%s7 + $0xf0] sm:$0xff]
  %v1727 = vld [vmem:[%s7 + $0xf8] sm:$0xff]
  %v1728 = vld [vmem:[#allocation2] sm:$0x1]
  %v1730 = vlaneseq
  %v1731 = vshrl.u32 %v1730, 7
  %v1732 = vsub.s32 0, %v1731
  %v1733 = vrot.slane %v1728, %v1732
  %1735 = vmatprep.subr.mxu0 0.0
  %1736 = vmatpush1.msra.mxu0 %v1696
  %1737 = vmatprep.subr.mxu0 0.0
  %1738 = vmatpush1.msra.mxu0 %v1697
  %1739 = vmatprep.subr.mxu0 0.0
  %1740 = vmatpush1.msra.mxu0 %v1698
  %1741 = vmatprep.subr.mxu0 0.0
  %1742 = vmatpush1.msra.mxu0 %v1699
  %1743 = vmatprep.subr.mxu0 0.0
  %1744 = vmatpush1.msra.mxu0 %v1700
  %1745 = vmatprep.subr.mxu0 0.0
  %1746 = vmatpush1.msra.mxu0 %v1701
  %1747 = vmatprep.subr.mxu0 0.0
  %1748 = vmatpush1.msra.mxu0 %v1702
  %1749 = vmatprep.subr.mxu0 0.0
  %1750 = vmatpush1.msra.mxu0 %v1703
  %1751 = vmatprep.subr.mxu0 0.0
  %1752 = vmatpush1.msra.mxu0 %v1704
  %1753 = vmatprep.subr.mxu0 0.0
  %1754 = vmatpush1.msra.mxu0 %v1705
  %1755 = vmatprep.subr.mxu0 0.0
  %1756 = vmatpush1.msra.mxu0 %v1706
  %1757 = vmatprep.subr.mxu0 0.0
  %1758 = vmatpush1.msra.mxu0 %v1707
  %1759 = vmatprep.subr.mxu0 0.0
  %1760 = vmatpush1.msra.mxu0 %v1708
  %1761 = vmatprep.subr.mxu0 0.0
  %1762 = vmatpush1.msra.mxu0 %v1709
  %1763 = vmatprep.subr.mxu0 0.0
  %1764 = vmatpush1.msra.mxu0 %v1710
  %1765 = vmatprep.subr.mxu0 0.0
  %1766 = vmatpush1.msra.mxu0 %v1711
  %1767 = vmatprep.subr.mxu0 0.0
  %1768 = vmatpush1.msra.mxu0 %v1712
  %1769 = vmatprep.subr.mxu0 0.0
  %1770 = vmatpush1.msra.mxu0 %v1713
  %1771 = vmatprep.subr.mxu0 0.0
  %1772 = vmatpush1.msra.mxu0 %v1714
  %1773 = vmatprep.subr.mxu0 0.0
  %1774 = vmatpush1.msra.mxu0 %v1715
  %1775 = vmatprep.subr.mxu0 0.0
  %1776 = vmatpush1.msra.mxu0 %v1716
  %1777 = vmatprep.subr.mxu0 0.0
  %1778 = vmatpush1.msra.mxu0 %v1717
  %1779 = vmatprep.subr.mxu0 0.0
  %1780 = vmatpush1.msra.mxu0 %v1718
  %1781 = vmatprep.subr.mxu0 0.0
  %1782 = vmatpush1.msra.mxu0 %v1719
  %1783 = vmatprep.subr.mxu0 0.0
  %1784 = vmatpush1.msra.mxu0 %v1720
  %1785 = vmatprep.subr.mxu0 0.0
  %1786 = vmatpush1.msra.mxu0 %v1721
  %1787 = vmatprep.subr.mxu0 0.0
  %1788 = vmatpush1.msra.mxu0 %v1722
  %1789 = vmatprep.subr.mxu0 0.0
  %1790 = vmatpush1.msra.mxu0 %v1723
  %1791 = vmatprep.subr.mxu0 0.0
  %1792 = vmatpush1.msra.mxu0 %v1724
  %1793 = vmatprep.subr.mxu0 0.0
  %1794 = vmatpush1.msra.mxu0 %v1725
  %1795 = vmatprep.subr.mxu0 0.0
  %1796 = vmatpush1.msra.mxu0 %v1726
  %1797 = vmatprep.subr.mxu0 0.0
  %1798 = vmatpush1.msra.mxu0 %v1727
  %1799 = vmatprep.mubr.f32.mxu0 %v1695
  %1800 = vmatmul.mubr.f32.gmra.mrb[0].mxu0 %v1694
  %v1801 = vpop.f32.mrb[0].mxu0
  %v1802 = vadd.f32 %v1733, %v1801
  %v1803 = vpop.f32.mrb[0].mxu0
  %1804 = vdwg.mxu0
  %v1805 = vsub.f32 0.0, %v1802
  %v1806 = vmul.f32 %v1805, 1.442695
  %v1807 = vpow.pop %v1806
  %v1808 = vadd.f32 %v1807, 1.0
  %v1809 = vrcp.pop %v1808
  %v1810 = vmul.f32 1.0, %v1809
  %v1811 = vld [vmem:[%s9] sm:$0xff]
  %v1812 = vld [vmem:[%s9 + $0x8] sm:$0xff]
  %v1813 = vld [vmem:[%s9 + $0x10] sm:$0xff]
  %v1814 = vld [vmem:[%s9 + $0x18] sm:$0xff]
  %v1815 = vld [vmem:[%s9 + $0x20] sm:$0xff]
  %v1816 = vld [vmem:[%s9 + $0x28] sm:$0xff]
  %v1817 = vld [vmem:[%s9 + $0x30] sm:$0xff]
  %v1818 = vld [vmem:[%s9 + $0x38] sm:$0xff]
  %v1819 = vld [vmem:[%s9 + $0x40] sm:$0xff]
  %v1820 = vld [vmem:[%s9 + $0x48] sm:$0xff]
  %v1821 = vld [vmem:[%s9 + $0x50] sm:$0xff]
  %v1822 = vld [vmem:[%s9 + $0x58] sm:$0xff]
  %v1823 = vld [vmem:[%s9 + $0x60] sm:$0xff]
  %v1824 = vld [vmem:[%s9 + $0x68] sm:$0xff]
  %v1825 = vld [vmem:[%s9 + $0x70] sm:$0xff]
  %v1826 = vld [vmem:[%s9 + $0x78] sm:$0xff]
  %v1827 = vld [vmem:[%s9 + $0x80] sm:$0xff]
  %v1828 = vld [vmem:[%s9 + $0x88] sm:$0xff]
  %v1829 = vld [vmem:[%s9 + $0x90] sm:$0xff]
  %v1830 = vld [vmem:[%s9 + $0x98] sm:$0xff]
  %v1831 = vld [vmem:[%s9 + $0xa0] sm:$0xff]
  %v1832 = vld [vmem:[%s9 + $0xa8] sm:$0xff]
  %v1833 = vld [vmem:[%s9 + $0xb0] sm:$0xff]
  %v1834 = vld [vmem:[%s9 + $0xb8] sm:$0xff]
  %v1835 = vld [vmem:[%s9 + $0xc0] sm:$0xff]
  %v1836 = vld [vmem:[%s9 + $0xc8] sm:$0xff]
  %v1837 = vld [vmem:[%s9 + $0xd0] sm:$0xff]
  %v1838 = vld [vmem:[%s9 + $0xd8] sm:$0xff]
  %v1839 = vld [vmem:[%s9 + $0xe0] sm:$0xff]
  %v1840 = vld [vmem:[%s9 + $0xe8] sm:$0xff]
  %v1841 = vld [vmem:[%s9 + $0xf0] sm:$0xff]
  %v1842 = vld [vmem:[%s9 + $0xf8] sm:$0xff]
  %v1843 = vld [vmem:[%s9 + $0x100] sm:$0xff]
  %v1844 = vld [vmem:[%s9 + $0x108] sm:$0xff]
  %v1845 = vld [vmem:[%s9 + $0x110] sm:$0xff]
  %v1846 = vld [vmem:[%s9 + $0x118] sm:$0xff]
  %v1847 = vld [vmem:[%s9 + $0x120] sm:$0xff]
  %v1848 = vld [vmem:[%s9 + $0x128] sm:$0xff]
  %v1849 = vld [vmem:[%s9 + $0x130] sm:$0xff]
  %v1850 = vld [vmem:[%s9 + $0x138] sm:$0xff]
  %v1851 = vld [vmem:[%s9 + $0x140] sm:$0xff]
  %v1852 = vld [vmem:[%s9 + $0x148] sm:$0xff]
  %v1853 = vld [vmem:[%s9 + $0x150] sm:$0xff]
  %v1854 = vld [vmem:[%s9 + $0x158] sm:$0xff]
  %v1855 = vld [vmem:[%s9 + $0x160] sm:$0xff]
  %v1856 = vld [vmem:[%s9 + $0x168] sm:$0xff]
  %v1857 = vld [vmem:[%s9 + $0x170] sm:$0xff]
  %v1858 = vld [vmem:[%s9 + $0x178] sm:$0xff]
  %v1859 = vld [vmem:[%s9 + $0x180] sm:$0xff]
  %v1860 = vld [vmem:[%s9 + $0x188] sm:$0xff]
  %v1861 = vld [vmem:[%s9 + $0x190] sm:$0xff]
  %v1862 = vld [vmem:[%s9 + $0x198] sm:$0xff]
  %v1863 = vld [vmem:[%s9 + $0x1a0] sm:$0xff]
  %v1864 = vld [vmem:[%s9 + $0x1a8] sm:$0xff]
  %v1865 = vld [vmem:[%s9 + $0x1b0] sm:$0xff]
  %v1866 = vld [vmem:[%s9 + $0x1b8] sm:$0xff]
  %v1867 = vld [vmem:[%s9 + $0x1c0] sm:$0xff]
  %v1868 = vld [vmem:[%s9 + $0x1c8] sm:$0xff]
  %v1869 = vld [vmem:[%s9 + $0x1d0] sm:$0xff]
  %v1870 = vld [vmem:[%s9 + $0x1d8] sm:$0xff]
  %v1871 = vld [vmem:[%s9 + $0x1e0] sm:$0xff]
  %v1872 = vld [vmem:[%s9 + $0x1e8] sm:$0xff]
  %v1873 = vld [vmem:[%s9 + $0x1f0] sm:$0xff]
  %v1874 = vld [vmem:[%s9 + $0x1f8] sm:$0xff]
  %v1939 = vunpack.c.l.b16 %v1811
  %v1940 = vunpack.c.h.b16 %v1811
  %v1941 = vunpack.c.l.b16 %v1812
  %v1942 = vunpack.c.h.b16 %v1812
  %v1943 = vunpack.c.l.b16 %v1813
  %v1944 = vunpack.c.h.b16 %v1813
  %v1945 = vunpack.c.l.b16 %v1814
  %v1946 = vunpack.c.h.b16 %v1814
  %v1947 = vunpack.c.l.b16 %v1815
  %v1948 = vunpack.c.h.b16 %v1815
  %v1949 = vunpack.c.l.b16 %v1816
  %v1950 = vunpack.c.h.b16 %v1816
  %v1951 = vunpack.c.l.b16 %v1817
  %v1952 = vunpack.c.h.b16 %v1817
  %v1953 = vunpack.c.l.b16 %v1818
  %v1954 = vunpack.c.h.b16 %v1818
  %v1955 = vunpack.c.l.b16 %v1819
  %v1956 = vunpack.c.h.b16 %v1819
  %v1957 = vunpack.c.l.b16 %v1820
  %v1958 = vunpack.c.h.b16 %v1820
  %v1959 = vunpack.c.l.b16 %v1821
  %v1960 = vunpack.c.h.b16 %v1821
  %v1961 = vunpack.c.l.b16 %v1822
  %v1962 = vunpack.c.h.b16 %v1822
  %v1963 = vunpack.c.l.b16 %v1823
  %v1964 = vunpack.c.h.b16 %v1823
  %v1965 = vunpack.c.l.b16 %v1824
  %v1966 = vunpack.c.h.b16 %v1824
  %v1967 = vunpack.c.l.b16 %v1825
  %v1968 = vunpack.c.h.b16 %v1825
  %v1969 = vunpack.c.l.b16 %v1826
  %v1970 = vunpack.c.h.b16 %v1826
  %v1971 = vunpack.c.l.b16 %v1827
  %v1972 = vunpack.c.h.b16 %v1827
  %v1973 = vunpack.c.l.b16 %v1828
  %v1974 = vunpack.c.h.b16 %v1828
  %v1975 = vunpack.c.l.b16 %v1829
  %v1976 = vunpack.c.h.b16 %v1829
  %v1977 = vunpack.c.l.b16 %v1830
  %v1978 = vunpack.c.h.b16 %v1830
  %v1979 = vunpack.c.l.b16 %v1831
  %v1980 = vunpack.c.h.b16 %v1831
  %v1981 = vunpack.c.l.b16 %v1832
  %v1982 = vunpack.c.h.b16 %v1832
  %v1983 = vunpack.c.l.b16 %v1833
  %v1984 = vunpack.c.h.b16 %v1833
  %v1985 = vunpack.c.l.b16 %v1834
  %v1986 = vunpack.c.h.b16 %v1834
  %v1987 = vunpack.c.l.b16 %v1835
  %v1988 = vunpack.c.h.b16 %v1835
  %v1989 = vunpack.c.l.b16 %v1836
  %v1990 = vunpack.c.h.b16 %v1836
  %v1991 = vunpack.c.l.b16 %v1837
  %v1992 = vunpack.c.h.b16 %v1837
  %v1993 = vunpack.c.l.b16 %v1838
  %v1994 = vunpack.c.h.b16 %v1838
  %v1995 = vunpack.c.l.b16 %v1839
  %v1996 = vunpack.c.h.b16 %v1839
  %v1997 = vunpack.c.l.b16 %v1840
  %v1998 = vunpack.c.h.b16 %v1840
  %v1999 = vunpack.c.l.b16 %v1841
  %v2000 = vunpack.c.h.b16 %v1841
  %v2001 = vunpack.c.l.b16 %v1842
  %v2002 = vunpack.c.h.b16 %v1842
  %v2003 = vunpack.c.l.b16 %v1843
  %v2004 = vunpack.c.h.b16 %v1843
  %v2005 = vunpack.c.l.b16 %v1844
  %v2006 = vunpack.c.h.b16 %v1844
  %v2007 = vunpack.c.l.b16 %v1845
  %v2008 = vunpack.c.h.b16 %v1845
  %v2009 = vunpack.c.l.b16 %v1846
  %v2010 = vunpack.c.h.b16 %v1846
  %v2011 = vunpack.c.l.b16 %v1847
  %v2012 = vunpack.c.h.b16 %v1847
  %v2013 = vunpack.c.l.b16 %v1848
  %v2014 = vunpack.c.h.b16 %v1848
  %v2015 = vunpack.c.l.b16 %v1849
  %v2016 = vunpack.c.h.b16 %v1849
  %v2017 = vunpack.c.l.b16 %v1850
  %v2018 = vunpack.c.h.b16 %v1850
  %v2019 = vunpack.c.l.b16 %v1851
  %v2020 = vunpack.c.h.b16 %v1851
  %v2021 = vunpack.c.l.b16 %v1852
  %v2022 = vunpack.c.h.b16 %v1852
  %v2023 = vunpack.c.l.b16 %v1853
  %v2024 = vunpack.c.h.b16 %v1853
  %v2025 = vunpack.c.l.b16 %v1854
  %v2026 = vunpack.c.h.b16 %v1854
  %v2027 = vunpack.c.l.b16 %v1855
  %v2028 = vunpack.c.h.b16 %v1855
  %v2029 = vunpack.c.l.b16 %v1856
  %v2030 = vunpack.c.h.b16 %v1856
  %v2031 = vunpack.c.l.b16 %v1857
  %v2032 = vunpack.c.h.b16 %v1857
  %v2033 = vunpack.c.l.b16 %v1858
  %v2034 = vunpack.c.h.b16 %v1858
  %v2035 = vunpack.c.l.b16 %v1859
  %v2036 = vunpack.c.h.b16 %v1859
  %v2037 = vunpack.c.l.b16 %v1860
  %v2038 = vunpack.c.h.b16 %v1860
  %v2039 = vunpack.c.l.b16 %v1861
  %v2040 = vunpack.c.h.b16 %v1861
  %v2041 = vunpack.c.l.b16 %v1862
  %v2042 = vunpack.c.h.b16 %v1862
  %v2043 = vunpack.c.l.b16 %v1863
  %v2044 = vunpack.c.h.b16 %v1863
  %v2045 = vunpack.c.l.b16 %v1864
  %v2046 = vunpack.c.h.b16 %v1864
  %v2047 = vunpack.c.l.b16 %v1865
  %v2048 = vunpack.c.h.b16 %v1865
  %v2049 = vunpack.c.l.b16 %v1866
  %v2050 = vunpack.c.h.b16 %v1866
  %v2051 = vunpack.c.l.b16 %v1867
  %v2052 = vunpack.c.h.b16 %v1867
  %v2053 = vunpack.c.l.b16 %v1868
  %v2054 = vunpack.c.h.b16 %v1868
  %v2055 = vunpack.c.l.b16 %v1869
  %v2056 = vunpack.c.h.b16 %v1869
  %v2057 = vunpack.c.l.b16 %v1870
  %v2058 = vunpack.c.h.b16 %v1870
  %v2059 = vunpack.c.l.b16 %v1871
  %v2060 = vunpack.c.h.b16 %v1871
  %v2061 = vunpack.c.l.b16 %v1872
  %v2062 = vunpack.c.h.b16 %v1872
  %v2063 = vunpack.c.l.b16 %v1873
  %v2064 = vunpack.c.h.b16 %v1873
  %v2065 = vunpack.c.l.b16 %v1874
  %v2066 = vunpack.c.h.b16 %v1874
  %v2067 = vpack.c.b16 %v1947, %v1939
  %v2068 = vpack.c.b16 %v1948, %v1940
  %v2069 = vpack.c.b16 %v1949, %v1941
  %v2070 = vpack.c.b16 %v1950, %v1942
  %v2071 = vpack.c.b16 %v1951, %v1943
  %v2072 = vpack.c.b16 %v1952, %v1944
  %v2073 = vpack.c.b16 %v1953, %v1945
  %v2074 = vpack.c.b16 %v1954, %v1946
  %v2075 = vpack.c.b16 %v1963, %v1955
  %v2076 = vpack.c.b16 %v1964, %v1956
  %v2077 = vpack.c.b16 %v1965, %v1957
  %v2078 = vpack.c.b16 %v1966, %v1958
  %v2079 = vpack.c.b16 %v1967, %v1959
  %v2080 = vpack.c.b16 %v1968, %v1960
  %v2081 = vpack.c.b16 %v1969, %v1961
  %v2082 = vpack.c.b16 %v1970, %v1962
  %v2083 = vpack.c.b16 %v1979, %v1971
  %v2084 = vpack.c.b16 %v1980, %v1972
  %v2085 = vpack.c.b16 %v1981, %v1973
  %v2086 = vpack.c.b16 %v1982, %v1974
  %v2087 = vpack.c.b16 %v1983, %v1975
  %v2088 = vpack.c.b16 %v1984, %v1976
  %v2089 = vpack.c.b16 %v1985, %v1977
  %v2090 = vpack.c.b16 %v1986, %v1978
  %v2091 = vpack.c.b16 %v1995, %v1987
  %v2092 = vpack.c.b16 %v1996, %v1988
  %v2093 = vpack.c.b16 %v1997, %v1989
  %v2094 = vpack.c.b16 %v1998, %v1990
  %v2095 = vpack.c.b16 %v1999, %v1991
  %v2096 = vpack.c.b16 %v2000, %v1992
  %v2097 = vpack.c.b16 %v2001, %v1993
  %v2098 = vpack.c.b16 %v2002, %v1994
  %v2099 = vpack.c.b16 %v2011, %v2003
  %v2100 = vpack.c.b16 %v2012, %v2004
  %v2101 = vpack.c.b16 %v2013, %v2005
  %v2102 = vpack.c.b16 %v2014, %v2006
  %v2103 = vpack.c.b16 %v2015, %v2007
  %v2104 = vpack.c.b16 %v2016, %v2008
  %v2105 = vpack.c.b16 %v2017, %v2009
  %v2106 = vpack.c.b16 %v2018, %v2010
  %v2107 = vpack.c.b16 %v2027, %v2019
  %v2108 = vpack.c.b16 %v2028, %v2020
  %v2109 = vpack.c.b16 %v2029, %v2021
  %v2110 = vpack.c.b16 %v2030, %v2022
  %v2111 = vpack.c.b16 %v2031, %v2023
  %v2112 = vpack.c.b16 %v2032, %v2024
  %v2113 = vpack.c.b16 %v2033, %v2025
  %v2114 = vpack.c.b16 %v2034, %v2026
  %v2115 = vpack.c.b16 %v2043, %v2035
  %v2116 = vpack.c.b16 %v2044, %v2036
  %v2117 = vpack.c.b16 %v2045, %v2037
  %v2118 = vpack.c.b16 %v2046, %v2038
  %v2119 = vpack.c.b16 %v2047, %v2039
  %v2120 = vpack.c.b16 %v2048, %v2040
  %v2121 = vpack.c.b16 %v2049, %v2041
  %v2122 = vpack.c.b16 %v2050, %v2042
  %v2123 = vpack.c.b16 %v2059, %v2051
  %v2124 = vpack.c.b16 %v2060, %v2052
  %v2125 = vpack.c.b16 %v2061, %v2053
  %v2126 = vpack.c.b16 %v2062, %v2054
  %v2127 = vpack.c.b16 %v2063, %v2055
  %v2128 = vpack.c.b16 %v2064, %v2056
  %v2129 = vpack.c.b16 %v2065, %v2057
  %v2130 = vpack.c.b16 %v2066, %v2058
  %2195 = vmatprep.subr.bf16.mxu0 %v2068
  %2196 = vmatpush1.bf16.msra.mxu0 %v2067
  %2197 = vmatprep.subr.bf16.mxu0 %v2076
  %2198 = vmatpush1.bf16.msra.mxu0 %v2075
  %2199 = vmatprep.subr.bf16.mxu0 %v2084
  %2200 = vmatpush1.bf16.msra.mxu0 %v2083
  %2201 = vmatprep.subr.bf16.mxu0 %v2092
  %2202 = vmatpush1.bf16.msra.mxu0 %v2091
  %2203 = vmatprep.subr.bf16.mxu0 %v2100
  %2204 = vmatpush1.bf16.msra.mxu0 %v2099
  %2205 = vmatprep.subr.bf16.mxu0 %v2108
  %2206 = vmatpush1.bf16.msra.mxu0 %v2107
  %2207 = vmatprep.subr.bf16.mxu0 %v2116
  %2208 = vmatpush1.bf16.msra.mxu0 %v2115
  %2209 = vmatprep.subr.bf16.mxu0 %v2124
  %2210 = vmatpush1.bf16.msra.mxu0 %v2123
  %2211 = vmatprep.subr.bf16.mxu0 0
  %2212 = vmatpush1.bf16.msra.mxu0 0
  %2213 = vmatprep.subr.bf16.mxu0 0
  %2214 = vmatpush1.bf16.msra.mxu0 0
  %2215 = vmatprep.subr.bf16.mxu0 0
  %2216 = vmatpush1.bf16.msra.mxu0 0
  %2217 = vmatprep.subr.bf16.mxu0 0
  %2218 = vmatpush1.bf16.msra.mxu0 0
  %2219 = vmatprep.subr.bf16.mxu0 0
  %2220 = vmatpush1.bf16.msra.mxu0 0
  %2221 = vmatprep.subr.bf16.mxu0 0
  %2222 = vmatpush1.bf16.msra.mxu0 0
  %2223 = vmatprep.subr.bf16.mxu0 0
  %2224 = vmatpush1.bf16.msra.mxu0 0
  %2225 = vmatprep.subr.bf16.mxu0 0
  %2226 = vmatpush1.bf16.msra.mxu0 0
  %2227 = vmatprep.mubr.bf16.mxu0 0
  %2228 = vmatmul.mubr.bf16.gmra.mrb[0].mxu0 %v69
  %v2229 = vpop.f32.mrb[0].mxu0
  %v2230 = vadd.f32 0.0, %v2229
  %v2231 = vpop.f32.mrb[0].mxu0
  %v2232 = vadd.f32 0.0, %v2231
  %v2233 = vpop.f32.mrb[0].mxu0
  %v2234 = vpop.f32.mrb[0].mxu0
  %2235 = vdwg.mxu0
  %2236 = vmatprep.subr.bf16.mxu0 %v2070
  %2237 = vmatpush1.bf16.msra.mxu0 %v2069
  %2238 = vmatprep.subr.bf16.mxu0 %v2078
  %2239 = vmatpush1.bf16.msra.mxu0 %v2077
  %2240 = vmatprep.subr.bf16.mxu0 %v2086
  %2241 = vmatpush1.bf16.msra.mxu0 %v2085
  %2242 = vmatprep.subr.bf16.mxu0 %v2094
  %2243 = vmatpush1.bf16.msra.mxu0 %v2093
  %2244 = vmatprep.subr.bf16.mxu0 %v2102
  %2245 = vmatpush1.bf16.msra.mxu0 %v2101
  %2246 = vmatprep.subr.bf16.mxu0 %v2110
  %2247 = vmatpush1.bf16.msra.mxu0 %v2109
  %2248 = vmatprep.subr.bf16.mxu0 %v2118
  %2249 = vmatpush1.bf16.msra.mxu0 %v2117
  %2250 = vmatprep.subr.bf16.mxu0 %v2126
  %2251 = vmatpush1.bf16.msra.mxu0 %v2125
  %2252 = vmatprep.subr.bf16.mxu0 0
  %2253 = vmatpush1.bf16.msra.mxu0 0
  %2254 = vmatprep.subr.bf16.mxu0 0
  %2255 = vmatpush1.bf16.msra.mxu0 0
  %2256 = vmatprep.subr.bf16.mxu0 0
  %2257 = vmatpush1.bf16.msra.mxu0 0
  %2258 = vmatprep.subr.bf16.mxu0 0
  %2259 = vmatpush1.bf16.msra.mxu0 0
  %2260 = vmatprep.subr.bf16.mxu0 0
  %2261 = vmatpush1.bf16.msra.mxu0 0
  %2262 = vmatprep.subr.bf16.mxu0 0
  %2263 = vmatpush1.bf16.msra.mxu0 0
  %2264 = vmatprep.subr.bf16.mxu0 0
  %2265 = vmatpush1.bf16.msra.mxu0 0
  %2266 = vmatprep.subr.bf16.mxu0 0
  %2267 = vmatpush1.bf16.msra.mxu0 0
  %2268 = vmatprep.mubr.bf16.mxu0 0
  %2269 = vmatmul.mubr.bf16.gmra.mrb[0].mxu0 %v69
  %v2270 = vpop.f32.mrb[0].mxu0
  %v2271 = vadd.f32 0.0, %v2270
  %v2272 = vpop.f32.mrb[0].mxu0
  %v2273 = vadd.f32 0.0, %v2272
  %v2274 = vpop.f32.mrb[0].mxu0
  %v2275 = vpop.f32.mrb[0].mxu0
  %2276 = vdwg.mxu0
  %2277 = vmatprep.subr.bf16.mxu0 %v2072
  %2278 = vmatpush1.bf16.msra.mxu0 %v2071
  %2279 = vmatprep.subr.bf16.mxu0 %v2080
  %2280 = vmatpush1.bf16.msra.mxu0 %v2079
  %2281 = vmatprep.subr.bf16.mxu0 %v2088
  %2282 = vmatpush1.bf16.msra.mxu0 %v2087
  %2283 = vmatprep.subr.bf16.mxu0 %v2096
  %2284 = vmatpush1.bf16.msra.mxu0 %v2095
  %2285 = vmatprep.subr.bf16.mxu0 %v2104
  %2286 = vmatpush1.bf16.msra.mxu0 %v2103
  %2287 = vmatprep.subr.bf16.mxu0 %v2112
  %2288 = vmatpush1.bf16.msra.mxu0 %v2111
  %2289 = vmatprep.subr.bf16.mxu0 %v2120
  %2290 = vmatpush1.bf16.msra.mxu0 %v2119
  %2291 = vmatprep.subr.bf16.mxu0 %v2128
  %2292 = vmatpush1.bf16.msra.mxu0 %v2127
  %2293 = vmatprep.subr.bf16.mxu0 0
  %2294 = vmatpush1.bf16.msra.mxu0 0
  %2295 = vmatprep.subr.bf16.mxu0 0
  %2296 = vmatpush1.bf16.msra.mxu0 0
  %2297 = vmatprep.subr.bf16.mxu0 0
  %2298 = vmatpush1.bf16.msra.mxu0 0
  %2299 = vmatprep.subr.bf16.mxu0 0
  %2300 = vmatpush1.bf16.msra.mxu0 0
  %2301 = vmatprep.subr.bf16.mxu0 0
  %2302 = vmatpush1.bf16.msra.mxu0 0
  %2303 = vmatprep.subr.bf16.mxu0 0
  %2304 = vmatpush1.bf16.msra.mxu0 0
  %2305 = vmatprep.subr.bf16.mxu0 0
  %2306 = vmatpush1.bf16.msra.mxu0 0
  %2307 = vmatprep.subr.bf16.mxu0 0
  %2308 = vmatpush1.bf16.msra.mxu0 0
  %2309 = vmatprep.mubr.bf16.mxu0 0
  %2310 = vmatmul.mubr.bf16.gmra.mrb[0].mxu0 %v69
  %v2311 = vpop.f32.mrb[0].mxu0
  %v2312 = vadd.f32 0.0, %v2311
  %v2313 = vpop.f32.mrb[0].mxu0
  %v2314 = vadd.f32 0.0, %v2313
  %v2315 = vpop.f32.mrb[0].mxu0
  %v2316 = vpop.f32.mrb[0].mxu0
  %2317 = vdwg.mxu0
  %2318 = vmatprep.subr.bf16.mxu0 %v2074
  %2319 = vmatpush1.bf16.msra.mxu0 %v2073
  %2320 = vmatprep.subr.bf16.mxu0 %v2082
  %2321 = vmatpush1.bf16.msra.mxu0 %v2081
  %2322 = vmatprep.subr.bf16.mxu0 %v2090
  %2323 = vmatpush1.bf16.msra.mxu0 %v2089
  %2324 = vmatprep.subr.bf16.mxu0 %v2098
  %2325 = vmatpush1.bf16.msra.mxu0 %v2097
  %2326 = vmatprep.subr.bf16.mxu0 %v2106
  %2327 = vmatpush1.bf16.msra.mxu0 %v2105
  %2328 = vmatprep.subr.bf16.mxu0 %v2114
  %2329 = vmatpush1.bf16.msra.mxu0 %v2113
  %2330 = vmatprep.subr.bf16.mxu0 %v2122
  %2331 = vmatpush1.bf16.msra.mxu0 %v2121
  %2332 = vmatprep.subr.bf16.mxu0 %v2130
  %2333 = vmatpush1.bf16.msra.mxu0 %v2129
  %2334 = vmatprep.subr.bf16.mxu0 0
  %2335 = vmatpush1.bf16.msra.mxu0 0
  %2336 = vmatprep.subr.bf16.mxu0 0
  %2337 = vmatpush1.bf16.msra.mxu0 0
  %2338 = vmatprep.subr.bf16.mxu0 0
  %2339 = vmatpush1.bf16.msra.mxu0 0
  %2340 = vmatprep.subr.bf16.mxu0 0
  %2341 = vmatpush1.bf16.msra.mxu0 0
  %2342 = vmatprep.subr.bf16.mxu0 0
  %2343 = vmatpush1.bf16.msra.mxu0 0
  %2344 = vmatprep.subr.bf16.mxu0 0
  %2345 = vmatpush1.bf16.msra.mxu0 0
  %2346 = vmatprep.subr.bf16.mxu0 0
  %2347 = vmatpush1.bf16.msra.mxu0 0
  %2348 = vmatprep.subr.bf16.mxu0 0
  %2349 = vmatpush1.bf16.msra.mxu0 0
  %2350 = vmatprep.mubr.bf16.mxu0 0
  %2351 = vmatmul.mubr.bf16.gmra.mrb[0].mxu0 %v69
  %v2352 = vpop.f32.mrb[0].mxu0
  %v2353 = vadd.f32 0.0, %v2352
  %v2354 = vpop.f32.mrb[0].mxu0
  %v2355 = vadd.f32 0.0, %v2354
  %v2356 = vpop.f32.mrb[0].mxu0
  %v2357 = vpop.f32.mrb[0].mxu0
  %2358 = vdwg.mxu0
  %v2359 = vld [vmem:[%s10] sm:$0xff]
  %v2361 = vlaneseq
  %v2362 = vshrl.u32 %v2361, 7
  %v2363 = vsub.s32 0, %v2362
  %v2364 = vrot.slane %v2359, %v2363
  %v2365 = vlaneseq
  %v2366 = vshrl.u32 %v2365, 7
  %v2367 = vsub.s32 1, %v2366
  %v2368 = vrot.slane %v2359, %v2367
  %v2369 = vlaneseq
  %v2370 = vshrl.u32 %v2369, 7
  %v2371 = vsub.s32 2, %v2370
  %v2372 = vrot.slane %v2359, %v2371
  %v2373 = vlaneseq
  %v2374 = vshrl.u32 %v2373, 7
  %v2375 = vsub.s32 3, %v2374
  %v2376 = vrot.slane %v2359, %v2375
  %v2377 = vlaneseq
  %v2378 = vshrl.u32 %v2377, 7
  %v2379 = vsub.s32 4, %v2378
  %v2380 = vrot.slane %v2359, %v2379
  %v2381 = vlaneseq
  %v2382 = vshrl.u32 %v2381, 7
  %v2383 = vsub.s32 5, %v2382
  %v2384 = vrot.slane %v2359, %v2383
  %v2385 = vlaneseq
  %v2386 = vshrl.u32 %v2385, 7
  %v2387 = vsub.s32 6, %v2386
  %v2388 = vrot.slane %v2359, %v2387
  %v2389 = vlaneseq
  %v2390 = vshrl.u32 %v2389, 7
  %v2391 = vsub.s32 7, %v2390
  %v2392 = vrot.slane %v2359, %v2391
  %v2401 = vmul.f32 %v2230, %v2364
  %v2402 = vmul.f32 %v2232, %v2368
  %v2403 = vmul.f32 %v2271, %v2372
  %v2404 = vmul.f32 %v2273, %v2376
  %v2405 = vmul.f32 %v2312, %v2380
  %v2406 = vmul.f32 %v2314, %v2384
  %v2407 = vmul.f32 %v2353, %v2388
  %v2408 = vmul.f32 %v2355, %v2392
  %v2409 = vld [vmem:[%s11] sm:$0xff]
  %v2411 = vlaneseq
  %v2412 = vshrl.u32 %v2411, 7
  %v2413 = vsub.s32 0, %v2412
  %v2414 = vrot.slane %v2409, %v2413
  %v2415 = vlaneseq
  %v2416 = vshrl.u32 %v2415, 7
  %v2417 = vsub.s32 1, %v2416
  %v2418 = vrot.slane %v2409, %v2417
  %v2419 = vlaneseq
  %v2420 = vshrl.u32 %v2419, 7
  %v2421 = vsub.s32 2, %v2420
  %v2422 = vrot.slane %v2409, %v2421
  %v2423 = vlaneseq
  %v2424 = vshrl.u32 %v2423, 7
  %v2425 = vsub.s32 3, %v2424
  %v2426 = vrot.slane %v2409, %v2425
  %v2427 = vlaneseq
  %v2428 = vshrl.u32 %v2427, 7
  %v2429 = vsub.s32 4, %v2428
  %v2430 = vrot.slane %v2409, %v2429
  %v2431 = vlaneseq
  %v2432 = vshrl.u32 %v2431, 7
  %v2433 = vsub.s32 5, %v2432
  %v2434 = vrot.slane %v2409, %v2433
  %v2435 = vlaneseq
  %v2436 = vshrl.u32 %v2435, 7
  %v2437 = vsub.s32 6, %v2436
  %v2438 = vrot.slane %v2409, %v2437
  %v2439 = vlaneseq
  %v2440 = vshrl.u32 %v2439, 7
  %v2441 = vsub.s32 7, %v2440
  %v2442 = vrot.slane %v2409, %v2441
  %v2451 = vadd.f32 %v2401, %v2414
  %v2452 = vadd.f32 %v2402, %v2418
  %v2453 = vadd.f32 %v2403, %v2422
  %v2454 = vadd.f32 %v2404, %v2426
  %v2455 = vadd.f32 %v2405, %v2430
  %v2456 = vadd.f32 %v2406, %v2434
  %v2457 = vadd.f32 %v2407, %v2438
  %v2458 = vadd.f32 %v2408, %v2442
  %v2459 = vmax.f32 %v2451, 0.0
  %v2460 = vmax.f32 %v2452, 0.0
  %v2461 = vmax.f32 %v2453, 0.0
  %v2462 = vmax.f32 %v2454, 0.0
  %v2463 = vmax.f32 %v2455, 0.0
  %v2464 = vmax.f32 %v2456, 0.0
  %v2465 = vmax.f32 %v2457, 0.0
  %v2466 = vmax.f32 %v2458, 0.0
  %v2467 = vpack.c.bf16 %v2459, %v2459
  %v2468 = vpack.c.bf16 %v2460, %v2460
  %v2469 = vpack.c.bf16 %v2461, %v2461
  %v2470 = vpack.c.bf16 %v2462, %v2462
  %v2471 = vpack.c.bf16 %v2463, %v2463
  %v2472 = vpack.c.bf16 %v2464, %v2464
  %v2473 = vpack.c.bf16 %v2465, %v2465
  %v2474 = vpack.c.bf16 %v2466, %v2466
  %v2475 = vld [vmem:[%s12] sm:$0xff]
  %v2476 = vld [vmem:[%s12 + $0x8] sm:$0xff]
  %v2477 = vld [vmem:[%s12 + $0x10] sm:$0xff]
  %v2478 = vld [vmem:[%s12 + $0x18] sm:$0xff]
  %v2479 = vld [vmem:[%s12 + $0x20] sm:$0xff]
  %v2480 = vld [vmem:[%s12 + $0x28] sm:$0xff]
  %v2481 = vld [vmem:[%s12 + $0x30] sm:$0xff]
  %v2482 = vld [vmem:[%s12 + $0x38] sm:$0xff]
  %v2483 = vld [vmem:[%s12 + $0x40] sm:$0xff]
  %v2484 = vld [vmem:[%s12 + $0x48] sm:$0xff]
  %v2485 = vld [vmem:[%s12 + $0x50] sm:$0xff]
  %v2486 = vld [vmem:[%s12 + $0x58] sm:$0xff]
  %v2487 = vld [vmem:[%s12 + $0x60] sm:$0xff]
  %v2488 = vld [vmem:[%s12 + $0x68] sm:$0xff]
  %v2489 = vld [vmem:[%s12 + $0x70] sm:$0xff]
  %v2490 = vld [vmem:[%s12 + $0x78] sm:$0xff]
  %v2491 = vld [vmem:[%s12 + $0x80] sm:$0xff]
  %v2492 = vld [vmem:[%s12 + $0x88] sm:$0xff]
  %v2493 = vld [vmem:[%s12 + $0x90] sm:$0xff]
  %v2494 = vld [vmem:[%s12 + $0x98] sm:$0xff]
  %v2495 = vld [vmem:[%s12 + $0xa0] sm:$0xff]
  %v2496 = vld [vmem:[%s12 + $0xa8] sm:$0xff]
  %v2497 = vld [vmem:[%s12 + $0xb0] sm:$0xff]
  %v2498 = vld [vmem:[%s12 + $0xb8] sm:$0xff]
  %v2499 = vld [vmem:[%s12 + $0xc0] sm:$0xff]
  %v2500 = vld [vmem:[%s12 + $0xc8] sm:$0xff]
  %v2501 = vld [vmem:[%s12 + $0xd0] sm:$0xff]
  %v2502 = vld [vmem:[%s12 + $0xd8] sm:$0xff]
  %v2503 = vld [vmem:[%s12 + $0xe0] sm:$0xff]
  %v2504 = vld [vmem:[%s12 + $0xe8] sm:$0xff]
  %v2505 = vld [vmem:[%s12 + $0xf0] sm:$0xff]
  %v2506 = vld [vmem:[%s12 + $0xf8] sm:$0xff]
  %v2507 = vld [vmem:[%s12 + $0x100] sm:$0xff]
  %v2508 = vld [vmem:[%s12 + $0x108] sm:$0xff]
  %v2509 = vld [vmem:[%s12 + $0x110] sm:$0xff]
  %v2510 = vld [vmem:[%s12 + $0x118] sm:$0xff]
  %v2511 = vld [vmem:[%s12 + $0x120] sm:$0xff]
  %v2512 = vld [vmem:[%s12 + $0x128] sm:$0xff]
  %v2513 = vld [vmem:[%s12 + $0x130] sm:$0xff]
  %v2514 = vld [vmem:[%s12 + $0x138] sm:$0xff]
  %v2515 = vld [vmem:[%s12 + $0x140] sm:$0xff]
  %v2516 = vld [vmem:[%s12 + $0x148] sm:$0xff]
  %v2517 = vld [vmem:[%s12 + $0x150] sm:$0xff]
  %v2518 = vld [vmem:[%s12 + $0x158] sm:$0xff]
  %v2519 = vld [vmem:[%s12 + $0x160] sm:$0xff]
  %v2520 = vld [vmem:[%s12 + $0x168] sm:$0xff]
  %v2521 = vld [vmem:[%s12 + $0x170] sm:$0xff]
  %v2522 = vld [vmem:[%s12 + $0x178] sm:$0xff]
  %v2523 = vld [vmem:[%s12 + $0x180] sm:$0xff]
  %v2524 = vld [vmem:[%s12 + $0x188] sm:$0xff]
  %v2525 = vld [vmem:[%s12 + $0x190] sm:$0xff]
  %v2526 = vld [vmem:[%s12 + $0x198] sm:$0xff]
  %v2527 = vld [vmem:[%s12 + $0x1a0] sm:$0xff]
  %v2528 = vld [vmem:[%s12 + $0x1a8] sm:$0xff]
  %v2529 = vld [vmem:[%s12 + $0x1b0] sm:$0xff]
  %v2530 = vld [vmem:[%s12 + $0x1b8] sm:$0xff]
  %v2531 = vld [vmem:[%s12 + $0x1c0] sm:$0xff]
  %v2532 = vld [vmem:[%s12 + $0x1c8] sm:$0xff]
  %v2533 = vld [vmem:[%s12 + $0x1d0] sm:$0xff]
  %v2534 = vld [vmem:[%s12 + $0x1d8] sm:$0xff]
  %v2535 = vld [vmem:[%s12 + $0x1e0] sm:$0xff]
  %v2536 = vld [vmem:[%s12 + $0x1e8] sm:$0xff]
  %v2537 = vld [vmem:[%s12 + $0x1f0] sm:$0xff]
  %v2538 = vld [vmem:[%s12 + $0x1f8] sm:$0xff]
  %v2539 = vld [vmem:[%s12 + $0x200] sm:$0xff]
  %v2540 = vld [vmem:[%s12 + $0x208] sm:$0xff]
  %v2541 = vld [vmem:[%s12 + $0x210] sm:$0xff]
  %v2542 = vld [vmem:[%s12 + $0x218] sm:$0xff]
  %v2543 = vld [vmem:[%s12 + $0x220] sm:$0xff]
  %v2544 = vld [vmem:[%s12 + $0x228] sm:$0xff]
  %v2545 = vld [vmem:[%s12 + $0x230] sm:$0xff]
  %v2546 = vld [vmem:[%s12 + $0x238] sm:$0xff]
  %v2547 = vld [vmem:[%s12 + $0x240] sm:$0xff]
  %v2548 = vld [vmem:[%s12 + $0x248] sm:$0xff]
  %v2549 = vld [vmem:[%s12 + $0x250] sm:$0xff]
  %v2550 = vld [vmem:[%s12 + $0x258] sm:$0xff]
  %v2551 = vld [vmem:[%s12 + $0x260] sm:$0xff]
  %v2552 = vld [vmem:[%s12 + $0x268] sm:$0xff]
  %v2553 = vld [vmem:[%s12 + $0x270] sm:$0xff]
  %v2554 = vld [vmem:[%s12 + $0x278] sm:$0xff]
  %v2555 = vld [vmem:[%s12 + $0x280] sm:$0xff]
  %v2556 = vld [vmem:[%s12 + $0x288] sm:$0xff]
  %v2557 = vld [vmem:[%s12 + $0x290] sm:$0xff]
  %v2558 = vld [vmem:[%s12 + $0x298] sm:$0xff]
  %v2559 = vld [vmem:[%s12 + $0x2a0] sm:$0xff]
  %v2560 = vld [vmem:[%s12 + $0x2a8] sm:$0xff]
  %v2561 = vld [vmem:[%s12 + $0x2b0] sm:$0xff]
  %v2562 = vld [vmem:[%s12 + $0x2b8] sm:$0xff]
  %v2563 = vld [vmem:[%s12 + $0x2c0] sm:$0xff]
  %v2564 = vld [vmem:[%s12 + $0x2c8] sm:$0xff]
  %v2565 = vld [vmem:[%s12 + $0x2d0] sm:$0xff]
  %v2566 = vld [vmem:[%s12 + $0x2d8] sm:$0xff]
  %v2567 = vld [vmem:[%s12 + $0x2e0] sm:$0xff]
  %v2568 = vld [vmem:[%s12 + $0x2e8] sm:$0xff]
  %v2569 = vld [vmem:[%s12 + $0x2f0] sm:$0xff]
  %v2570 = vld [vmem:[%s12 + $0x2f8] sm:$0xff]
  %v2571 = vld [vmem:[%s12 + $0x300] sm:$0xff]
  %v2572 = vld [vmem:[%s12 + $0x308] sm:$0xff]
  %v2573 = vld [vmem:[%s12 + $0x310] sm:$0xff]
  %v2574 = vld [vmem:[%s12 + $0x318] sm:$0xff]
  %v2575 = vld [vmem:[%s12 + $0x320] sm:$0xff]
  %v2576 = vld [vmem:[%s12 + $0x328] sm:$0xff]
  %v2577 = vld [vmem:[%s12 + $0x330] sm:$0xff]
  %v2578 = vld [vmem:[%s12 + $0x338] sm:$0xff]
  %v2579 = vld [vmem:[%s12 + $0x340] sm:$0xff]
  %v2580 = vld [vmem:[%s12 + $0x348] sm:$0xff]
  %v2581 = vld [vmem:[%s12 + $0x350] sm:$0xff]
  %v2582 = vld [vmem:[%s12 + $0x358] sm:$0xff]
  %v2583 = vld [vmem:[%s12 + $0x360] sm:$0xff]
  %v2584 = vld [vmem:[%s12 + $0x368] sm:$0xff]
  %v2585 = vld [vmem:[%s12 + $0x370] sm:$0xff]
  %v2586 = vld [vmem:[%s12 + $0x378] sm:$0xff]
  %v2587 = vld [vmem:[%s12 + $0x380] sm:$0xff]
  %v2588 = vld [vmem:[%s12 + $0x388] sm:$0xff]
  %v2589 = vld [vmem:[%s12 + $0x390] sm:$0xff]
  %v2590 = vld [vmem:[%s12 + $0x398] sm:$0xff]
  %v2591 = vld [vmem:[%s12 + $0x3a0] sm:$0xff]
  %v2592 = vld [vmem:[%s12 + $0x3a8] sm:$0xff]
  %v2593 = vld [vmem:[%s12 + $0x3b0] sm:$0xff]
  %v2594 = vld [vmem:[%s12 + $0x3b8] sm:$0xff]
  %v2595 = vld [vmem:[%s12 + $0x3c0] sm:$0xff]
  %v2596 = vld [vmem:[%s12 + $0x3c8] sm:$0xff]
  %v2597 = vld [vmem:[%s12 + $0x3d0] sm:$0xff]
  %v2598 = vld [vmem:[%s12 + $0x3d8] sm:$0xff]
  %v2599 = vld [vmem:[%s12 + $0x3e0] sm:$0xff]
  %v2600 = vld [vmem:[%s12 + $0x3e8] sm:$0xff]
  %v2601 = vld [vmem:[%s12 + $0x3f0] sm:$0xff]
  %v2602 = vld [vmem:[%s12 + $0x3f8] sm:$0xff]
  %v2731 = vunpack.c.l.b16 %v2475
  %v2732 = vunpack.c.h.b16 %v2475
  %v2733 = vunpack.c.l.b16 %v2476
  %v2734 = vunpack.c.h.b16 %v2476
  %v2735 = vunpack.c.l.b16 %v2477
  %v2736 = vunpack.c.h.b16 %v2477
  %v2737 = vunpack.c.l.b16 %v2478
  %v2738 = vunpack.c.h.b16 %v2478
  %v2739 = vunpack.c.l.b16 %v2479
  %v2740 = vunpack.c.h.b16 %v2479
  %v2741 = vunpack.c.l.b16 %v2480
  %v2742 = vunpack.c.h.b16 %v2480
  %v2743 = vunpack.c.l.b16 %v2481
  %v2744 = vunpack.c.h.b16 %v2481
  %v2745 = vunpack.c.l.b16 %v2482
  %v2746 = vunpack.c.h.b16 %v2482
  %v2747 = vunpack.c.l.b16 %v2483
  %v2748 = vunpack.c.h.b16 %v2483
  %v2749 = vunpack.c.l.b16 %v2484
  %v2750 = vunpack.c.h.b16 %v2484
  %v2751 = vunpack.c.l.b16 %v2485
  %v2752 = vunpack.c.h.b16 %v2485
  %v2753 = vunpack.c.l.b16 %v2486
  %v2754 = vunpack.c.h.b16 %v2486
  %v2755 = vunpack.c.l.b16 %v2487
  %v2756 = vunpack.c.h.b16 %v2487
  %v2757 = vunpack.c.l.b16 %v2488
  %v2758 = vunpack.c.h.b16 %v2488
  %v2759 = vunpack.c.l.b16 %v2489
  %v2760 = vunpack.c.h.b16 %v2489
  %v2761 = vunpack.c.l.b16 %v2490
  %v2762 = vunpack.c.h.b16 %v2490
  %v2763 = vunpack.c.l.b16 %v2491
  %v2764 = vunpack.c.h.b16 %v2491
  %v2765 = vunpack.c.l.b16 %v2492
  %v2766 = vunpack.c.h.b16 %v2492
  %v2767 = vunpack.c.l.b16 %v2493
  %v2768 = vunpack.c.h.b16 %v2493
  %v2769 = vunpack.c.l.b16 %v2494
  %v2770 = vunpack.c.h.b16 %v2494
  %v2771 = vunpack.c.l.b16 %v2495
  %v2772 = vunpack.c.h.b16 %v2495
  %v2773 = vunpack.c.l.b16 %v2496
  %v2774 = vunpack.c.h.b16 %v2496
  %v2775 = vunpack.c.l.b16 %v2497
  %v2776 = vunpack.c.h.b16 %v2497
  %v2777 = vunpack.c.l.b16 %v2498
  %v2778 = vunpack.c.h.b16 %v2498
  %v2779 = vunpack.c.l.b16 %v2499
  %v2780 = vunpack.c.h.b16 %v2499
  %v2781 = vunpack.c.l.b16 %v2500
  %v2782 = vunpack.c.h.b16 %v2500
  %v2783 = vunpack.c.l.b16 %v2501
  %v2784 = vunpack.c.h.b16 %v2501
  %v2785 = vunpack.c.l.b16 %v2502
  %v2786 = vunpack.c.h.b16 %v2502
  %v2787 = vunpack.c.l.b16 %v2503
  %v2788 = vunpack.c.h.b16 %v2503
  %v2789 = vunpack.c.l.b16 %v2504
  %v2790 = vunpack.c.h.b16 %v2504
  %v2791 = vunpack.c.l.b16 %v2505
  %v2792 = vunpack.c.h.b16 %v2505
  %v2793 = vunpack.c.l.b16 %v2506
  %v2794 = vunpack.c.h.b16 %v2506
  %v2795 = vunpack.c.l.b16 %v2507
  %v2796 = vunpack.c.h.b16 %v2507
  %v2797 = vunpack.c.l.b16 %v2508
  %v2798 = vunpack.c.h.b16 %v2508
  %v2799 = vunpack.c.l.b16 %v2509
  %v2800 = vunpack.c.h.b16 %v2509
  %v2801 = vunpack.c.l.b16 %v2510
  %v2802 = vunpack.c.h.b16 %v2510
  %v2803 = vunpack.c.l.b16 %v2511
  %v2804 = vunpack.c.h.b16 %v2511
  %v2805 = vunpack.c.l.b16 %v2512
  %v2806 = vunpack.c.h.b16 %v2512
  %v2807 = vunpack.c.l.b16 %v2513
  %v2808 = vunpack.c.h.b16 %v2513
  %v2809 = vunpack.c.l.b16 %v2514
  %v2810 = vunpack.c.h.b16 %v2514
  %v2811 = vunpack.c.l.b16 %v2515
  %v2812 = vunpack.c.h.b16 %v2515
  %v2813 = vunpack.c.l.b16 %v2516
  %v2814 = vunpack.c.h.b16 %v2516
  %v2815 = vunpack.c.l.b16 %v2517
  %v2816 = vunpack.c.h.b16 %v2517
  %v2817 = vunpack.c.l.b16 %v2518
  %v2818 = vunpack.c.h.b16 %v2518
  %v2819 = vunpack.c.l.b16 %v2519
  %v2820 = vunpack.c.h.b16 %v2519
  %v2821 = vunpack.c.l.b16 %v2520
  %v2822 = vunpack.c.h.b16 %v2520
  %v2823 = vunpack.c.l.b16 %v2521
  %v2824 = vunpack.c.h.b16 %v2521
  %v2825 = vunpack.c.l.b16 %v2522
  %v2826 = vunpack.c.h.b16 %v2522
  %v2827 = vunpack.c.l.b16 %v2523
  %v2828 = vunpack.c.h.b16 %v2523
  %v2829 = vunpack.c.l.b16 %v2524
  %v2830 = vunpack.c.h.b16 %v2524
  %v2831 = vunpack.c.l.b16 %v2525
  %v2832 = vunpack.c.h.b16 %v2525
  %v2833 = vunpack.c.l.b16 %v2526
  %v2834 = vunpack.c.h.b16 %v2526
  %v2835 = vunpack.c.l.b16 %v2527
  %v2836 = vunpack.c.h.b16 %v2527
  %v2837 = vunpack.c.l.b16 %v2528
  %v2838 = vunpack.c.h.b16 %v2528
  %v2839 = vunpack.c.l.b16 %v2529
  %v2840 = vunpack.c.h.b16 %v2529
  %v2841 = vunpack.c.l.b16 %v2530
  %v2842 = vunpack.c.h.b16 %v2530
  %v2843 = vunpack.c.l.b16 %v2531
  %v2844 = vunpack.c.h.b16 %v2531
  %v2845 = vunpack.c.l.b16 %v2532
  %v2846 = vunpack.c.h.b16 %v2532
  %v2847 = vunpack.c.l.b16 %v2533
  %v2848 = vunpack.c.h.b16 %v2533
  %v2849 = vunpack.c.l.b16 %v2534
  %v2850 = vunpack.c.h.b16 %v2534
  %v2851 = vunpack.c.l.b16 %v2535
  %v2852 = vunpack.c.h.b16 %v2535
  %v2853 = vunpack.c.l.b16 %v2536
  %v2854 = vunpack.c.h.b16 %v2536
  %v2855 = vunpack.c.l.b16 %v2537
  %v2856 = vunpack.c.h.b16 %v2537
  %v2857 = vunpack.c.l.b16 %v2538
  %v2858 = vunpack.c.h.b16 %v2538
  %v2859 = vunpack.c.l.b16 %v2539
  %v2860 = vunpack.c.h.b16 %v2539
  %v2861 = vunpack.c.l.b16 %v2540
  %v2862 = vunpack.c.h.b16 %v2540
  %v2863 = vunpack.c.l.b16 %v2541
  %v2864 = vunpack.c.h.b16 %v2541
  %v2865 = vunpack.c.l.b16 %v2542
  %v2866 = vunpack.c.h.b16 %v2542
  %v2867 = vunpack.c.l.b16 %v2543
  %v2868 = vunpack.c.h.b16 %v2543
  %v2869 = vunpack.c.l.b16 %v2544
  %v2870 = vunpack.c.h.b16 %v2544
  %v2871 = vunpack.c.l.b16 %v2545
  %v2872 = vunpack.c.h.b16 %v2545
  %v2873 = vunpack.c.l.b16 %v2546
  %v2874 = vunpack.c.h.b16 %v2546
  %v2875 = vunpack.c.l.b16 %v2547
  %v2876 = vunpack.c.h.b16 %v2547
  %v2877 = vunpack.c.l.b16 %v2548
  %v2878 = vunpack.c.h.b16 %v2548
  %v2879 = vunpack.c.l.b16 %v2549
  %v2880 = vunpack.c.h.b16 %v2549
  %v2881 = vunpack.c.l.b16 %v2550
  %v2882 = vunpack.c.h.b16 %v2550
  %v2883 = vunpack.c.l.b16 %v2551
  %v2884 = vunpack.c.h.b16 %v2551
  %v2885 = vunpack.c.l.b16 %v2552
  %v2886 = vunpack.c.h.b16 %v2552
  %v2887 = vunpack.c.l.b16 %v2553
  %v2888 = vunpack.c.h.b16 %v2553
  %v2889 = vunpack.c.l.b16 %v2554
  %v2890 = vunpack.c.h.b16 %v2554
  %v2891 = vunpack.c.l.b16 %v2555
  %v2892 = vunpack.c.h.b16 %v2555
  %v2893 = vunpack.c.l.b16 %v2556
  %v2894 = vunpack.c.h.b16 %v2556
  %v2895 = vunpack.c.l.b16 %v2557
  %v2896 = vunpack.c.h.b16 %v2557
  %v2897 = vunpack.c.l.b16 %v2558
  %v2898 = vunpack.c.h.b16 %v2558
  %v2899 = vunpack.c.l.b16 %v2559
  %v2900 = vunpack.c.h.b16 %v2559
  %v2901 = vunpack.c.l.b16 %v2560
  %v2902 = vunpack.c.h.b16 %v2560
  %v2903 = vunpack.c.l.b16 %v2561
  %v2904 = vunpack.c.h.b16 %v2561
  %v2905 = vunpack.c.l.b16 %v2562
  %v2906 = vunpack.c.h.b16 %v2562
  %v2907 = vunpack.c.l.b16 %v2563
  %v2908 = vunpack.c.h.b16 %v2563
  %v2909 = vunpack.c.l.b16 %v2564
  %v2910 = vunpack.c.h.b16 %v2564
  %v2911 = vunpack.c.l.b16 %v2565
  %v2912 = vunpack.c.h.b16 %v2565
  %v2913 = vunpack.c.l.b16 %v2566
  %v2914 = vunpack.c.h.b16 %v2566
  %v2915 = vunpack.c.l.b16 %v2567
  %v2916 = vunpack.c.h.b16 %v2567
  %v2917 = vunpack.c.l.b16 %v2568
  %v2918 = vunpack.c.h.b16 %v2568
  %v2919 = vunpack.c.l.b16 %v2569
  %v2920 = vunpack.c.h.b16 %v2569
  %v2921 = vunpack.c.l.b16 %v2570
  %v2922 = vunpack.c.h.b16 %v2570
  %v2923 = vunpack.c.l.b16 %v2571
  %v2924 = vunpack.c.h.b16 %v2571
  %v2925 = vunpack.c.l.b16 %v2572
  %v2926 = vunpack.c.h.b16 %v2572
  %v2927 = vunpack.c.l.b16 %v2573
  %v2928 = vunpack.c.h.b16 %v2573
  %v2929 = vunpack.c.l.b16 %v2574
  %v2930 = vunpack.c.h.b16 %v2574
  %v2931 = vunpack.c.l.b16 %v2575
  %v2932 = vunpack.c.h.b16 %v2575
  %v2933 = vunpack.c.l.b16 %v2576
  %v2934 = vunpack.c.h.b16 %v2576
  %v2935 = vunpack.c.l.b16 %v2577
  %v2936 = vunpack.c.h.b16 %v2577
  %v2937 = vunpack.c.l.b16 %v2578
  %v2938 = vunpack.c.h.b16 %v2578
  %v2939 = vunpack.c.l.b16 %v2579
  %v2940 = vunpack.c.h.b16 %v2579
  %v2941 = vunpack.c.l.b16 %v2580
  %v2942 = vunpack.c.h.b16 %v2580
  %v2943 = vunpack.c.l.b16 %v2581
  %v2944 = vunpack.c.h.b16 %v2581
  %v2945 = vunpack.c.l.b16 %v2582
  %v2946 = vunpack.c.h.b16 %v2582
  %v2947 = vunpack.c.l.b16 %v2583
  %v2948 = vunpack.c.h.b16 %v2583
  %v2949 = vunpack.c.l.b16 %v2584
  %v2950 = vunpack.c.h.b16 %v2584
  %v2951 = vunpack.c.l.b16 %v2585
  %v2952 = vunpack.c.h.b16 %v2585
  %v2953 = vunpack.c.l.b16 %v2586
  %v2954 = vunpack.c.h.b16 %v2586
  %v2955 = vunpack.c.l.b16 %v2587
  %v2956 = vunpack.c.h.b16 %v2587
  %v2957 = vunpack.c.l.b16 %v2588
  %v2958 = vunpack.c.h.b16 %v2588
  %v2959 = vunpack.c.l.b16 %v2589
  %v2960 = vunpack.c.h.b16 %v2589
  %v2961 = vunpack.c.l.b16 %v2590
  %v2962 = vunpack.c.h.b16 %v2590
  %v2963 = vunpack.c.l.b16 %v2591
  %v2964 = vunpack.c.h.b16 %v2591
  %v2965 = vunpack.c.l.b16 %v2592
  %v2966 = vunpack.c.h.b16 %v2592
  %v2967 = vunpack.c.l.b16 %v2593
  %v2968 = vunpack.c.h.b16 %v2593
  %v2969 = vunpack.c.l.b16 %v2594
  %v2970 = vunpack.c.h.b16 %v2594
  %v2971 = vunpack.c.l.b16 %v2595
  %v2972 = vunpack.c.h.b16 %v2595
  %v2973 = vunpack.c.l.b16 %v2596
  %v2974 = vunpack.c.h.b16 %v2596
  %v2975 = vunpack.c.l.b16 %v2597
  %v2976 = vunpack.c.h.b16 %v2597
  %v2977 = vunpack.c.l.b16 %v2598
  %v2978 = vunpack.c.h.b16 %v2598
  %v2979 = vunpack.c.l.b16 %v2599
  %v2980 = vunpack.c.h.b16 %v2599
  %v2981 = vunpack.c.l.b16 %v2600
  %v2982 = vunpack.c.h.b16 %v2600
  %v2983 = vunpack.c.l.b16 %v2601
  %v2984 = vunpack.c.h.b16 %v2601
  %v2985 = vunpack.c.l.b16 %v2602
  %v2986 = vunpack.c.h.b16 %v2602
  %v2987 = vpack.c.b16 %v2733, %v2731
  %v2988 = vpack.c.b16 %v2734, %v2732
  %v2989 = vpack.c.b16 %v2737, %v2735
  %v2990 = vpack.c.b16 %v2738, %v2736
  %v2991 = vpack.c.b16 %v2741, %v2739
  %v2992 = vpack.c.b16 %v2742, %v2740
  %v2993 = vpack.c.b16 %v2745, %v2743
  %v2994 = vpack.c.b16 %v2746, %v2744
  %v2995 = vpack.c.b16 %v2749, %v2747
  %v2996 = vpack.c.b16 %v2750, %v2748
  %v2997 = vpack.c.b16 %v2753, %v2751
  %v2998 = vpack.c.b16 %v2754, %v2752
  %v2999 = vpack.c.b16 %v2757, %v2755
  %v3000 = vpack.c.b16 %v2758, %v2756
  %v3001 = vpack.c.b16 %v2761, %v2759
  %v3002 = vpack.c.b16 %v2762, %v2760
  %v3003 = vpack.c.b16 %v2765, %v2763
  %v3004 = vpack.c.b16 %v2766, %v2764
  %v3005 = vpack.c.b16 %v2769, %v2767
  %v3006 = vpack.c.b16 %v2770, %v2768
  %v3007 = vpack.c.b16 %v2773, %v2771
  %v3008 = vpack.c.b16 %v2774, %v2772
  %v3009 = vpack.c.b16 %v2777, %v2775
  %v3010 = vpack.c.b16 %v2778, %v2776
  %v3011 = vpack.c.b16 %v2781, %v2779
  %v3012 = vpack.c.b16 %v2782, %v2780
  %v3013 = vpack.c.b16 %v2785, %v2783
  %v3014 = vpack.c.b16 %v2786, %v2784
  %v3015 = vpack.c.b16 %v2789, %v2787
  %v3016 = vpack.c.b16 %v2790, %v2788
  %v3017 = vpack.c.b16 %v2793, %v2791
  %v3018 = vpack.c.b16 %v2794, %v2792
  %v3019 = vpack.c.b16 %v2797, %v2795
  %v3020 = vpack.c.b16 %v2798, %v2796
  %v3021 = vpack.c.b16 %v2801, %v2799
  %v3022 = vpack.c.b16 %v2802, %v2800
  %v3023 = vpack.c.b16 %v2805, %v2803
  %v3024 = vpack.c.b16 %v2806, %v2804
  %v3025 = vpack.c.b16 %v2809, %v2807
  %v3026 = vpack.c.b16 %v2810, %v2808
  %v3027 = vpack.c.b16 %v2813, %v2811
  %v3028 = vpack.c.b16 %v2814, %v2812
  %v3029 = vpack.c.b16 %v2817, %v2815
  %v3030 = vpack.c.b16 %v2818, %v2816
  %v3031 = vpack.c.b16 %v2821, %v2819
  %v3032 = vpack.c.b16 %v2822, %v2820
  %v3033 = vpack.c.b16 %v2825, %v2823
  %v3034 = vpack.c.b16 %v2826, %v2824
  %v3035 = vpack.c.b16 %v2829, %v2827
  %v3036 = vpack.c.b16 %v2830, %v2828
  %v3037 = vpack.c.b16 %v2833, %v2831
  %v3038 = vpack.c.b16 %v2834, %v2832
  %v3039 = vpack.c.b16 %v2837, %v2835
  %v3040 = vpack.c.b16 %v2838, %v2836
  %v3041 = vpack.c.b16 %v2841, %v2839
  %v3042 = vpack.c.b16 %v2842, %v2840
  %v3043 = vpack.c.b16 %v2845, %v2843
  %v3044 = vpack.c.b16 %v2846, %v2844
  %v3045 = vpack.c.b16 %v2849, %v2847
  %v3046 = vpack.c.b16 %v2850, %v2848
  %v3047 = vpack.c.b16 %v2853, %v2851
  %v3048 = vpack.c.b16 %v2854, %v2852
  %v3049 = vpack.c.b16 %v2857, %v2855
  %v3050 = vpack.c.b16 %v2858, %v2856
  %v3051 = vpack.c.b16 %v2861, %v2859
  %v3052 = vpack.c.b16 %v2862, %v2860
  %v3053 = vpack.c.b16 %v2865, %v2863
  %v3054 = vpack.c.b16 %v2866, %v2864
  %v3055 = vpack.c.b16 %v2869, %v2867
  %v3056 = vpack.c.b16 %v2870, %v2868
  %v3057 = vpack.c.b16 %v2873, %v2871
  %v3058 = vpack.c.b16 %v2874, %v2872
  %v3059 = vpack.c.b16 %v2877, %v2875
  %v3060 = vpack.c.b16 %v2878, %v2876
  %v3061 = vpack.c.b16 %v2881, %v2879
  %v3062 = vpack.c.b16 %v2882, %v2880
  %v3063 = vpack.c.b16 %v2885, %v2883
  %v3064 = vpack.c.b16 %v2886, %v2884
  %v3065 = vpack.c.b16 %v2889, %v2887
  %v3066 = vpack.c.b16 %v2890, %v2888
  %v3067 = vpack.c.b16 %v2893, %v2891
  %v3068 = vpack.c.b16 %v2894, %v2892
  %v3069 = vpack.c.b16 %v2897, %v2895
  %v3070 = vpack.c.b16 %v2898, %v2896
  %v3071 = vpack.c.b16 %v2901, %v2899
  %v3072 = vpack.c.b16 %v2902, %v2900
  %v3073 = vpack.c.b16 %v2905, %v2903
  %v3074 = vpack.c.b16 %v2906, %v2904
  %v3075 = vpack.c.b16 %v2909, %v2907
  %v3076 = vpack.c.b16 %v2910, %v2908
  %v3077 = vpack.c.b16 %v2913, %v2911
  %v3078 = vpack.c.b16 %v2914, %v2912
  %v3079 = vpack.c.b16 %v2917, %v2915
  %v3080 = vpack.c.b16 %v2918, %v2916
  %v3081 = vpack.c.b16 %v2921, %v2919
  %v3082 = vpack.c.b16 %v2922, %v2920
  %v3083 = vpack.c.b16 %v2925, %v2923
  %v3084 = vpack.c.b16 %v2926, %v2924
  %v3085 = vpack.c.b16 %v2929, %v2927
  %v3086 = vpack.c.b16 %v2930, %v2928
  %v3087 = vpack.c.b16 %v2933, %v2931
  %v3088 = vpack.c.b16 %v2934, %v2932
  %v3089 = vpack.c.b16 %v2937, %v2935
  %v3090 = vpack.c.b16 %v2938, %v2936
  %v3091 = vpack.c.b16 %v2941, %v2939
  %v3092 = vpack.c.b16 %v2942, %v2940
  %v3093 = vpack.c.b16 %v2945, %v2943
  %v3094 = vpack.c.b16 %v2946, %v2944
  %v3095 = vpack.c.b16 %v2949, %v2947
  %v3096 = vpack.c.b16 %v2950, %v2948
  %v3097 = vpack.c.b16 %v2953, %v2951
  %v3098 = vpack.c.b16 %v2954, %v2952
  %v3099 = vpack.c.b16 %v2957, %v2955
  %v3100 = vpack.c.b16 %v2958, %v2956
  %v3101 = vpack.c.b16 %v2961, %v2959
  %v3102 = vpack.c.b16 %v2962, %v2960
  %v3103 = vpack.c.b16 %v2965, %v2963
  %v3104 = vpack.c.b16 %v2966, %v2964
  %v3105 = vpack.c.b16 %v2969, %v2967
  %v3106 = vpack.c.b16 %v2970, %v2968
  %v3107 = vpack.c.b16 %v2973, %v2971
  %v3108 = vpack.c.b16 %v2974, %v2972
  %v3109 = vpack.c.b16 %v2977, %v2975
  %v3110 = vpack.c.b16 %v2978, %v2976
  %v3111 = vpack.c.b16 %v2981, %v2979
  %v3112 = vpack.c.b16 %v2982, %v2980
  %v3113 = vpack.c.b16 %v2985, %v2983
  %v3114 = vpack.c.b16 %v2986, %v2984
  %3243 = vmatprep.subr.bf16.mxu0 %v2988
  %3244 = vmatpush1.bf16.msra.mxu0 %v2987
  %3245 = vmatprep.subr.bf16.mxu0 %v2990
  %3246 = vmatpush1.bf16.msra.mxu0 %v2989
  %3247 = vmatprep.subr.bf16.mxu0 %v2992
  %3248 = vmatpush1.bf16.msra.mxu0 %v2991
  %3249 = vmatprep.subr.bf16.mxu0 %v2994
  %3250 = vmatpush1.bf16.msra.mxu0 %v2993
  %3251 = vmatprep.subr.bf16.mxu0 %v2996
  %3252 = vmatpush1.bf16.msra.mxu0 %v2995
  %3253 = vmatprep.subr.bf16.mxu0 %v2998
  %3254 = vmatpush1.bf16.msra.mxu0 %v2997
  %3255 = vmatprep.subr.bf16.mxu0 %v3000
  %3256 = vmatpush1.bf16.msra.mxu0 %v2999
  %3257 = vmatprep.subr.bf16.mxu0 %v3002
  %3258 = vmatpush1.bf16.msra.mxu0 %v3001
  %3259 = vmatprep.subr.bf16.mxu0 %v3004
  %3260 = vmatpush1.bf16.msra.mxu0 %v3003
  %3261 = vmatprep.subr.bf16.mxu0 %v3006
  %3262 = vmatpush1.bf16.msra.mxu0 %v3005
  %3263 = vmatprep.subr.bf16.mxu0 %v3008
  %3264 = vmatpush1.bf16.msra.mxu0 %v3007
  %3265 = vmatprep.subr.bf16.mxu0 %v3010
  %3266 = vmatpush1.bf16.msra.mxu0 %v3009
  %3267 = vmatprep.subr.bf16.mxu0 %v3012
  %3268 = vmatpush1.bf16.msra.mxu0 %v3011
  %3269 = vmatprep.subr.bf16.mxu0 %v3014
  %3270 = vmatpush1.bf16.msra.mxu0 %v3013
  %3271 = vmatprep.subr.bf16.mxu0 %v3016
  %3272 = vmatpush1.bf16.msra.mxu0 %v3015
  %3273 = vmatprep.subr.bf16.mxu0 %v3018
  %3274 = vmatpush1.bf16.msra.mxu0 %v3017
  %3275 = vmatprep.mubr.bf16.mxu0 %v2468
  %3276 = vmatmul.mubr.bf16.gmra.mrb[0].mxu0 %v2467
  %v3277 = vpop.f32.mrb[0].mxu0
  %v3278 = vadd.f32 0.0, %v3277
  %v3279 = vpop.f32.mrb[0].mxu0
  %v3280 = vadd.f32 0.0, %v3279
  %v3281 = vpop.f32.mrb[0].mxu0
  %v3282 = vpop.f32.mrb[0].mxu0
  %3283 = vdwg.mxu0
  %3284 = vmatprep.subr.bf16.mxu0 %v3020
  %3285 = vmatpush1.bf16.msra.mxu0 %v3019
  %3286 = vmatprep.subr.bf16.mxu0 %v3022
  %3287 = vmatpush1.bf16.msra.mxu0 %v3021
  %3288 = vmatprep.subr.bf16.mxu0 %v3024
  %3289 = vmatpush1.bf16.msra.mxu0 %v3023
  %3290 = vmatprep.subr.bf16.mxu0 %v3026
  %3291 = vmatpush1.bf16.msra.mxu0 %v3025
  %3292 = vmatprep.subr.bf16.mxu0 %v3028
  %3293 = vmatpush1.bf16.msra.mxu0 %v3027
  %3294 = vmatprep.subr.bf16.mxu0 %v3030
  %3295 = vmatpush1.bf16.msra.mxu0 %v3029
  %3296 = vmatprep.subr.bf16.mxu0 %v3032
  %3297 = vmatpush1.bf16.msra.mxu0 %v3031
  %3298 = vmatprep.subr.bf16.mxu0 %v3034
  %3299 = vmatpush1.bf16.msra.mxu0 %v3033
  %3300 = vmatprep.subr.bf16.mxu0 %v3036
  %3301 = vmatpush1.bf16.msra.mxu0 %v3035
  %3302 = vmatprep.subr.bf16.mxu0 %v3038
  %3303 = vmatpush1.bf16.msra.mxu0 %v3037
  %3304 = vmatprep.subr.bf16.mxu0 %v3040
  %3305 = vmatpush1.bf16.msra.mxu0 %v3039
  %3306 = vmatprep.subr.bf16.mxu0 %v3042
  %3307 = vmatpush1.bf16.msra.mxu0 %v3041
  %3308 = vmatprep.subr.bf16.mxu0 %v3044
  %3309 = vmatpush1.bf16.msra.mxu0 %v3043
  %3310 = vmatprep.subr.bf16.mxu0 %v3046
  %3311 = vmatpush1.bf16.msra.mxu0 %v3045
  %3312 = vmatprep.subr.bf16.mxu0 %v3048
  %3313 = vmatpush1.bf16.msra.mxu0 %v3047
  %3314 = vmatprep.subr.bf16.mxu0 %v3050
  %3315 = vmatpush1.bf16.msra.mxu0 %v3049
  %3316 = vmatprep.mubr.bf16.mxu0 %v2470
  %3317 = vmatmul.mubr.bf16.gmra.mrb[0].mxu0 %v2469
  %v3318 = vpop.f32.mrb[0].mxu0
  %v3319 = vadd.f32 %v3278, %v3318
  %v3320 = vpop.f32.mrb[0].mxu0
  %v3321 = vadd.f32 %v3280, %v3320
  %v3322 = vpop.f32.mrb[0].mxu0
  %v3323 = vpop.f32.mrb[0].mxu0
  %3324 = vdwg.mxu0
  %3325 = vmatprep.subr.bf16.mxu0 %v3052
  %3326 = vmatpush1.bf16.msra.mxu0 %v3051
  %3327 = vmatprep.subr.bf16.mxu0 %v3054
  %3328 = vmatpush1.bf16.msra.mxu0 %v3053
  %3329 = vmatprep.subr.bf16.mxu0 %v3056
  %3330 = vmatpush1.bf16.msra.mxu0 %v3055
  %3331 = vmatprep.subr.bf16.mxu0 %v3058
  %3332 = vmatpush1.bf16.msra.mxu0 %v3057
  %3333 = vmatprep.subr.bf16.mxu0 %v3060
  %3334 = vmatpush1.bf16.msra.mxu0 %v3059
  %3335 = vmatprep.subr.bf16.mxu0 %v3062
  %3336 = vmatpush1.bf16.msra.mxu0 %v3061
  %3337 = vmatprep.subr.bf16.mxu0 %v3064
  %3338 = vmatpush1.bf16.msra.mxu0 %v3063
  %3339 = vmatprep.subr.bf16.mxu0 %v3066
  %3340 = vmatpush1.bf16.msra.mxu0 %v3065
  %3341 = vmatprep.subr.bf16.mxu0 %v3068
  %3342 = vmatpush1.bf16.msra.mxu0 %v3067
  %3343 = vmatprep.subr.bf16.mxu0 %v3070
  %3344 = vmatpush1.bf16.msra.mxu0 %v3069
  %3345 = vmatprep.subr.bf16.mxu0 %v3072
  %3346 = vmatpush1.bf16.msra.mxu0 %v3071
  %3347 = vmatprep.subr.bf16.mxu0 %v3074
  %3348 = vmatpush1.bf16.msra.mxu0 %v3073
  %3349 = vmatprep.subr.bf16.mxu0 %v3076
  %3350 = vmatpush1.bf16.msra.mxu0 %v3075
  %3351 = vmatprep.subr.bf16.mxu0 %v3078
  %3352 = vmatpush1.bf16.msra.mxu0 %v3077
  %3353 = vmatprep.subr.bf16.mxu0 %v3080
  %3354 = vmatpush1.bf16.msra.mxu0 %v3079
  %3355 = vmatprep.subr.bf16.mxu0 %v3082
  %3356 = vmatpush1.bf16.msra.mxu0 %v3081
  %3357 = vmatprep.mubr.bf16.mxu0 %v2472
  %3358 = vmatmul.mubr.bf16.gmra.mrb[0].mxu0 %v2471
  %v3359 = vpop.f32.mrb[0].mxu0
  %v3360 = vadd.f32 %v3319, %v3359
  %v3361 = vpop.f32.mrb[0].mxu0
  %v3362 = vadd.f32 %v3321, %v3361
  %v3363 = vpop.f32.mrb[0].mxu0
  %v3364 = vpop.f32.mrb[0].mxu0
  %3365 = vdwg.mxu0
  %3366 = vmatprep.subr.bf16.mxu0 %v3084
  %3367 = vmatpush1.bf16.msra.mxu0 %v3083
  %3368 = vmatprep.subr.bf16.mxu0 %v3086
  %3369 = vmatpush1.bf16.msra.mxu0 %v3085
  %3370 = vmatprep.subr.bf16.mxu0 %v3088
  %3371 = vmatpush1.bf16.msra.mxu0 %v3087
  %3372 = vmatprep.subr.bf16.mxu0 %v3090
  %3373 = vmatpush1.bf16.msra.mxu0 %v3089
  %3374 = vmatprep.subr.bf16.mxu0 %v3092
  %3375 = vmatpush1.bf16.msra.mxu0 %v3091
  %3376 = vmatprep.subr.bf16.mxu0 %v3094
  %3377 = vmatpush1.bf16.msra.mxu0 %v3093
  %3378 = vmatprep.subr.bf16.mxu0 %v3096
  %3379 = vmatpush1.bf16.msra.mxu0 %v3095
  %3380 = vmatprep.subr.bf16.mxu0 %v3098
  %3381 = vmatpush1.bf16.msra.mxu0 %v3097
  %3382 = vmatprep.subr.bf16.mxu0 %v3100
  %3383 = vmatpush1.bf16.msra.mxu0 %v3099
  %3384 = vmatprep.subr.bf16.mxu0 %v3102
  %3385 = vmatpush1.bf16.msra.mxu0 %v3101
  %3386 = vmatprep.subr.bf16.mxu0 %v3104
  %3387 = vmatpush1.bf16.msra.mxu0 %v3103
  %3388 = vmatprep.subr.bf16.mxu0 %v3106
  %3389 = vmatpush1.bf16.msra.mxu0 %v3105
  %3390 = vmatprep.subr.bf16.mxu0 %v3108
  %3391 = vmatpush1.bf16.msra.mxu0 %v3107
  %3392 = vmatprep.subr.bf16.mxu0 %v3110
  %3393 = vmatpush1.bf16.msra.mxu0 %v3109
  %3394 = vmatprep.subr.bf16.mxu0 %v3112
  %3395 = vmatpush1.bf16.msra.mxu0 %v3111
  %3396 = vmatprep.subr.bf16.mxu0 %v3114
  %3397 = vmatpush1.bf16.msra.mxu0 %v3113
  %3398 = vmatprep.mubr.bf16.mxu0 %v2474
  %3399 = vmatmul.mubr.bf16.gmra.mrb[0].mxu0 %v2473
  %v3400 = vpop.f32.mrb[0].mxu0
  %v3401 = vadd.f32 %v3360, %v3400
  %v3402 = vpop.f32.mrb[0].mxu0
  %v3403 = vadd.f32 %v3362, %v3402
  %v3404 = vpop.f32.mrb[0].mxu0
  %v3405 = vpop.f32.mrb[0].mxu0
  %3406 = vdwg.mxu0
  %v3407 = vld [vmem:[%s13] sm:$0x3]
  %v3409 = vlaneseq
  %v3410 = vshrl.u32 %v3409, 7
  %v3411 = vsub.s32 0, %v3410
  %v3412 = vrot.slane %v3407, %v3411
  %v3413 = vlaneseq
  %v3414 = vshrl.u32 %v3413, 7
  %v3415 = vsub.s32 1, %v3414
  %v3416 = vrot.slane %v3407, %v3415
  %v3419 = vmul.f32 %v3401, %v3412
  %v3420 = vmul.f32 %v3403, %v3416
  %v3421 = vld [vmem:[%s14] sm:$0x3]
  %v3423 = vlaneseq
  %v3424 = vshrl.u32 %v3423, 7
  %v3425 = vsub.s32 0, %v3424
  %v3426 = vrot.slane %v3421, %v3425
  %v3427 = vlaneseq
  %v3428 = vshrl.u32 %v3427, 7
  %v3429 = vsub.s32 1, %v3428
  %v3430 = vrot.slane %v3421, %v3429
  %v3433 = vadd.f32 %v3419, %v3426
  %v3434 = vadd.f32 %v3420, %v3430
  %v3435 = vmax.f32 %v3433, 0.0
  %v3436 = vmax.f32 %v3434, 0.0
  %v3437 = vld [vmem:[#allocation3] sm:$0x1]
  %v3439 = vlaneseq
  %v3440 = vshrl.u32 %v3439, 7
  %v3441 = vsub.s32 0, %v3440
  %v3442 = vrot.slane %v3437, %v3441
  %v3444 = vmul.f32 %v1810, %v3442
  %v3445 = vld [vmem:[%s16] sm:$0xff]
  %v3446 = vld [vmem:[%s16 + $0x8] sm:$0xff]
  %v3447 = vld [vmem:[%s16 + $0x10] sm:$0xff]
  %v3448 = vld [vmem:[%s16 + $0x18] sm:$0xff]
  %v3449 = vld [vmem:[%s16 + $0x20] sm:$0xff]
  %v3450 = vld [vmem:[%s16 + $0x28] sm:$0xff]
  %v3451 = vld [vmem:[%s16 + $0x30] sm:$0xff]
  %v3452 = vld [vmem:[%s16 + $0x38] sm:$0xff]
  %v3453 = vld [vmem:[%s16 + $0x40] sm:$0xff]
  %v3454 = vld [vmem:[%s16 + $0x48] sm:$0xff]
  %v3455 = vld [vmem:[%s16 + $0x50] sm:$0xff]
  %v3456 = vld [vmem:[%s16 + $0x58] sm:$0xff]
  %v3457 = vld [vmem:[%s16 + $0x60] sm:$0xff]
  %v3458 = vld [vmem:[%s16 + $0x68] sm:$0xff]
  %v3459 = vld [vmem:[%s16 + $0x70] sm:$0xff]
  %v3460 = vld [vmem:[%s16 + $0x78] sm:$0xff]
  %v3461 = vld [vmem:[%s16 + $0x80] sm:$0xff]
  %v3462 = vld [vmem:[%s16 + $0x88] sm:$0xff]
  %v3463 = vld [vmem:[%s16 + $0x90] sm:$0xff]
  %v3464 = vld [vmem:[%s16 + $0x98] sm:$0xff]
  %v3465 = vld [vmem:[%s16 + $0xa0] sm:$0xff]
  %v3466 = vld [vmem:[%s16 + $0xa8] sm:$0xff]
  %v3467 = vld [vmem:[%s16 + $0xb0] sm:$0xff]
  %v3468 = vld [vmem:[%s16 + $0xb8] sm:$0xff]
  %v3469 = vld [vmem:[%s16 + $0xc0] sm:$0xff]
  %v3470 = vld [vmem:[%s16 + $0xc8] sm:$0xff]
  %v3471 = vld [vmem:[%s16 + $0xd0] sm:$0xff]
  %v3472 = vld [vmem:[%s16 + $0xd8] sm:$0xff]
  %v3473 = vld [vmem:[%s16 + $0xe0] sm:$0xff]
  %v3474 = vld [vmem:[%s16 + $0xe8] sm:$0xff]
  %v3475 = vld [vmem:[%s16 + $0xf0] sm:$0xff]
  %v3476 = vld [vmem:[%s16 + $0xf8] sm:$0xff]
  %3477 = vmatprep.subr.mxu0 0.0
  %3478 = vmatpush1.msra.mxu0 %v3445
  %3479 = vmatprep.subr.mxu0 0.0
  %3480 = vmatpush1.msra.mxu0 %v3446
  %3481 = vmatprep.subr.mxu0 0.0
  %3482 = vmatpush1.msra.mxu0 %v3447
  %3483 = vmatprep.subr.mxu0 0.0
  %3484 = vmatpush1.msra.mxu0 %v3448
  %3485 = vmatprep.subr.mxu0 0.0
  %3486 = vmatpush1.msra.mxu0 %v3449
  %3487 = vmatprep.subr.mxu0 0.0
  %3488 = vmatpush1.msra.mxu0 %v3450
  %3489 = vmatprep.subr.mxu0 0.0
  %3490 = vmatpush1.msra.mxu0 %v3451
  %3491 = vmatprep.subr.mxu0 0.0
  %3492 = vmatpush1.msra.mxu0 %v3452
  %3493 = vmatprep.subr.mxu0 0.0
  %3494 = vmatpush1.msra.mxu0 %v3453
  %3495 = vmatprep.subr.mxu0 0.0
  %3496 = vmatpush1.msra.mxu0 %v3454
  %3497 = vmatprep.subr.mxu0 0.0
  %3498 = vmatpush1.msra.mxu0 %v3455
  %3499 = vmatprep.subr.mxu0 0.0
  %3500 = vmatpush1.msra.mxu0 %v3456
  %3501 = vmatprep.subr.mxu0 0.0
  %3502 = vmatpush1.msra.mxu0 %v3457
  %3503 = vmatprep.subr.mxu0 0.0
  %3504 = vmatpush1.msra.mxu0 %v3458
  %3505 = vmatprep.subr.mxu0 0.0
  %3506 = vmatpush1.msra.mxu0 %v3459
  %3507 = vmatprep.subr.mxu0 0.0
  %3508 = vmatpush1.msra.mxu0 %v3460
  %3509 = vmatprep.subr.mxu0 0.0
  %3510 = vmatpush1.msra.mxu0 %v3461
  %3511 = vmatprep.subr.mxu0 0.0
  %3512 = vmatpush1.msra.mxu0 %v3462
  %3513 = vmatprep.subr.mxu0 0.0
  %3514 = vmatpush1.msra.mxu0 %v3463
  %3515 = vmatprep.subr.mxu0 0.0
  %3516 = vmatpush1.msra.mxu0 %v3464
  %3517 = vmatprep.subr.mxu0 0.0
  %3518 = vmatpush1.msra.mxu0 %v3465
  %3519 = vmatprep.subr.mxu0 0.0
  %3520 = vmatpush1.msra.mxu0 %v3466
  %3521 = vmatprep.subr.mxu0 0.0
  %3522 = vmatpush1.msra.mxu0 %v3467
  %3523 = vmatprep.subr.mxu0 0.0
  %3524 = vmatpush1.msra.mxu0 %v3468
  %3525 = vmatprep.subr.mxu0 0.0
  %3526 = vmatpush1.msra.mxu0 %v3469
  %3527 = vmatprep.subr.mxu0 0.0
  %3528 = vmatpush1.msra.mxu0 %v3470
  %3529 = vmatprep.subr.mxu0 0.0
  %3530 = vmatpush1.msra.mxu0 %v3471
  %3531 = vmatprep.subr.mxu0 0.0
  %3532 = vmatpush1.msra.mxu0 %v3472
  %3533 = vmatprep.subr.mxu0 0.0
  %3534 = vmatpush1.msra.mxu0 %v3473
  %3535 = vmatprep.subr.mxu0 0.0
  %3536 = vmatpush1.msra.mxu0 %v3474
  %3537 = vmatprep.subr.mxu0 0.0
  %3538 = vmatpush1.msra.mxu0 %v3475
  %3539 = vmatprep.subr.mxu0 0.0
  %3540 = vmatpush1.msra.mxu0 %v3476
  %3541 = vmatprep.mubr.f32.mxu0 %v3436
  %3542 = vmatmul.mubr.f32.gmra.mrb[0].mxu0 %v3435
  %v3543 = vpop.f32.mrb[0].mxu0
  %v3544 = vadd.f32 0.0, %v3543
  %v3545 = vpop.f32.mrb[0].mxu0
  %3546 = vdwg.mxu0
  %v3547 = vadd.f32 %v3444, %v3544
  %v3548 = vld [vmem:[#allocation4] sm:$0x1]
  %v3550 = vlaneseq
  %v3551 = vshrl.u32 %v3550, 7
  %v3552 = vsub.s32 0, %v3551
  %v3553 = vrot.slane %v3548, %v3552
  %v3555 = vadd.f32 %v3547, %v3553
  %v3556 = vsub.f32 0.0, %v3555
  %v3557 = vmul.f32 %v3556, 1.442695
  %v3558 = vpow.pop %v3557
  %v3559 = vadd.f32 %v3558, 1.0
  %v3560 = vrcp.pop %v3559
  %v3561 = vmul.f32 1.0, %v3560
  %vm3562 = vcmask 1024
  %3563 = vst.msk [vmem:[%s18] sm:$0x3] %vm3562, %v1810
  %3564 = vst.msk [vmem:[%s19] sm:$0x3] %vm3562, %v3561
  // Predicated region
  $region74: #{forward.5} parent=0 // pred_check
    _
  $region75: #{forward.5} parent=0 // pred_check_branch
    %3566 = sbr.rel (0) target = $region77
  $region76: #{forward.5} parent=0 // pred_region
    _
  $region77: #{forward.5} parent=0 // pred_fallthru
    _
  // Predicated region
  $region78: #{forward.5} parent=0 // pred_check
    _
  $region79: #{forward.5} parent=0 // pred_check_branch
    %3568 = sbr.rel (0) target = $region81
  $region80: #{forward.5} parent=0 // pred_region
    _
  $region81: #{forward.5} parent=0 // pred_fallthru
    _
  // Predicated region
  $region82: #{forward.5} parent=0 // pred_check
    _
  $region83: #{forward.5} parent=0 // pred_check_branch
    %3570 = sbr.rel (0) target = $region85
  $region84: #{forward.5} parent=0 // pred_region
    _
  $region85: #{forward.5} parent=0 // pred_fallthru
    _
  // Predicated region
  $region86: #{forward.5} parent=0 // pred_check
    _
  $region87: #{forward.5} parent=0 // pred_check_branch
    %3572 = sbr.rel (0) target = $region89
  $region88: #{forward.5} parent=0 // pred_region
    _
  $region89: #{forward.5} parent=0 // pred_fallthru
    _

// kernel: forward.3
$region0: #{forward.3}
  #allocation0 [shape = 'u32[]', space=smem, size = 0x4, offset = 0x4, fixed_abs, tag = 'smem constant byte address 0x4 - core index']
  #allocation1 [shape = 'u32[144,128]{1,0:T(1,128)}', space=vmem, size = 0x12000, scoped, tag = 'internal scratch']
  %s0 = inlined_call_operand.vmem [shape: f32[2,8,128], index: 0, kind: input, shape index: {}]
  %s1 = inlined_call_operand.vmem [shape: bf16[8,128,16], index: 1, kind: input, shape index: {}]
  %s2 = inlined_call_operand.vmem [shape: bf16[8,128,16], index: 2, kind: input, shape index: {}]
  %s3 = inlined_call_operand.vmem [shape: bf16[8,128,16], index: 3, kind: input, shape index: {}]
  %s4 = inlined_call_operand.vmem [shape: f32[8,1,16], index: 4, kind: input, shape index: {}]
  %s5 = inlined_call_operand.vmem [shape: f32[8,1,16], index: 5, kind: input, shape index: {}]
  %s6 = inlined_call_operand.vmem [shape: f32[8,1,16], index: 6, kind: input, shape index: {}]
  %s7 = inlined_call_operand.vmem [shape: bf16[8,16,128], index: 7, kind: input, shape index: {}]
  %s8 = inlined_call_operand.vmem [shape: f32[1,128], index: 8, kind: input, shape index: {}]
  %s9 = inlined_call_operand.vmem [shape: f32[2,1,8], index: 9, kind: input, shape index: {}]
  %s10 = inlined_call_operand.vmem [shape: f32[2,8,128], index: 10, kind: output, shape index: {0}]
  %s11 = inlined_call_operand.hbm [shape: f32[2,8,8], index: 11, kind: output, shape index: {1}]
  %12 = xla_tuple %s10, %s11
  %s13 = sld [smem:[#allocation0]]
  $region81: #{forward.3} parent=0
    _
  %s15 = ssub.s32 1, %s13
  %s16 = scalar_select 0, %s15, %s13
  $region1: #{forward.3} parent=0
    #allocation2 [shape = 'u8[8192]{0}', space=vmem, size = 0x2000, scoped, tag = 'output window, operand 1']
    #allocation3 [shape = 's32[2]{0}', space=sflag, size = 0x8, scoped, tag = 'scoped memory for forward.3']
    %17 = vsyncpa [#allocation3], 0
    %s18 = scalar_lea.sflag [#allocation3], 1
    %19 = vsyncpa %s18, 0
    loop: start=0, step=1, limit=4
    $region2: #{forward.3} parent=1 // loop_pre_header
      _
    $region3: #{forward.3} parent=1 // loop_header
      %s21 = sphi 0, %s25
      %p22 = scmp.ge.s32.totalorder %s21, 4
      %s31 = sphi 0, %s33
      %s34 = sphi 0, %s31
      %s35 = sphi 0, %s34
      %s51 = sphi 0, %s35
      %s55 = sphi 0, %s55
      %s57 = sphi 0, %s55
      %s58 = sphi 0, %s57
      %s72 = sphi 0, %s58
      %s76 = sphi 0, %s76
      %s78 = sphi 0, %s76
      %s79 = sphi 0, %s78
      %s93 = sphi 0, %s79
      %s97 = sphi 0, %s97
      %s99 = sphi 0, %s97
      %s100 = sphi 0, %s99
      %s114 = sphi 0, %s100
      %s118 = sphi 0, %s118
      %s120 = sphi 0, %s118
      %s121 = sphi 0, %s120
      %s135 = sphi 0, %s121
      %s139 = sphi 0, %s139
      %s141 = sphi 0, %s139
      %s142 = sphi 0, %s141
      %s156 = sphi 0, %s142
      %s160 = sphi 0, %s160
      %s162 = sphi 0, %s160
      %s163 = sphi 0, %s162
      %s177 = sphi 0, %s163
      %s181 = sphi 0, %s181
      %s183 = sphi 0, %s181
      %s184 = sphi 0, %s183
      %s198 = sphi 0, %s184
      %s202 = sphi 0, %s202
      %s204 = sphi 0, %s202
      %s205 = sphi 0, %s204
      %s219 = sphi 0, %s205
      %s225 = sphi 0, %s227
      %s228 = sphi 0, %s225
      %s229 = sphi 0, %s228
      %s245 = sphi 0, %s229
      %s251 = sphi 0, %s253
      %s254 = sphi 0, %s251
      %s255 = sphi 0, %s254
      %s271 = sphi 0, %s255
      %s277 = sphi 0, %s279
      %s280 = sphi 0, %s277
      %s281 = sphi 0, %s280
      %s297 = sphi 0, %s281
    $region4: #{forward.3} parent=1 // loop_header_branch
      %24 = sbr.rel (%p22) target = $region8
    $region5: #{forward.3} parent=1 // loop_body
      %s26 = ssub.s32 %s21, 1
      %s27 = ssub.s32 %s21, 2
      %s28 = sadd.s32 %s21, 1
      %s29 = ssub.s32 %s21, %s28
      %p30 = scmp.eq.s32.totalorder %s29, 0
      %s32 = sadd.s32 %s31, 1
      %s33 = scalar_select %p30, %s31, %s32
      %p36 = pneg %p30
      %p37 = scmp.eq.s32.totalorder %s21, 1
      %p38 = por %p36, %p37
      %p39 = scmp.ne.s32.totalorder %s31, %s34
      %p40 = scmp.eq.s32.totalorder %s21, 0
      %p41 = por %p39, %p40
      %p42 = scmp.ne.s32.totalorder %s31, %s34
      %p43 = scmp.eq.s32.totalorder %s26, 1
      %p44 = por %p42, %p43
      %p45 = scmp.ne.s32.totalorder %s34, %s35
      %p46 = scmp.eq.s32.totalorder %s26, 0
      %p47 = por %p45, %p46
      %p48 = scmp.ne.s32.totalorder %s34, %s35
      %p49 = scmp.eq.s32.totalorder %s27, 1
      %p50 = por %p48, %p49
      %p52 = scmp.ne.s32.totalorder %s35, %s51
      %p53 = scmp.eq.s32.totalorder %s27, 0
      %p54 = por %p52, %p53
      %s56 = sadd.s32 %s55, 1
      %p59 = scmp.eq.s32.totalorder %s21, 1
      %p60 = scmp.ne.s32.totalorder %s55, %s57
      %p61 = scmp.eq.s32.totalorder %s21, 0
      %p62 = por %p60, %p61
      %p63 = scmp.ne.s32.totalorder %s55, %s57
      %p64 = scmp.eq.s32.totalorder %s26, 1
      %p65 = por %p63, %p64
      %p66 = scmp.ne.s32.totalorder %s57, %s58
      %p67 = scmp.eq.s32.totalorder %s26, 0
      %p68 = por %p66, %p67
      %p69 = scmp.ne.s32.totalorder %s57, %s58
      %p70 = scmp.eq.s32.totalorder %s27, 1
      %p71 = por %p69, %p70
      %p73 = scmp.ne.s32.totalorder %s58, %s72
      %p74 = scmp.eq.s32.totalorder %s27, 0
      %p75 = por %p73, %p74
      %s77 = sadd.s32 %s76, 1
      %p80 = scmp.eq.s32.totalorder %s21, 1
      %p81 = scmp.ne.s32.totalorder %s76, %s78
      %p82 = scmp.eq.s32.totalorder %s21, 0
      %p83 = por %p81, %p82
      %p84 = scmp.ne.s32.totalorder %s76, %s78
      %p85 = scmp.eq.s32.totalorder %s26, 1
      %p86 = por %p84, %p85
      %p87 = scmp.ne.s32.totalorder %s78, %s79
      %p88 = scmp.eq.s32.totalorder %s26, 0
      %p89 = por %p87, %p88
      %p90 = scmp.ne.s32.totalorder %s78, %s79
      %p91 = scmp.eq.s32.totalorder %s27, 1
      %p92 = por %p90, %p91
      %p94 = scmp.ne.s32.totalorder %s79, %s93
      %p95 = scmp.eq.s32.totalorder %s27, 0
      %p96 = por %p94, %p95
      %s98 = sadd.s32 %s97, 1
      %p101 = scmp.eq.s32.totalorder %s21, 1
      %p102 = scmp.ne.s32.totalorder %s97, %s99
      %p103 = scmp.eq.s32.totalorder %s21, 0
      %p104 = por %p102, %p103
      %p105 = scmp.ne.s32.totalorder %s97, %s99
      %p106 = scmp.eq.s32.totalorder %s26, 1
      %p107 = por %p105, %p106
      %p108 = scmp.ne.s32.totalorder %s99, %s100
      %p109 = scmp.eq.s32.totalorder %s26, 0
      %p110 = por %p108, %p109
      %p111 = scmp.ne.s32.totalorder %s99, %s100
      %p112 = scmp.eq.s32.totalorder %s27, 1
      %p113 = por %p111, %p112
      %p115 = scmp.ne.s32.totalorder %s100, %s114
      %p116 = scmp.eq.s32.totalorder %s27, 0
      %p117 = por %p115, %p116
      %s119 = sadd.s32 %s118, 1
      %p122 = scmp.eq.s32.totalorder %s21, 1
      %p123 = scmp.ne.s32.totalorder %s118, %s120
      %p124 = scmp.eq.s32.totalorder %s21, 0
      %p125 = por %p123, %p124
      %p126 = scmp.ne.s32.totalorder %s118, %s120
      %p127 = scmp.eq.s32.totalorder %s26, 1
      %p128 = por %p126, %p127
      %p129 = scmp.ne.s32.totalorder %s120, %s121
      %p130 = scmp.eq.s32.totalorder %s26, 0
      %p131 = por %p129, %p130
      %p132 = scmp.ne.s32.totalorder %s120, %s121
      %p133 = scmp.eq.s32.totalorder %s27, 1
      %p134 = por %p132, %p133
      %p136 = scmp.ne.s32.totalorder %s121, %s135
      %p137 = scmp.eq.s32.totalorder %s27, 0
      %p138 = por %p136, %p137
      %s140 = sadd.s32 %s139, 1
      %p143 = scmp.eq.s32.totalorder %s21, 1
      %p144 = scmp.ne.s32.totalorder %s139, %s141
      %p145 = scmp.eq.s32.totalorder %s21, 0
      %p146 = por %p144, %p145
      %p147 = scmp.ne.s32.totalorder %s139, %s141
      %p148 = scmp.eq.s32.totalorder %s26, 1
      %p149 = por %p147, %p148
      %p150 = scmp.ne.s32.totalorder %s141, %s142
      %p151 = scmp.eq.s32.totalorder %s26, 0
      %p152 = por %p150, %p151
      %p153 = scmp.ne.s32.totalorder %s141, %s142
      %p154 = scmp.eq.s32.totalorder %s27, 1
      %p155 = por %p153, %p154
      %p157 = scmp.ne.s32.totalorder %s142, %s156
      %p158 = scmp.eq.s32.totalorder %s27, 0
      %p159 = por %p157, %p158
      %s161 = sadd.s32 %s160, 1
      %p164 = scmp.eq.s32.totalorder %s21, 1
      %p165 = scmp.ne.s32.totalorder %s160, %s162
      %p166 = scmp.eq.s32.totalorder %s21, 0
      %p167 = por %p165, %p166
      %p168 = scmp.ne.s32.totalorder %s160, %s162
      %p169 = scmp.eq.s32.totalorder %s26, 1
      %p170 = por %p168, %p169
      %p171 = scmp.ne.s32.totalorder %s162, %s163
      %p172 = scmp.eq.s32.totalorder %s26, 0
      %p173 = por %p171, %p172
      %p174 = scmp.ne.s32.totalorder %s162, %s163
      %p175 = scmp.eq.s32.totalorder %s27, 1
      %p176 = por %p174, %p175
      %p178 = scmp.ne.s32.totalorder %s163, %s177
      %p179 = scmp.eq.s32.totalorder %s27, 0
      %p180 = por %p178, %p179
      %s182 = sadd.s32 %s181, 1
      %p185 = scmp.eq.s32.totalorder %s21, 1
      %p186 = scmp.ne.s32.totalorder %s181, %s183
      %p187 = scmp.eq.s32.totalorder %s21, 0
      %p188 = por %p186, %p187
      %p189 = scmp.ne.s32.totalorder %s181, %s183
      %p190 = scmp.eq.s32.totalorder %s26, 1
      %p191 = por %p189, %p190
      %p192 = scmp.ne.s32.totalorder %s183, %s184
      %p193 = scmp.eq.s32.totalorder %s26, 0
      %p194 = por %p192, %p193
      %p195 = scmp.ne.s32.totalorder %s183, %s184
      %p196 = scmp.eq.s32.totalorder %s27, 1
      %p197 = por %p195, %p196
      %p199 = scmp.ne.s32.totalorder %s184, %s198
      %p200 = scmp.eq.s32.totalorder %s27, 0
      %p201 = por %p199, %p200
      %s203 = sadd.s32 %s202, 1
      %p206 = scmp.eq.s32.totalorder %s21, 1
      %p207 = scmp.ne.s32.totalorder %s202, %s204
      %p208 = scmp.eq.s32.totalorder %s21, 0
      %p209 = por %p207, %p208
      %p210 = scmp.ne.s32.totalorder %s202, %s204
      %p211 = scmp.eq.s32.totalorder %s26, 1
      %p212 = por %p210, %p211
      %p213 = scmp.ne.s32.totalorder %s204, %s205
      %p214 = scmp.eq.s32.totalorder %s26, 0
      %p215 = por %p213, %p214
      %p216 = scmp.ne.s32.totalorder %s204, %s205
      %p217 = scmp.eq.s32.totalorder %s27, 1
      %p218 = por %p216, %p217
      %p220 = scmp.ne.s32.totalorder %s205, %s219
      %p221 = scmp.eq.s32.totalorder %s27, 0
      %p222 = por %p220, %p221
      %s223 = ssub.s32 %s21, %s28
      %p224 = scmp.eq.s32.totalorder %s223, 0
      %s226 = sadd.s32 %s225, 1
      %s227 = scalar_select %p224, %s225, %s226
      %p230 = pneg %p224
      %p231 = scmp.eq.s32.totalorder %s21, 1
      %p232 = por %p230, %p231
      %p233 = scmp.ne.s32.totalorder %s225, %s228
      %p234 = scmp.eq.s32.totalorder %s21, 0
      %p235 = por %p233, %p234
      %p236 = scmp.ne.s32.totalorder %s225, %s228
      %p237 = scmp.eq.s32.totalorder %s26, 1
      %p238 = por %p236, %p237
      %p239 = scmp.ne.s32.totalorder %s228, %s229
      %p240 = scmp.eq.s32.totalorder %s26, 0
      %p241 = por %p239, %p240
      %p242 = scmp.ne.s32.totalorder %s228, %s229
      %p243 = scmp.eq.s32.totalorder %s27, 1
      %p244 = por %p242, %p243
      %p246 = scmp.ne.s32.totalorder %s229, %s245
      %p247 = scmp.eq.s32.totalorder %s27, 0
      %p248 = por %p246, %p247
      %s249 = ssub.s32 %s21, %s28
      %p250 = scmp.eq.s32.totalorder %s249, 0
      %s252 = sadd.s32 %s251, 1
      %s253 = scalar_select %p250, %s251, %s252
      %p256 = pneg %p250
      %p257 = scmp.eq.s32.totalorder %s21, 1
      %p258 = por %p256, %p257
      %p259 = scmp.ne.s32.totalorder %s251, %s254
      %p260 = scmp.eq.s32.totalorder %s21, 0
      %p261 = por %p259, %p260
      %p262 = scmp.ne.s32.totalorder %s251, %s254
      %p263 = scmp.eq.s32.totalorder %s26, 1
      %p264 = por %p262, %p263
      %p265 = scmp.ne.s32.totalorder %s254, %s255
      %p266 = scmp.eq.s32.totalorder %s26, 0
      %p267 = por %p265, %p266
      %p268 = scmp.ne.s32.totalorder %s254, %s255
      %p269 = scmp.eq.s32.totalorder %s27, 1
      %p270 = por %p268, %p269
      %p272 = scmp.ne.s32.totalorder %s255, %s271
      %p273 = scmp.eq.s32.totalorder %s27, 0
      %p274 = por %p272, %p273
      %s275 = ssub.s32 %s21, %s28
      %p276 = scmp.eq.s32.totalorder %s275, 0
      %s278 = sadd.s32 %s277, 1
      %s279 = scalar_select %p276, %s277, %s278
      %p282 = pneg %p276
      %p283 = scmp.eq.s32.totalorder %s21, 1
      %p284 = por %p282, %p283
      %p285 = scmp.ne.s32.totalorder %s277, %s280
      %p286 = scmp.eq.s32.totalorder %s21, 0
      %p287 = por %p285, %p286
      %p288 = scmp.ne.s32.totalorder %s277, %s280
      %p289 = scmp.eq.s32.totalorder %s26, 1
      %p290 = por %p288, %p289
      %p291 = scmp.ne.s32.totalorder %s280, %s281
      %p292 = scmp.eq.s32.totalorder %s26, 0
      %p293 = por %p291, %p292
      %p294 = scmp.ne.s32.totalorder %s280, %s281
      %p295 = scmp.eq.s32.totalorder %s27, 1
      %p296 = por %p294, %p295
      %p298 = scmp.ne.s32.totalorder %s281, %s297
      %p299 = scmp.eq.s32.totalorder %s27, 0
      %p300 = por %p298, %p299
      %p301 = scmp.le.s32.totalorder 1, %s21
      %p302 = scmp.lt.s32.totalorder %s21, 3
      %p303 = pnand %p301, %p302
      %p304 = pneg %p303
      // Predicated region
      $region9: #{forward.3} parent=5 // pred_check
        _
      $region10: #{forward.3} parent=5 // pred_check_branch
        %306 = sbr.rel (%p303) target = $region12
      $region11: #{forward.3} parent=5 // pred_region
        %s307 = ssub.s32 %s21, 1
        // Predicated region
        $region13: #{forward.3} parent=11 // pred_check
          %p308 = pneg %p68
        $region14: #{forward.3} parent=11 // pred_check_branch
          %310 = sbr.rel (%p308) target = $region16
        $region15: #{forward.3} parent=11 // pred_region
          _
        $region16: #{forward.3} parent=11 // pred_fallthru
          _
        // Predicated region
        $region17: #{forward.3} parent=11 // pred_check
          %p311 = pneg %p89
        $region18: #{forward.3} parent=11 // pred_check_branch
          %313 = sbr.rel (%p311) target = $region20
        $region19: #{forward.3} parent=11 // pred_region
          _
        $region20: #{forward.3} parent=11 // pred_fallthru
          _
        // Predicated region
        $region21: #{forward.3} parent=11 // pred_check
          %p314 = pneg %p110
        $region22: #{forward.3} parent=11 // pred_check_branch
          %316 = sbr.rel (%p314) target = $region24
        $region23: #{forward.3} parent=11 // pred_region
          _
        $region24: #{forward.3} parent=11 // pred_fallthru
          _
        // Predicated region
        $region25: #{forward.3} parent=11 // pred_check
          %p317 = pneg %p131
        $region26: #{forward.3} parent=11 // pred_check_branch
          %319 = sbr.rel (%p317) target = $region28
        $region27: #{forward.3} parent=11 // pred_region
          _
        $region28: #{forward.3} parent=11 // pred_fallthru
          _
        // Predicated region
        $region29: #{forward.3} parent=11 // pred_check
          %p320 = pneg %p152
        $region30: #{forward.3} parent=11 // pred_check_branch
          %322 = sbr.rel (%p320) target = $region32
        $region31: #{forward.3} parent=11 // pred_region
          _
        $region32: #{forward.3} parent=11 // pred_fallthru
          _
        // Predicated region
        $region33: #{forward.3} parent=11 // pred_check
          %p323 = pneg %p173
        $region34: #{forward.3} parent=11 // pred_check_branch
          %325 = sbr.rel (%p323) target = $region36
        $region35: #{forward.3} parent=11 // pred_region
          _
        $region36: #{forward.3} parent=11 // pred_fallthru
          _
        // Predicated region
        $region37: #{forward.3} parent=11 // pred_check
          %p326 = pneg %p194
        $region38: #{forward.3} parent=11 // pred_check_branch
          %328 = sbr.rel (%p326) target = $region40
        $region39: #{forward.3} parent=11 // pred_region
          _
        $region40: #{forward.3} parent=11 // pred_fallthru
          _
        // Predicated region
        $region41: #{forward.3} parent=11 // pred_check
          %p329 = pneg %p215
        $region42: #{forward.3} parent=11 // pred_check_branch
          %331 = sbr.rel (%p329) target = $region44
        $region43: #{forward.3} parent=11 // pred_region
          _
        $region44: #{forward.3} parent=11 // pred_fallthru
          _
      $region12: #{forward.3} parent=5 // pred_fallthru
        _
      %p332 = scmp.lt.s32.totalorder %s21, 2
      // Predicated region
      $region45: #{forward.3} parent=5 // pred_check
        %p333 = pneg %p332
      $region46: #{forward.3} parent=5 // pred_check_branch
        %335 = sbr.rel (%p333) target = $region48
      $region47: #{forward.3} parent=5 // pred_region
        // Predicated region
        $region49: #{forward.3} parent=47 // pred_check
          %p336 = pneg %p41
        $region50: #{forward.3} parent=47 // pred_check_branch
          %338 = sbr.rel (%p336) target = $region52
        $region51: #{forward.3} parent=47 // pred_region
          %p339 = scmp.lt.s32.totalorder %s21, 1
          %s340 = scalar_select %p339, %s21, 1
          %s341 = smul.addr %s340, 8
          %s342 = scalar_lea.vmem %s0, %s341
        $region52: #{forward.3} parent=47 // pred_fallthru
          _
        // Predicated region
        $region53: #{forward.3} parent=47 // pred_check
          %p343 = pneg %p235
        $region54: #{forward.3} parent=47 // pred_check_branch
          %345 = sbr.rel (%p343) target = $region56
        $region55: #{forward.3} parent=47 // pred_region
          %p346 = scmp.lt.s32.totalorder %s21, 1
          %s347 = scalar_select %p346, %s21, 1
          %s348 = scalar_lea.vmem %s9, %s347
        $region56: #{forward.3} parent=47 // pred_fallthru
          _
      $region48: #{forward.3} parent=5 // pred_fallthru
        _
      %p349 = scmp.le.s32.totalorder 1, %s21
      %p350 = scmp.lt.s32.totalorder %s21, 3
      %p351 = pnand %p349, %p350
      %p352 = pneg %p351
      // Predicated region
      $region57: #{forward.3} parent=5 // pred_check
        _
      $region58: #{forward.3} parent=5 // pred_check_branch
        %354 = sbr.rel (%p351) target = $region60
      $region59: #{forward.3} parent=5 // pred_region
        %s355 = ssub.s32 %s21, 1
        %p356 = scmp.lt.s32.totalorder %s26, 1
        %s357 = scalar_select %p356, %s26, 1
        %s358 = smul.addr %s357, 8
        %s359 = scalar_lea.vmem %s0, %s358
        %p360 = pneg %p47
        %p361 = pneg %p44
        %p362 = pneg %p68
        %p363 = pneg %p65
        %p364 = pneg %p89
        %p365 = pneg %p86
        %p366 = pneg %p110
        %p367 = pneg %p107
        %p368 = pneg %p131
        %p369 = pneg %p128
        %p370 = pneg %p152
        %p371 = pneg %p149
        %p372 = pneg %p173
        %p373 = pneg %p170
        %p374 = pneg %p194
        %p375 = pneg %p191
        %p376 = pneg %p215
        %p377 = pneg %p212
        %p378 = scmp.lt.s32.totalorder %s26, 1
        %s379 = scalar_select %p378, %s26, 1
        %s380 = scalar_lea.vmem %s9, %s379
        %p381 = pneg %p241
        %p382 = pneg %p238
        %p383 = pneg %p267
        %p384 = pneg %p264
        %p385 = scmp.lt.s32.totalorder %s26, 1
        %s386 = scalar_select %p385, %s26, 1
        %s387 = smul.addr %s386, 8
        %s388 = scalar_lea.vmem %s10, %s387
        %p389 = pneg %p293
        %p390 = pneg %p290
        %s391 = sand.u32 %s280, 1
        %s392 = scalar_lea.sflag [#allocation3], %s391
        %s393 = sand.u32 %s280, 1
        %s394 = smul.addr %s393, 8
        %s395 = scalar_lea.vmem [#allocation2], %s394
        %p396 = scmp.lt.s32.totalorder %s26, 1
        %s397 = scalar_select %p396, %s26, 1
        %s398 = smul.addr %s397, 8
        %s399 = scalar_lea.vmem %s0, %s398
        %p400 = scmp.lt.s32.totalorder %s26, 1
        %s401 = scalar_select %p400, %s26, 1
        %s402 = scalar_lea.vmem %s9, %s401
        %p403 = scmp.lt.s32.totalorder %s26, 1
        %s404 = scalar_select %p403, %s26, 1
        %s405 = smul.addr %s404, 8
        %s406 = scalar_lea.vmem %s10, %s405
        %v408 = vld [vmem:[%s399] sm:$0xff]
        %v409 = vpack.c.bf16 %v408, %v408
        %v410 = vld [vmem:[%s402] sm:$0x1]
        %v411 = vld [vmem:[%s8] sm:$0x1]
        %v413 = vlaneseq
        %v414 = vshrl.u32 %v413, 7
        %v415 = vsub.s32 0, %v414
        %v416 = vrot.slane %v411, %v415
        %v418 = vadd.f32 %v416, 0.0
        %v419 = vld [vmem:[%s1] sm:$0xf]
        %v420 = vld [vmem:[%s1 + $0x4] sm:$0xf]
        %v421 = vld [vmem:[%s1 + $0x8] sm:$0xf]
        %v422 = vld [vmem:[%s1 + $0xc] sm:$0xf]
        %v423 = vld [vmem:[%s1 + $0x10] sm:$0xf]
        %v424 = vld [vmem:[%s1 + $0x14] sm:$0xf]
        %v425 = vld [vmem:[%s1 + $0x18] sm:$0xf]
        %v426 = vld [vmem:[%s1 + $0x1c] sm:$0xf]
        %v427 = vld [vmem:[%s1 + $0x20] sm:$0xf]
        %v428 = vld [vmem:[%s1 + $0x24] sm:$0xf]
        %v429 = vld [vmem:[%s1 + $0x28] sm:$0xf]
        %v430 = vld [vmem:[%s1 + $0x2c] sm:$0xf]
        %v431 = vld [vmem:[%s1 + $0x30] sm:$0xf]
        %v432 = vld [vmem:[%s1 + $0x34] sm:$0xf]
        %v433 = vld [vmem:[%s1 + $0x38] sm:$0xf]
        %v434 = vld [vmem:[%s1 + $0x3c] sm:$0xf]
        %v435 = vld [vmem:[%s4] sm:$0x1]
        %v437 = vlaneseq
        %v438 = vshrl.u32 %v437, 7
        %v439 = vsub.s32 0, %v438
        %v440 = vrot.slane %v435, %v439
        %v458 = vunpack.c.l.b16 %v419
        %v459 = vunpack.c.l.b16 %v420
        %v460 = vunpack.c.l.b16 %v421
        %v461 = vunpack.c.l.b16 %v422
        %v462 = vunpack.c.l.b16 %v423
        %v463 = vunpack.c.l.b16 %v424
        %v464 = vunpack.c.l.b16 %v425
        %v465 = vunpack.c.l.b16 %v426
        %v466 = vunpack.c.l.b16 %v427
        %v467 = vunpack.c.l.b16 %v428
        %v468 = vunpack.c.l.b16 %v429
        %v469 = vunpack.c.l.b16 %v430
        %v470 = vunpack.c.l.b16 %v431
        %v471 = vunpack.c.l.b16 %v432
        %v472 = vunpack.c.l.b16 %v433
        %v473 = vunpack.c.l.b16 %v434
        %v474 = vpack.c.b16 %v459, %v458
        %v475 = vpack.c.b16 %v461, %v460
        %v476 = vpack.c.b16 %v463, %v462
        %v477 = vpack.c.b16 %v465, %v464
        %v478 = vpack.c.b16 %v467, %v466
        %v479 = vpack.c.b16 %v469, %v468
        %v480 = vpack.c.b16 %v471, %v470
        %v481 = vpack.c.b16 %v473, %v472
        %490 = vmatprep.subr.bf16.mxu0 0
        %491 = vmatpush1.bf16.msra.mxu0 %v474
        %492 = vmatprep.subr.bf16.mxu0 0
        %493 = vmatpush1.bf16.msra.mxu0 %v475
        %494 = vmatprep.subr.bf16.mxu0 0
        %495 = vmatpush1.bf16.msra.mxu0 %v476
        %496 = vmatprep.subr.bf16.mxu0 0
        %497 = vmatpush1.bf16.msra.mxu0 %v477
        %498 = vmatprep.subr.bf16.mxu0 0
        %499 = vmatpush1.bf16.msra.mxu0 %v478
        %500 = vmatprep.subr.bf16.mxu0 0
        %501 = vmatpush1.bf16.msra.mxu0 %v479
        %502 = vmatprep.subr.bf16.mxu0 0
        %503 = vmatpush1.bf16.msra.mxu0 %v480
        %504 = vmatprep.subr.bf16.mxu0 0
        %505 = vmatpush1.bf16.msra.mxu0 %v481
        %506 = vmatprep.subr.bf16.mxu0 0
        %507 = vmatpush1.bf16.msra.mxu0 0
        %508 = vmatprep.subr.bf16.mxu0 0
        %509 = vmatpush1.bf16.msra.mxu0 0
        %510 = vmatprep.subr.bf16.mxu0 0
        %511 = vmatpush1.bf16.msra.mxu0 0
        %512 = vmatprep.subr.bf16.mxu0 0
        %513 = vmatpush1.bf16.msra.mxu0 0
        %514 = vmatprep.subr.bf16.mxu0 0
        %515 = vmatpush1.bf16.msra.mxu0 0
        %516 = vmatprep.subr.bf16.mxu0 0
        %517 = vmatpush1.bf16.msra.mxu0 0
        %518 = vmatprep.subr.bf16.mxu0 0
        %519 = vmatpush1.bf16.msra.mxu0 0
        %520 = vmatprep.subr.bf16.mxu0 0
        %521 = vmatpush1.bf16.msra.mxu0 0
        %522 = vmatprep.mubr.bf16.mxu0 0
        %523 = vmatmul.mubr.bf16.gmra.mrb[0].mxu0 %v409
        %v524 = vpop.f32.mrb[0].mxu0
        %v525 = vadd.f32 %v440, %v524
        %v526 = vpop.f32.mrb[0].mxu0
        %v527 = vpop.f32.mrb[0].mxu0
        %v528 = vpop.f32.mrb[0].mxu0
        %529 = vdwg.mxu0
        %v530 = vmul.f32 %v525, 0.25
        %v531 = vld [vmem:[%s2] sm:$0xf]
        %v532 = vld [vmem:[%s2 + $0x4] sm:$0xf]
        %v533 = vld [vmem:[%s2 + $0x8] sm:$0xf]
        %v534 = vld [vmem:[%s2 + $0xc] sm:$0xf]
        %v535 = vld [vmem:[%s2 + $0x10] sm:$0xf]
        %v536 = vld [vmem:[%s2 + $0x14] sm:$0xf]
        %v537 = vld [vmem:[%s2 + $0x18] sm:$0xf]
        %v538 = vld [vmem:[%s2 + $0x1c] sm:$0xf]
        %v539 = vld [vmem:[%s2 + $0x20] sm:$0xf]
        %v540 = vld [vmem:[%s2 + $0x24] sm:$0xf]
        %v541 = vld [vmem:[%s2 + $0x28] sm:$0xf]
        %v542 = vld [vmem:[%s2 + $0x2c] sm:$0xf]
        %v543 = vld [vmem:[%s2 + $0x30] sm:$0xf]
        %v544 = vld [vmem:[%s2 + $0x34] sm:$0xf]
        %v545 = vld [vmem:[%s2 + $0x38] sm:$0xf]
        %v546 = vld [vmem:[%s2 + $0x3c] sm:$0xf]
        %v547 = vld [vmem:[%s5] sm:$0x1]
        %v549 = vlaneseq
        %v550 = vshrl.u32 %v549, 7
        %v551 = vsub.s32 0, %v550
        %v552 = vrot.slane %v547, %v551
        %v570 = vunpack.c.l.b16 %v531
        %v571 = vunpack.c.l.b16 %v532
        %v572 = vunpack.c.l.b16 %v533
        %v573 = vunpack.c.l.b16 %v534
        %v574 = vunpack.c.l.b16 %v535
        %v575 = vunpack.c.l.b16 %v536
        %v576 = vunpack.c.l.b16 %v537
        %v577 = vunpack.c.l.b16 %v538
        %v578 = vunpack.c.l.b16 %v539
        %v579 = vunpack.c.l.b16 %v540
        %v580 = vunpack.c.l.b16 %v541
        %v581 = vunpack.c.l.b16 %v542
        %v582 = vunpack.c.l.b16 %v543
        %v583 = vunpack.c.l.b16 %v544
        %v584 = vunpack.c.l.b16 %v545
        %v585 = vunpack.c.l.b16 %v546
        %v586 = vpack.c.b16 %v571, %v570
        %v587 = vpack.c.b16 %v573, %v572
        %v588 = vpack.c.b16 %v575, %v574
        %v589 = vpack.c.b16 %v577, %v576
        %v590 = vpack.c.b16 %v579, %v578
        %v591 = vpack.c.b16 %v581, %v580
        %v592 = vpack.c.b16 %v583, %v582
        %v593 = vpack.c.b16 %v585, %v584
        %602 = vmatprep.subr.bf16.mxu0 0
        %603 = vmatpush1.bf16.msra.mxu0 %v586
        %604 = vmatprep.subr.bf16.mxu0 0
        %605 = vmatpush1.bf16.msra.mxu0 %v587
        %606 = vmatprep.subr.bf16.mxu0 0
        %607 = vmatpush1.bf16.msra.mxu0 %v588
        %608 = vmatprep.subr.bf16.mxu0 0
        %609 = vmatpush1.bf16.msra.mxu0 %v589
        %610 = vmatprep.subr.bf16.mxu0 0
        %611 = vmatpush1.bf16.msra.mxu0 %v590
        %612 = vmatprep.subr.bf16.mxu0 0
        %613 = vmatpush1.bf16.msra.mxu0 %v591
        %614 = vmatprep.subr.bf16.mxu0 0
        %615 = vmatpush1.bf16.msra.mxu0 %v592
        %616 = vmatprep.subr.bf16.mxu0 0
        %617 = vmatpush1.bf16.msra.mxu0 %v593
        %618 = vmatprep.subr.bf16.mxu0 0
        %619 = vmatpush1.bf16.msra.mxu0 0
        %620 = vmatprep.subr.bf16.mxu0 0
        %621 = vmatpush1.bf16.msra.mxu0 0
        %622 = vmatprep.subr.bf16.mxu0 0
        %623 = vmatpush1.bf16.msra.mxu0 0
        %624 = vmatprep.subr.bf16.mxu0 0
        %625 = vmatpush1.bf16.msra.mxu0 0
        %626 = vmatprep.subr.bf16.mxu0 0
        %627 = vmatpush1.bf16.msra.mxu0 0
        %628 = vmatprep.subr.bf16.mxu0 0
        %629 = vmatpush1.bf16.msra.mxu0 0
        %630 = vmatprep.subr.bf16.mxu0 0
        %631 = vmatpush1.bf16.msra.mxu0 0
        %632 = vmatprep.subr.bf16.mxu0 0
        %633 = vmatpush1.bf16.msra.mxu0 0
        %634 = vmatprep.mubr.bf16.mxu0 0
        %635 = vmatmul.mubr.bf16.gmra.mrb[0].mxu0 %v409
        %v636 = vpop.f32.mrb[0].mxu0
        %v637 = vadd.f32 %v552, %v636
        %v638 = vpop.f32.mrb[0].mxu0
        %v639 = vpop.f32.mrb[0].mxu0
        %v640 = vpop.f32.mrb[0].mxu0
        %641 = vdwg.mxu0
        %v642 = vld [vmem:[%s3] sm:$0xf]
        %v643 = vld [vmem:[%s3 + $0x4] sm:$0xf]
        %v644 = vld [vmem:[%s3 + $0x8] sm:$0xf]
        %v645 = vld [vmem:[%s3 + $0xc] sm:$0xf]
        %v646 = vld [vmem:[%s3 + $0x10] sm:$0xf]
        %v647 = vld [vmem:[%s3 + $0x14] sm:$0xf]
        %v648 = vld [vmem:[%s3 + $0x18] sm:$0xf]
        %v649 = vld [vmem:[%s3 + $0x1c] sm:$0xf]
        %v650 = vld [vmem:[%s3 + $0x20] sm:$0xf]
        %v651 = vld [vmem:[%s3 + $0x24] sm:$0xf]
        %v652 = vld [vmem:[%s3 + $0x28] sm:$0xf]
        %v653 = vld [vmem:[%s3 + $0x2c] sm:$0xf]
        %v654 = vld [vmem:[%s3 + $0x30] sm:$0xf]
        %v655 = vld [vmem:[%s3 + $0x34] sm:$0xf]
        %v656 = vld [vmem:[%s3 + $0x38] sm:$0xf]
        %v657 = vld [vmem:[%s3 + $0x3c] sm:$0xf]
        %v658 = vld [vmem:[%s6] sm:$0x1]
        %v660 = vlaneseq
        %v661 = vshrl.u32 %v660, 7
        %v662 = vsub.s32 0, %v661
        %v663 = vrot.slane %v658, %v662
        %v681 = vunpack.c.l.b16 %v642
        %v682 = vunpack.c.l.b16 %v643
        %v683 = vunpack.c.l.b16 %v644
        %v684 = vunpack.c.l.b16 %v645
        %v685 = vunpack.c.l.b16 %v646
        %v686 = vunpack.c.l.b16 %v647
        %v687 = vunpack.c.l.b16 %v648
        %v688 = vunpack.c.l.b16 %v649
        %v689 = vunpack.c.l.b16 %v650
        %v690 = vunpack.c.l.b16 %v651
        %v691 = vunpack.c.l.b16 %v652
        %v692 = vunpack.c.l.b16 %v653
        %v693 = vunpack.c.l.b16 %v654
        %v694 = vunpack.c.l.b16 %v655
        %v695 = vunpack.c.l.b16 %v656
        %v696 = vunpack.c.l.b16 %v657
        %v697 = vpack.c.b16 %v682, %v681
        %v698 = vpack.c.b16 %v684, %v683
        %v699 = vpack.c.b16 %v686, %v685
        %v700 = vpack.c.b16 %v688, %v687
        %v701 = vpack.c.b16 %v690, %v689
        %v702 = vpack.c.b16 %v692, %v691
        %v703 = vpack.c.b16 %v694, %v693
        %v704 = vpack.c.b16 %v696, %v695
        %713 = vmatprep.subr.bf16.mxu0 0
        %714 = vmatpush1.bf16.msra.mxu0 %v697
        %715 = vmatprep.subr.bf16.mxu0 0
        %716 = vmatpush1.bf16.msra.mxu0 %v698
        %717 = vmatprep.subr.bf16.mxu0 0
        %718 = vmatpush1.bf16.msra.mxu0 %v699
        %719 = vmatprep.subr.bf16.mxu0 0
        %720 = vmatpush1.bf16.msra.mxu0 %v700
        %721 = vmatprep.subr.bf16.mxu0 0
        %722 = vmatpush1.bf16.msra.mxu0 %v701
        %723 = vmatprep.subr.bf16.mxu0 0
        %724 = vmatpush1.bf16.msra.mxu0 %v702
        %725 = vmatprep.subr.bf16.mxu0 0
        %726 = vmatpush1.bf16.msra.mxu0 %v703
        %727 = vmatprep.subr.bf16.mxu0 0
        %728 = vmatpush1.bf16.msra.mxu0 %v704
        %729 = vmatprep.subr.bf16.mxu0 0
        %730 = vmatpush1.bf16.msra.mxu0 0
        %731 = vmatprep.subr.bf16.mxu0 0
        %732 = vmatpush1.bf16.msra.mxu0 0
        %733 = vmatprep.subr.bf16.mxu0 0
        %734 = vmatpush1.bf16.msra.mxu0 0
        %735 = vmatprep.subr.bf16.mxu0 0
        %736 = vmatpush1.bf16.msra.mxu0 0
        %737 = vmatprep.subr.bf16.mxu0 0
        %738 = vmatpush1.bf16.msra.mxu0 0
        %739 = vmatprep.subr.bf16.mxu0 0
        %740 = vmatpush1.bf16.msra.mxu0 0
        %741 = vmatprep.subr.bf16.mxu0 0
        %742 = vmatpush1.bf16.msra.mxu0 0
        %743 = vmatprep.subr.bf16.mxu0 0
        %744 = vmatpush1.bf16.msra.mxu0 0
        %745 = vmatprep.mubr.bf16.mxu0 0
        %746 = vmatmul.mubr.bf16.gmra.mrb[0].mxu0 %v409
        %v747 = vpop.f32.mrb[0].mxu0
        %v748 = vadd.f32 %v663, %v747
        %v749 = vpop.f32.mrb[0].mxu0
        %v750 = vpop.f32.mrb[0].mxu0
        %v751 = vpop.f32.mrb[0].mxu0
        %752 = vdwg.mxu0
        %v754 = vlaneseq
        %v755 = vshrl.u32 %v754, 7
        %v756 = vsub.s32 0, %v755
        %v757 = vrot.slane %v410, %v756
        %vm759 = vcmask 130048
        %v761 = vsel %vm759, %v530, 0
        %v764 = vsel %vm759, %v637, 0
        %766 = vmatprep.subr.mxu0 0.0
        %767 = vmatpush1.xpose.msra.mxu0 %v764
        %768 = vmatprep.subr.mxu0 0.0
        %769 = vmatpush1.xpose.msra.mxu0 0.0
        %770 = vmatprep.subr.mxu0 0.0
        %771 = vmatpush1.xpose.msra.mxu0 0.0
        %772 = vmatprep.subr.mxu0 0.0
        %773 = vmatpush1.xpose.msra.mxu0 0.0
        %774 = vmatprep.subr.mxu0 0.0
        %775 = vmatpush1.xpose.msra.mxu0 0.0
        %776 = vmatprep.subr.mxu0 0.0
        %777 = vmatpush1.xpose.msra.mxu0 0.0
        %778 = vmatprep.subr.mxu0 0.0
        %779 = vmatpush1.xpose.msra.mxu0 0.0
        %780 = vmatprep.subr.mxu0 0.0
        %781 = vmatpush1.xpose.msra.mxu0 0.0
        %782 = vmatprep.subr.mxu0 0.0
        %783 = vmatpush1.xpose.msra.mxu0 0.0
        %784 = vmatprep.subr.mxu0 0.0
        %785 = vmatpush1.xpose.msra.mxu0 0.0
        %786 = vmatprep.subr.mxu0 0.0
        %787 = vmatpush1.xpose.msra.mxu0 0.0
        %788 = vmatprep.subr.mxu0 0.0
        %789 = vmatpush1.xpose.msra.mxu0 0.0
        %790 = vmatprep.subr.mxu0 0.0
        %791 = vmatpush1.xpose.msra.mxu0 0.0
        %792 = vmatprep.subr.mxu0 0.0
        %793 = vmatpush1.xpose.msra.mxu0 0.0
        %794 = vmatprep.subr.mxu0 0.0
        %795 = vmatpush1.xpose.msra.mxu0 0.0
        %796 = vmatprep.subr.mxu0 0.0
        %797 = vmatpush1.xpose.msra.mxu0 0.0
        %798 = vmatprep.subr.mxu0 0.0
        %799 = vmatpush1.xpose.msra.mxu0 0.0
        %800 = vmatprep.subr.mxu0 0.0
        %801 = vmatpush1.xpose.msra.mxu0 0.0
        %802 = vmatprep.subr.mxu0 0.0
        %803 = vmatpush1.xpose.msra.mxu0 0.0
        %804 = vmatprep.subr.mxu0 0.0
        %805 = vmatpush1.xpose.msra.mxu0 0.0
        %806 = vmatprep.subr.mxu0 0.0
        %807 = vmatpush1.xpose.msra.mxu0 0.0
        %808 = vmatprep.subr.mxu0 0.0
        %809 = vmatpush1.xpose.msra.mxu0 0.0
        %810 = vmatprep.subr.mxu0 0.0
        %811 = vmatpush1.xpose.msra.mxu0 0.0
        %812 = vmatprep.subr.mxu0 0.0
        %813 = vmatpush1.xpose.msra.mxu0 0.0
        %814 = vmatprep.subr.mxu0 0.0
        %815 = vmatpush1.xpose.msra.mxu0 0.0
        %816 = vmatprep.subr.mxu0 0.0
        %817 = vmatpush1.xpose.msra.mxu0 0.0
        %818 = vmatprep.subr.mxu0 0.0
        %819 = vmatpush1.xpose.msra.mxu0 0.0
        %820 = vmatprep.subr.mxu0 0.0
        %821 = vmatpush1.xpose.msra.mxu0 0.0
        %822 = vmatprep.subr.mxu0 0.0
        %823 = vmatpush1.xpose.msra.mxu0 0.0
        %824 = vmatprep.subr.mxu0 0.0
        %825 = vmatpush1.xpose.msra.mxu0 0.0
        %826 = vmatprep.subr.mxu0 0.0
        %827 = vmatpush1.xpose.msra.mxu0 0.0
        %828 = vmatprep.subr.mxu0 0.0
        %829 = vmatpush1.xpose.msra.mxu0 0.0
        %830 = vmatprep.mubr.f32.mxu0 0.0
        %831 = vmatmul.mubr.f32.gmra.mrb[0].mxu0 %v761
        %v832 = vpop.f32.mrb[0].mxu0
        %v833 = vadd.f32 %v757, %v832
        %v834 = vpop.f32.mrb[0].mxu0
        %835 = vdwg.mxu0
        %vm836 = vcmask 64512
        %v837 = vsel %vm836, %v833, -inf
        %838 = vmax.xlane.f32.xlu0 %v837
        %v839 = vpop.xlane.xlu0 %838
        %v840 = vsub.f32 %v833, %v839
        %v841 = vmul.f32 %v840, 1.442695
        %v842 = vpow.pop %v841
        %v843 = vsel %vm836, %v842, 0.0
        %844 = vadd.xlane.f32.xlu0 %v843
        %v845 = vpop.xlane.xlu0 %844
        %v846 = vrcp.pop %v845
        %v847 = vmul.f32 %v842, %v846
        %v848 = vadd.f32 %v847, 0.0
        %v850 = vsel %vm836, %v847, 0
        %852 = vmatprep.subr.mxu0 0.0
        %853 = vmatpush1.msra.mxu0 %v748
        %854 = vmatprep.subr.mxu0 0.0
        %855 = vmatpush1.msra.mxu0 0.0
        %856 = vmatprep.subr.mxu0 0.0
        %857 = vmatpush1.msra.mxu0 0.0
        %858 = vmatprep.subr.mxu0 0.0
        %859 = vmatpush1.msra.mxu0 0.0
        %860 = vmatprep.subr.mxu0 0.0
        %861 = vmatpush1.msra.mxu0 0.0
        %862 = vmatprep.subr.mxu0 0.0
        %863 = vmatpush1.msra.mxu0 0.0
        %864 = vmatprep.subr.mxu0 0.0
        %865 = vmatpush1.msra.mxu0 0.0
        %866 = vmatprep.subr.mxu0 0.0
        %867 = vmatpush1.msra.mxu0 0.0
        %868 = vmatprep.subr.mxu0 0.0
        %869 = vmatpush1.msra.mxu0 0.0
        %870 = vmatprep.subr.mxu0 0.0
        %871 = vmatpush1.msra.mxu0 0.0
        %872 = vmatprep.subr.mxu0 0.0
        %873 = vmatpush1.msra.mxu0 0.0
        %874 = vmatprep.subr.mxu0 0.0
        %875 = vmatpush1.msra.mxu0 0.0
        %876 = vmatprep.subr.mxu0 0.0
        %877 = vmatpush1.msra.mxu0 0.0
        %878 = vmatprep.subr.mxu0 0.0
        %879 = vmatpush1.msra.mxu0 0.0
        %880 = vmatprep.subr.mxu0 0.0
        %881 = vmatpush1.msra.mxu0 0.0
        %882 = vmatprep.subr.mxu0 0.0
        %883 = vmatpush1.msra.mxu0 0.0
        %884 = vmatprep.subr.mxu0 0.0
        %885 = vmatpush1.msra.mxu0 0.0
        %886 = vmatprep.subr.mxu0 0.0
        %887 = vmatpush1.msra.mxu0 0.0
        %888 = vmatprep.subr.mxu0 0.0
        %889 = vmatpush1.msra.mxu0 0.0
        %890 = vmatprep.subr.mxu0 0.0
        %891 = vmatpush1.msra.mxu0 0.0
        %892 = vmatprep.subr.mxu0 0.0
        %893 = vmatpush1.msra.mxu0 0.0
        %894 = vmatprep.subr.mxu0 0.0
        %895 = vmatpush1.msra.mxu0 0.0
        %896 = vmatprep.subr.mxu0 0.0
        %897 = vmatpush1.msra.mxu0 0.0
        %898 = vmatprep.subr.mxu0 0.0
        %899 = vmatpush1.msra.mxu0 0.0
        %900 = vmatprep.subr.mxu0 0.0
        %901 = vmatpush1.msra.mxu0 0.0
        %902 = vmatprep.subr.mxu0 0.0
        %903 = vmatpush1.msra.mxu0 0.0
        %904 = vmatprep.subr.mxu0 0.0
        %905 = vmatpush1.msra.mxu0 0.0
        %906 = vmatprep.subr.mxu0 0.0
        %907 = vmatpush1.msra.mxu0 0.0
        %908 = vmatprep.subr.mxu0 0.0
        %909 = vmatpush1.msra.mxu0 0.0
        %910 = vmatprep.subr.mxu0 0.0
        %911 = vmatpush1.msra.mxu0 0.0
        %912 = vmatprep.subr.mxu0 0.0
        %913 = vmatpush1.msra.mxu0 0.0
        %914 = vmatprep.subr.mxu0 0.0
        %915 = vmatpush1.msra.mxu0 0.0
        %916 = vmatprep.mubr.f32.mxu0 0.0
        %917 = vmatmul.mubr.f32.gmra.mrb[0].mxu0 %v850
        %v918 = vpop.f32.mrb[0].mxu0
        %v919 = vadd.f32 0.0, %v918
        %v920 = vpop.f32.mrb[0].mxu0
        %921 = vdwg.mxu0
        %v922 = vpack.c.bf16 %v919, %v919
        %v923 = vld [vmem:[%s7] sm:$0xf]
        %v924 = vld [vmem:[%s7 + $0x4] sm:$0xf]
        %v927 = vunpack.c.l.b16 %v923
        %v928 = vunpack.c.l.b16 %v924
        %v929 = vpack.c.b16 %v928, %v927
        %v932 = vsel %vm759, %v922, 0
        %934 = vmatprep.subr.bf16.mxu0 0
        %935 = vmatpush1.bf16.msra.mxu0 %v929
        %936 = vmatprep.subr.bf16.mxu0 0
        %937 = vmatpush1.bf16.msra.mxu0 0
        %938 = vmatprep.subr.bf16.mxu0 0
        %939 = vmatpush1.bf16.msra.mxu0 0
        %940 = vmatprep.subr.bf16.mxu0 0
        %941 = vmatpush1.bf16.msra.mxu0 0
        %942 = vmatprep.subr.bf16.mxu0 0
        %943 = vmatpush1.bf16.msra.mxu0 0
        %944 = vmatprep.subr.bf16.mxu0 0
        %945 = vmatpush1.bf16.msra.mxu0 0
        %946 = vmatprep.subr.bf16.mxu0 0
        %947 = vmatpush1.bf16.msra.mxu0 0
        %948 = vmatprep.subr.bf16.mxu0 0
        %949 = vmatpush1.bf16.msra.mxu0 0
        %950 = vmatprep.subr.bf16.mxu0 0
        %951 = vmatpush1.bf16.msra.mxu0 0
        %952 = vmatprep.subr.bf16.mxu0 0
        %953 = vmatpush1.bf16.msra.mxu0 0
        %954 = vmatprep.subr.bf16.mxu0 0
        %955 = vmatpush1.bf16.msra.mxu0 0
        %956 = vmatprep.subr.bf16.mxu0 0
        %957 = vmatpush1.bf16.msra.mxu0 0
        %958 = vmatprep.subr.bf16.mxu0 0
        %959 = vmatpush1.bf16.msra.mxu0 0
        %960 = vmatprep.subr.bf16.mxu0 0
        %961 = vmatpush1.bf16.msra.mxu0 0
        %962 = vmatprep.subr.bf16.mxu0 0
        %963 = vmatpush1.bf16.msra.mxu0 0
        %964 = vmatprep.subr.bf16.mxu0 0
        %965 = vmatpush1.bf16.msra.mxu0 0
        %966 = vmatprep.mubr.bf16.mxu0 0
        %967 = vmatmul.mubr.bf16.gmra.mrb[0].mxu0 %v932
        %v968 = vpop.f32.mrb[0].mxu0
        %v969 = vadd.f32 0.0, %v968
        %v970 = vpop.f32.mrb[0].mxu0
        %v971 = vpop.f32.mrb[0].mxu0
        %v972 = vpop.f32.mrb[0].mxu0
        %973 = vdwg.mxu0
        %v974 = vadd.f32 %v418, %v969
        %s975 = scalar_lea.vmem %s1, 64
        %v976 = vld [vmem:[%s975] sm:$0xf]
        %v977 = vld [vmem:[%s975 + $0x4] sm:$0xf]
        %v978 = vld [vmem:[%s975 + $0x8] sm:$0xf]
        %v979 = vld [vmem:[%s975 + $0xc] sm:$0xf]
        %v980 = vld [vmem:[%s975 + $0x10] sm:$0xf]
        %v981 = vld [vmem:[%s975 + $0x14] sm:$0xf]
        %v982 = vld [vmem:[%s975 + $0x18] sm:$0xf]
        %v983 = vld [vmem:[%s975 + $0x1c] sm:$0xf]
        %v984 = vld [vmem:[%s975 + $0x20] sm:$0xf]
        %v985 = vld [vmem:[%s975 + $0x24] sm:$0xf]
        %v986 = vld [vmem:[%s975 + $0x28] sm:$0xf]
        %v987 = vld [vmem:[%s975 + $0x2c] sm:$0xf]
        %v988 = vld [vmem:[%s975 + $0x30] sm:$0xf]
        %v989 = vld [vmem:[%s975 + $0x34] sm:$0xf]
        %v990 = vld [vmem:[%s975 + $0x38] sm:$0xf]
        %v991 = vld [vmem:[%s975 + $0x3c] sm:$0xf]
        %s992 = scalar_lea.vmem %s4, 1
        %v993 = vld [vmem:[%s992] sm:$0x1]
        %v995 = vlaneseq
        %v996 = vshrl.u32 %v995, 7
        %v997 = vsub.s32 0, %v996
        %v998 = vrot.slane %v993, %v997
        %v1016 = vunpack.c.l.b16 %v976
        %v1017 = vunpack.c.l.b16 %v977
        %v1018 = vunpack.c.l.b16 %v978
        %v1019 = vunpack.c.l.b16 %v979
        %v1020 = vunpack.c.l.b16 %v980
        %v1021 = vunpack.c.l.b16 %v981
        %v1022 = vunpack.c.l.b16 %v982
        %v1023 = vunpack.c.l.b16 %v983
        %v1024 = vunpack.c.l.b16 %v984
        %v1025 = vunpack.c.l.b16 %v985
        %v1026 = vunpack.c.l.b16 %v986
        %v1027 = vunpack.c.l.b16 %v987
        %v1028 = vunpack.c.l.b16 %v988
        %v1029 = vunpack.c.l.b16 %v989
        %v1030 = vunpack.c.l.b16 %v990
        %v1031 = vunpack.c.l.b16 %v991
        %v1032 = vpack.c.b16 %v1017, %v1016
        %v1033 = vpack.c.b16 %v1019, %v1018
        %v1034 = vpack.c.b16 %v1021, %v1020
        %v1035 = vpack.c.b16 %v1023, %v1022
        %v1036 = vpack.c.b16 %v1025, %v1024
        %v1037 = vpack.c.b16 %v1027, %v1026
        %v1038 = vpack.c.b16 %v1029, %v1028
        %v1039 = vpack.c.b16 %v1031, %v1030
        %1048 = vmatprep.subr.bf16.mxu0 0
        %1049 = vmatpush1.bf16.msra.mxu0 %v1032
        %1050 = vmatprep.subr.bf16.mxu0 0
        %1051 = vmatpush1.bf16.msra.mxu0 %v1033
        %1052 = vmatprep.subr.bf16.mxu0 0
        %1053 = vmatpush1.bf16.msra.mxu0 %v1034
        %1054 = vmatprep.subr.bf16.mxu0 0
        %1055 = vmatpush1.bf16.msra.mxu0 %v1035
        %1056 = vmatprep.subr.bf16.mxu0 0
        %1057 = vmatpush1.bf16.msra.mxu0 %v1036
        %1058 = vmatprep.subr.bf16.mxu0 0
        %1059 = vmatpush1.bf16.msra.mxu0 %v1037
        %1060 = vmatprep.subr.bf16.mxu0 0
        %1061 = vmatpush1.bf16.msra.mxu0 %v1038
        %1062 = vmatprep.subr.bf16.mxu0 0
        %1063 = vmatpush1.bf16.msra.mxu0 %v1039
        %1064 = vmatprep.subr.bf16.mxu0 0
        %1065 = vmatpush1.bf16.msra.mxu0 0
        %1066 = vmatprep.subr.bf16.mxu0 0
        %1067 = vmatpush1.bf16.msra.mxu0 0
        %1068 = vmatprep.subr.bf16.mxu0 0
        %1069 = vmatpush1.bf16.msra.mxu0 0
        %1070 = vmatprep.subr.bf16.mxu0 0
        %1071 = vmatpush1.bf16.msra.mxu0 0
        %1072 = vmatprep.subr.bf16.mxu0 0
        %1073 = vmatpush1.bf16.msra.mxu0 0
        %1074 = vmatprep.subr.bf16.mxu0 0
        %1075 = vmatpush1.bf16.msra.mxu0 0
        %1076 = vmatprep.subr.bf16.mxu0 0
        %1077 = vmatpush1.bf16.msra.mxu0 0
        %1078 = vmatprep.subr.bf16.mxu0 0
        %1079 = vmatpush1.bf16.msra.mxu0 0
        %1080 = vmatprep.mubr.bf16.mxu0 0
        %1081 = vmatmul.mubr.bf16.gmra.mrb[0].mxu0 %v409
        %v1082 = vpop.f32.mrb[0].mxu0
        %v1083 = vadd.f32 %v998, %v1082
        %v1084 = vpop.f32.mrb[0].mxu0
        %v1085 = vpop.f32.mrb[0].mxu0
        %v1086 = vpop.f32.mrb[0].mxu0
        %1087 = vdwg.mxu0
        %v1088 = vmul.f32 %v1083, 0.25
        %s1089 = scalar_lea.vmem %s2, 64
        %v1090 = vld [vmem:[%s1089] sm:$0xf]
        %v1091 = vld [vmem:[%s1089 + $0x4] sm:$0xf]
        %v1092 = vld [vmem:[%s1089 + $0x8] sm:$0xf]
        %v1093 = vld [vmem:[%s1089 + $0xc] sm:$0xf]
        %v1094 = vld [vmem:[%s1089 + $0x10] sm:$0xf]
        %v1095 = vld [vmem:[%s1089 + $0x14] sm:$0xf]
        %v1096 = vld [vmem:[%s1089 + $0x18] sm:$0xf]
        %v1097 = vld [vmem:[%s1089 + $0x1c] sm:$0xf]
        %v1098 = vld [vmem:[%s1089 + $0x20] sm:$0xf]
        %v1099 = vld [vmem:[%s1089 + $0x24] sm:$0xf]
        %v1100 = vld [vmem:[%s1089 + $0x28] sm:$0xf]
        %v1101 = vld [vmem:[%s1089 + $0x2c] sm:$0xf]
        %v1102 = vld [vmem:[%s1089 + $0x30] sm:$0xf]
        %v1103 = vld [vmem:[%s1089 + $0x34] sm:$0xf]
        %v1104 = vld [vmem:[%s1089 + $0x38] sm:$0xf]
        %v1105 = vld [vmem:[%s1089 + $0x3c] sm:$0xf]
        %s1106 = scalar_lea.vmem %s5, 1
        %v1107 = vld [vmem:[%s1106] sm:$0x1]
        %v1109 = vlaneseq
        %v1110 = vshrl.u32 %v1109, 7
        %v1111 = vsub.s32 0, %v1110
        %v1112 = vrot.slane %v1107, %v1111
        %v1130 = vunpack.c.l.b16 %v1090
        %v1131 = vunpack.c.l.b16 %v1091
        %v1132 = vunpack.c.l.b16 %v1092
        %v1133 = vunpack.c.l.b16 %v1093
        %v1134 = vunpack.c.l.b16 %v1094
        %v1135 = vunpack.c.l.b16 %v1095
        %v1136 = vunpack.c.l.b16 %v1096
        %v1137 = vunpack.c.l.b16 %v1097
        %v1138 = vunpack.c.l.b16 %v1098
        %v1139 = vunpack.c.l.b16 %v1099
        %v1140 = vunpack.c.l.b16 %v1100
        %v1141 = vunpack.c.l.b16 %v1101
        %v1142 = vunpack.c.l.b16 %v1102
        %v1143 = vunpack.c.l.b16 %v1103
        %v1144 = vunpack.c.l.b16 %v1104
        %v1145 = vunpack.c.l.b16 %v1105
        %v1146 = vpack.c.b16 %v1131, %v1130
        %v1147 = vpack.c.b16 %v1133, %v1132
        %v1148 = vpack.c.b16 %v1135, %v1134
        %v1149 = vpack.c.b16 %v1137, %v1136
        %v1150 = vpack.c.b16 %v1139, %v1138
        %v1151 = vpack.c.b16 %v1141, %v1140
        %v1152 = vpack.c.b16 %v1143, %v1142
        %v1153 = vpack.c.b16 %v1145, %v1144
        %1162 = vmatprep.subr.bf16.mxu0 0
        %1163 = vmatpush1.bf16.msra.mxu0 %v1146
        %1164 = vmatprep.subr.bf16.mxu0 0
        %1165 = vmatpush1.bf16.msra.mxu0 %v1147
        %1166 = vmatprep.subr.bf16.mxu0 0
        %1167 = vmatpush1.bf16.msra.mxu0 %v1148
        %1168 = vmatprep.subr.bf16.mxu0 0
        %1169 = vmatpush1.bf16.msra.mxu0 %v1149
        %1170 = vmatprep.subr.bf16.mxu0 0
        %1171 = vmatpush1.bf16.msra.mxu0 %v1150
        %1172 = vmatprep.subr.bf16.mxu0 0
        %1173 = vmatpush1.bf16.msra.mxu0 %v1151
        %1174 = vmatprep.subr.bf16.mxu0 0
        %1175 = vmatpush1.bf16.msra.mxu0 %v1152
        %1176 = vmatprep.subr.bf16.mxu0 0
        %1177 = vmatpush1.bf16.msra.mxu0 %v1153
        %1178 = vmatprep.subr.bf16.mxu0 0
        %1179 = vmatpush1.bf16.msra.mxu0 0
        %1180 = vmatprep.subr.bf16.mxu0 0
        %1181 = vmatpush1.bf16.msra.mxu0 0
        %1182 = vmatprep.subr.bf16.mxu0 0
        %1183 = vmatpush1.bf16.msra.mxu0 0
        %1184 = vmatprep.subr.bf16.mxu0 0
        %1185 = vmatpush1.bf16.msra.mxu0 0
        %1186 = vmatprep.subr.bf16.mxu0 0
        %1187 = vmatpush1.bf16.msra.mxu0 0
        %1188 = vmatprep.subr.bf16.mxu0 0
        %1189 = vmatpush1.bf16.msra.mxu0 0
        %1190 = vmatprep.subr.bf16.mxu0 0
        %1191 = vmatpush1.bf16.msra.mxu0 0
        %1192 = vmatprep.subr.bf16.mxu0 0
        %1193 = vmatpush1.bf16.msra.mxu0 0
        %1194 = vmatprep.mubr.bf16.mxu0 0
        %1195 = vmatmul.mubr.bf16.gmra.mrb[0].mxu0 %v409
        %v1196 = vpop.f32.mrb[0].mxu0
        %v1197 = vadd.f32 %v1112, %v1196
        %v1198 = vpop.f32.mrb[0].mxu0
        %v1199 = vpop.f32.mrb[0].mxu0
        %v1200 = vpop.f32.mrb[0].mxu0
        %1201 = vdwg.mxu0
        %s1202 = scalar_lea.vmem %s3, 64
        %v1203 = vld [vmem:[%s1202] sm:$0xf]
        %v1204 = vld [vmem:[%s1202 + $0x4] sm:$0xf]
        %v1205 = vld [vmem:[%s1202 + $0x8] sm:$0xf]
        %v1206 = vld [vmem:[%s1202 + $0xc] sm:$0xf]
        %v1207 = vld [vmem:[%s1202 + $0x10] sm:$0xf]
        %v1208 = vld [vmem:[%s1202 + $0x14] sm:$0xf]
        %v1209 = vld [vmem:[%s1202 + $0x18] sm:$0xf]
        %v1210 = vld [vmem:[%s1202 + $0x1c] sm:$0xf]
        %v1211 = vld [vmem:[%s1202 + $0x20] sm:$0xf]
        %v1212 = vld [vmem:[%s1202 + $0x24] sm:$0xf]
        %v1213 = vld [vmem:[%s1202 + $0x28] sm:$0xf]
        %v1214 = vld [vmem:[%s1202 + $0x2c] sm:$0xf]
        %v1215 = vld [vmem:[%s1202 + $0x30] sm:$0xf]
        %v1216 = vld [vmem:[%s1202 + $0x34] sm:$0xf]
        %v1217 = vld [vmem:[%s1202 + $0x38] sm:$0xf]
        %v1218 = vld [vmem:[%s1202 + $0x3c] sm:$0xf]
        %s1219 = scalar_lea.vmem %s6, 1
        %v1220 = vld [vmem:[%s1219] sm:$0x1]
        %v1222 = vlaneseq
        %v1223 = vshrl.u32 %v1222, 7
        %v1224 = vsub.s32 0, %v1223
        %v1225 = vrot.slane %v1220, %v1224
        %v1243 = vunpack.c.l.b16 %v1203
        %v1244 = vunpack.c.l.b16 %v1204
        %v1245 = vunpack.c.l.b16 %v1205
        %v1246 = vunpack.c.l.b16 %v1206
        %v1247 = vunpack.c.l.b16 %v1207
        %v1248 = vunpack.c.l.b16 %v1208
        %v1249 = vunpack.c.l.b16 %v1209
        %v1250 = vunpack.c.l.b16 %v1210
        %v1251 = vunpack.c.l.b16 %v1211
        %v1252 = vunpack.c.l.b16 %v1212
        %v1253 = vunpack.c.l.b16 %v1213
        %v1254 = vunpack.c.l.b16 %v1214
        %v1255 = vunpack.c.l.b16 %v1215
        %v1256 = vunpack.c.l.b16 %v1216
        %v1257 = vunpack.c.l.b16 %v1217
        %v1258 = vunpack.c.l.b16 %v1218
        %v1259 = vpack.c.b16 %v1244, %v1243
        %v1260 = vpack.c.b16 %v1246, %v1245
        %v1261 = vpack.c.b16 %v1248, %v1247
        %v1262 = vpack.c.b16 %v1250, %v1249
        %v1263 = vpack.c.b16 %v1252, %v1251
        %v1264 = vpack.c.b16 %v1254, %v1253
        %v1265 = vpack.c.b16 %v1256, %v1255
        %v1266 = vpack.c.b16 %v1258, %v1257
        %1275 = vmatprep.subr.bf16.mxu0 0
        %1276 = vmatpush1.bf16.msra.mxu0 %v1259
        %1277 = vmatprep.subr.bf16.mxu0 0
        %1278 = vmatpush1.bf16.msra.mxu0 %v1260
        %1279 = vmatprep.subr.bf16.mxu0 0
        %1280 = vmatpush1.bf16.msra.mxu0 %v1261
        %1281 = vmatprep.subr.bf16.mxu0 0
        %1282 = vmatpush1.bf16.msra.mxu0 %v1262
        %1283 = vmatprep.subr.bf16.mxu0 0
        %1284 = vmatpush1.bf16.msra.mxu0 %v1263
        %1285 = vmatprep.subr.bf16.mxu0 0
        %1286 = vmatpush1.bf16.msra.mxu0 %v1264
        %1287 = vmatprep.subr.bf16.mxu0 0
        %1288 = vmatpush1.bf16.msra.mxu0 %v1265
        %1289 = vmatprep.subr.bf16.mxu0 0
        %1290 = vmatpush1.bf16.msra.mxu0 %v1266
        %1291 = vmatprep.subr.bf16.mxu0 0
        %1292 = vmatpush1.bf16.msra.mxu0 0
        %1293 = vmatprep.subr.bf16.mxu0 0
        %1294 = vmatpush1.bf16.msra.mxu0 0
        %1295 = vmatprep.subr.bf16.mxu0 0
        %1296 = vmatpush1.bf16.msra.mxu0 0
        %1297 = vmatprep.subr.bf16.mxu0 0
        %1298 = vmatpush1.bf16.msra.mxu0 0
        %1299 = vmatprep.subr.bf16.mxu0 0
        %1300 = vmatpush1.bf16.msra.mxu0 0
        %1301 = vmatprep.subr.bf16.mxu0 0
        %1302 = vmatpush1.bf16.msra.mxu0 0
        %1303 = vmatprep.subr.bf16.mxu0 0
        %1304 = vmatpush1.bf16.msra.mxu0 0
        %1305 = vmatprep.subr.bf16.mxu0 0
        %1306 = vmatpush1.bf16.msra.mxu0 0
        %1307 = vmatprep.mubr.bf16.mxu0 0
        %1308 = vmatmul.mubr.bf16.gmra.mrb[0].mxu0 %v409
        %v1309 = vpop.f32.mrb[0].mxu0
        %v1310 = vadd.f32 %v1225, %v1309
        %v1311 = vpop.f32.mrb[0].mxu0
        %v1312 = vpop.f32.mrb[0].mxu0
        %v1313 = vpop.f32.mrb[0].mxu0
        %1314 = vdwg.mxu0
        %v1316 = vsel %vm759, %v1088, 0
        %v1319 = vsel %vm759, %v1197, 0
        %1321 = vmatprep.subr.mxu0 0.0
        %1322 = vmatpush1.xpose.msra.mxu0 %v1319
        %1323 = vmatprep.subr.mxu0 0.0
        %1324 = vmatpush1.xpose.msra.mxu0 0.0
        %1325 = vmatprep.subr.mxu0 0.0
        %1326 = vmatpush1.xpose.msra.mxu0 0.0
        %1327 = vmatprep.subr.mxu0 0.0
        %1328 = vmatpush1.xpose.msra.mxu0 0.0
        %1329 = vmatprep.subr.mxu0 0.0
        %1330 = vmatpush1.xpose.msra.mxu0 0.0
        %1331 = vmatprep.subr.mxu0 0.0
        %1332 = vmatpush1.xpose.msra.mxu0 0.0
        %1333 = vmatprep.subr.mxu0 0.0
        %1334 = vmatpush1.xpose.msra.mxu0 0.0
        %1335 = vmatprep.subr.mxu0 0.0
        %1336 = vmatpush1.xpose.msra.mxu0 0.0
        %1337 = vmatprep.subr.mxu0 0.0
        %1338 = vmatpush1.xpose.msra.mxu0 0.0
        %1339 = vmatprep.subr.mxu0 0.0
        %1340 = vmatpush1.xpose.msra.mxu0 0.0
        %1341 = vmatprep.subr.mxu0 0.0
        %1342 = vmatpush1.xpose.msra.mxu0 0.0
        %1343 = vmatprep.subr.mxu0 0.0
        %1344 = vmatpush1.xpose.msra.mxu0 0.0
        %1345 = vmatprep.subr.mxu0 0.0
        %1346 = vmatpush1.xpose.msra.mxu0 0.0
        %1347 = vmatprep.subr.mxu0 0.0
        %1348 = vmatpush1.xpose.msra.mxu0 0.0
        %1349 = vmatprep.subr.mxu0 0.0
        %1350 = vmatpush1.xpose.msra.mxu0 0.0
        %1351 = vmatprep.subr.mxu0 0.0
        %1352 = vmatpush1.xpose.msra.mxu0 0.0
        %1353 = vmatprep.subr.mxu0 0.0
        %1354 = vmatpush1.xpose.msra.mxu0 0.0
        %1355 = vmatprep.subr.mxu0 0.0
        %1356 = vmatpush1.xpose.msra.mxu0 0.0
        %1357 = vmatprep.subr.mxu0 0.0
        %1358 = vmatpush1.xpose.msra.mxu0 0.0
        %1359 = vmatprep.subr.mxu0 0.0
        %1360 = vmatpush1.xpose.msra.mxu0 0.0
        %1361 = vmatprep.subr.mxu0 0.0
        %1362 = vmatpush1.xpose.msra.mxu0 0.0
        %1363 = vmatprep.subr.mxu0 0.0
        %1364 = vmatpush1.xpose.msra.mxu0 0.0
        %1365 = vmatprep.subr.mxu0 0.0
        %1366 = vmatpush1.xpose.msra.mxu0 0.0
        %1367 = vmatprep.subr.mxu0 0.0
        %1368 = vmatpush1.xpose.msra.mxu0 0.0
        %1369 = vmatprep.subr.mxu0 0.0
        %1370 = vmatpush1.xpose.msra.mxu0 0.0
        %1371 = vmatprep.subr.mxu0 0.0
        %1372 = vmatpush1.xpose.msra.mxu0 0.0
        %1373 = vmatprep.subr.mxu0 0.0
        %1374 = vmatpush1.xpose.msra.mxu0 0.0
        %1375 = vmatprep.subr.mxu0 0.0
        %1376 = vmatpush1.xpose.msra.mxu0 0.0
        %1377 = vmatprep.subr.mxu0 0.0
        %1378 = vmatpush1.xpose.msra.mxu0 0.0
        %1379 = vmatprep.subr.mxu0 0.0
        %1380 = vmatpush1.xpose.msra.mxu0 0.0
        %1381 = vmatprep.subr.mxu0 0.0
        %1382 = vmatpush1.xpose.msra.mxu0 0.0
        %1383 = vmatprep.subr.mxu0 0.0
        %1384 = vmatpush1.xpose.msra.mxu0 0.0
        %1385 = vmatprep.mubr.f32.mxu0 0.0
        %1386 = vmatmul.mubr.f32.gmra.mrb[0].mxu0 %v1316
        %v1387 = vpop.f32.mrb[0].mxu0
        %v1388 = vadd.f32 %v757, %v1387
        %v1389 = vpop.f32.mrb[0].mxu0
        %1390 = vdwg.mxu0
        %v1391 = vsel %vm836, %v1388, -inf
        %1392 = vmax.xlane.f32.xlu0 %v1391
        %v1393 = vpop.xlane.xlu0 %1392
        %v1394 = vsub.f32 %v1388, %v1393
        %v1395 = vmul.f32 %v1394, 1.442695
        %v1396 = vpow.pop %v1395
        %v1397 = vsel %vm836, %v1396, 0.0
        %1398 = vadd.xlane.f32.xlu0 %v1397
        %v1399 = vpop.xlane.xlu0 %1398
        %v1400 = vrcp.pop %v1399
        %v1401 = vmul.f32 %v1396, %v1400
        %v1402 = vadd.f32 %v848, %v1401
        %v1404 = vsel %vm836, %v1401, 0
        %1406 = vmatprep.subr.mxu0 0.0
        %1407 = vmatpush1.msra.mxu0 %v1310
        %1408 = vmatprep.subr.mxu0 0.0
        %1409 = vmatpush1.msra.mxu0 0.0
        %1410 = vmatprep.subr.mxu0 0.0
        %1411 = vmatpush1.msra.mxu0 0.0
        %1412 = vmatprep.subr.mxu0 0.0
        %1413 = vmatpush1.msra.mxu0 0.0
        %1414 = vmatprep.subr.mxu0 0.0
        %1415 = vmatpush1.msra.mxu0 0.0
        %1416 = vmatprep.subr.mxu0 0.0
        %1417 = vmatpush1.msra.mxu0 0.0
        %1418 = vmatprep.subr.mxu0 0.0
        %1419 = vmatpush1.msra.mxu0 0.0
        %1420 = vmatprep.subr.mxu0 0.0
        %1421 = vmatpush1.msra.mxu0 0.0
        %1422 = vmatprep.subr.mxu0 0.0
        %1423 = vmatpush1.msra.mxu0 0.0
        %1424 = vmatprep.subr.mxu0 0.0
        %1425 = vmatpush1.msra.mxu0 0.0
        %1426 = vmatprep.subr.mxu0 0.0
        %1427 = vmatpush1.msra.mxu0 0.0
        %1428 = vmatprep.subr.mxu0 0.0
        %1429 = vmatpush1.msra.mxu0 0.0
        %1430 = vmatprep.subr.mxu0 0.0
        %1431 = vmatpush1.msra.mxu0 0.0
        %1432 = vmatprep.subr.mxu0 0.0
        %1433 = vmatpush1.msra.mxu0 0.0
        %1434 = vmatprep.subr.mxu0 0.0
        %1435 = vmatpush1.msra.mxu0 0.0
        %1436 = vmatprep.subr.mxu0 0.0
        %1437 = vmatpush1.msra.mxu0 0.0
        %1438 = vmatprep.subr.mxu0 0.0
        %1439 = vmatpush1.msra.mxu0 0.0
        %1440 = vmatprep.subr.mxu0 0.0
        %1441 = vmatpush1.msra.mxu0 0.0
        %1442 = vmatprep.subr.mxu0 0.0
        %1443 = vmatpush1.msra.mxu0 0.0
        %1444 = vmatprep.subr.mxu0 0.0
        %1445 = vmatpush1.msra.mxu0 0.0
        %1446 = vmatprep.subr.mxu0 0.0
        %1447 = vmatpush1.msra.mxu0 0.0
        %1448 = vmatprep.subr.mxu0 0.0
        %1449 = vmatpush1.msra.mxu0 0.0
        %1450 = vmatprep.subr.mxu0 0.0
        %1451 = vmatpush1.msra.mxu0 0.0
        %1452 = vmatprep.subr.mxu0 0.0
        %1453 = vmatpush1.msra.mxu0 0.0
        %1454 = vmatprep.subr.mxu0 0.0
        %1455 = vmatpush1.msra.mxu0 0.0
        %1456 = vmatprep.subr.mxu0 0.0
        %1457 = vmatpush1.msra.mxu0 0.0
        %1458 = vmatprep.subr.mxu0 0.0
        %1459 = vmatpush1.msra.mxu0 0.0
        %1460 = vmatprep.subr.mxu0 0.0
        %1461 = vmatpush1.msra.mxu0 0.0
        %1462 = vmatprep.subr.mxu0 0.0
        %1463 = vmatpush1.msra.mxu0 0.0
        %1464 = vmatprep.subr.mxu0 0.0
        %1465 = vmatpush1.msra.mxu0 0.0
        %1466 = vmatprep.subr.mxu0 0.0
        %1467 = vmatpush1.msra.mxu0 0.0
        %1468 = vmatprep.subr.mxu0 0.0
        %1469 = vmatpush1.msra.mxu0 0.0
        %1470 = vmatprep.mubr.f32.mxu0 0.0
        %1471 = vmatmul.mubr.f32.gmra.mrb[0].mxu0 %v1404
        %v1472 = vpop.f32.mrb[0].mxu0
        %v1473 = vadd.f32 0.0, %v1472
        %v1474 = vpop.f32.mrb[0].mxu0
        %1475 = vdwg.mxu0
        %v1476 = vpack.c.bf16 %v1473, %v1473
        %s1477 = scalar_lea.vmem %s7, 8
        %v1478 = vld [vmem:[%s1477] sm:$0xf]
        %v1479 = vld [vmem:[%s1477 + $0x4] sm:$0xf]
        %v1482 = vunpack.c.l.b16 %v1478
        %v1483 = vunpack.c.l.b16 %v1479
        %v1484 = vpack.c.b16 %v1483, %v1482
        %v1487 = vsel %vm759, %v1476, 0
        %1489 = vmatprep.subr.bf16.mxu0 0
        %1490 = vmatpush1.bf16.msra.mxu0 %v1484
        %1491 = vmatprep.subr.bf16.mxu0 0
        %1492 = vmatpush1.bf16.msra.mxu0 0
        %1493 = vmatprep.subr.bf16.mxu0 0
        %1494 = vmatpush1.bf16.msra.mxu0 0
        %1495 = vmatprep.subr.bf16.mxu0 0
        %1496 = vmatpush1.bf16.msra.mxu0 0
        %1497 = vmatprep.subr.bf16.mxu0 0
        %1498 = vmatpush1.bf16.msra.mxu0 0
        %1499 = vmatprep.subr.bf16.mxu0 0
        %1500 = vmatpush1.bf16.msra.mxu0 0
        %1501 = vmatprep.subr.bf16.mxu0 0
        %1502 = vmatpush1.bf16.msra.mxu0 0
        %1503 = vmatprep.subr.bf16.mxu0 0
        %1504 = vmatpush1.bf16.msra.mxu0 0
        %1505 = vmatprep.subr.bf16.mxu0 0
        %1506 = vmatpush1.bf16.msra.mxu0 0
        %1507 = vmatprep.subr.bf16.mxu0 0
        %1508 = vmatpush1.bf16.msra.mxu0 0
        %1509 = vmatprep.subr.bf16.mxu0 0
        %1510 = vmatpush1.bf16.msra.mxu0 0
        %1511 = vmatprep.subr.bf16.mxu0 0
        %1512 = vmatpush1.bf16.msra.mxu0 0
        %1513 = vmatprep.subr.bf16.mxu0 0
        %1514 = vmatpush1.bf16.msra.mxu0 0
        %1515 = vmatprep.subr.bf16.mxu0 0
        %1516 = vmatpush1.bf16.msra.mxu0 0
        %1517 = vmatprep.subr.bf16.mxu0 0
        %1518 = vmatpush1.bf16.msra.mxu0 0
        %1519 = vmatprep.subr.bf16.mxu0 0
        %1520 = vmatpush1.bf16.msra.mxu0 0
        %1521 = vmatprep.mubr.bf16.mxu0 0
        %1522 = vmatmul.mubr.bf16.gmra.mrb[0].mxu0 %v1487
        %v1523 = vpop.f32.mrb[0].mxu0
        %v1524 = vadd.f32 0.0, %v1523
        %v1525 = vpop.f32.mrb[0].mxu0
        %v1526 = vpop.f32.mrb[0].mxu0
        %v1527 = vpop.f32.mrb[0].mxu0
        %1528 = vdwg.mxu0
        %v1529 = vadd.f32 %v974, %v1524
        %s1530 = scalar_lea.vmem %s1, 128
        %v1531 = vld [vmem:[%s1530] sm:$0xf]
        %v1532 = vld [vmem:[%s1530 + $0x4] sm:$0xf]
        %v1533 = vld [vmem:[%s1530 + $0x8] sm:$0xf]
        %v1534 = vld [vmem:[%s1530 + $0xc] sm:$0xf]
        %v1535 = vld [vmem:[%s1530 + $0x10] sm:$0xf]
        %v1536 = vld [vmem:[%s1530 + $0x14] sm:$0xf]
        %v1537 = vld [vmem:[%s1530 + $0x18] sm:$0xf]
        %v1538 = vld [vmem:[%s1530 + $0x1c] sm:$0xf]
        %v1539 = vld [vmem:[%s1530 + $0x20] sm:$0xf]
        %v1540 = vld [vmem:[%s1530 + $0x24] sm:$0xf]
        %v1541 = vld [vmem:[%s1530 + $0x28] sm:$0xf]
        %v1542 = vld [vmem:[%s1530 + $0x2c] sm:$0xf]
        %v1543 = vld [vmem:[%s1530 + $0x30] sm:$0xf]
        %v1544 = vld [vmem:[%s1530 + $0x34] sm:$0xf]
        %v1545 = vld [vmem:[%s1530 + $0x38] sm:$0xf]
        %v1546 = vld [vmem:[%s1530 + $0x3c] sm:$0xf]
        %s1547 = scalar_lea.vmem %s4, 2
        %v1548 = vld [vmem:[%s1547] sm:$0x1]
        %v1550 = vlaneseq
        %v1551 = vshrl.u32 %v1550, 7
        %v1552 = vsub.s32 0, %v1551
        %v1553 = vrot.slane %v1548, %v1552
        %v1571 = vunpack.c.l.b16 %v1531
        %v1572 = vunpack.c.l.b16 %v1532
        %v1573 = vunpack.c.l.b16 %v1533
        %v1574 = vunpack.c.l.b16 %v1534
        %v1575 = vunpack.c.l.b16 %v1535
        %v1576 = vunpack.c.l.b16 %v1536
        %v1577 = vunpack.c.l.b16 %v1537
        %v1578 = vunpack.c.l.b16 %v1538
        %v1579 = vunpack.c.l.b16 %v1539
        %v1580 = vunpack.c.l.b16 %v1540
        %v1581 = vunpack.c.l.b16 %v1541
        %v1582 = vunpack.c.l.b16 %v1542
        %v1583 = vunpack.c.l.b16 %v1543
        %v1584 = vunpack.c.l.b16 %v1544
        %v1585 = vunpack.c.l.b16 %v1545
        %v1586 = vunpack.c.l.b16 %v1546
        %v1587 = vpack.c.b16 %v1572, %v1571
        %v1588 = vpack.c.b16 %v1574, %v1573
        %v1589 = vpack.c.b16 %v1576, %v1575
        %v1590 = vpack.c.b16 %v1578, %v1577
        %v1591 = vpack.c.b16 %v1580, %v1579
        %v1592 = vpack.c.b16 %v1582, %v1581
        %v1593 = vpack.c.b16 %v1584, %v1583
        %v1594 = vpack.c.b16 %v1586, %v1585
        %1603 = vmatprep.subr.bf16.mxu0 0
        %1604 = vmatpush1.bf16.msra.mxu0 %v1587
        %1605 = vmatprep.subr.bf16.mxu0 0
        %1606 = vmatpush1.bf16.msra.mxu0 %v1588
        %1607 = vmatprep.subr.bf16.mxu0 0
        %1608 = vmatpush1.bf16.msra.mxu0 %v1589
        %1609 = vmatprep.subr.bf16.mxu0 0
        %1610 = vmatpush1.bf16.msra.mxu0 %v1590
        %1611 = vmatprep.subr.bf16.mxu0 0
        %1612 = vmatpush1.bf16.msra.mxu0 %v1591
        %1613 = vmatprep.subr.bf16.mxu0 0
        %1614 = vmatpush1.bf16.msra.mxu0 %v1592
        %1615 = vmatprep.subr.bf16.mxu0 0
        %1616 = vmatpush1.bf16.msra.mxu0 %v1593
        %1617 = vmatprep.subr.bf16.mxu0 0
        %1618 = vmatpush1.bf16.msra.mxu0 %v1594
        %1619 = vmatprep.subr.bf16.mxu0 0
        %1620 = vmatpush1.bf16.msra.mxu0 0
        %1621 = vmatprep.subr.bf16.mxu0 0
        %1622 = vmatpush1.bf16.msra.mxu0 0
        %1623 = vmatprep.subr.bf16.mxu0 0
        %1624 = vmatpush1.bf16.msra.mxu0 0
        %1625 = vmatprep.subr.bf16.mxu0 0
        %1626 = vmatpush1.bf16.msra.mxu0 0
        %1627 = vmatprep.subr.bf16.mxu0 0
        %1628 = vmatpush1.bf16.msra.mxu0 0
        %1629 = vmatprep.subr.bf16.mxu0 0
        %1630 = vmatpush1.bf16.msra.mxu0 0
        %1631 = vmatprep.subr.bf16.mxu0 0
        %1632 = vmatpush1.bf16.msra.mxu0 0
        %1633 = vmatprep.subr.bf16.mxu0 0
        %1634 = vmatpush1.bf16.msra.mxu0 0
        %1635 = vmatprep.mubr.bf16.mxu0 0
        %1636 = vmatmul.mubr.bf16.gmra.mrb[0].mxu0 %v409
        %v1637 = vpop.f32.mrb[0].mxu0
        %v1638 = vadd.f32 %v1553, %v1637
        %v1639 = vpop.f32.mrb[0].mxu0
        %v1640 = vpop.f32.mrb[0].mxu0
        %v1641 = vpop.f32.mrb[0].mxu0
        %1642 = vdwg.mxu0
        %v1643 = vmul.f32 %v1638, 0.25
        %s1644 = scalar_lea.vmem %s2, 128
        %v1645 = vld [vmem:[%s1644] sm:$0xf]
        %v1646 = vld [vmem:[%s1644 + $0x4] sm:$0xf]
        %v1647 = vld [vmem:[%s1644 + $0x8] sm:$0xf]
        %v1648 = vld [vmem:[%s1644 + $0xc] sm:$0xf]
        %v1649 = vld [vmem:[%s1644 + $0x10] sm:$0xf]
        %v1650 = vld [vmem:[%s1644 + $0x14] sm:$0xf]
        %v1651 = vld [vmem:[%s1644 + $0x18] sm:$0xf]
        %v1652 = vld [vmem:[%s1644 + $0x1c] sm:$0xf]
        %v1653 = vld [vmem:[%s1644 + $0x20] sm:$0xf]
        %v1654 = vld [vmem:[%s1644 + $0x24] sm:$0xf]
        %v1655 = vld [vmem:[%s1644 + $0x28] sm:$0xf]
        %v1656 = vld [vmem:[%s1644 + $0x2c] sm:$0xf]
        %v1657 = vld [vmem:[%s1644 + $0x30] sm:$0xf]
        %v1658 = vld [vmem:[%s1644 + $0x34] sm:$0xf]
        %v1659 = vld [vmem:[%s1644 + $0x38] sm:$0xf]
        %v1660 = vld [vmem:[%s1644 + $0x3c] sm:$0xf]
        %s1661 = scalar_lea.vmem %s5, 2
        %v1662 = vld [vmem:[%s1661] sm:$0x1]
        %v1664 = vlaneseq
        %v1665 = vshrl.u32 %v1664, 7
        %v1666 = vsub.s32 0, %v1665
        %v1667 = vrot.slane %v1662, %v1666
        %v1685 = vunpack.c.l.b16 %v1645
        %v1686 = vunpack.c.l.b16 %v1646
        %v1687 = vunpack.c.l.b16 %v1647
        %v1688 = vunpack.c.l.b16 %v1648
        %v1689 = vunpack.c.l.b16 %v1649
        %v1690 = vunpack.c.l.b16 %v1650
        %v1691 = vunpack.c.l.b16 %v1651
        %v1692 = vunpack.c.l.b16 %v1652
        %v1693 = vunpack.c.l.b16 %v1653
        %v1694 = vunpack.c.l.b16 %v1654
        %v1695 = vunpack.c.l.b16 %v1655
        %v1696 = vunpack.c.l.b16 %v1656
        %v1697 = vunpack.c.l.b16 %v1657
        %v1698 = vunpack.c.l.b16 %v1658
        %v1699 = vunpack.c.l.b16 %v1659
        %v1700 = vunpack.c.l.b16 %v1660
        %v1701 = vpack.c.b16 %v1686, %v1685
        %v1702 = vpack.c.b16 %v1688, %v1687
        %v1703 = vpack.c.b16 %v1690, %v1689
        %v1704 = vpack.c.b16 %v1692, %v1691
        %v1705 = vpack.c.b16 %v1694, %v1693
        %v1706 = vpack.c.b16 %v1696, %v1695
        %v1707 = vpack.c.b16 %v1698, %v1697
        %v1708 = vpack.c.b16 %v1700, %v1699
        %1717 = vmatprep.subr.bf16.mxu0 0
        %1718 = vmatpush1.bf16.msra.mxu0 %v1701
        %1719 = vmatprep.subr.bf16.mxu0 0
        %1720 = vmatpush1.bf16.msra.mxu0 %v1702
        %1721 = vmatprep.subr.bf16.mxu0 0
        %1722 = vmatpush1.bf16.msra.mxu0 %v1703
        %1723 = vmatprep.subr.bf16.mxu0 0
        %1724 = vmatpush1.bf16.msra.mxu0 %v1704
        %1725 = vmatprep.subr.bf16.mxu0 0
        %1726 = vmatpush1.bf16.msra.mxu0 %v1705
        %1727 = vmatprep.subr.bf16.mxu0 0
        %1728 = vmatpush1.bf16.msra.mxu0 %v1706
        %1729 = vmatprep.subr.bf16.mxu0 0
        %1730 = vmatpush1.bf16.msra.mxu0 %v1707
        %1731 = vmatprep.subr.bf16.mxu0 0
        %1732 = vmatpush1.bf16.msra.mxu0 %v1708
        %1733 = vmatprep.subr.bf16.mxu0 0
        %1734 = vmatpush1.bf16.msra.mxu0 0
        %1735 = vmatprep.subr.bf16.mxu0 0
        %1736 = vmatpush1.bf16.msra.mxu0 0
        %1737 = vmatprep.subr.bf16.mxu0 0
        %1738 = vmatpush1.bf16.msra.mxu0 0
        %1739 = vmatprep.subr.bf16.mxu0 0
        %1740 = vmatpush1.bf16.msra.mxu0 0
        %1741 = vmatprep.subr.bf16.mxu0 0
        %1742 = vmatpush1.bf16.msra.mxu0 0
        %1743 = vmatprep.subr.bf16.mxu0 0
        %1744 = vmatpush1.bf16.msra.mxu0 0
        %1745 = vmatprep.subr.bf16.mxu0 0
        %1746 = vmatpush1.bf16.msra.mxu0 0
        %1747 = vmatprep.subr.bf16.mxu0 0
        %1748 = vmatpush1.bf16.msra.mxu0 0
        %1749 = vmatprep.mubr.bf16.mxu0 0
        %1750 = vmatmul.mubr.bf16.gmra.mrb[0].mxu0 %v409
        %v1751 = vpop.f32.mrb[0].mxu0
        %v1752 = vadd.f32 %v1667, %v1751
        %v1753 = vpop.f32.mrb[0].mxu0
        %v1754 = vpop.f32.mrb[0].mxu0
        %v1755 = vpop.f32.mrb[0].mxu0
        %1756 = vdwg.mxu0
        %s1757 = scalar_lea.vmem %s3, 128
        %v1758 = vld [vmem:[%s1757] sm:$0xf]
        %v1759 = vld [vmem:[%s1757 + $0x4] sm:$0xf]
        %v1760 = vld [vmem:[%s1757 + $0x8] sm:$0xf]
        %v1761 = vld [vmem:[%s1757 + $0xc] sm:$0xf]
        %v1762 = vld [vmem:[%s1757 + $0x10] sm:$0xf]
        %v1763 = vld [vmem:[%s1757 + $0x14] sm:$0xf]
        %v1764 = vld [vmem:[%s1757 + $0x18] sm:$0xf]
        %v1765 = vld [vmem:[%s1757 + $0x1c] sm:$0xf]
        %v1766 = vld [vmem:[%s1757 + $0x20] sm:$0xf]
        %v1767 = vld [vmem:[%s1757 + $0x24] sm:$0xf]
        %v1768 = vld [vmem:[%s1757 + $0x28] sm:$0xf]
        %v1769 = vld [vmem:[%s1757 + $0x2c] sm:$0xf]
        %v1770 = vld [vmem:[%s1757 + $0x30] sm:$0xf]
        %v1771 = vld [vmem:[%s1757 + $0x34] sm:$0xf]
        %v1772 = vld [vmem:[%s1757 + $0x38] sm:$0xf]
        %v1773 = vld [vmem:[%s1757 + $0x3c] sm:$0xf]
        %s1774 = scalar_lea.vmem %s6, 2
        %v1775 = vld [vmem:[%s1774] sm:$0x1]
        %v1777 = vlaneseq
        %v1778 = vshrl.u32 %v1777, 7
        %v1779 = vsub.s32 0, %v1778
        %v1780 = vrot.slane %v1775, %v1779
        %v1798 = vunpack.c.l.b16 %v1758
        %v1799 = vunpack.c.l.b16 %v1759
        %v1800 = vunpack.c.l.b16 %v1760
        %v1801 = vunpack.c.l.b16 %v1761
        %v1802 = vunpack.c.l.b16 %v1762
        %v1803 = vunpack.c.l.b16 %v1763
        %v1804 = vunpack.c.l.b16 %v1764
        %v1805 = vunpack.c.l.b16 %v1765
        %v1806 = vunpack.c.l.b16 %v1766
        %v1807 = vunpack.c.l.b16 %v1767
        %v1808 = vunpack.c.l.b16 %v1768
        %v1809 = vunpack.c.l.b16 %v1769
        %v1810 = vunpack.c.l.b16 %v1770
        %v1811 = vunpack.c.l.b16 %v1771
        %v1812 = vunpack.c.l.b16 %v1772
        %v1813 = vunpack.c.l.b16 %v1773
        %v1814 = vpack.c.b16 %v1799, %v1798
        %v1815 = vpack.c.b16 %v1801, %v1800
        %v1816 = vpack.c.b16 %v1803, %v1802
        %v1817 = vpack.c.b16 %v1805, %v1804
        %v1818 = vpack.c.b16 %v1807, %v1806
        %v1819 = vpack.c.b16 %v1809, %v1808
        %v1820 = vpack.c.b16 %v1811, %v1810
        %v1821 = vpack.c.b16 %v1813, %v1812
        %1830 = vmatprep.subr.bf16.mxu0 0
        %1831 = vmatpush1.bf16.msra.mxu0 %v1814
        %1832 = vmatprep.subr.bf16.mxu0 0
        %1833 = vmatpush1.bf16.msra.mxu0 %v1815
        %1834 = vmatprep.subr.bf16.mxu0 0
        %1835 = vmatpush1.bf16.msra.mxu0 %v1816
        %1836 = vmatprep.subr.bf16.mxu0 0
        %1837 = vmatpush1.bf16.msra.mxu0 %v1817
        %1838 = vmatprep.subr.bf16.mxu0 0
        %1839 = vmatpush1.bf16.msra.mxu0 %v1818
        %1840 = vmatprep.subr.bf16.mxu0 0
        %1841 = vmatpush1.bf16.msra.mxu0 %v1819
        %1842 = vmatprep.subr.bf16.mxu0 0
        %1843 = vmatpush1.bf16.msra.mxu0 %v1820
        %1844 = vmatprep.subr.bf16.mxu0 0
        %1845 = vmatpush1.bf16.msra.mxu0 %v1821
        %1846 = vmatprep.subr.bf16.mxu0 0
        %1847 = vmatpush1.bf16.msra.mxu0 0
        %1848 = vmatprep.subr.bf16.mxu0 0
        %1849 = vmatpush1.bf16.msra.mxu0 0
        %1850 = vmatprep.subr.bf16.mxu0 0
        %1851 = vmatpush1.bf16.msra.mxu0 0
        %1852 = vmatprep.subr.bf16.mxu0 0
        %1853 = vmatpush1.bf16.msra.mxu0 0
        %1854 = vmatprep.subr.bf16.mxu0 0
        %1855 = vmatpush1.bf16.msra.mxu0 0
        %1856 = vmatprep.subr.bf16.mxu0 0
        %1857 = vmatpush1.bf16.msra.mxu0 0
        %1858 = vmatprep.subr.bf16.mxu0 0
        %1859 = vmatpush1.bf16.msra.mxu0 0
        %1860 = vmatprep.subr.bf16.mxu0 0
        %1861 = vmatpush1.bf16.msra.mxu0 0
        %1862 = vmatprep.mubr.bf16.mxu0 0
        %1863 = vmatmul.mubr.bf16.gmra.mrb[0].mxu0 %v409
        %v1864 = vpop.f32.mrb[0].mxu0
        %v1865 = vadd.f32 %v1780, %v1864
        %v1866 = vpop.f32.mrb[0].mxu0
        %v1867 = vpop.f32.mrb[0].mxu0
        %v1868 = vpop.f32.mrb[0].mxu0
        %1869 = vdwg.mxu0
        %v1871 = vsel %vm759, %v1643, 0
        %v1874 = vsel %vm759, %v1752, 0
        %1876 = vmatprep.subr.mxu0 0.0
        %1877 = vmatpush1.xpose.msra.mxu0 %v1874
        %1878 = vmatprep.subr.mxu0 0.0
        %1879 = vmatpush1.xpose.msra.mxu0 0.0
        %1880 = vmatprep.subr.mxu0 0.0
        %1881 = vmatpush1.xpose.msra.mxu0 0.0
        %1882 = vmatprep.subr.mxu0 0.0
        %1883 = vmatpush1.xpose.msra.mxu0 0.0
        %1884 = vmatprep.subr.mxu0 0.0
        %1885 = vmatpush1.xpose.msra.mxu0 0.0
        %1886 = vmatprep.subr.mxu0 0.0
        %1887 = vmatpush1.xpose.msra.mxu0 0.0
        %1888 = vmatprep.subr.mxu0 0.0
        %1889 = vmatpush1.xpose.msra.mxu0 0.0
        %1890 = vmatprep.subr.mxu0 0.0
        %1891 = vmatpush1.xpose.msra.mxu0 0.0
        %1892 = vmatprep.subr.mxu0 0.0
        %1893 = vmatpush1.xpose.msra.mxu0 0.0
        %1894 = vmatprep.subr.mxu0 0.0
        %1895 = vmatpush1.xpose.msra.mxu0 0.0
        %1896 = vmatprep.subr.mxu0 0.0
        %1897 = vmatpush1.xpose.msra.mxu0 0.0
        %1898 = vmatprep.subr.mxu0 0.0
        %1899 = vmatpush1.xpose.msra.mxu0 0.0
        %1900 = vmatprep.subr.mxu0 0.0
        %1901 = vmatpush1.xpose.msra.mxu0 0.0
        %1902 = vmatprep.subr.mxu0 0.0
        %1903 = vmatpush1.xpose.msra.mxu0 0.0
        %1904 = vmatprep.subr.mxu0 0.0
        %1905 = vmatpush1.xpose.msra.mxu0 0.0
        %1906 = vmatprep.subr.mxu0 0.0
        %1907 = vmatpush1.xpose.msra.mxu0 0.0
        %1908 = vmatprep.subr.mxu0 0.0
        %1909 = vmatpush1.xpose.msra.mxu0 0.0
        %1910 = vmatprep.subr.mxu0 0.0
        %1911 = vmatpush1.xpose.msra.mxu0 0.0
        %1912 = vmatprep.subr.mxu0 0.0
        %1913 = vmatpush1.xpose.msra.mxu0 0.0
        %1914 = vmatprep.subr.mxu0 0.0
        %1915 = vmatpush1.xpose.msra.mxu0 0.0
        %1916 = vmatprep.subr.mxu0 0.0
        %1917 = vmatpush1.xpose.msra.mxu0 0.0
        %1918 = vmatprep.subr.mxu0 0.0
        %1919 = vmatpush1.xpose.msra.mxu0 0.0
        %1920 = vmatprep.subr.mxu0 0.0
        %1921 = vmatpush1.xpose.msra.mxu0 0.0
        %1922 = vmatprep.subr.mxu0 0.0
        %1923 = vmatpush1.xpose.msra.mxu0 0.0
        %1924 = vmatprep.subr.mxu0 0.0
        %1925 = vmatpush1.xpose.msra.mxu0 0.0
        %1926 = vmatprep.subr.mxu0 0.0
        %1927 = vmatpush1.xpose.msra.mxu0 0.0
        %1928 = vmatprep.subr.mxu0 0.0
        %1929 = vmatpush1.xpose.msra.mxu0 0.0
        %1930 = vmatprep.subr.mxu0 0.0
        %1931 = vmatpush1.xpose.msra.mxu0 0.0
        %1932 = vmatprep.subr.mxu0 0.0
        %1933 = vmatpush1.xpose.msra.mxu0 0.0
        %1934 = vmatprep.subr.mxu0 0.0
        %1935 = vmatpush1.xpose.msra.mxu0 0.0
        %1936 = vmatprep.subr.mxu0 0.0
        %1937 = vmatpush1.xpose.msra.mxu0 0.0
        %1938 = vmatprep.subr.mxu0 0.0
        %1939 = vmatpush1.xpose.msra.mxu0 0.0
        %1940 = vmatprep.mubr.f32.mxu0 0.0
        %1941 = vmatmul.mubr.f32.gmra.mrb[0].mxu0 %v1871
        %v1942 = vpop.f32.mrb[0].mxu0
        %v1943 = vadd.f32 %v757, %v1942
        %v1944 = vpop.f32.mrb[0].mxu0
        %1945 = vdwg.mxu0
        %v1946 = vsel %vm836, %v1943, -inf
        %1947 = vmax.xlane.f32.xlu0 %v1946
        %v1948 = vpop.xlane.xlu0 %1947
        %v1949 = vsub.f32 %v1943, %v1948
        %v1950 = vmul.f32 %v1949, 1.442695
        %v1951 = vpow.pop %v1950
        %v1952 = vsel %vm836, %v1951, 0.0
        %1953 = vadd.xlane.f32.xlu0 %v1952
        %v1954 = vpop.xlane.xlu0 %1953
        %v1955 = vrcp.pop %v1954
        %v1956 = vmul.f32 %v1951, %v1955
        %v1957 = vadd.f32 %v1402, %v1956
        %v1959 = vsel %vm836, %v1956, 0
        %1961 = vmatprep.subr.mxu0 0.0
        %1962 = vmatpush1.msra.mxu0 %v1865
        %1963 = vmatprep.subr.mxu0 0.0
        %1964 = vmatpush1.msra.mxu0 0.0
        %1965 = vmatprep.subr.mxu0 0.0
        %1966 = vmatpush1.msra.mxu0 0.0
        %1967 = vmatprep.subr.mxu0 0.0
        %1968 = vmatpush1.msra.mxu0 0.0
        %1969 = vmatprep.subr.mxu0 0.0
        %1970 = vmatpush1.msra.mxu0 0.0
        %1971 = vmatprep.subr.mxu0 0.0
        %1972 = vmatpush1.msra.mxu0 0.0
        %1973 = vmatprep.subr.mxu0 0.0
        %1974 = vmatpush1.msra.mxu0 0.0
        %1975 = vmatprep.subr.mxu0 0.0
        %1976 = vmatpush1.msra.mxu0 0.0
        %1977 = vmatprep.subr.mxu0 0.0
        %1978 = vmatpush1.msra.mxu0 0.0
        %1979 = vmatprep.subr.mxu0 0.0
        %1980 = vmatpush1.msra.mxu0 0.0
        %1981 = vmatprep.subr.mxu0 0.0
        %1982 = vmatpush1.msra.mxu0 0.0
        %1983 = vmatprep.subr.mxu0 0.0
        %1984 = vmatpush1.msra.mxu0 0.0
        %1985 = vmatprep.subr.mxu0 0.0
        %1986 = vmatpush1.msra.mxu0 0.0
        %1987 = vmatprep.subr.mxu0 0.0
        %1988 = vmatpush1.msra.mxu0 0.0
        %1989 = vmatprep.subr.mxu0 0.0
        %1990 = vmatpush1.msra.mxu0 0.0
        %1991 = vmatprep.subr.mxu0 0.0
        %1992 = vmatpush1.msra.mxu0 0.0
        %1993 = vmatprep.subr.mxu0 0.0
        %1994 = vmatpush1.msra.mxu0 0.0
        %1995 = vmatprep.subr.mxu0 0.0
        %1996 = vmatpush1.msra.mxu0 0.0
        %1997 = vmatprep.subr.mxu0 0.0
        %1998 = vmatpush1.msra.mxu0 0.0
        %1999 = vmatprep.subr.mxu0 0.0
        %2000 = vmatpush1.msra.mxu0 0.0
        %2001 = vmatprep.subr.mxu0 0.0
        %2002 = vmatpush1.msra.mxu0 0.0
        %2003 = vmatprep.subr.mxu0 0.0
        %2004 = vmatpush1.msra.mxu0 0.0
        %2005 = vmatprep.subr.mxu0 0.0
        %2006 = vmatpush1.msra.mxu0 0.0
        %2007 = vmatprep.subr.mxu0 0.0
        %2008 = vmatpush1.msra.mxu0 0.0
        %2009 = vmatprep.subr.mxu0 0.0
        %2010 = vmatpush1.msra.mxu0 0.0
        %2011 = vmatprep.subr.mxu0 0.0
        %2012 = vmatpush1.msra.mxu0 0.0
        %2013 = vmatprep.subr.mxu0 0.0
        %2014 = vmatpush1.msra.mxu0 0.0
        %2015 = vmatprep.subr.mxu0 0.0
        %2016 = vmatpush1.msra.mxu0 0.0
        %2017 = vmatprep.subr.mxu0 0.0
        %2018 = vmatpush1.msra.mxu0 0.0
        %2019 = vmatprep.subr.mxu0 0.0
        %2020 = vmatpush1.msra.mxu0 0.0
        %2021 = vmatprep.subr.mxu0 0.0
        %2022 = vmatpush1.msra.mxu0 0.0
        %2023 = vmatprep.subr.mxu0 0.0
        %2024 = vmatpush1.msra.mxu0 0.0
        %2025 = vmatprep.mubr.f32.mxu0 0.0
        %2026 = vmatmul.mubr.f32.gmra.mrb[0].mxu0 %v1959
        %v2027 = vpop.f32.mrb[0].mxu0
        %v2028 = vadd.f32 0.0, %v2027
        %v2029 = vpop.f32.mrb[0].mxu0
        %2030 = vdwg.mxu0
        %v2031 = vpack.c.bf16 %v2028, %v2028
        %s2032 = scalar_lea.vmem %s7, 16
        %v2033 = vld [vmem:[%s2032] sm:$0xf]
        %v2034 = vld [vmem:[%s2032 + $0x4] sm:$0xf]
        %v2037 = vunpack.c.l.b16 %v2033
        %v2038 = vunpack.c.l.b16 %v2034
        %v2039 = vpack.c.b16 %v2038, %v2037
        %v2042 = vsel %vm759, %v2031, 0
        %2044 = vmatprep.subr.bf16.mxu0 0
        %2045 = vmatpush1.bf16.msra.mxu0 %v2039
        %2046 = vmatprep.subr.bf16.mxu0 0
        %2047 = vmatpush1.bf16.msra.mxu0 0
        %2048 = vmatprep.subr.bf16.mxu0 0
        %2049 = vmatpush1.bf16.msra.mxu0 0
        %2050 = vmatprep.subr.bf16.mxu0 0
        %2051 = vmatpush1.bf16.msra.mxu0 0
        %2052 = vmatprep.subr.bf16.mxu0 0
        %2053 = vmatpush1.bf16.msra.mxu0 0
        %2054 = vmatprep.subr.bf16.mxu0 0
        %2055 = vmatpush1.bf16.msra.mxu0 0
        %2056 = vmatprep.subr.bf16.mxu0 0
        %2057 = vmatpush1.bf16.msra.mxu0 0
        %2058 = vmatprep.subr.bf16.mxu0 0
        %2059 = vmatpush1.bf16.msra.mxu0 0
        %2060 = vmatprep.subr.bf16.mxu0 0
        %2061 = vmatpush1.bf16.msra.mxu0 0
        %2062 = vmatprep.subr.bf16.mxu0 0
        %2063 = vmatpush1.bf16.msra.mxu0 0
        %2064 = vmatprep.subr.bf16.mxu0 0
        %2065 = vmatpush1.bf16.msra.mxu0 0
        %2066 = vmatprep.subr.bf16.mxu0 0
        %2067 = vmatpush1.bf16.msra.mxu0 0
        %2068 = vmatprep.subr.bf16.mxu0 0
        %2069 = vmatpush1.bf16.msra.mxu0 0
        %2070 = vmatprep.subr.bf16.mxu0 0
        %2071 = vmatpush1.bf16.msra.mxu0 0
        %2072 = vmatprep.subr.bf16.mxu0 0
        %2073 = vmatpush1.bf16.msra.mxu0 0
        %2074 = vmatprep.subr.bf16.mxu0 0
        %2075 = vmatpush1.bf16.msra.mxu0 0
        %2076 = vmatprep.mubr.bf16.mxu0 0
        %2077 = vmatmul.mubr.bf16.gmra.mrb[0].mxu0 %v2042
        %v2078 = vpop.f32.mrb[0].mxu0
        %v2079 = vadd.f32 0.0, %v2078
        %v2080 = vpop.f32.mrb[0].mxu0
        %v2081 = vpop.f32.mrb[0].mxu0
        %v2082 = vpop.f32.mrb[0].mxu0
        %2083 = vdwg.mxu0
        %v2084 = vadd.f32 %v1529, %v2079
        %s2085 = scalar_lea.vmem %s1, 192
        %v2086 = vld [vmem:[%s2085] sm:$0xf]
        %v2087 = vld [vmem:[%s2085 + $0x4] sm:$0xf]
        %v2088 = vld [vmem:[%s2085 + $0x8] sm:$0xf]
        %v2089 = vld [vmem:[%s2085 + $0xc] sm:$0xf]
        %v2090 = vld [vmem:[%s2085 + $0x10] sm:$0xf]
        %v2091 = vld [vmem:[%s2085 + $0x14] sm:$0xf]
        %v2092 = vld [vmem:[%s2085 + $0x18] sm:$0xf]
        %v2093 = vld [vmem:[%s2085 + $0x1c] sm:$0xf]
        %v2094 = vld [vmem:[%s2085 + $0x20] sm:$0xf]
        %v2095 = vld [vmem:[%s2085 + $0x24] sm:$0xf]
        %v2096 = vld [vmem:[%s2085 + $0x28] sm:$0xf]
        %v2097 = vld [vmem:[%s2085 + $0x2c] sm:$0xf]
        %v2098 = vld [vmem:[%s2085 + $0x30] sm:$0xf]
        %v2099 = vld [vmem:[%s2085 + $0x34] sm:$0xf]
        %v2100 = vld [vmem:[%s2085 + $0x38] sm:$0xf]
        %v2101 = vld [vmem:[%s2085 + $0x3c] sm:$0xf]
        %s2102 = scalar_lea.vmem %s4, 3
        %v2103 = vld [vmem:[%s2102] sm:$0x1]
        %v2105 = vlaneseq
        %v2106 = vshrl.u32 %v2105, 7
        %v2107 = vsub.s32 0, %v2106
        %v2108 = vrot.slane %v2103, %v2107
        %v2126 = vunpack.c.l.b16 %v2086
        %v2127 = vunpack.c.l.b16 %v2087
        %v2128 = vunpack.c.l.b16 %v2088
        %v2129 = vunpack.c.l.b16 %v2089
        %v2130 = vunpack.c.l.b16 %v2090
        %v2131 = vunpack.c.l.b16 %v2091
        %v2132 = vunpack.c.l.b16 %v2092
        %v2133 = vunpack.c.l.b16 %v2093
        %v2134 = vunpack.c.l.b16 %v2094
        %v2135 = vunpack.c.l.b16 %v2095
        %v2136 = vunpack.c.l.b16 %v2096
        %v2137 = vunpack.c.l.b16 %v2097
        %v2138 = vunpack.c.l.b16 %v2098
        %v2139 = vunpack.c.l.b16 %v2099
        %v2140 = vunpack.c.l.b16 %v2100
        %v2141 = vunpack.c.l.b16 %v2101
        %v2142 = vpack.c.b16 %v2127, %v2126
        %v2143 = vpack.c.b16 %v2129, %v2128
        %v2144 = vpack.c.b16 %v2131, %v2130
        %v2145 = vpack.c.b16 %v2133, %v2132
        %v2146 = vpack.c.b16 %v2135, %v2134
        %v2147 = vpack.c.b16 %v2137, %v2136
        %v2148 = vpack.c.b16 %v2139, %v2138
        %v2149 = vpack.c.b16 %v2141, %v2140
        %2158 = vmatprep.subr.bf16.mxu0 0
        %2159 = vmatpush1.bf16.msra.mxu0 %v2142
        %2160 = vmatprep.subr.bf16.mxu0 0
        %2161 = vmatpush1.bf16.msra.mxu0 %v2143
        %2162 = vmatprep.subr.bf16.mxu0 0
        %2163 = vmatpush1.bf16.msra.mxu0 %v2144
        %2164 = vmatprep.subr.bf16.mxu0 0
        %2165 = vmatpush1.bf16.msra.mxu0 %v2145
        %2166 = vmatprep.subr.bf16.mxu0 0
        %2167 = vmatpush1.bf16.msra.mxu0 %v2146
        %2168 = vmatprep.subr.bf16.mxu0 0
        %2169 = vmatpush1.bf16.msra.mxu0 %v2147
        %2170 = vmatprep.subr.bf16.mxu0 0
        %2171 = vmatpush1.bf16.msra.mxu0 %v2148
        %2172 = vmatprep.subr.bf16.mxu0 0
        %2173 = vmatpush1.bf16.msra.mxu0 %v2149
        %2174 = vmatprep.subr.bf16.mxu0 0
        %2175 = vmatpush1.bf16.msra.mxu0 0
        %2176 = vmatprep.subr.bf16.mxu0 0
        %2177 = vmatpush1.bf16.msra.mxu0 0
        %2178 = vmatprep.subr.bf16.mxu0 0
        %2179 = vmatpush1.bf16.msra.mxu0 0
        %2180 = vmatprep.subr.bf16.mxu0 0
        %2181 = vmatpush1.bf16.msra.mxu0 0
        %2182 = vmatprep.subr.bf16.mxu0 0
        %2183 = vmatpush1.bf16.msra.mxu0 0
        %2184 = vmatprep.subr.bf16.mxu0 0
        %2185 = vmatpush1.bf16.msra.mxu0 0
        %2186 = vmatprep.subr.bf16.mxu0 0
        %2187 = vmatpush1.bf16.msra.mxu0 0
        %2188 = vmatprep.subr.bf16.mxu0 0
        %2189 = vmatpush1.bf16.msra.mxu0 0
        %2190 = vmatprep.mubr.bf16.mxu0 0
        %2191 = vmatmul.mubr.bf16.gmra.mrb[0].mxu0 %v409
        %v2192 = vpop.f32.mrb[0].mxu0
        %v2193 = vadd.f32 %v2108, %v2192
        %v2194 = vpop.f32.mrb[0].mxu0
        %v2195 = vpop.f32.mrb[0].mxu0
        %v2196 = vpop.f32.mrb[0].mxu0
        %2197 = vdwg.mxu0
        %v2198 = vmul.f32 %v2193, 0.25
        %s2199 = scalar_lea.vmem %s2, 192
        %v2200 = vld [vmem:[%s2199] sm:$0xf]
        %v2201 = vld [vmem:[%s2199 + $0x4] sm:$0xf]
        %v2202 = vld [vmem:[%s2199 + $0x8] sm:$0xf]
        %v2203 = vld [vmem:[%s2199 + $0xc] sm:$0xf]
        %v2204 = vld [vmem:[%s2199 + $0x10] sm:$0xf]
        %v2205 = vld [vmem:[%s2199 + $0x14] sm:$0xf]
        %v2206 = vld [vmem:[%s2199 + $0x18] sm:$0xf]
        %v2207 = vld [vmem:[%s2199 + $0x1c] sm:$0xf]
        %v2208 = vld [vmem:[%s2199 + $0x20] sm:$0xf]
        %v2209 = vld [vmem:[%s2199 + $0x24] sm:$0xf]
        %v2210 = vld [vmem:[%s2199 + $0x28] sm:$0xf]
        %v2211 = vld [vmem:[%s2199 + $0x2c] sm:$0xf]
        %v2212 = vld [vmem:[%s2199 + $0x30] sm:$0xf]
        %v2213 = vld [vmem:[%s2199 + $0x34] sm:$0xf]
        %v2214 = vld [vmem:[%s2199 + $0x38] sm:$0xf]
        %v2215 = vld [vmem:[%s2199 + $0x3c] sm:$0xf]
        %s2216 = scalar_lea.vmem %s5, 3
        %v2217 = vld [vmem:[%s2216] sm:$0x1]
        %v2219 = vlaneseq
        %v2220 = vshrl.u32 %v2219, 7
        %v2221 = vsub.s32 0, %v2220
        %v2222 = vrot.slane %v2217, %v2221
        %v2240 = vunpack.c.l.b16 %v2200
        %v2241 = vunpack.c.l.b16 %v2201
        %v2242 = vunpack.c.l.b16 %v2202
        %v2243 = vunpack.c.l.b16 %v2203
        %v2244 = vunpack.c.l.b16 %v2204
        %v2245 = vunpack.c.l.b16 %v2205
        %v2246 = vunpack.c.l.b16 %v2206
        %v2247 = vunpack.c.l.b16 %v2207
        %v2248 = vunpack.c.l.b16 %v2208
        %v2249 = vunpack.c.l.b16 %v2209
        %v2250 = vunpack.c.l.b16 %v2210
        %v2251 = vunpack.c.l.b16 %v2211
        %v2252 = vunpack.c.l.b16 %v2212
        %v2253 = vunpack.c.l.b16 %v2213
        %v2254 = vunpack.c.l.b16 %v2214
        %v2255 = vunpack.c.l.b16 %v2215
        %v2256 = vpack.c.b16 %v2241, %v2240
        %v2257 = vpack.c.b16 %v2243, %v2242
        %v2258 = vpack.c.b16 %v2245, %v2244
        %v2259 = vpack.c.b16 %v2247, %v2246
        %v2260 = vpack.c.b16 %v2249, %v2248
        %v2261 = vpack.c.b16 %v2251, %v2250
        %v2262 = vpack.c.b16 %v2253, %v2252
        %v2263 = vpack.c.b16 %v2255, %v2254
        %2272 = vmatprep.subr.bf16.mxu0 0
        %2273 = vmatpush1.bf16.msra.mxu0 %v2256
        %2274 = vmatprep.subr.bf16.mxu0 0
        %2275 = vmatpush1.bf16.msra.mxu0 %v2257
        %2276 = vmatprep.subr.bf16.mxu0 0
        %2277 = vmatpush1.bf16.msra.mxu0 %v2258
        %2278 = vmatprep.subr.bf16.mxu0 0
        %2279 = vmatpush1.bf16.msra.mxu0 %v2259
        %2280 = vmatprep.subr.bf16.mxu0 0
        %2281 = vmatpush1.bf16.msra.mxu0 %v2260
        %2282 = vmatprep.subr.bf16.mxu0 0
        %2283 = vmatpush1.bf16.msra.mxu0 %v2261
        %2284 = vmatprep.subr.bf16.mxu0 0
        %2285 = vmatpush1.bf16.msra.mxu0 %v2262
        %2286 = vmatprep.subr.bf16.mxu0 0
        %2287 = vmatpush1.bf16.msra.mxu0 %v2263
        %2288 = vmatprep.subr.bf16.mxu0 0
        %2289 = vmatpush1.bf16.msra.mxu0 0
        %2290 = vmatprep.subr.bf16.mxu0 0
        %2291 = vmatpush1.bf16.msra.mxu0 0
        %2292 = vmatprep.subr.bf16.mxu0 0
        %2293 = vmatpush1.bf16.msra.mxu0 0
        %2294 = vmatprep.subr.bf16.mxu0 0
        %2295 = vmatpush1.bf16.msra.mxu0 0
        %2296 = vmatprep.subr.bf16.mxu0 0
        %2297 = vmatpush1.bf16.msra.mxu0 0
        %2298 = vmatprep.subr.bf16.mxu0 0
        %2299 = vmatpush1.bf16.msra.mxu0 0
        %2300 = vmatprep.subr.bf16.mxu0 0
        %2301 = vmatpush1.bf16.msra.mxu0 0
        %2302 = vmatprep.subr.bf16.mxu0 0
        %2303 = vmatpush1.bf16.msra.mxu0 0
        %2304 = vmatprep.mubr.bf16.mxu0 0
        %2305 = vmatmul.mubr.bf16.gmra.mrb[0].mxu0 %v409
        %v2306 = vpop.f32.mrb[0].mxu0
        %v2307 = vadd.f32 %v2222, %v2306
        %v2308 = vpop.f32.mrb[0].mxu0
        %v2309 = vpop.f32.mrb[0].mxu0
        %v2310 = vpop.f32.mrb[0].mxu0
        %2311 = vdwg.mxu0
        %s2312 = scalar_lea.vmem %s3, 192
        %v2313 = vld [vmem:[%s2312] sm:$0xf]
        %v2314 = vld [vmem:[%s2312 + $0x4] sm:$0xf]
        %v2315 = vld [vmem:[%s2312 + $0x8] sm:$0xf]
        %v2316 = vld [vmem:[%s2312 + $0xc] sm:$0xf]
        %v2317 = vld [vmem:[%s2312 + $0x10] sm:$0xf]
        %v2318 = vld [vmem:[%s2312 + $0x14] sm:$0xf]
        %v2319 = vld [vmem:[%s2312 + $0x18] sm:$0xf]
        %v2320 = vld [vmem:[%s2312 + $0x1c] sm:$0xf]
        %v2321 = vld [vmem:[%s2312 + $0x20] sm:$0xf]
        %v2322 = vld [vmem:[%s2312 + $0x24] sm:$0xf]
        %v2323 = vld [vmem:[%s2312 + $0x28] sm:$0xf]
        %v2324 = vld [vmem:[%s2312 + $0x2c] sm:$0xf]
        %v2325 = vld [vmem:[%s2312 + $0x30] sm:$0xf]
        %v2326 = vld [vmem:[%s2312 + $0x34] sm:$0xf]
        %v2327 = vld [vmem:[%s2312 + $0x38] sm:$0xf]
        %v2328 = vld [vmem:[%s2312 + $0x3c] sm:$0xf]
        %s2329 = scalar_lea.vmem %s6, 3
        %v2330 = vld [vmem:[%s2329] sm:$0x1]
        %v2332 = vlaneseq
        %v2333 = vshrl.u32 %v2332, 7
        %v2334 = vsub.s32 0, %v2333
        %v2335 = vrot.slane %v2330, %v2334
        %v2353 = vunpack.c.l.b16 %v2313
        %v2354 = vunpack.c.l.b16 %v2314
        %v2355 = vunpack.c.l.b16 %v2315
        %v2356 = vunpack.c.l.b16 %v2316
        %v2357 = vunpack.c.l.b16 %v2317
        %v2358 = vunpack.c.l.b16 %v2318
        %v2359 = vunpack.c.l.b16 %v2319
        %v2360 = vunpack.c.l.b16 %v2320
        %v2361 = vunpack.c.l.b16 %v2321
        %v2362 = vunpack.c.l.b16 %v2322
        %v2363 = vunpack.c.l.b16 %v2323
        %v2364 = vunpack.c.l.b16 %v2324
        %v2365 = vunpack.c.l.b16 %v2325
        %v2366 = vunpack.c.l.b16 %v2326
        %v2367 = vunpack.c.l.b16 %v2327
        %v2368 = vunpack.c.l.b16 %v2328
        %v2369 = vpack.c.b16 %v2354, %v2353
        %v2370 = vpack.c.b16 %v2356, %v2355
        %v2371 = vpack.c.b16 %v2358, %v2357
        %v2372 = vpack.c.b16 %v2360, %v2359
        %v2373 = vpack.c.b16 %v2362, %v2361
        %v2374 = vpack.c.b16 %v2364, %v2363
        %v2375 = vpack.c.b16 %v2366, %v2365
        %v2376 = vpack.c.b16 %v2368, %v2367
        %2385 = vmatprep.subr.bf16.mxu0 0
        %2386 = vmatpush1.bf16.msra.mxu0 %v2369
        %2387 = vmatprep.subr.bf16.mxu0 0
        %2388 = vmatpush1.bf16.msra.mxu0 %v2370
        %2389 = vmatprep.subr.bf16.mxu0 0
        %2390 = vmatpush1.bf16.msra.mxu0 %v2371
        %2391 = vmatprep.subr.bf16.mxu0 0
        %2392 = vmatpush1.bf16.msra.mxu0 %v2372
        %2393 = vmatprep.subr.bf16.mxu0 0
        %2394 = vmatpush1.bf16.msra.mxu0 %v2373
        %2395 = vmatprep.subr.bf16.mxu0 0
        %2396 = vmatpush1.bf16.msra.mxu0 %v2374
        %2397 = vmatprep.subr.bf16.mxu0 0
        %2398 = vmatpush1.bf16.msra.mxu0 %v2375
        %2399 = vmatprep.subr.bf16.mxu0 0
        %2400 = vmatpush1.bf16.msra.mxu0 %v2376
        %2401 = vmatprep.subr.bf16.mxu0 0
        %2402 = vmatpush1.bf16.msra.mxu0 0
        %2403 = vmatprep.subr.bf16.mxu0 0
        %2404 = vmatpush1.bf16.msra.mxu0 0
        %2405 = vmatprep.subr.bf16.mxu0 0
        %2406 = vmatpush1.bf16.msra.mxu0 0
        %2407 = vmatprep.subr.bf16.mxu0 0
        %2408 = vmatpush1.bf16.msra.mxu0 0
        %2409 = vmatprep.subr.bf16.mxu0 0
        %2410 = vmatpush1.bf16.msra.mxu0 0
        %2411 = vmatprep.subr.bf16.mxu0 0
        %2412 = vmatpush1.bf16.msra.mxu0 0
        %2413 = vmatprep.subr.bf16.mxu0 0
        %2414 = vmatpush1.bf16.msra.mxu0 0
        %2415 = vmatprep.subr.bf16.mxu0 0
        %2416 = vmatpush1.bf16.msra.mxu0 0
        %2417 = vmatprep.mubr.bf16.mxu0 0
        %2418 = vmatmul.mubr.bf16.gmra.mrb[0].mxu0 %v409
        %v2419 = vpop.f32.mrb[0].mxu0
        %v2420 = vadd.f32 %v2335, %v2419
        %v2421 = vpop.f32.mrb[0].mxu0
        %v2422 = vpop.f32.mrb[0].mxu0
        %v2423 = vpop.f32.mrb[0].mxu0
        %2424 = vdwg.mxu0
        %v2426 = vsel %vm759, %v2198, 0
        %v2429 = vsel %vm759, %v2307, 0
        %2431 = vmatprep.subr.mxu0 0.0
        %2432 = vmatpush1.xpose.msra.mxu0 %v2429
        %2433 = vmatprep.subr.mxu0 0.0
        %2434 = vmatpush1.xpose.msra.mxu0 0.0
        %2435 = vmatprep.subr.mxu0 0.0
        %2436 = vmatpush1.xpose.msra.mxu0 0.0
        %2437 = vmatprep.subr.mxu0 0.0
        %2438 = vmatpush1.xpose.msra.mxu0 0.0
        %2439 = vmatprep.subr.mxu0 0.0
        %2440 = vmatpush1.xpose.msra.mxu0 0.0
        %2441 = vmatprep.subr.mxu0 0.0
        %2442 = vmatpush1.xpose.msra.mxu0 0.0
        %2443 = vmatprep.subr.mxu0 0.0
        %2444 = vmatpush1.xpose.msra.mxu0 0.0
        %2445 = vmatprep.subr.mxu0 0.0
        %2446 = vmatpush1.xpose.msra.mxu0 0.0
        %2447 = vmatprep.subr.mxu0 0.0
        %2448 = vmatpush1.xpose.msra.mxu0 0.0
        %2449 = vmatprep.subr.mxu0 0.0
        %2450 = vmatpush1.xpose.msra.mxu0 0.0
        %2451 = vmatprep.subr.mxu0 0.0
        %2452 = vmatpush1.xpose.msra.mxu0 0.0
        %2453 = vmatprep.subr.mxu0 0.0
        %2454 = vmatpush1.xpose.msra.mxu0 0.0
        %2455 = vmatprep.subr.mxu0 0.0
        %2456 = vmatpush1.xpose.msra.mxu0 0.0
        %2457 = vmatprep.subr.mxu0 0.0
        %2458 = vmatpush1.xpose.msra.mxu0 0.0
        %2459 = vmatprep.subr.mxu0 0.0
        %2460 = vmatpush1.xpose.msra.mxu0 0.0
        %2461 = vmatprep.subr.mxu0 0.0
        %2462 = vmatpush1.xpose.msra.mxu0 0.0
        %2463 = vmatprep.subr.mxu0 0.0
        %2464 = vmatpush1.xpose.msra.mxu0 0.0
        %2465 = vmatprep.subr.mxu0 0.0
        %2466 = vmatpush1.xpose.msra.mxu0 0.0
        %2467 = vmatprep.subr.mxu0 0.0
        %2468 = vmatpush1.xpose.msra.mxu0 0.0
        %2469 = vmatprep.subr.mxu0 0.0
        %2470 = vmatpush1.xpose.msra.mxu0 0.0
        %2471 = vmatprep.subr.mxu0 0.0
        %2472 = vmatpush1.xpose.msra.mxu0 0.0
        %2473 = vmatprep.subr.mxu0 0.0
        %2474 = vmatpush1.xpose.msra.mxu0 0.0
        %2475 = vmatprep.subr.mxu0 0.0
        %2476 = vmatpush1.xpose.msra.mxu0 0.0
        %2477 = vmatprep.subr.mxu0 0.0
        %2478 = vmatpush1.xpose.msra.mxu0 0.0
        %2479 = vmatprep.subr.mxu0 0.0
        %2480 = vmatpush1.xpose.msra.mxu0 0.0
        %2481 = vmatprep.subr.mxu0 0.0
        %2482 = vmatpush1.xpose.msra.mxu0 0.0
        %2483 = vmatprep.subr.mxu0 0.0
        %2484 = vmatpush1.xpose.msra.mxu0 0.0
        %2485 = vmatprep.subr.mxu0 0.0
        %2486 = vmatpush1.xpose.msra.mxu0 0.0
        %2487 = vmatprep.subr.mxu0 0.0
        %2488 = vmatpush1.xpose.msra.mxu0 0.0
        %2489 = vmatprep.subr.mxu0 0.0
        %2490 = vmatpush1.xpose.msra.mxu0 0.0
        %2491 = vmatprep.subr.mxu0 0.0
        %2492 = vmatpush1.xpose.msra.mxu0 0.0
        %2493 = vmatprep.subr.mxu0 0.0
        %2494 = vmatpush1.xpose.msra.mxu0 0.0
        %2495 = vmatprep.mubr.f32.mxu0 0.0
        %2496 = vmatmul.mubr.f32.gmra.mrb[0].mxu0 %v2426
        %v2497 = vpop.f32.mrb[0].mxu0
        %v2498 = vadd.f32 %v757, %v2497
        %v2499 = vpop.f32.mrb[0].mxu0
        %2500 = vdwg.mxu0
        %v2501 = vsel %vm836, %v2498, -inf
        %2502 = vmax.xlane.f32.xlu0 %v2501
        %v2503 = vpop.xlane.xlu0 %2502
        %v2504 = vsub.f32 %v2498, %v2503
        %v2505 = vmul.f32 %v2504, 1.442695
        %v2506 = vpow.pop %v2505
        %v2507 = vsel %vm836, %v2506, 0.0
        %2508 = vadd.xlane.f32.xlu0 %v2507
        %v2509 = vpop.xlane.xlu0 %2508
        %v2510 = vrcp.pop %v2509
        %v2511 = vmul.f32 %v2506, %v2510
        %v2512 = vadd.f32 %v1957, %v2511
        %v2514 = vsel %vm836, %v2511, 0
        %2516 = vmatprep.subr.mxu0 0.0
        %2517 = vmatpush1.msra.mxu0 %v2420
        %2518 = vmatprep.subr.mxu0 0.0
        %2519 = vmatpush1.msra.mxu0 0.0
        %2520 = vmatprep.subr.mxu0 0.0
        %2521 = vmatpush1.msra.mxu0 0.0
        %2522 = vmatprep.subr.mxu0 0.0
        %2523 = vmatpush1.msra.mxu0 0.0
        %2524 = vmatprep.subr.mxu0 0.0
        %2525 = vmatpush1.msra.mxu0 0.0
        %2526 = vmatprep.subr.mxu0 0.0
        %2527 = vmatpush1.msra.mxu0 0.0
        %2528 = vmatprep.subr.mxu0 0.0
        %2529 = vmatpush1.msra.mxu0 0.0
        %2530 = vmatprep.subr.mxu0 0.0
        %2531 = vmatpush1.msra.mxu0 0.0
        %2532 = vmatprep.subr.mxu0 0.0
        %2533 = vmatpush1.msra.mxu0 0.0
        %2534 = vmatprep.subr.mxu0 0.0
        %2535 = vmatpush1.msra.mxu0 0.0
        %2536 = vmatprep.subr.mxu0 0.0
        %2537 = vmatpush1.msra.mxu0 0.0
        %2538 = vmatprep.subr.mxu0 0.0
        %2539 = vmatpush1.msra.mxu0 0.0
        %2540 = vmatprep.subr.mxu0 0.0
        %2541 = vmatpush1.msra.mxu0 0.0
        %2542 = vmatprep.subr.mxu0 0.0
        %2543 = vmatpush1.msra.mxu0 0.0
        %2544 = vmatprep.subr.mxu0 0.0
        %2545 = vmatpush1.msra.mxu0 0.0
        %2546 = vmatprep.subr.mxu0 0.0
        %2547 = vmatpush1.msra.mxu0 0.0
        %2548 = vmatprep.subr.mxu0 0.0
        %2549 = vmatpush1.msra.mxu0 0.0
        %2550 = vmatprep.subr.mxu0 0.0
        %2551 = vmatpush1.msra.mxu0 0.0
        %2552 = vmatprep.subr.mxu0 0.0
        %2553 = vmatpush1.msra.mxu0 0.0
        %2554 = vmatprep.subr.mxu0 0.0
        %2555 = vmatpush1.msra.mxu0 0.0
        %2556 = vmatprep.subr.mxu0 0.0
        %2557 = vmatpush1.msra.mxu0 0.0
        %2558 = vmatprep.subr.mxu0 0.0
        %2559 = vmatpush1.msra.mxu0 0.0
        %2560 = vmatprep.subr.mxu0 0.0
        %2561 = vmatpush1.msra.mxu0 0.0
        %2562 = vmatprep.subr.mxu0 0.0
        %2563 = vmatpush1.msra.mxu0 0.0
        %2564 = vmatprep.subr.mxu0 0.0
        %2565 = vmatpush1.msra.mxu0 0.0
        %2566 = vmatprep.subr.mxu0 0.0
        %2567 = vmatpush1.msra.mxu0 0.0
        %2568 = vmatprep.subr.mxu0 0.0
        %2569 = vmatpush1.msra.mxu0 0.0
        %2570 = vmatprep.subr.mxu0 0.0
        %2571 = vmatpush1.msra.mxu0 0.0
        %2572 = vmatprep.subr.mxu0 0.0
        %2573 = vmatpush1.msra.mxu0 0.0
        %2574 = vmatprep.subr.mxu0 0.0
        %2575 = vmatpush1.msra.mxu0 0.0
        %2576 = vmatprep.subr.mxu0 0.0
        %2577 = vmatpush1.msra.mxu0 0.0
        %2578 = vmatprep.subr.mxu0 0.0
        %2579 = vmatpush1.msra.mxu0 0.0
        %2580 = vmatprep.mubr.f32.mxu0 0.0
        %2581 = vmatmul.mubr.f32.gmra.mrb[0].mxu0 %v2514
        %v2582 = vpop.f32.mrb[0].mxu0
        %v2583 = vadd.f32 0.0, %v2582
        %v2584 = vpop.f32.mrb[0].mxu0
        %2585 = vdwg.mxu0
        %v2586 = vpack.c.bf16 %v2583, %v2583
        %s2587 = scalar_lea.vmem %s7, 24
        %v2588 = vld [vmem:[%s2587] sm:$0xf]
        %v2589 = vld [vmem:[%s2587 + $0x4] sm:$0xf]
        %v2592 = vunpack.c.l.b16 %v2588
        %v2593 = vunpack.c.l.b16 %v2589
        %v2594 = vpack.c.b16 %v2593, %v2592
        %v2597 = vsel %vm759, %v2586, 0
        %2599 = vmatprep.subr.bf16.mxu0 0
        %2600 = vmatpush1.bf16.msra.mxu0 %v2594
        %2601 = vmatprep.subr.bf16.mxu0 0
        %2602 = vmatpush1.bf16.msra.mxu0 0
        %2603 = vmatprep.subr.bf16.mxu0 0
        %2604 = vmatpush1.bf16.msra.mxu0 0
        %2605 = vmatprep.subr.bf16.mxu0 0
        %2606 = vmatpush1.bf16.msra.mxu0 0
        %2607 = vmatprep.subr.bf16.mxu0 0
        %2608 = vmatpush1.bf16.msra.mxu0 0
        %2609 = vmatprep.subr.bf16.mxu0 0
        %2610 = vmatpush1.bf16.msra.mxu0 0
        %2611 = vmatprep.subr.bf16.mxu0 0
        %2612 = vmatpush1.bf16.msra.mxu0 0
        %2613 = vmatprep.subr.bf16.mxu0 0
        %2614 = vmatpush1.bf16.msra.mxu0 0
        %2615 = vmatprep.subr.bf16.mxu0 0
        %2616 = vmatpush1.bf16.msra.mxu0 0
        %2617 = vmatprep.subr.bf16.mxu0 0
        %2618 = vmatpush1.bf16.msra.mxu0 0
        %2619 = vmatprep.subr.bf16.mxu0 0
        %2620 = vmatpush1.bf16.msra.mxu0 0
        %2621 = vmatprep.subr.bf16.mxu0 0
        %2622 = vmatpush1.bf16.msra.mxu0 0
        %2623 = vmatprep.subr.bf16.mxu0 0
        %2624 = vmatpush1.bf16.msra.mxu0 0
        %2625 = vmatprep.subr.bf16.mxu0 0
        %2626 = vmatpush1.bf16.msra.mxu0 0
        %2627 = vmatprep.subr.bf16.mxu0 0
        %2628 = vmatpush1.bf16.msra.mxu0 0
        %2629 = vmatprep.subr.bf16.mxu0 0
        %2630 = vmatpush1.bf16.msra.mxu0 0
        %2631 = vmatprep.mubr.bf16.mxu0 0
        %2632 = vmatmul.mubr.bf16.gmra.mrb[0].mxu0 %v2597
        %v2633 = vpop.f32.mrb[0].mxu0
        %v2634 = vadd.f32 0.0, %v2633
        %v2635 = vpop.f32.mrb[0].mxu0
        %v2636 = vpop.f32.mrb[0].mxu0
        %v2637 = vpop.f32.mrb[0].mxu0
        %2638 = vdwg.mxu0
        %v2639 = vadd.f32 %v2084, %v2634
        %s2640 = scalar_lea.vmem %s1, 256
        %v2641 = vld [vmem:[%s2640] sm:$0xf]
        %v2642 = vld [vmem:[%s2640 + $0x4] sm:$0xf]
        %v2643 = vld [vmem:[%s2640 + $0x8] sm:$0xf]
        %v2644 = vld [vmem:[%s2640 + $0xc] sm:$0xf]
        %v2645 = vld [vmem:[%s2640 + $0x10] sm:$0xf]
        %v2646 = vld [vmem:[%s2640 + $0x14] sm:$0xf]
        %v2647 = vld [vmem:[%s2640 + $0x18] sm:$0xf]
        %v2648 = vld [vmem:[%s2640 + $0x1c] sm:$0xf]
        %v2649 = vld [vmem:[%s2640 + $0x20] sm:$0xf]
        %v2650 = vld [vmem:[%s2640 + $0x24] sm:$0xf]
        %v2651 = vld [vmem:[%s2640 + $0x28] sm:$0xf]
        %v2652 = vld [vmem:[%s2640 + $0x2c] sm:$0xf]
        %v2653 = vld [vmem:[%s2640 + $0x30] sm:$0xf]
        %v2654 = vld [vmem:[%s2640 + $0x34] sm:$0xf]
        %v2655 = vld [vmem:[%s2640 + $0x38] sm:$0xf]
        %v2656 = vld [vmem:[%s2640 + $0x3c] sm:$0xf]
        %s2657 = scalar_lea.vmem %s4, 4
        %v2658 = vld [vmem:[%s2657] sm:$0x1]
        %v2660 = vlaneseq
        %v2661 = vshrl.u32 %v2660, 7
        %v2662 = vsub.s32 0, %v2661
        %v2663 = vrot.slane %v2658, %v2662
        %v2681 = vunpack.c.l.b16 %v2641
        %v2682 = vunpack.c.l.b16 %v2642
        %v2683 = vunpack.c.l.b16 %v2643
        %v2684 = vunpack.c.l.b16 %v2644
        %v2685 = vunpack.c.l.b16 %v2645
        %v2686 = vunpack.c.l.b16 %v2646
        %v2687 = vunpack.c.l.b16 %v2647
        %v2688 = vunpack.c.l.b16 %v2648
        %v2689 = vunpack.c.l.b16 %v2649
        %v2690 = vunpack.c.l.b16 %v2650
        %v2691 = vunpack.c.l.b16 %v2651
        %v2692 = vunpack.c.l.b16 %v2652
        %v2693 = vunpack.c.l.b16 %v2653
        %v2694 = vunpack.c.l.b16 %v2654
        %v2695 = vunpack.c.l.b16 %v2655
        %v2696 = vunpack.c.l.b16 %v2656
        %v2697 = vpack.c.b16 %v2682, %v2681
        %v2698 = vpack.c.b16 %v2684, %v2683
        %v2699 = vpack.c.b16 %v2686, %v2685
        %v2700 = vpack.c.b16 %v2688, %v2687
        %v2701 = vpack.c.b16 %v2690, %v2689
        %v2702 = vpack.c.b16 %v2692, %v2691
        %v2703 = vpack.c.b16 %v2694, %v2693
        %v2704 = vpack.c.b16 %v2696, %v2695
        %2713 = vmatprep.subr.bf16.mxu0 0
        %2714 = vmatpush1.bf16.msra.mxu0 %v2697
        %2715 = vmatprep.subr.bf16.mxu0 0
        %2716 = vmatpush1.bf16.msra.mxu0 %v2698
        %2717 = vmatprep.subr.bf16.mxu0 0
        %2718 = vmatpush1.bf16.msra.mxu0 %v2699
        %2719 = vmatprep.subr.bf16.mxu0 0
        %2720 = vmatpush1.bf16.msra.mxu0 %v2700
        %2721 = vmatprep.subr.bf16.mxu0 0
        %2722 = vmatpush1.bf16.msra.mxu0 %v2701
        %2723 = vmatprep.subr.bf16.mxu0 0
        %2724 = vmatpush1.bf16.msra.mxu0 %v2702
        %2725 = vmatprep.subr.bf16.mxu0 0
        %2726 = vmatpush1.bf16.msra.mxu0 %v2703
        %2727 = vmatprep.subr.bf16.mxu0 0
        %2728 = vmatpush1.bf16.msra.mxu0 %v2704
        %2729 = vmatprep.subr.bf16.mxu0 0
        %2730 = vmatpush1.bf16.msra.mxu0 0
        %2731 = vmatprep.subr.bf16.mxu0 0
        %2732 = vmatpush1.bf16.msra.mxu0 0
        %2733 = vmatprep.subr.bf16.mxu0 0
        %2734 = vmatpush1.bf16.msra.mxu0 0
        %2735 = vmatprep.subr.bf16.mxu0 0
        %2736 = vmatpush1.bf16.msra.mxu0 0
        %2737 = vmatprep.subr.bf16.mxu0 0
        %2738 = vmatpush1.bf16.msra.mxu0 0
        %2739 = vmatprep.subr.bf16.mxu0 0
        %2740 = vmatpush1.bf16.msra.mxu0 0
        %2741 = vmatprep.subr.bf16.mxu0 0
        %2742 = vmatpush1.bf16.msra.mxu0 0
        %2743 = vmatprep.subr.bf16.mxu0 0
        %2744 = vmatpush1.bf16.msra.mxu0 0
        %2745 = vmatprep.mubr.bf16.mxu0 0
        %2746 = vmatmul.mubr.bf16.gmra.mrb[0].mxu0 %v409
        %v2747 = vpop.f32.mrb[0].mxu0
        %v2748 = vadd.f32 %v2663, %v2747
        %v2749 = vpop.f32.mrb[0].mxu0
        %v2750 = vpop.f32.mrb[0].mxu0
        %v2751 = vpop.f32.mrb[0].mxu0
        %2752 = vdwg.mxu0
        %v2753 = vmul.f32 %v2748, 0.25
        %s2754 = scalar_lea.vmem %s2, 256
        %v2755 = vld [vmem:[%s2754] sm:$0xf]
        %v2756 = vld [vmem:[%s2754 + $0x4] sm:$0xf]
        %v2757 = vld [vmem:[%s2754 + $0x8] sm:$0xf]
        %v2758 = vld [vmem:[%s2754 + $0xc] sm:$0xf]
        %v2759 = vld [vmem:[%s2754 + $0x10] sm:$0xf]
        %v2760 = vld [vmem:[%s2754 + $0x14] sm:$0xf]
        %v2761 = vld [vmem:[%s2754 + $0x18] sm:$0xf]
        %v2762 = vld [vmem:[%s2754 + $0x1c] sm:$0xf]
        %v2763 = vld [vmem:[%s2754 + $0x20] sm:$0xf]
        %v2764 = vld [vmem:[%s2754 + $0x24] sm:$0xf]
        %v2765 = vld [vmem:[%s2754 + $0x28] sm:$0xf]
        %v2766 = vld [vmem:[%s2754 + $0x2c] sm:$0xf]
        %v2767 = vld [vmem:[%s2754 + $0x30] sm:$0xf]
        %v2768 = vld [vmem:[%s2754 + $0x34] sm:$0xf]
        %v2769 = vld [vmem:[%s2754 + $0x38] sm:$0xf]
        %v2770 = vld [vmem:[%s2754 + $0x3c] sm:$0xf]
        %s2771 = scalar_lea.vmem %s5, 4
        %v2772 = vld [vmem:[%s2771] sm:$0x1]
        %v2774 = vlaneseq
        %v2775 = vshrl.u32 %v2774, 7
        %v2776 = vsub.s32 0, %v2775
        %v2777 = vrot.slane %v2772, %v2776
        %v2795 = vunpack.c.l.b16 %v2755
        %v2796 = vunpack.c.l.b16 %v2756
        %v2797 = vunpack.c.l.b16 %v2757
        %v2798 = vunpack.c.l.b16 %v2758
        %v2799 = vunpack.c.l.b16 %v2759
        %v2800 = vunpack.c.l.b16 %v2760
        %v2801 = vunpack.c.l.b16 %v2761
        %v2802 = vunpack.c.l.b16 %v2762
        %v2803 = vunpack.c.l.b16 %v2763
        %v2804 = vunpack.c.l.b16 %v2764
        %v2805 = vunpack.c.l.b16 %v2765
        %v2806 = vunpack.c.l.b16 %v2766
        %v2807 = vunpack.c.l.b16 %v2767
        %v2808 = vunpack.c.l.b16 %v2768
        %v2809 = vunpack.c.l.b16 %v2769
        %v2810 = vunpack.c.l.b16 %v2770
        %v2811 = vpack.c.b16 %v2796, %v2795
        %v2812 = vpack.c.b16 %v2798, %v2797
        %v2813 = vpack.c.b16 %v2800, %v2799
        %v2814 = vpack.c.b16 %v2802, %v2801
        %v2815 = vpack.c.b16 %v2804, %v2803
        %v2816 = vpack.c.b16 %v2806, %v2805
        %v2817 = vpack.c.b16 %v2808, %v2807
        %v2818 = vpack.c.b16 %v2810, %v2809
        %2827 = vmatprep.subr.bf16.mxu0 0
        %2828 = vmatpush1.bf16.msra.mxu0 %v2811
        %2829 = vmatprep.subr.bf16.mxu0 0
        %2830 = vmatpush1.bf16.msra.mxu0 %v2812
        %2831 = vmatprep.subr.bf16.mxu0 0
        %2832 = vmatpush1.bf16.msra.mxu0 %v2813
        %2833 = vmatprep.subr.bf16.mxu0 0
        %2834 = vmatpush1.bf16.msra.mxu0 %v2814
        %2835 = vmatprep.subr.bf16.mxu0 0
        %2836 = vmatpush1.bf16.msra.mxu0 %v2815
        %2837 = vmatprep.subr.bf16.mxu0 0
        %2838 = vmatpush1.bf16.msra.mxu0 %v2816
        %2839 = vmatprep.subr.bf16.mxu0 0
        %2840 = vmatpush1.bf16.msra.mxu0 %v2817
        %2841 = vmatprep.subr.bf16.mxu0 0
        %2842 = vmatpush1.bf16.msra.mxu0 %v2818
        %2843 = vmatprep.subr.bf16.mxu0 0
        %2844 = vmatpush1.bf16.msra.mxu0 0
        %2845 = vmatprep.subr.bf16.mxu0 0
        %2846 = vmatpush1.bf16.msra.mxu0 0
        %2847 = vmatprep.subr.bf16.mxu0 0
        %2848 = vmatpush1.bf16.msra.mxu0 0
        %2849 = vmatprep.subr.bf16.mxu0 0
        %2850 = vmatpush1.bf16.msra.mxu0 0
        %2851 = vmatprep.subr.bf16.mxu0 0
        %2852 = vmatpush1.bf16.msra.mxu0 0
        %2853 = vmatprep.subr.bf16.mxu0 0
        %2854 = vmatpush1.bf16.msra.mxu0 0
        %2855 = vmatprep.subr.bf16.mxu0 0
        %2856 = vmatpush1.bf16.msra.mxu0 0
        %2857 = vmatprep.subr.bf16.mxu0 0
        %2858 = vmatpush1.bf16.msra.mxu0 0
        %2859 = vmatprep.mubr.bf16.mxu0 0
        %2860 = vmatmul.mubr.bf16.gmra.mrb[0].mxu0 %v409
        %v2861 = vpop.f32.mrb[0].mxu0
        %v2862 = vadd.f32 %v2777, %v2861
        %v2863 = vpop.f32.mrb[0].mxu0
        %v2864 = vpop.f32.mrb[0].mxu0
        %v2865 = vpop.f32.mrb[0].mxu0
        %2866 = vdwg.mxu0
        %s2867 = scalar_lea.vmem %s3, 256
        %v2868 = vld [vmem:[%s2867] sm:$0xf]
        %v2869 = vld [vmem:[%s2867 + $0x4] sm:$0xf]
        %v2870 = vld [vmem:[%s2867 + $0x8] sm:$0xf]
        %v2871 = vld [vmem:[%s2867 + $0xc] sm:$0xf]
        %v2872 = vld [vmem:[%s2867 + $0x10] sm:$0xf]
        %v2873 = vld [vmem:[%s2867 + $0x14] sm:$0xf]
        %v2874 = vld [vmem:[%s2867 + $0x18] sm:$0xf]
        %v2875 = vld [vmem:[%s2867 + $0x1c] sm:$0xf]
        %v2876 = vld [vmem:[%s2867 + $0x20] sm:$0xf]
        %v2877 = vld [vmem:[%s2867 + $0x24] sm:$0xf]
        %v2878 = vld [vmem:[%s2867 + $0x28] sm:$0xf]
        %v2879 = vld [vmem:[%s2867 + $0x2c] sm:$0xf]
        %v2880 = vld [vmem:[%s2867 + $0x30] sm:$0xf]
        %v2881 = vld [vmem:[%s2867 + $0x34] sm:$0xf]
        %v2882 = vld [vmem:[%s2867 + $0x38] sm:$0xf]
        %v2883 = vld [vmem:[%s2867 + $0x3c] sm:$0xf]
        %s2884 = scalar_lea.vmem %s6, 4
        %v2885 = vld [vmem:[%s2884] sm:$0x1]
        %v2887 = vlaneseq
        %v2888 = vshrl.u32 %v2887, 7
        %v2889 = vsub.s32 0, %v2888
        %v2890 = vrot.slane %v2885, %v2889
        %v2908 = vunpack.c.l.b16 %v2868
        %v2909 = vunpack.c.l.b16 %v2869
        %v2910 = vunpack.c.l.b16 %v2870
        %v2911 = vunpack.c.l.b16 %v2871
        %v2912 = vunpack.c.l.b16 %v2872
        %v2913 = vunpack.c.l.b16 %v2873
        %v2914 = vunpack.c.l.b16 %v2874
        %v2915 = vunpack.c.l.b16 %v2875
        %v2916 = vunpack.c.l.b16 %v2876
        %v2917 = vunpack.c.l.b16 %v2877
        %v2918 = vunpack.c.l.b16 %v2878
        %v2919 = vunpack.c.l.b16 %v2879
        %v2920 = vunpack.c.l.b16 %v2880
        %v2921 = vunpack.c.l.b16 %v2881
        %v2922 = vunpack.c.l.b16 %v2882
        %v2923 = vunpack.c.l.b16 %v2883
        %v2924 = vpack.c.b16 %v2909, %v2908
        %v2925 = vpack.c.b16 %v2911, %v2910
        %v2926 = vpack.c.b16 %v2913, %v2912
        %v2927 = vpack.c.b16 %v2915, %v2914
        %v2928 = vpack.c.b16 %v2917, %v2916
        %v2929 = vpack.c.b16 %v2919, %v2918
        %v2930 = vpack.c.b16 %v2921, %v2920
        %v2931 = vpack.c.b16 %v2923, %v2922
        %2940 = vmatprep.subr.bf16.mxu0 0
        %2941 = vmatpush1.bf16.msra.mxu0 %v2924
        %2942 = vmatprep.subr.bf16.mxu0 0
        %2943 = vmatpush1.bf16.msra.mxu0 %v2925
        %2944 = vmatprep.subr.bf16.mxu0 0
        %2945 = vmatpush1.bf16.msra.mxu0 %v2926
        %2946 = vmatprep.subr.bf16.mxu0 0
        %2947 = vmatpush1.bf16.msra.mxu0 %v2927
        %2948 = vmatprep.subr.bf16.mxu0 0
        %2949 = vmatpush1.bf16.msra.mxu0 %v2928
        %2950 = vmatprep.subr.bf16.mxu0 0
        %2951 = vmatpush1.bf16.msra.mxu0 %v2929
        %2952 = vmatprep.subr.bf16.mxu0 0
        %2953 = vmatpush1.bf16.msra.mxu0 %v2930
        %2954 = vmatprep.subr.bf16.mxu0 0
        %2955 = vmatpush1.bf16.msra.mxu0 %v2931
        %2956 = vmatprep.subr.bf16.mxu0 0
        %2957 = vmatpush1.bf16.msra.mxu0 0
        %2958 = vmatprep.subr.bf16.mxu0 0
        %2959 = vmatpush1.bf16.msra.mxu0 0
        %2960 = vmatprep.subr.bf16.mxu0 0
        %2961 = vmatpush1.bf16.msra.mxu0 0
        %2962 = vmatprep.subr.bf16.mxu0 0
        %2963 = vmatpush1.bf16.msra.mxu0 0
        %2964 = vmatprep.subr.bf16.mxu0 0
        %2965 = vmatpush1.bf16.msra.mxu0 0
        %2966 = vmatprep.subr.bf16.mxu0 0
        %2967 = vmatpush1.bf16.msra.mxu0 0
        %2968 = vmatprep.subr.bf16.mxu0 0
        %2969 = vmatpush1.bf16.msra.mxu0 0
        %2970 = vmatprep.subr.bf16.mxu0 0
        %2971 = vmatpush1.bf16.msra.mxu0 0
        %2972 = vmatprep.mubr.bf16.mxu0 0
        %2973 = vmatmul.mubr.bf16.gmra.mrb[0].mxu0 %v409
        %v2974 = vpop.f32.mrb[0].mxu0
        %v2975 = vadd.f32 %v2890, %v2974
        %v2976 = vpop.f32.mrb[0].mxu0
        %v2977 = vpop.f32.mrb[0].mxu0
        %v2978 = vpop.f32.mrb[0].mxu0
        %2979 = vdwg.mxu0
        %v2981 = vsel %vm759, %v2753, 0
        %v2984 = vsel %vm759, %v2862, 0
        %2986 = vmatprep.subr.mxu0 0.0
        %2987 = vmatpush1.xpose.msra.mxu0 %v2984
        %2988 = vmatprep.subr.mxu0 0.0
        %2989 = vmatpush1.xpose.msra.mxu0 0.0
        %2990 = vmatprep.subr.mxu0 0.0
        %2991 = vmatpush1.xpose.msra.mxu0 0.0
        %2992 = vmatprep.subr.mxu0 0.0
        %2993 = vmatpush1.xpose.msra.mxu0 0.0
        %2994 = vmatprep.subr.mxu0 0.0
        %2995 = vmatpush1.xpose.msra.mxu0 0.0
        %2996 = vmatprep.subr.mxu0 0.0
        %2997 = vmatpush1.xpose.msra.mxu0 0.0
        %2998 = vmatprep.subr.mxu0 0.0
        %2999 = vmatpush1.xpose.msra.mxu0 0.0
        %3000 = vmatprep.subr.mxu0 0.0
        %3001 = vmatpush1.xpose.msra.mxu0 0.0
        %3002 = vmatprep.subr.mxu0 0.0
        %3003 = vmatpush1.xpose.msra.mxu0 0.0
        %3004 = vmatprep.subr.mxu0 0.0
        %3005 = vmatpush1.xpose.msra.mxu0 0.0
        %3006 = vmatprep.subr.mxu0 0.0
        %3007 = vmatpush1.xpose.msra.mxu0 0.0
        %3008 = vmatprep.subr.mxu0 0.0
        %3009 = vmatpush1.xpose.msra.mxu0 0.0
        %3010 = vmatprep.subr.mxu0 0.0
        %3011 = vmatpush1.xpose.msra.mxu0 0.0
        %3012 = vmatprep.subr.mxu0 0.0
        %3013 = vmatpush1.xpose.msra.mxu0 0.0
        %3014 = vmatprep.subr.mxu0 0.0
        %3015 = vmatpush1.xpose.msra.mxu0 0.0
        %3016 = vmatprep.subr.mxu0 0.0
        %3017 = vmatpush1.xpose.msra.mxu0 0.0
        %3018 = vmatprep.subr.mxu0 0.0
        %3019 = vmatpush1.xpose.msra.mxu0 0.0
        %3020 = vmatprep.subr.mxu0 0.0
        %3021 = vmatpush1.xpose.msra.mxu0 0.0
        %3022 = vmatprep.subr.mxu0 0.0
        %3023 = vmatpush1.xpose.msra.mxu0 0.0
        %3024 = vmatprep.subr.mxu0 0.0
        %3025 = vmatpush1.xpose.msra.mxu0 0.0
        %3026 = vmatprep.subr.mxu0 0.0
        %3027 = vmatpush1.xpose.msra.mxu0 0.0
        %3028 = vmatprep.subr.mxu0 0.0
        %3029 = vmatpush1.xpose.msra.mxu0 0.0
        %3030 = vmatprep.subr.mxu0 0.0
        %3031 = vmatpush1.xpose.msra.mxu0 0.0
        %3032 = vmatprep.subr.mxu0 0.0
        %3033 = vmatpush1.xpose.msra.mxu0 0.0
        %3034 = vmatprep.subr.mxu0 0.0
        %3035 = vmatpush1.xpose.msra.mxu0 0.0
        %3036 = vmatprep.subr.mxu0 0.0
        %3037 = vmatpush1.xpose.msra.mxu0 0.0
        %3038 = vmatprep.subr.mxu0 0.0
        %3039 = vmatpush1.xpose.msra.mxu0 0.0
        %3040 = vmatprep.subr.mxu0 0.0
        %3041 = vmatpush1.xpose.msra.mxu0 0.0
        %3042 = vmatprep.subr.mxu0 0.0
        %3043 = vmatpush1.xpose.msra.mxu0 0.0
        %3044 = vmatprep.subr.mxu0 0.0
        %3045 = vmatpush1.xpose.msra.mxu0 0.0
        %3046 = vmatprep.subr.mxu0 0.0
        %3047 = vmatpush1.xpose.msra.mxu0 0.0
        %3048 = vmatprep.subr.mxu0 0.0
        %3049 = vmatpush1.xpose.msra.mxu0 0.0
        %3050 = vmatprep.mubr.f32.mxu0 0.0
        %3051 = vmatmul.mubr.f32.gmra.mrb[0].mxu0 %v2981
        %v3052 = vpop.f32.mrb[0].mxu0
        %v3053 = vadd.f32 %v757, %v3052
        %v3054 = vpop.f32.mrb[0].mxu0
        %3055 = vdwg.mxu0
        %v3056 = vsel %vm836, %v3053, -inf
        %3057 = vmax.xlane.f32.xlu0 %v3056
        %v3058 = vpop.xlane.xlu0 %3057
        %v3059 = vsub.f32 %v3053, %v3058
        %v3060 = vmul.f32 %v3059, 1.442695
        %v3061 = vpow.pop %v3060
        %v3062 = vsel %vm836, %v3061, 0.0
        %3063 = vadd.xlane.f32.xlu0 %v3062
        %v3064 = vpop.xlane.xlu0 %3063
        %v3065 = vrcp.pop %v3064
        %v3066 = vmul.f32 %v3061, %v3065
        %v3067 = vadd.f32 %v2512, %v3066
        %v3069 = vsel %vm836, %v3066, 0
        %3071 = vmatprep.subr.mxu0 0.0
        %3072 = vmatpush1.msra.mxu0 %v2975
        %3073 = vmatprep.subr.mxu0 0.0
        %3074 = vmatpush1.msra.mxu0 0.0
        %3075 = vmatprep.subr.mxu0 0.0
        %3076 = vmatpush1.msra.mxu0 0.0
        %3077 = vmatprep.subr.mxu0 0.0
        %3078 = vmatpush1.msra.mxu0 0.0
        %3079 = vmatprep.subr.mxu0 0.0
        %3080 = vmatpush1.msra.mxu0 0.0
        %3081 = vmatprep.subr.mxu0 0.0
        %3082 = vmatpush1.msra.mxu0 0.0
        %3083 = vmatprep.subr.mxu0 0.0
        %3084 = vmatpush1.msra.mxu0 0.0
        %3085 = vmatprep.subr.mxu0 0.0
        %3086 = vmatpush1.msra.mxu0 0.0
        %3087 = vmatprep.subr.mxu0 0.0
        %3088 = vmatpush1.msra.mxu0 0.0
        %3089 = vmatprep.subr.mxu0 0.0
        %3090 = vmatpush1.msra.mxu0 0.0
        %3091 = vmatprep.subr.mxu0 0.0
        %3092 = vmatpush1.msra.mxu0 0.0
        %3093 = vmatprep.subr.mxu0 0.0
        %3094 = vmatpush1.msra.mxu0 0.0
        %3095 = vmatprep.subr.mxu0 0.0
        %3096 = vmatpush1.msra.mxu0 0.0
        %3097 = vmatprep.subr.mxu0 0.0
        %3098 = vmatpush1.msra.mxu0 0.0
        %3099 = vmatprep.subr.mxu0 0.0
        %3100 = vmatpush1.msra.mxu0 0.0
        %3101 = vmatprep.subr.mxu0 0.0
        %3102 = vmatpush1.msra.mxu0 0.0
        %3103 = vmatprep.subr.mxu0 0.0
        %3104 = vmatpush1.msra.mxu0 0.0
        %3105 = vmatprep.subr.mxu0 0.0
        %3106 = vmatpush1.msra.mxu0 0.0
        %3107 = vmatprep.subr.mxu0 0.0
        %3108 = vmatpush1.msra.mxu0 0.0
        %3109 = vmatprep.subr.mxu0 0.0
        %3110 = vmatpush1.msra.mxu0 0.0
        %3111 = vmatprep.subr.mxu0 0.0
        %3112 = vmatpush1.msra.mxu0 0.0
        %3113 = vmatprep.subr.mxu0 0.0
        %3114 = vmatpush1.msra.mxu0 0.0
        %3115 = vmatprep.subr.mxu0 0.0
        %3116 = vmatpush1.msra.mxu0 0.0
        %3117 = vmatprep.subr.mxu0 0.0
        %3118 = vmatpush1.msra.mxu0 0.0
        %3119 = vmatprep.subr.mxu0 0.0
        %3120 = vmatpush1.msra.mxu0 0.0
        %3121 = vmatprep.subr.mxu0 0.0
        %3122 = vmatpush1.msra.mxu0 0.0
        %3123 = vmatprep.subr.mxu0 0.0
        %3124 = vmatpush1.msra.mxu0 0.0
        %3125 = vmatprep.subr.mxu0 0.0
        %3126 = vmatpush1.msra.mxu0 0.0
        %3127 = vmatprep.subr.mxu0 0.0
        %3128 = vmatpush1.msra.mxu0 0.0
        %3129 = vmatprep.subr.mxu0 0.0
        %3130 = vmatpush1.msra.mxu0 0.0
        %3131 = vmatprep.subr.mxu0 0.0
        %3132 = vmatpush1.msra.mxu0 0.0
        %3133 = vmatprep.subr.mxu0 0.0
        %3134 = vmatpush1.msra.mxu0 0.0
        %3135 = vmatprep.mubr.f32.mxu0 0.0
        %3136 = vmatmul.mubr.f32.gmra.mrb[0].mxu0 %v3069
        %v3137 = vpop.f32.mrb[0].mxu0
        %v3138 = vadd.f32 0.0, %v3137
        %v3139 = vpop.f32.mrb[0].mxu0
        %3140 = vdwg.mxu0
        %v3141 = vpack.c.bf16 %v3138, %v3138
        %s3142 = scalar_lea.vmem %s7, 32
        %v3143 = vld [vmem:[%s3142] sm:$0xf]
        %v3144 = vld [vmem:[%s3142 + $0x4] sm:$0xf]
        %v3147 = vunpack.c.l.b16 %v3143
        %v3148 = vunpack.c.l.b16 %v3144
        %v3149 = vpack.c.b16 %v3148, %v3147
        %v3152 = vsel %vm759, %v3141, 0
        %3154 = vmatprep.subr.bf16.mxu0 0
        %3155 = vmatpush1.bf16.msra.mxu0 %v3149
        %3156 = vmatprep.subr.bf16.mxu0 0
        %3157 = vmatpush1.bf16.msra.mxu0 0
        %3158 = vmatprep.subr.bf16.mxu0 0
        %3159 = vmatpush1.bf16.msra.mxu0 0
        %3160 = vmatprep.subr.bf16.mxu0 0
        %3161 = vmatpush1.bf16.msra.mxu0 0
        %3162 = vmatprep.subr.bf16.mxu0 0
        %3163 = vmatpush1.bf16.msra.mxu0 0
        %3164 = vmatprep.subr.bf16.mxu0 0
        %3165 = vmatpush1.bf16.msra.mxu0 0
        %3166 = vmatprep.subr.bf16.mxu0 0
        %3167 = vmatpush1.bf16.msra.mxu0 0
        %3168 = vmatprep.subr.bf16.mxu0 0
        %3169 = vmatpush1.bf16.msra.mxu0 0
        %3170 = vmatprep.subr.bf16.mxu0 0
        %3171 = vmatpush1.bf16.msra.mxu0 0
        %3172 = vmatprep.subr.bf16.mxu0 0
        %3173 = vmatpush1.bf16.msra.mxu0 0
        %3174 = vmatprep.subr.bf16.mxu0 0
        %3175 = vmatpush1.bf16.msra.mxu0 0
        %3176 = vmatprep.subr.bf16.mxu0 0
        %3177 = vmatpush1.bf16.msra.mxu0 0
        %3178 = vmatprep.subr.bf16.mxu0 0
        %3179 = vmatpush1.bf16.msra.mxu0 0
        %3180 = vmatprep.subr.bf16.mxu0 0
        %3181 = vmatpush1.bf16.msra.mxu0 0
        %3182 = vmatprep.subr.bf16.mxu0 0
        %3183 = vmatpush1.bf16.msra.mxu0 0
        %3184 = vmatprep.subr.bf16.mxu0 0
        %3185 = vmatpush1.bf16.msra.mxu0 0
        %3186 = vmatprep.mubr.bf16.mxu0 0
        %3187 = vmatmul.mubr.bf16.gmra.mrb[0].mxu0 %v3152
        %v3188 = vpop.f32.mrb[0].mxu0
        %v3189 = vadd.f32 0.0, %v3188
        %v3190 = vpop.f32.mrb[0].mxu0
        %v3191 = vpop.f32.mrb[0].mxu0
        %v3192 = vpop.f32.mrb[0].mxu0
        %3193 = vdwg.mxu0
        %v3194 = vadd.f32 %v2639, %v3189
        %s3195 = scalar_lea.vmem %s1, 320
        %v3196 = vld [vmem:[%s3195] sm:$0xf]
        %v3197 = vld [vmem:[%s3195 + $0x4] sm:$0xf]
        %v3198 = vld [vmem:[%s3195 + $0x8] sm:$0xf]
        %v3199 = vld [vmem:[%s3195 + $0xc] sm:$0xf]
        %v3200 = vld [vmem:[%s3195 + $0x10] sm:$0xf]
        %v3201 = vld [vmem:[%s3195 + $0x14] sm:$0xf]
        %v3202 = vld [vmem:[%s3195 + $0x18] sm:$0xf]
        %v3203 = vld [vmem:[%s3195 + $0x1c] sm:$0xf]
        %v3204 = vld [vmem:[%s3195 + $0x20] sm:$0xf]
        %v3205 = vld [vmem:[%s3195 + $0x24] sm:$0xf]
        %v3206 = vld [vmem:[%s3195 + $0x28] sm:$0xf]
        %v3207 = vld [vmem:[%s3195 + $0x2c] sm:$0xf]
        %v3208 = vld [vmem:[%s3195 + $0x30] sm:$0xf]
        %v3209 = vld [vmem:[%s3195 + $0x34] sm:$0xf]
        %v3210 = vld [vmem:[%s3195 + $0x38] sm:$0xf]
        %v3211 = vld [vmem:[%s3195 + $0x3c] sm:$0xf]
        %s3212 = scalar_lea.vmem %s4, 5
        %v3213 = vld [vmem:[%s3212] sm:$0x1]
        %v3215 = vlaneseq
        %v3216 = vshrl.u32 %v3215, 7
        %v3217 = vsub.s32 0, %v3216
        %v3218 = vrot.slane %v3213, %v3217
        %v3236 = vunpack.c.l.b16 %v3196
        %v3237 = vunpack.c.l.b16 %v3197
        %v3238 = vunpack.c.l.b16 %v3198
        %v3239 = vunpack.c.l.b16 %v3199
        %v3240 = vunpack.c.l.b16 %v3200
        %v3241 = vunpack.c.l.b16 %v3201
        %v3242 = vunpack.c.l.b16 %v3202
        %v3243 = vunpack.c.l.b16 %v3203
        %v3244 = vunpack.c.l.b16 %v3204
        %v3245 = vunpack.c.l.b16 %v3205
        %v3246 = vunpack.c.l.b16 %v3206
        %v3247 = vunpack.c.l.b16 %v3207
        %v3248 = vunpack.c.l.b16 %v3208
        %v3249 = vunpack.c.l.b16 %v3209
        %v3250 = vunpack.c.l.b16 %v3210
        %v3251 = vunpack.c.l.b16 %v3211
        %v3252 = vpack.c.b16 %v3237, %v3236
        %v3253 = vpack.c.b16 %v3239, %v3238
        %v3254 = vpack.c.b16 %v3241, %v3240
        %v3255 = vpack.c.b16 %v3243, %v3242
        %v3256 = vpack.c.b16 %v3245, %v3244
        %v3257 = vpack.c.b16 %v3247, %v3246
        %v3258 = vpack.c.b16 %v3249, %v3248
        %v3259 = vpack.c.b16 %v3251, %v3250
        %3268 = vmatprep.subr.bf16.mxu0 0
        %3269 = vmatpush1.bf16.msra.mxu0 %v3252
        %3270 = vmatprep.subr.bf16.mxu0 0
        %3271 = vmatpush1.bf16.msra.mxu0 %v3253
        %3272 = vmatprep.subr.bf16.mxu0 0
        %3273 = vmatpush1.bf16.msra.mxu0 %v3254
        %3274 = vmatprep.subr.bf16.mxu0 0
        %3275 = vmatpush1.bf16.msra.mxu0 %v3255
        %3276 = vmatprep.subr.bf16.mxu0 0
        %3277 = vmatpush1.bf16.msra.mxu0 %v3256
        %3278 = vmatprep.subr.bf16.mxu0 0
        %3279 = vmatpush1.bf16.msra.mxu0 %v3257
        %3280 = vmatprep.subr.bf16.mxu0 0
        %3281 = vmatpush1.bf16.msra.mxu0 %v3258
        %3282 = vmatprep.subr.bf16.mxu0 0
        %3283 = vmatpush1.bf16.msra.mxu0 %v3259
        %3284 = vmatprep.subr.bf16.mxu0 0
        %3285 = vmatpush1.bf16.msra.mxu0 0
        %3286 = vmatprep.subr.bf16.mxu0 0
        %3287 = vmatpush1.bf16.msra.mxu0 0
        %3288 = vmatprep.subr.bf16.mxu0 0
        %3289 = vmatpush1.bf16.msra.mxu0 0
        %3290 = vmatprep.subr.bf16.mxu0 0
        %3291 = vmatpush1.bf16.msra.mxu0 0
        %3292 = vmatprep.subr.bf16.mxu0 0
        %3293 = vmatpush1.bf16.msra.mxu0 0
        %3294 = vmatprep.subr.bf16.mxu0 0
        %3295 = vmatpush1.bf16.msra.mxu0 0
        %3296 = vmatprep.subr.bf16.mxu0 0
        %3297 = vmatpush1.bf16.msra.mxu0 0
        %3298 = vmatprep.subr.bf16.mxu0 0
        %3299 = vmatpush1.bf16.msra.mxu0 0
        %3300 = vmatprep.mubr.bf16.mxu0 0
        %3301 = vmatmul.mubr.bf16.gmra.mrb[0].mxu0 %v409
        %v3302 = vpop.f32.mrb[0].mxu0
        %v3303 = vadd.f32 %v3218, %v3302
        %v3304 = vpop.f32.mrb[0].mxu0
        %v3305 = vpop.f32.mrb[0].mxu0
        %v3306 = vpop.f32.mrb[0].mxu0
        %3307 = vdwg.mxu0
        %v3308 = vmul.f32 %v3303, 0.25
        %s3309 = scalar_lea.vmem %s2, 320
        %v3310 = vld [vmem:[%s3309] sm:$0xf]
        %v3311 = vld [vmem:[%s3309 + $0x4] sm:$0xf]
        %v3312 = vld [vmem:[%s3309 + $0x8] sm:$0xf]
        %v3313 = vld [vmem:[%s3309 + $0xc] sm:$0xf]
        %v3314 = vld [vmem:[%s3309 + $0x10] sm:$0xf]
        %v3315 = vld [vmem:[%s3309 + $0x14] sm:$0xf]
        %v3316 = vld [vmem:[%s3309 + $0x18] sm:$0xf]
        %v3317 = vld [vmem:[%s3309 + $0x1c] sm:$0xf]
        %v3318 = vld [vmem:[%s3309 + $0x20] sm:$0xf]
        %v3319 = vld [vmem:[%s3309 + $0x24] sm:$0xf]
        %v3320 = vld [vmem:[%s3309 + $0x28] sm:$0xf]
        %v3321 = vld [vmem:[%s3309 + $0x2c] sm:$0xf]
        %v3322 = vld [vmem:[%s3309 + $0x30] sm:$0xf]
        %v3323 = vld [vmem:[%s3309 + $0x34] sm:$0xf]
        %v3324 = vld [vmem:[%s3309 + $0x38] sm:$0xf]
        %v3325 = vld [vmem:[%s3309 + $0x3c] sm:$0xf]
        %s3326 = scalar_lea.vmem %s5, 5
        %v3327 = vld [vmem:[%s3326] sm:$0x1]
        %v3329 = vlaneseq
        %v3330 = vshrl.u32 %v3329, 7
        %v3331 = vsub.s32 0, %v3330
        %v3332 = vrot.slane %v3327, %v3331
        %v3350 = vunpack.c.l.b16 %v3310
        %v3351 = vunpack.c.l.b16 %v3311
        %v3352 = vunpack.c.l.b16 %v3312
        %v3353 = vunpack.c.l.b16 %v3313
        %v3354 = vunpack.c.l.b16 %v3314
        %v3355 = vunpack.c.l.b16 %v3315
        %v3356 = vunpack.c.l.b16 %v3316
        %v3357 = vunpack.c.l.b16 %v3317
        %v3358 = vunpack.c.l.b16 %v3318
        %v3359 = vunpack.c.l.b16 %v3319
        %v3360 = vunpack.c.l.b16 %v3320
        %v3361 = vunpack.c.l.b16 %v3321
        %v3362 = vunpack.c.l.b16 %v3322
        %v3363 = vunpack.c.l.b16 %v3323
        %v3364 = vunpack.c.l.b16 %v3324
        %v3365 = vunpack.c.l.b16 %v3325
        %v3366 = vpack.c.b16 %v3351, %v3350
        %v3367 = vpack.c.b16 %v3353, %v3352
        %v3368 = vpack.c.b16 %v3355, %v3354
        %v3369 = vpack.c.b16 %v3357, %v3356
        %v3370 = vpack.c.b16 %v3359, %v3358
        %v3371 = vpack.c.b16 %v3361, %v3360
        %v3372 = vpack.c.b16 %v3363, %v3362
        %v3373 = vpack.c.b16 %v3365, %v3364
        %3382 = vmatprep.subr.bf16.mxu0 0
        %3383 = vmatpush1.bf16.msra.mxu0 %v3366
        %3384 = vmatprep.subr.bf16.mxu0 0
        %3385 = vmatpush1.bf16.msra.mxu0 %v3367
        %3386 = vmatprep.subr.bf16.mxu0 0
        %3387 = vmatpush1.bf16.msra.mxu0 %v3368
        %3388 = vmatprep.subr.bf16.mxu0 0
        %3389 = vmatpush1.bf16.msra.mxu0 %v3369
        %3390 = vmatprep.subr.bf16.mxu0 0
        %3391 = vmatpush1.bf16.msra.mxu0 %v3370
        %3392 = vmatprep.subr.bf16.mxu0 0
        %3393 = vmatpush1.bf16.msra.mxu0 %v3371
        %3394 = vmatprep.subr.bf16.mxu0 0
        %3395 = vmatpush1.bf16.msra.mxu0 %v3372
        %3396 = vmatprep.subr.bf16.mxu0 0
        %3397 = vmatpush1.bf16.msra.mxu0 %v3373
        %3398 = vmatprep.subr.bf16.mxu0 0
        %3399 = vmatpush1.bf16.msra.mxu0 0
        %3400 = vmatprep.subr.bf16.mxu0 0
        %3401 = vmatpush1.bf16.msra.mxu0 0
        %3402 = vmatprep.subr.bf16.mxu0 0
        %3403 = vmatpush1.bf16.msra.mxu0 0
        %3404 = vmatprep.subr.bf16.mxu0 0
        %3405 = vmatpush1.bf16.msra.mxu0 0
        %3406 = vmatprep.subr.bf16.mxu0 0
        %3407 = vmatpush1.bf16.msra.mxu0 0
        %3408 = vmatprep.subr.bf16.mxu0 0
        %3409 = vmatpush1.bf16.msra.mxu0 0
        %3410 = vmatprep.subr.bf16.mxu0 0
        %3411 = vmatpush1.bf16.msra.mxu0 0
        %3412 = vmatprep.subr.bf16.mxu0 0
        %3413 = vmatpush1.bf16.msra.mxu0 0
        %3414 = vmatprep.mubr.bf16.mxu0 0
        %3415 = vmatmul.mubr.bf16.gmra.mrb[0].mxu0 %v409
        %v3416 = vpop.f32.mrb[0].mxu0
        %v3417 = vadd.f32 %v3332, %v3416
        %v3418 = vpop.f32.mrb[0].mxu0
        %v3419 = vpop.f32.mrb[0].mxu0
        %v3420 = vpop.f32.mrb[0].mxu0
        %3421 = vdwg.mxu0
        %s3422 = scalar_lea.vmem %s3, 320
        %v3423 = vld [vmem:[%s3422] sm:$0xf]
        %v3424 = vld [vmem:[%s3422 + $0x4] sm:$0xf]
        %v3425 = vld [vmem:[%s3422 + $0x8] sm:$0xf]
        %v3426 = vld [vmem:[%s3422 + $0xc] sm:$0xf]
        %v3427 = vld [vmem:[%s3422 + $0x10] sm:$0xf]
        %v3428 = vld [vmem:[%s3422 + $0x14] sm:$0xf]
        %v3429 = vld [vmem:[%s3422 + $0x18] sm:$0xf]
        %v3430 = vld [vmem:[%s3422 + $0x1c] sm:$0xf]
        %v3431 = vld [vmem:[%s3422 + $0x20] sm:$0xf]
        %v3432 = vld [vmem:[%s3422 + $0x24] sm:$0xf]
        %v3433 = vld [vmem:[%s3422 + $0x28] sm:$0xf]
        %v3434 = vld [vmem:[%s3422 + $0x2c] sm:$0xf]
        %v3435 = vld [vmem:[%s3422 + $0x30] sm:$0xf]
        %v3436 = vld [vmem:[%s3422 + $0x34] sm:$0xf]
        %v3437 = vld [vmem:[%s3422 + $0x38] sm:$0xf]
        %v3438 = vld [vmem:[%s3422 + $0x3c] sm:$0xf]
        %s3439 = scalar_lea.vmem %s6, 5
        %v3440 = vld [vmem:[%s3439] sm:$0x1]
        %v3442 = vlaneseq
        %v3443 = vshrl.u32 %v3442, 7
        %v3444 = vsub.s32 0, %v3443
        %v3445 = vrot.slane %v3440, %v3444
        %v3463 = vunpack.c.l.b16 %v3423
        %v3464 = vunpack.c.l.b16 %v3424
        %v3465 = vunpack.c.l.b16 %v3425
        %v3466 = vunpack.c.l.b16 %v3426
        %v3467 = vunpack.c.l.b16 %v3427
        %v3468 = vunpack.c.l.b16 %v3428
        %v3469 = vunpack.c.l.b16 %v3429
        %v3470 = vunpack.c.l.b16 %v3430
        %v3471 = vunpack.c.l.b16 %v3431
        %v3472 = vunpack.c.l.b16 %v3432
        %v3473 = vunpack.c.l.b16 %v3433
        %v3474 = vunpack.c.l.b16 %v3434
        %v3475 = vunpack.c.l.b16 %v3435
        %v3476 = vunpack.c.l.b16 %v3436
        %v3477 = vunpack.c.l.b16 %v3437
        %v3478 = vunpack.c.l.b16 %v3438
        %v3479 = vpack.c.b16 %v3464, %v3463
        %v3480 = vpack.c.b16 %v3466, %v3465
        %v3481 = vpack.c.b16 %v3468, %v3467
        %v3482 = vpack.c.b16 %v3470, %v3469
        %v3483 = vpack.c.b16 %v3472, %v3471
        %v3484 = vpack.c.b16 %v3474, %v3473
        %v3485 = vpack.c.b16 %v3476, %v3475
        %v3486 = vpack.c.b16 %v3478, %v3477
        %3495 = vmatprep.subr.bf16.mxu0 0
        %3496 = vmatpush1.bf16.msra.mxu0 %v3479
        %3497 = vmatprep.subr.bf16.mxu0 0
        %3498 = vmatpush1.bf16.msra.mxu0 %v3480
        %3499 = vmatprep.subr.bf16.mxu0 0
        %3500 = vmatpush1.bf16.msra.mxu0 %v3481
        %3501 = vmatprep.subr.bf16.mxu0 0
        %3502 = vmatpush1.bf16.msra.mxu0 %v3482
        %3503 = vmatprep.subr.bf16.mxu0 0
        %3504 = vmatpush1.bf16.msra.mxu0 %v3483
        %3505 = vmatprep.subr.bf16.mxu0 0
        %3506 = vmatpush1.bf16.msra.mxu0 %v3484
        %3507 = vmatprep.subr.bf16.mxu0 0
        %3508 = vmatpush1.bf16.msra.mxu0 %v3485
        %3509 = vmatprep.subr.bf16.mxu0 0
        %3510 = vmatpush1.bf16.msra.mxu0 %v3486
        %3511 = vmatprep.subr.bf16.mxu0 0
        %3512 = vmatpush1.bf16.msra.mxu0 0
        %3513 = vmatprep.subr.bf16.mxu0 0
        %3514 = vmatpush1.bf16.msra.mxu0 0
        %3515 = vmatprep.subr.bf16.mxu0 0
        %3516 = vmatpush1.bf16.msra.mxu0 0
        %3517 = vmatprep.subr.bf16.mxu0 0
        %3518 = vmatpush1.bf16.msra.mxu0 0
        %3519 = vmatprep.subr.bf16.mxu0 0
        %3520 = vmatpush1.bf16.msra.mxu0 0
        %3521 = vmatprep.subr.bf16.mxu0 0
        %3522 = vmatpush1.bf16.msra.mxu0 0
        %3523 = vmatprep.subr.bf16.mxu0 0
        %3524 = vmatpush1.bf16.msra.mxu0 0
        %3525 = vmatprep.subr.bf16.mxu0 0
        %3526 = vmatpush1.bf16.msra.mxu0 0
        %3527 = vmatprep.mubr.bf16.mxu0 0
        %3528 = vmatmul.mubr.bf16.gmra.mrb[0].mxu0 %v409
        %v3529 = vpop.f32.mrb[0].mxu0
        %v3530 = vadd.f32 %v3445, %v3529
        %v3531 = vpop.f32.mrb[0].mxu0
        %v3532 = vpop.f32.mrb[0].mxu0
        %v3533 = vpop.f32.mrb[0].mxu0
        %3534 = vdwg.mxu0
        %v3536 = vsel %vm759, %v3308, 0
        %v3539 = vsel %vm759, %v3417, 0
        %3541 = vmatprep.subr.mxu0 0.0
        %3542 = vmatpush1.xpose.msra.mxu0 %v3539
        %3543 = vmatprep.subr.mxu0 0.0
        %3544 = vmatpush1.xpose.msra.mxu0 0.0
        %3545 = vmatprep.subr.mxu0 0.0
        %3546 = vmatpush1.xpose.msra.mxu0 0.0
        %3547 = vmatprep.subr.mxu0 0.0
        %3548 = vmatpush1.xpose.msra.mxu0 0.0
        %3549 = vmatprep.subr.mxu0 0.0
        %3550 = vmatpush1.xpose.msra.mxu0 0.0
        %3551 = vmatprep.subr.mxu0 0.0
        %3552 = vmatpush1.xpose.msra.mxu0 0.0
        %3553 = vmatprep.subr.mxu0 0.0
        %3554 = vmatpush1.xpose.msra.mxu0 0.0
        %3555 = vmatprep.subr.mxu0 0.0
        %3556 = vmatpush1.xpose.msra.mxu0 0.0
        %3557 = vmatprep.subr.mxu0 0.0
        %3558 = vmatpush1.xpose.msra.mxu0 0.0
        %3559 = vmatprep.subr.mxu0 0.0
        %3560 = vmatpush1.xpose.msra.mxu0 0.0
        %3561 = vmatprep.subr.mxu0 0.0
        %3562 = vmatpush1.xpose.msra.mxu0 0.0
        %3563 = vmatprep.subr.mxu0 0.0
        %3564 = vmatpush1.xpose.msra.mxu0 0.0
        %3565 = vmatprep.subr.mxu0 0.0
        %3566 = vmatpush1.xpose.msra.mxu0 0.0
        %3567 = vmatprep.subr.mxu0 0.0
        %3568 = vmatpush1.xpose.msra.mxu0 0.0
        %3569 = vmatprep.subr.mxu0 0.0
        %3570 = vmatpush1.xpose.msra.mxu0 0.0
        %3571 = vmatprep.subr.mxu0 0.0
        %3572 = vmatpush1.xpose.msra.mxu0 0.0
        %3573 = vmatprep.subr.mxu0 0.0
        %3574 = vmatpush1.xpose.msra.mxu0 0.0
        %3575 = vmatprep.subr.mxu0 0.0
        %3576 = vmatpush1.xpose.msra.mxu0 0.0
        %3577 = vmatprep.subr.mxu0 0.0
        %3578 = vmatpush1.xpose.msra.mxu0 0.0
        %3579 = vmatprep.subr.mxu0 0.0
        %3580 = vmatpush1.xpose.msra.mxu0 0.0
        %3581 = vmatprep.subr.mxu0 0.0
        %3582 = vmatpush1.xpose.msra.mxu0 0.0
        %3583 = vmatprep.subr.mxu0 0.0
        %3584 = vmatpush1.xpose.msra.mxu0 0.0
        %3585 = vmatprep.subr.mxu0 0.0
        %3586 = vmatpush1.xpose.msra.mxu0 0.0
        %3587 = vmatprep.subr.mxu0 0.0
        %3588 = vmatpush1.xpose.msra.mxu0 0.0
        %3589 = vmatprep.subr.mxu0 0.0
        %3590 = vmatpush1.xpose.msra.mxu0 0.0
        %3591 = vmatprep.subr.mxu0 0.0
        %3592 = vmatpush1.xpose.msra.mxu0 0.0
        %3593 = vmatprep.subr.mxu0 0.0
        %3594 = vmatpush1.xpose.msra.mxu0 0.0
        %3595 = vmatprep.subr.mxu0 0.0
        %3596 = vmatpush1.xpose.msra.mxu0 0.0
        %3597 = vmatprep.subr.mxu0 0.0
        %3598 = vmatpush1.xpose.msra.mxu0 0.0
        %3599 = vmatprep.subr.mxu0 0.0
        %3600 = vmatpush1.xpose.msra.mxu0 0.0
        %3601 = vmatprep.subr.mxu0 0.0
        %3602 = vmatpush1.xpose.msra.mxu0 0.0
        %3603 = vmatprep.subr.mxu0 0.0
        %3604 = vmatpush1.xpose.msra.mxu0 0.0
        %3605 = vmatprep.mubr.f32.mxu0 0.0
        %3606 = vmatmul.mubr.f32.gmra.mrb[0].mxu0 %v3536
        %v3607 = vpop.f32.mrb[0].mxu0
        %v3608 = vadd.f32 %v757, %v3607
        %v3609 = vpop.f32.mrb[0].mxu0
        %3610 = vdwg.mxu0
        %v3611 = vsel %vm836, %v3608, -inf
        %3612 = vmax.xlane.f32.xlu0 %v3611
        %v3613 = vpop.xlane.xlu0 %3612
        %v3614 = vsub.f32 %v3608, %v3613
        %v3615 = vmul.f32 %v3614, 1.442695
        %v3616 = vpow.pop %v3615
        %v3617 = vsel %vm836, %v3616, 0.0
        %3618 = vadd.xlane.f32.xlu0 %v3617
        %v3619 = vpop.xlane.xlu0 %3618
        %v3620 = vrcp.pop %v3619
        %v3621 = vmul.f32 %v3616, %v3620
        %v3622 = vadd.f32 %v3067, %v3621
        %v3624 = vsel %vm836, %v3621, 0
        %3626 = vmatprep.subr.mxu0 0.0
        %3627 = vmatpush1.msra.mxu0 %v3530
        %3628 = vmatprep.subr.mxu0 0.0
        %3629 = vmatpush1.msra.mxu0 0.0
        %3630 = vmatprep.subr.mxu0 0.0
        %3631 = vmatpush1.msra.mxu0 0.0
        %3632 = vmatprep.subr.mxu0 0.0
        %3633 = vmatpush1.msra.mxu0 0.0
        %3634 = vmatprep.subr.mxu0 0.0
        %3635 = vmatpush1.msra.mxu0 0.0
        %3636 = vmatprep.subr.mxu0 0.0
        %3637 = vmatpush1.msra.mxu0 0.0
        %3638 = vmatprep.subr.mxu0 0.0
        %3639 = vmatpush1.msra.mxu0 0.0
        %3640 = vmatprep.subr.mxu0 0.0
        %3641 = vmatpush1.msra.mxu0 0.0
        %3642 = vmatprep.subr.mxu0 0.0
        %3643 = vmatpush1.msra.mxu0 0.0
        %3644 = vmatprep.subr.mxu0 0.0
        %3645 = vmatpush1.msra.mxu0 0.0
        %3646 = vmatprep.subr.mxu0 0.0
        %3647 = vmatpush1.msra.mxu0 0.0
        %3648 = vmatprep.subr.mxu0 0.0
        %3649 = vmatpush1.msra.mxu0 0.0
        %3650 = vmatprep.subr.mxu0 0.0
        %3651 = vmatpush1.msra.mxu0 0.0
        %3652 = vmatprep.subr.mxu0 0.0
        %3653 = vmatpush1.msra.mxu0 0.0
        %3654 = vmatprep.subr.mxu0 0.0
        %3655 = vmatpush1.msra.mxu0 0.0
        %3656 = vmatprep.subr.mxu0 0.0
        %3657 = vmatpush1.msra.mxu0 0.0
        %3658 = vmatprep.subr.mxu0 0.0
        %3659 = vmatpush1.msra.mxu0 0.0
        %3660 = vmatprep.subr.mxu0 0.0
        %3661 = vmatpush1.msra.mxu0 0.0
        %3662 = vmatprep.subr.mxu0 0.0
        %3663 = vmatpush1.msra.mxu0 0.0
        %3664 = vmatprep.subr.mxu0 0.0
        %3665 = vmatpush1.msra.mxu0 0.0
        %3666 = vmatprep.subr.mxu0 0.0
        %3667 = vmatpush1.msra.mxu0 0.0
        %3668 = vmatprep.subr.mxu0 0.0
        %3669 = vmatpush1.msra.mxu0 0.0
        %3670 = vmatprep.subr.mxu0 0.0
        %3671 = vmatpush1.msra.mxu0 0.0
        %3672 = vmatprep.subr.mxu0 0.0
        %3673 = vmatpush1.msra.mxu0 0.0
        %3674 = vmatprep.subr.mxu0 0.0
        %3675 = vmatpush1.msra.mxu0 0.0
        %3676 = vmatprep.subr.mxu0 0.0
        %3677 = vmatpush1.msra.mxu0 0.0
        %3678 = vmatprep.subr.mxu0 0.0
        %3679 = vmatpush1.msra.mxu0 0.0
        %3680 = vmatprep.subr.mxu0 0.0
        %3681 = vmatpush1.msra.mxu0 0.0
        %3682 = vmatprep.subr.mxu0 0.0
        %3683 = vmatpush1.msra.mxu0 0.0
        %3684 = vmatprep.subr.mxu0 0.0
        %3685 = vmatpush1.msra.mxu0 0.0
        %3686 = vmatprep.subr.mxu0 0.0
        %3687 = vmatpush1.msra.mxu0 0.0
        %3688 = vmatprep.subr.mxu0 0.0
        %3689 = vmatpush1.msra.mxu0 0.0
        %3690 = vmatprep.mubr.f32.mxu0 0.0
        %3691 = vmatmul.mubr.f32.gmra.mrb[0].mxu0 %v3624
        %v3692 = vpop.f32.mrb[0].mxu0
        %v3693 = vadd.f32 0.0, %v3692
        %v3694 = vpop.f32.mrb[0].mxu0
        %3695 = vdwg.mxu0
        %v3696 = vpack.c.bf16 %v3693, %v3693
        %s3697 = scalar_lea.vmem %s7, 40
        %v3698 = vld [vmem:[%s3697] sm:$0xf]
        %v3699 = vld [vmem:[%s3697 + $0x4] sm:$0xf]
        %v3702 = vunpack.c.l.b16 %v3698
        %v3703 = vunpack.c.l.b16 %v3699
        %v3704 = vpack.c.b16 %v3703, %v3702
        %v3707 = vsel %vm759, %v3696, 0
        %3709 = vmatprep.subr.bf16.mxu0 0
        %3710 = vmatpush1.bf16.msra.mxu0 %v3704
        %3711 = vmatprep.subr.bf16.mxu0 0
        %3712 = vmatpush1.bf16.msra.mxu0 0
        %3713 = vmatprep.subr.bf16.mxu0 0
        %3714 = vmatpush1.bf16.msra.mxu0 0
        %3715 = vmatprep.subr.bf16.mxu0 0
        %3716 = vmatpush1.bf16.msra.mxu0 0
        %3717 = vmatprep.subr.bf16.mxu0 0
        %3718 = vmatpush1.bf16.msra.mxu0 0
        %3719 = vmatprep.subr.bf16.mxu0 0
        %3720 = vmatpush1.bf16.msra.mxu0 0
        %3721 = vmatprep.subr.bf16.mxu0 0
        %3722 = vmatpush1.bf16.msra.mxu0 0
        %3723 = vmatprep.subr.bf16.mxu0 0
        %3724 = vmatpush1.bf16.msra.mxu0 0
        %3725 = vmatprep.subr.bf16.mxu0 0
        %3726 = vmatpush1.bf16.msra.mxu0 0
        %3727 = vmatprep.subr.bf16.mxu0 0
        %3728 = vmatpush1.bf16.msra.mxu0 0
        %3729 = vmatprep.subr.bf16.mxu0 0
        %3730 = vmatpush1.bf16.msra.mxu0 0
        %3731 = vmatprep.subr.bf16.mxu0 0
        %3732 = vmatpush1.bf16.msra.mxu0 0
        %3733 = vmatprep.subr.bf16.mxu0 0
        %3734 = vmatpush1.bf16.msra.mxu0 0
        %3735 = vmatprep.subr.bf16.mxu0 0
        %3736 = vmatpush1.bf16.msra.mxu0 0
        %3737 = vmatprep.subr.bf16.mxu0 0
        %3738 = vmatpush1.bf16.msra.mxu0 0
        %3739 = vmatprep.subr.bf16.mxu0 0
        %3740 = vmatpush1.bf16.msra.mxu0 0
        %3741 = vmatprep.mubr.bf16.mxu0 0
        %3742 = vmatmul.mubr.bf16.gmra.mrb[0].mxu0 %v3707
        %v3743 = vpop.f32.mrb[0].mxu0
        %v3744 = vadd.f32 0.0, %v3743
        %v3745 = vpop.f32.mrb[0].mxu0
        %v3746 = vpop.f32.mrb[0].mxu0
        %v3747 = vpop.f32.mrb[0].mxu0
        %3748 = vdwg.mxu0
        %v3749 = vadd.f32 %v3194, %v3744
        %s3750 = scalar_lea.vmem %s1, 384
        %v3751 = vld [vmem:[%s3750] sm:$0xf]
        %v3752 = vld [vmem:[%s3750 + $0x4] sm:$0xf]
        %v3753 = vld [vmem:[%s3750 + $0x8] sm:$0xf]
        %v3754 = vld [vmem:[%s3750 + $0xc] sm:$0xf]
        %v3755 = vld [vmem:[%s3750 + $0x10] sm:$0xf]
        %v3756 = vld [vmem:[%s3750 + $0x14] sm:$0xf]
        %v3757 = vld [vmem:[%s3750 + $0x18] sm:$0xf]
        %v3758 = vld [vmem:[%s3750 + $0x1c] sm:$0xf]
        %v3759 = vld [vmem:[%s3750 + $0x20] sm:$0xf]
        %v3760 = vld [vmem:[%s3750 + $0x24] sm:$0xf]
        %v3761 = vld [vmem:[%s3750 + $0x28] sm:$0xf]
        %v3762 = vld [vmem:[%s3750 + $0x2c] sm:$0xf]
        %v3763 = vld [vmem:[%s3750 + $0x30] sm:$0xf]
        %v3764 = vld [vmem:[%s3750 + $0x34] sm:$0xf]
        %v3765 = vld [vmem:[%s3750 + $0x38] sm:$0xf]
        %v3766 = vld [vmem:[%s3750 + $0x3c] sm:$0xf]
        %s3767 = scalar_lea.vmem %s4, 6
        %v3768 = vld [vmem:[%s3767] sm:$0x1]
        %v3770 = vlaneseq
        %v3771 = vshrl.u32 %v3770, 7
        %v3772 = vsub.s32 0, %v3771
        %v3773 = vrot.slane %v3768, %v3772
        %v3791 = vunpack.c.l.b16 %v3751
        %v3792 = vunpack.c.l.b16 %v3752
        %v3793 = vunpack.c.l.b16 %v3753
        %v3794 = vunpack.c.l.b16 %v3754
        %v3795 = vunpack.c.l.b16 %v3755
        %v3796 = vunpack.c.l.b16 %v3756
        %v3797 = vunpack.c.l.b16 %v3757
        %v3798 = vunpack.c.l.b16 %v3758
        %v3799 = vunpack.c.l.b16 %v3759
        %v3800 = vunpack.c.l.b16 %v3760
        %v3801 = vunpack.c.l.b16 %v3761
        %v3802 = vunpack.c.l.b16 %v3762
        %v3803 = vunpack.c.l.b16 %v3763
        %v3804 = vunpack.c.l.b16 %v3764
        %v3805 = vunpack.c.l.b16 %v3765
        %v3806 = vunpack.c.l.b16 %v3766
        %v3807 = vpack.c.b16 %v3792, %v3791
        %v3808 = vpack.c.b16 %v3794, %v3793
        %v3809 = vpack.c.b16 %v3796, %v3795
        %v3810 = vpack.c.b16 %v3798, %v3797
        %v3811 = vpack.c.b16 %v3800, %v3799
        %v3812 = vpack.c.b16 %v3802, %v3801
        %v3813 = vpack.c.b16 %v3804, %v3803
        %v3814 = vpack.c.b16 %v3806, %v3805
        %3823 = vmatprep.subr.bf16.mxu0 0
        %3824 = vmatpush1.bf16.msra.mxu0 %v3807
        %3825 = vmatprep.subr.bf16.mxu0 0
        %3826 = vmatpush1.bf16.msra.mxu0 %v3808
        %3827 = vmatprep.subr.bf16.mxu0 0
        %3828 = vmatpush1.bf16.msra.mxu0 %v3809
        %3829 = vmatprep.subr.bf16.mxu0 0
        %3830 = vmatpush1.bf16.msra.mxu0 %v3810
        %3831 = vmatprep.subr.bf16.mxu0 0
        %3832 = vmatpush1.bf16.msra.mxu0 %v3811
        %3833 = vmatprep.subr.bf16.mxu0 0
        %3834 = vmatpush1.bf16.msra.mxu0 %v3812
        %3835 = vmatprep.subr.bf16.mxu0 0
        %3836 = vmatpush1.bf16.msra.mxu0 %v3813
        %3837 = vmatprep.subr.bf16.mxu0 0
        %3838 = vmatpush1.bf16.msra.mxu0 %v3814
        %3839 = vmatprep.subr.bf16.mxu0 0
        %3840 = vmatpush1.bf16.msra.mxu0 0
        %3841 = vmatprep.subr.bf16.mxu0 0
        %3842 = vmatpush1.bf16.msra.mxu0 0
        %3843 = vmatprep.subr.bf16.mxu0 0
        %3844 = vmatpush1.bf16.msra.mxu0 0
        %3845 = vmatprep.subr.bf16.mxu0 0
        %3846 = vmatpush1.bf16.msra.mxu0 0
        %3847 = vmatprep.subr.bf16.mxu0 0
        %3848 = vmatpush1.bf16.msra.mxu0 0
        %3849 = vmatprep.subr.bf16.mxu0 0
        %3850 = vmatpush1.bf16.msra.mxu0 0
        %3851 = vmatprep.subr.bf16.mxu0 0
        %3852 = vmatpush1.bf16.msra.mxu0 0
        %3853 = vmatprep.subr.bf16.mxu0 0
        %3854 = vmatpush1.bf16.msra.mxu0 0
        %3855 = vmatprep.mubr.bf16.mxu0 0
        %3856 = vmatmul.mubr.bf16.gmra.mrb[0].mxu0 %v409
        %v3857 = vpop.f32.mrb[0].mxu0
        %v3858 = vadd.f32 %v3773, %v3857
        %v3859 = vpop.f32.mrb[0].mxu0
        %v3860 = vpop.f32.mrb[0].mxu0
        %v3861 = vpop.f32.mrb[0].mxu0
        %3862 = vdwg.mxu0
        %v3863 = vmul.f32 %v3858, 0.25
        %s3864 = scalar_lea.vmem %s2, 384
        %v3865 = vld [vmem:[%s3864] sm:$0xf]
        %v3866 = vld [vmem:[%s3864 + $0x4] sm:$0xf]
        %v3867 = vld [vmem:[%s3864 + $0x8] sm:$0xf]
        %v3868 = vld [vmem:[%s3864 + $0xc] sm:$0xf]
        %v3869 = vld [vmem:[%s3864 + $0x10] sm:$0xf]
        %v3870 = vld [vmem:[%s3864 + $0x14] sm:$0xf]
        %v3871 = vld [vmem:[%s3864 + $0x18] sm:$0xf]
        %v3872 = vld [vmem:[%s3864 + $0x1c] sm:$0xf]
        %v3873 = vld [vmem:[%s3864 + $0x20] sm:$0xf]
        %v3874 = vld [vmem:[%s3864 + $0x24] sm:$0xf]
        %v3875 = vld [vmem:[%s3864 + $0x28] sm:$0xf]
        %v3876 = vld [vmem:[%s3864 + $0x2c] sm:$0xf]
        %v3877 = vld [vmem:[%s3864 + $0x30] sm:$0xf]
        %v3878 = vld [vmem:[%s3864 + $0x34] sm:$0xf]
        %v3879 = vld [vmem:[%s3864 + $0x38] sm:$0xf]
        %v3880 = vld [vmem:[%s3864 + $0x3c] sm:$0xf]
        %s3881 = scalar_lea.vmem %s5, 6
        %v3882 = vld [vmem:[%s3881] sm:$0x1]
        %v3884 = vlaneseq
        %v3885 = vshrl.u32 %v3884, 7
        %v3886 = vsub.s32 0, %v3885
        %v3887 = vrot.slane %v3882, %v3886
        %v3905 = vunpack.c.l.b16 %v3865
        %v3906 = vunpack.c.l.b16 %v3866
        %v3907 = vunpack.c.l.b16 %v3867
        %v3908 = vunpack.c.l.b16 %v3868
        %v3909 = vunpack.c.l.b16 %v3869
        %v3910 = vunpack.c.l.b16 %v3870
        %v3911 = vunpack.c.l.b16 %v3871
        %v3912 = vunpack.c.l.b16 %v3872
        %v3913 = vunpack.c.l.b16 %v3873
        %v3914 = vunpack.c.l.b16 %v3874
        %v3915 = vunpack.c.l.b16 %v3875
        %v3916 = vunpack.c.l.b16 %v3876
        %v3917 = vunpack.c.l.b16 %v3877
        %v3918 = vunpack.c.l.b16 %v3878
        %v3919 = vunpack.c.l.b16 %v3879
        %v3920 = vunpack.c.l.b16 %v3880
        %v3921 = vpack.c.b16 %v3906, %v3905
        %v3922 = vpack.c.b16 %v3908, %v3907
        %v3923 = vpack.c.b16 %v3910, %v3909
        %v3924 = vpack.c.b16 %v3912, %v3911
        %v3925 = vpack.c.b16 %v3914, %v3913
        %v3926 = vpack.c.b16 %v3916, %v3915
        %v3927 = vpack.c.b16 %v3918, %v3917
        %v3928 = vpack.c.b16 %v3920, %v3919
        %3937 = vmatprep.subr.bf16.mxu0 0
        %3938 = vmatpush1.bf16.msra.mxu0 %v3921
        %3939 = vmatprep.subr.bf16.mxu0 0
        %3940 = vmatpush1.bf16.msra.mxu0 %v3922
        %3941 = vmatprep.subr.bf16.mxu0 0
        %3942 = vmatpush1.bf16.msra.mxu0 %v3923
        %3943 = vmatprep.subr.bf16.mxu0 0
        %3944 = vmatpush1.bf16.msra.mxu0 %v3924
        %3945 = vmatprep.subr.bf16.mxu0 0
        %3946 = vmatpush1.bf16.msra.mxu0 %v3925
        %3947 = vmatprep.subr.bf16.mxu0 0
        %3948 = vmatpush1.bf16.msra.mxu0 %v3926
        %3949 = vmatprep.subr.bf16.mxu0 0
        %3950 = vmatpush1.bf16.msra.mxu0 %v3927
        %3951 = vmatprep.subr.bf16.mxu0 0
        %3952 = vmatpush1.bf16.msra.mxu0 %v3928
        %3953 = vmatprep.subr.bf16.mxu0 0
        %3954 = vmatpush1.bf16.msra.mxu0 0
        %3955 = vmatprep.subr.bf16.mxu0 0
        %3956 = vmatpush1.bf16.msra.mxu0 0
        %3957 = vmatprep.subr.bf16.mxu0 0
        %3958 = vmatpush1.bf16.msra.mxu0 0
        %3959 = vmatprep.subr.bf16.mxu0 0
        %3960 = vmatpush1.bf16.msra.mxu0 0
        %3961 = vmatprep.subr.bf16.mxu0 0
        %3962 = vmatpush1.bf16.msra.mxu0 0
        %3963 = vmatprep.subr.bf16.mxu0 0
        %3964 = vmatpush1.bf16.msra.mxu0 0
        %3965 = vmatprep.subr.bf16.mxu0 0
        %3966 = vmatpush1.bf16.msra.mxu0 0
        %3967 = vmatprep.subr.bf16.mxu0 0
        %3968 = vmatpush1.bf16.msra.mxu0 0
        %3969 = vmatprep.mubr.bf16.mxu0 0
        %3970 = vmatmul.mubr.bf16.gmra.mrb[0].mxu0 %v409
        %v3971 = vpop.f32.mrb[0].mxu0
        %v3972 = vadd.f32 %v3887, %v3971
        %v3973 = vpop.f32.mrb[0].mxu0
        %v3974 = vpop.f32.mrb[0].mxu0
        %v3975 = vpop.f32.mrb[0].mxu0
        %3976 = vdwg.mxu0
        %s3977 = scalar_lea.vmem %s3, 384
        %v3978 = vld [vmem:[%s3977] sm:$0xf]
        %v3979 = vld [vmem:[%s3977 + $0x4] sm:$0xf]
        %v3980 = vld [vmem:[%s3977 + $0x8] sm:$0xf]
        %v3981 = vld [vmem:[%s3977 + $0xc] sm:$0xf]
        %v3982 = vld [vmem:[%s3977 + $0x10] sm:$0xf]
        %v3983 = vld [vmem:[%s3977 + $0x14] sm:$0xf]
        %v3984 = vld [vmem:[%s3977 + $0x18] sm:$0xf]
        %v3985 = vld [vmem:[%s3977 + $0x1c] sm:$0xf]
        %v3986 = vld [vmem:[%s3977 + $0x20] sm:$0xf]
        %v3987 = vld [vmem:[%s3977 + $0x24] sm:$0xf]
        %v3988 = vld [vmem:[%s3977 + $0x28] sm:$0xf]
        %v3989 = vld [vmem:[%s3977 + $0x2c] sm:$0xf]
        %v3990 = vld [vmem:[%s3977 + $0x30] sm:$0xf]
        %v3991 = vld [vmem:[%s3977 + $0x34] sm:$0xf]
        %v3992 = vld [vmem:[%s3977 + $0x38] sm:$0xf]
        %v3993 = vld [vmem:[%s3977 + $0x3c] sm:$0xf]
        %s3994 = scalar_lea.vmem %s6, 6
        %v3995 = vld [vmem:[%s3994] sm:$0x1]
        %v3997 = vlaneseq
        %v3998 = vshrl.u32 %v3997, 7
        %v3999 = vsub.s32 0, %v3998
        %v4000 = vrot.slane %v3995, %v3999
        %v4018 = vunpack.c.l.b16 %v3978
        %v4019 = vunpack.c.l.b16 %v3979
        %v4020 = vunpack.c.l.b16 %v3980
        %v4021 = vunpack.c.l.b16 %v3981
        %v4022 = vunpack.c.l.b16 %v3982
        %v4023 = vunpack.c.l.b16 %v3983
        %v4024 = vunpack.c.l.b16 %v3984
        %v4025 = vunpack.c.l.b16 %v3985
        %v4026 = vunpack.c.l.b16 %v3986
        %v4027 = vunpack.c.l.b16 %v3987
        %v4028 = vunpack.c.l.b16 %v3988
        %v4029 = vunpack.c.l.b16 %v3989
        %v4030 = vunpack.c.l.b16 %v3990
        %v4031 = vunpack.c.l.b16 %v3991
        %v4032 = vunpack.c.l.b16 %v3992
        %v4033 = vunpack.c.l.b16 %v3993
        %v4034 = vpack.c.b16 %v4019, %v4018
        %v4035 = vpack.c.b16 %v4021, %v4020
        %v4036 = vpack.c.b16 %v4023, %v4022
        %v4037 = vpack.c.b16 %v4025, %v4024
        %v4038 = vpack.c.b16 %v4027, %v4026
        %v4039 = vpack.c.b16 %v4029, %v4028
        %v4040 = vpack.c.b16 %v4031, %v4030
        %v4041 = vpack.c.b16 %v4033, %v4032
        %4050 = vmatprep.subr.bf16.mxu0 0
        %4051 = vmatpush1.bf16.msra.mxu0 %v4034
        %4052 = vmatprep.subr.bf16.mxu0 0
        %4053 = vmatpush1.bf16.msra.mxu0 %v4035
        %4054 = vmatprep.subr.bf16.mxu0 0
        %4055 = vmatpush1.bf16.msra.mxu0 %v4036
        %4056 = vmatprep.subr.bf16.mxu0 0
        %4057 = vmatpush1.bf16.msra.mxu0 %v4037
        %4058 = vmatprep.subr.bf16.mxu0 0
        %4059 = vmatpush1.bf16.msra.mxu0 %v4038
        %4060 = vmatprep.subr.bf16.mxu0 0
        %4061 = vmatpush1.bf16.msra.mxu0 %v4039
        %4062 = vmatprep.subr.bf16.mxu0 0
        %4063 = vmatpush1.bf16.msra.mxu0 %v4040
        %4064 = vmatprep.subr.bf16.mxu0 0
        %4065 = vmatpush1.bf16.msra.mxu0 %v4041
        %4066 = vmatprep.subr.bf16.mxu0 0
        %4067 = vmatpush1.bf16.msra.mxu0 0
        %4068 = vmatprep.subr.bf16.mxu0 0
        %4069 = vmatpush1.bf16.msra.mxu0 0
        %4070 = vmatprep.subr.bf16.mxu0 0
        %4071 = vmatpush1.bf16.msra.mxu0 0
        %4072 = vmatprep.subr.bf16.mxu0 0
        %4073 = vmatpush1.bf16.msra.mxu0 0
        %4074 = vmatprep.subr.bf16.mxu0 0
        %4075 = vmatpush1.bf16.msra.mxu0 0
        %4076 = vmatprep.subr.bf16.mxu0 0
        %4077 = vmatpush1.bf16.msra.mxu0 0
        %4078 = vmatprep.subr.bf16.mxu0 0
        %4079 = vmatpush1.bf16.msra.mxu0 0
        %4080 = vmatprep.subr.bf16.mxu0 0
        %4081 = vmatpush1.bf16.msra.mxu0 0
        %4082 = vmatprep.mubr.bf16.mxu0 0
        %4083 = vmatmul.mubr.bf16.gmra.mrb[0].mxu0 %v409
        %v4084 = vpop.f32.mrb[0].mxu0
        %v4085 = vadd.f32 %v4000, %v4084
        %v4086 = vpop.f32.mrb[0].mxu0
        %v4087 = vpop.f32.mrb[0].mxu0
        %v4088 = vpop.f32.mrb[0].mxu0
        %4089 = vdwg.mxu0
        %v4091 = vsel %vm759, %v3863, 0
        %v4094 = vsel %vm759, %v3972, 0
        %4096 = vmatprep.subr.mxu0 0.0
        %4097 = vmatpush1.xpose.msra.mxu0 %v4094
        %4098 = vmatprep.subr.mxu0 0.0
        %4099 = vmatpush1.xpose.msra.mxu0 0.0
        %4100 = vmatprep.subr.mxu0 0.0
        %4101 = vmatpush1.xpose.msra.mxu0 0.0
        %4102 = vmatprep.subr.mxu0 0.0
        %4103 = vmatpush1.xpose.msra.mxu0 0.0
        %4104 = vmatprep.subr.mxu0 0.0
        %4105 = vmatpush1.xpose.msra.mxu0 0.0
        %4106 = vmatprep.subr.mxu0 0.0
        %4107 = vmatpush1.xpose.msra.mxu0 0.0
        %4108 = vmatprep.subr.mxu0 0.0
        %4109 = vmatpush1.xpose.msra.mxu0 0.0
        %4110 = vmatprep.subr.mxu0 0.0
        %4111 = vmatpush1.xpose.msra.mxu0 0.0
        %4112 = vmatprep.subr.mxu0 0.0
        %4113 = vmatpush1.xpose.msra.mxu0 0.0
        %4114 = vmatprep.subr.mxu0 0.0
        %4115 = vmatpush1.xpose.msra.mxu0 0.0
        %4116 = vmatprep.subr.mxu0 0.0
        %4117 = vmatpush1.xpose.msra.mxu0 0.0
        %4118 = vmatprep.subr.mxu0 0.0
        %4119 = vmatpush1.xpose.msra.mxu0 0.0
        %4120 = vmatprep.subr.mxu0 0.0
        %4121 = vmatpush1.xpose.msra.mxu0 0.0
        %4122 = vmatprep.subr.mxu0 0.0
        %4123 = vmatpush1.xpose.msra.mxu0 0.0
        %4124 = vmatprep.subr.mxu0 0.0
        %4125 = vmatpush1.xpose.msra.mxu0 0.0
        %4126 = vmatprep.subr.mxu0 0.0
        %4127 = vmatpush1.xpose.msra.mxu0 0.0
        %4128 = vmatprep.subr.mxu0 0.0
        %4129 = vmatpush1.xpose.msra.mxu0 0.0
        %4130 = vmatprep.subr.mxu0 0.0
        %4131 = vmatpush1.xpose.msra.mxu0 0.0
        %4132 = vmatprep.subr.mxu0 0.0
        %4133 = vmatpush1.xpose.msra.mxu0 0.0
        %4134 = vmatprep.subr.mxu0 0.0
        %4135 = vmatpush1.xpose.msra.mxu0 0.0
        %4136 = vmatprep.subr.mxu0 0.0
        %4137 = vmatpush1.xpose.msra.mxu0 0.0
        %4138 = vmatprep.subr.mxu0 0.0
        %4139 = vmatpush1.xpose.msra.mxu0 0.0
        %4140 = vmatprep.subr.mxu0 0.0
        %4141 = vmatpush1.xpose.msra.mxu0 0.0
        %4142 = vmatprep.subr.mxu0 0.0
        %4143 = vmatpush1.xpose.msra.mxu0 0.0
        %4144 = vmatprep.subr.mxu0 0.0
        %4145 = vmatpush1.xpose.msra.mxu0 0.0
        %4146 = vmatprep.subr.mxu0 0.0
        %4147 = vmatpush1.xpose.msra.mxu0 0.0
        %4148 = vmatprep.subr.mxu0 0.0
        %4149 = vmatpush1.xpose.msra.mxu0 0.0
        %4150 = vmatprep.subr.mxu0 0.0
        %4151 = vmatpush1.xpose.msra.mxu0 0.0
        %4152 = vmatprep.subr.mxu0 0.0
        %4153 = vmatpush1.xpose.msra.mxu0 0.0
        %4154 = vmatprep.subr.mxu0 0.0
        %4155 = vmatpush1.xpose.msra.mxu0 0.0
        %4156 = vmatprep.subr.mxu0 0.0
        %4157 = vmatpush1.xpose.msra.mxu0 0.0
        %4158 = vmatprep.subr.mxu0 0.0
        %4159 = vmatpush1.xpose.msra.mxu0 0.0
        %4160 = vmatprep.mubr.f32.mxu0 0.0
        %4161 = vmatmul.mubr.f32.gmra.mrb[0].mxu0 %v4091
        %v4162 = vpop.f32.mrb[0].mxu0
        %v4163 = vadd.f32 %v757, %v4162
        %v4164 = vpop.f32.mrb[0].mxu0
        %4165 = vdwg.mxu0
        %v4166 = vsel %vm836, %v4163, -inf
        %4167 = vmax.xlane.f32.xlu0 %v4166
        %v4168 = vpop.xlane.xlu0 %4167
        %v4169 = vsub.f32 %v4163, %v4168
        %v4170 = vmul.f32 %v4169, 1.442695
        %v4171 = vpow.pop %v4170
        %v4172 = vsel %vm836, %v4171, 0.0
        %4173 = vadd.xlane.f32.xlu0 %v4172
        %v4174 = vpop.xlane.xlu0 %4173
        %v4175 = vrcp.pop %v4174
        %v4176 = vmul.f32 %v4171, %v4175
        %v4177 = vadd.f32 %v3622, %v4176
        %v4179 = vsel %vm836, %v4176, 0
        %4181 = vmatprep.subr.mxu0 0.0
        %4182 = vmatpush1.msra.mxu0 %v4085
        %4183 = vmatprep.subr.mxu0 0.0
        %4184 = vmatpush1.msra.mxu0 0.0
        %4185 = vmatprep.subr.mxu0 0.0
        %4186 = vmatpush1.msra.mxu0 0.0
        %4187 = vmatprep.subr.mxu0 0.0
        %4188 = vmatpush1.msra.mxu0 0.0
        %4189 = vmatprep.subr.mxu0 0.0
        %4190 = vmatpush1.msra.mxu0 0.0
        %4191 = vmatprep.subr.mxu0 0.0
        %4192 = vmatpush1.msra.mxu0 0.0
        %4193 = vmatprep.subr.mxu0 0.0
        %4194 = vmatpush1.msra.mxu0 0.0
        %4195 = vmatprep.subr.mxu0 0.0
        %4196 = vmatpush1.msra.mxu0 0.0
        %4197 = vmatprep.subr.mxu0 0.0
        %4198 = vmatpush1.msra.mxu0 0.0
        %4199 = vmatprep.subr.mxu0 0.0
        %4200 = vmatpush1.msra.mxu0 0.0
        %4201 = vmatprep.subr.mxu0 0.0
        %4202 = vmatpush1.msra.mxu0 0.0
        %4203 = vmatprep.subr.mxu0 0.0
        %4204 = vmatpush1.msra.mxu0 0.0
        %4205 = vmatprep.subr.mxu0 0.0
        %4206 = vmatpush1.msra.mxu0 0.0
        %4207 = vmatprep.subr.mxu0 0.0
        %4208 = vmatpush1.msra.mxu0 0.0
        %4209 = vmatprep.subr.mxu0 0.0
        %4210 = vmatpush1.msra.mxu0 0.0
        %4211 = vmatprep.subr.mxu0 0.0
        %4212 = vmatpush1.msra.mxu0 0.0
        %4213 = vmatprep.subr.mxu0 0.0
        %4214 = vmatpush1.msra.mxu0 0.0
        %4215 = vmatprep.subr.mxu0 0.0
        %4216 = vmatpush1.msra.mxu0 0.0
        %4217 = vmatprep.subr.mxu0 0.0
        %4218 = vmatpush1.msra.mxu0 0.0
        %4219 = vmatprep.subr.mxu0 0.0
        %4220 = vmatpush1.msra.mxu0 0.0
        %4221 = vmatprep.subr.mxu0 0.0
        %4222 = vmatpush1.msra.mxu0 0.0
        %4223 = vmatprep.subr.mxu0 0.0
        %4224 = vmatpush1.msra.mxu0 0.0
        %4225 = vmatprep.subr.mxu0 0.0
        %4226 = vmatpush1.msra.mxu0 0.0
        %4227 = vmatprep.subr.mxu0 0.0
        %4228 = vmatpush1.msra.mxu0 0.0
        %4229 = vmatprep.subr.mxu0 0.0
        %4230 = vmatpush1.msra.mxu0 0.0
        %4231 = vmatprep.subr.mxu0 0.0
        %4232 = vmatpush1.msra.mxu0 0.0
        %4233 = vmatprep.subr.mxu0 0.0
        %4234 = vmatpush1.msra.mxu0 0.0
        %4235 = vmatprep.subr.mxu0 0.0
        %4236 = vmatpush1.msra.mxu0 0.0
        %4237 = vmatprep.subr.mxu0 0.0
        %4238 = vmatpush1.msra.mxu0 0.0
        %4239 = vmatprep.subr.mxu0 0.0
        %4240 = vmatpush1.msra.mxu0 0.0
        %4241 = vmatprep.subr.mxu0 0.0
        %4242 = vmatpush1.msra.mxu0 0.0
        %4243 = vmatprep.subr.mxu0 0.0
        %4244 = vmatpush1.msra.mxu0 0.0
        %4245 = vmatprep.mubr.f32.mxu0 0.0
        %4246 = vmatmul.mubr.f32.gmra.mrb[0].mxu0 %v4179
        %v4247 = vpop.f32.mrb[0].mxu0
        %v4248 = vadd.f32 0.0, %v4247
        %v4249 = vpop.f32.mrb[0].mxu0
        %4250 = vdwg.mxu0
        %v4251 = vpack.c.bf16 %v4248, %v4248
        %s4252 = scalar_lea.vmem %s7, 48
        %v4253 = vld [vmem:[%s4252] sm:$0xf]
        %v4254 = vld [vmem:[%s4252 + $0x4] sm:$0xf]
        %v4257 = vunpack.c.l.b16 %v4253
        %v4258 = vunpack.c.l.b16 %v4254
        %v4259 = vpack.c.b16 %v4258, %v4257
        %v4262 = vsel %vm759, %v4251, 0
        %4264 = vmatprep.subr.bf16.mxu0 0
        %4265 = vmatpush1.bf16.msra.mxu0 %v4259
        %4266 = vmatprep.subr.bf16.mxu0 0
        %4267 = vmatpush1.bf16.msra.mxu0 0
        %4268 = vmatprep.subr.bf16.mxu0 0
        %4269 = vmatpush1.bf16.msra.mxu0 0
        %4270 = vmatprep.subr.bf16.mxu0 0
        %4271 = vmatpush1.bf16.msra.mxu0 0
        %4272 = vmatprep.subr.bf16.mxu0 0
        %4273 = vmatpush1.bf16.msra.mxu0 0
        %4274 = vmatprep.subr.bf16.mxu0 0
        %4275 = vmatpush1.bf16.msra.mxu0 0
        %4276 = vmatprep.subr.bf16.mxu0 0
        %4277 = vmatpush1.bf16.msra.mxu0 0
        %4278 = vmatprep.subr.bf16.mxu0 0
        %4279 = vmatpush1.bf16.msra.mxu0 0
        %4280 = vmatprep.subr.bf16.mxu0 0
        %4281 = vmatpush1.bf16.msra.mxu0 0
        %4282 = vmatprep.subr.bf16.mxu0 0
        %4283 = vmatpush1.bf16.msra.mxu0 0
        %4284 = vmatprep.subr.bf16.mxu0 0
        %4285 = vmatpush1.bf16.msra.mxu0 0
        %4286 = vmatprep.subr.bf16.mxu0 0
        %4287 = vmatpush1.bf16.msra.mxu0 0
        %4288 = vmatprep.subr.bf16.mxu0 0
        %4289 = vmatpush1.bf16.msra.mxu0 0
        %4290 = vmatprep.subr.bf16.mxu0 0
        %4291 = vmatpush1.bf16.msra.mxu0 0
        %4292 = vmatprep.subr.bf16.mxu0 0
        %4293 = vmatpush1.bf16.msra.mxu0 0
        %4294 = vmatprep.subr.bf16.mxu0 0
        %4295 = vmatpush1.bf16.msra.mxu0 0
        %4296 = vmatprep.mubr.bf16.mxu0 0
        %4297 = vmatmul.mubr.bf16.gmra.mrb[0].mxu0 %v4262
        %v4298 = vpop.f32.mrb[0].mxu0
        %v4299 = vadd.f32 0.0, %v4298
        %v4300 = vpop.f32.mrb[0].mxu0
        %v4301 = vpop.f32.mrb[0].mxu0
        %v4302 = vpop.f32.mrb[0].mxu0
        %4303 = vdwg.mxu0
        %v4304 = vadd.f32 %v3749, %v4299
        %s4305 = scalar_lea.vmem %s1, 448
        %v4306 = vld [vmem:[%s4305] sm:$0xf]
        %v4307 = vld [vmem:[%s4305 + $0x4] sm:$0xf]
        %v4308 = vld [vmem:[%s4305 + $0x8] sm:$0xf]
        %v4309 = vld [vmem:[%s4305 + $0xc] sm:$0xf]
        %v4310 = vld [vmem:[%s4305 + $0x10] sm:$0xf]
        %v4311 = vld [vmem:[%s4305 + $0x14] sm:$0xf]
        %v4312 = vld [vmem:[%s4305 + $0x18] sm:$0xf]
        %v4313 = vld [vmem:[%s4305 + $0x1c] sm:$0xf]
        %v4314 = vld [vmem:[%s4305 + $0x20] sm:$0xf]
        %v4315 = vld [vmem:[%s4305 + $0x24] sm:$0xf]
        %v4316 = vld [vmem:[%s4305 + $0x28] sm:$0xf]
        %v4317 = vld [vmem:[%s4305 + $0x2c] sm:$0xf]
        %v4318 = vld [vmem:[%s4305 + $0x30] sm:$0xf]
        %v4319 = vld [vmem:[%s4305 + $0x34] sm:$0xf]
        %v4320 = vld [vmem:[%s4305 + $0x38] sm:$0xf]
        %v4321 = vld [vmem:[%s4305 + $0x3c] sm:$0xf]
        %s4322 = scalar_lea.vmem %s4, 7
        %v4323 = vld [vmem:[%s4322] sm:$0x1]
        %v4325 = vlaneseq
        %v4326 = vshrl.u32 %v4325, 7
        %v4327 = vsub.s32 0, %v4326
        %v4328 = vrot.slane %v4323, %v4327
        %v4346 = vunpack.c.l.b16 %v4306
        %v4347 = vunpack.c.l.b16 %v4307
        %v4348 = vunpack.c.l.b16 %v4308
        %v4349 = vunpack.c.l.b16 %v4309
        %v4350 = vunpack.c.l.b16 %v4310
        %v4351 = vunpack.c.l.b16 %v4311
        %v4352 = vunpack.c.l.b16 %v4312
        %v4353 = vunpack.c.l.b16 %v4313
        %v4354 = vunpack.c.l.b16 %v4314
        %v4355 = vunpack.c.l.b16 %v4315
        %v4356 = vunpack.c.l.b16 %v4316
        %v4357 = vunpack.c.l.b16 %v4317
        %v4358 = vunpack.c.l.b16 %v4318
        %v4359 = vunpack.c.l.b16 %v4319
        %v4360 = vunpack.c.l.b16 %v4320
        %v4361 = vunpack.c.l.b16 %v4321
        %v4362 = vpack.c.b16 %v4347, %v4346
        %v4363 = vpack.c.b16 %v4349, %v4348
        %v4364 = vpack.c.b16 %v4351, %v4350
        %v4365 = vpack.c.b16 %v4353, %v4352
        %v4366 = vpack.c.b16 %v4355, %v4354
        %v4367 = vpack.c.b16 %v4357, %v4356
        %v4368 = vpack.c.b16 %v4359, %v4358
        %v4369 = vpack.c.b16 %v4361, %v4360
        %4378 = vmatprep.subr.bf16.mxu0 0
        %4379 = vmatpush1.bf16.msra.mxu0 %v4362
        %4380 = vmatprep.subr.bf16.mxu0 0
        %4381 = vmatpush1.bf16.msra.mxu0 %v4363
        %4382 = vmatprep.subr.bf16.mxu0 0
        %4383 = vmatpush1.bf16.msra.mxu0 %v4364
        %4384 = vmatprep.subr.bf16.mxu0 0
        %4385 = vmatpush1.bf16.msra.mxu0 %v4365
        %4386 = vmatprep.subr.bf16.mxu0 0
        %4387 = vmatpush1.bf16.msra.mxu0 %v4366
        %4388 = vmatprep.subr.bf16.mxu0 0
        %4389 = vmatpush1.bf16.msra.mxu0 %v4367
        %4390 = vmatprep.subr.bf16.mxu0 0
        %4391 = vmatpush1.bf16.msra.mxu0 %v4368
        %4392 = vmatprep.subr.bf16.mxu0 0
        %4393 = vmatpush1.bf16.msra.mxu0 %v4369
        %4394 = vmatprep.subr.bf16.mxu0 0
        %4395 = vmatpush1.bf16.msra.mxu0 0
        %4396 = vmatprep.subr.bf16.mxu0 0
        %4397 = vmatpush1.bf16.msra.mxu0 0
        %4398 = vmatprep.subr.bf16.mxu0 0
        %4399 = vmatpush1.bf16.msra.mxu0 0
        %4400 = vmatprep.subr.bf16.mxu0 0
        %4401 = vmatpush1.bf16.msra.mxu0 0
        %4402 = vmatprep.subr.bf16.mxu0 0
        %4403 = vmatpush1.bf16.msra.mxu0 0
        %4404 = vmatprep.subr.bf16.mxu0 0
        %4405 = vmatpush1.bf16.msra.mxu0 0
        %4406 = vmatprep.subr.bf16.mxu0 0
        %4407 = vmatpush1.bf16.msra.mxu0 0
        %4408 = vmatprep.subr.bf16.mxu0 0
        %4409 = vmatpush1.bf16.msra.mxu0 0
        %4410 = vmatprep.mubr.bf16.mxu0 0
        %4411 = vmatmul.mubr.bf16.gmra.mrb[0].mxu0 %v409
        %v4412 = vpop.f32.mrb[0].mxu0
        %v4413 = vadd.f32 %v4328, %v4412
        %v4414 = vpop.f32.mrb[0].mxu0
        %v4415 = vpop.f32.mrb[0].mxu0
        %v4416 = vpop.f32.mrb[0].mxu0
        %4417 = vdwg.mxu0
        %v4418 = vmul.f32 %v4413, 0.25
        %s4419 = scalar_lea.vmem %s2, 448
        %v4420 = vld [vmem:[%s4419] sm:$0xf]
        %v4421 = vld [vmem:[%s4419 + $0x4] sm:$0xf]
        %v4422 = vld [vmem:[%s4419 + $0x8] sm:$0xf]
        %v4423 = vld [vmem:[%s4419 + $0xc] sm:$0xf]
        %v4424 = vld [vmem:[%s4419 + $0x10] sm:$0xf]
        %v4425 = vld [vmem:[%s4419 + $0x14] sm:$0xf]
        %v4426 = vld [vmem:[%s4419 + $0x18] sm:$0xf]
        %v4427 = vld [vmem:[%s4419 + $0x1c] sm:$0xf]
        %v4428 = vld [vmem:[%s4419 + $0x20] sm:$0xf]
        %v4429 = vld [vmem:[%s4419 + $0x24] sm:$0xf]
        %v4430 = vld [vmem:[%s4419 + $0x28] sm:$0xf]
        %v4431 = vld [vmem:[%s4419 + $0x2c] sm:$0xf]
        %v4432 = vld [vmem:[%s4419 + $0x30] sm:$0xf]
        %v4433 = vld [vmem:[%s4419 + $0x34] sm:$0xf]
        %v4434 = vld [vmem:[%s4419 + $0x38] sm:$0xf]
        %v4435 = vld [vmem:[%s4419 + $0x3c] sm:$0xf]
        %s4436 = scalar_lea.vmem %s5, 7
        %v4437 = vld [vmem:[%s4436] sm:$0x1]
        %v4439 = vlaneseq
        %v4440 = vshrl.u32 %v4439, 7
        %v4441 = vsub.s32 0, %v4440
        %v4442 = vrot.slane %v4437, %v4441
        %v4460 = vunpack.c.l.b16 %v4420
        %v4461 = vunpack.c.l.b16 %v4421
        %v4462 = vunpack.c.l.b16 %v4422
        %v4463 = vunpack.c.l.b16 %v4423
        %v4464 = vunpack.c.l.b16 %v4424
        %v4465 = vunpack.c.l.b16 %v4425
        %v4466 = vunpack.c.l.b16 %v4426
        %v4467 = vunpack.c.l.b16 %v4427
        %v4468 = vunpack.c.l.b16 %v4428
        %v4469 = vunpack.c.l.b16 %v4429
        %v4470 = vunpack.c.l.b16 %v4430
        %v4471 = vunpack.c.l.b16 %v4431
        %v4472 = vunpack.c.l.b16 %v4432
        %v4473 = vunpack.c.l.b16 %v4433
        %v4474 = vunpack.c.l.b16 %v4434
        %v4475 = vunpack.c.l.b16 %v4435
        %v4476 = vpack.c.b16 %v4461, %v4460
        %v4477 = vpack.c.b16 %v4463, %v4462
        %v4478 = vpack.c.b16 %v4465, %v4464
        %v4479 = vpack.c.b16 %v4467, %v4466
        %v4480 = vpack.c.b16 %v4469, %v4468
        %v4481 = vpack.c.b16 %v4471, %v4470
        %v4482 = vpack.c.b16 %v4473, %v4472
        %v4483 = vpack.c.b16 %v4475, %v4474
        %4492 = vmatprep.subr.bf16.mxu0 0
        %4493 = vmatpush1.bf16.msra.mxu0 %v4476
        %4494 = vmatprep.subr.bf16.mxu0 0
        %4495 = vmatpush1.bf16.msra.mxu0 %v4477
        %4496 = vmatprep.subr.bf16.mxu0 0
        %4497 = vmatpush1.bf16.msra.mxu0 %v4478
        %4498 = vmatprep.subr.bf16.mxu0 0
        %4499 = vmatpush1.bf16.msra.mxu0 %v4479
        %4500 = vmatprep.subr.bf16.mxu0 0
        %4501 = vmatpush1.bf16.msra.mxu0 %v4480
        %4502 = vmatprep.subr.bf16.mxu0 0
        %4503 = vmatpush1.bf16.msra.mxu0 %v4481
        %4504 = vmatprep.subr.bf16.mxu0 0
        %4505 = vmatpush1.bf16.msra.mxu0 %v4482
        %4506 = vmatprep.subr.bf16.mxu0 0
        %4507 = vmatpush1.bf16.msra.mxu0 %v4483
        %4508 = vmatprep.subr.bf16.mxu0 0
        %4509 = vmatpush1.bf16.msra.mxu0 0
        %4510 = vmatprep.subr.bf16.mxu0 0
        %4511 = vmatpush1.bf16.msra.mxu0 0
        %4512 = vmatprep.subr.bf16.mxu0 0
        %4513 = vmatpush1.bf16.msra.mxu0 0
        %4514 = vmatprep.subr.bf16.mxu0 0
        %4515 = vmatpush1.bf16.msra.mxu0 0
        %4516 = vmatprep.subr.bf16.mxu0 0
        %4517 = vmatpush1.bf16.msra.mxu0 0
        %4518 = vmatprep.subr.bf16.mxu0 0
        %4519 = vmatpush1.bf16.msra.mxu0 0
        %4520 = vmatprep.subr.bf16.mxu0 0
        %4521 = vmatpush1.bf16.msra.mxu0 0
        %4522 = vmatprep.subr.bf16.mxu0 0
        %4523 = vmatpush1.bf16.msra.mxu0 0
        %4524 = vmatprep.mubr.bf16.mxu0 0
        %4525 = vmatmul.mubr.bf16.gmra.mrb[0].mxu0 %v409
        %v4526 = vpop.f32.mrb[0].mxu0
        %v4527 = vadd.f32 %v4442, %v4526
        %v4528 = vpop.f32.mrb[0].mxu0
        %v4529 = vpop.f32.mrb[0].mxu0
        %v4530 = vpop.f32.mrb[0].mxu0
        %4531 = vdwg.mxu0
        %s4532 = scalar_lea.vmem %s3, 448
        %v4533 = vld [vmem:[%s4532] sm:$0xf]
        %v4534 = vld [vmem:[%s4532 + $0x4] sm:$0xf]
        %v4535 = vld [vmem:[%s4532 + $0x8] sm:$0xf]
        %v4536 = vld [vmem:[%s4532 + $0xc] sm:$0xf]
        %v4537 = vld [vmem:[%s4532 + $0x10] sm:$0xf]
        %v4538 = vld [vmem:[%s4532 + $0x14] sm:$0xf]
        %v4539 = vld [vmem:[%s4532 + $0x18] sm:$0xf]
        %v4540 = vld [vmem:[%s4532 + $0x1c] sm:$0xf]
        %v4541 = vld [vmem:[%s4532 + $0x20] sm:$0xf]
        %v4542 = vld [vmem:[%s4532 + $0x24] sm:$0xf]
        %v4543 = vld [vmem:[%s4532 + $0x28] sm:$0xf]
        %v4544 = vld [vmem:[%s4532 + $0x2c] sm:$0xf]
        %v4545 = vld [vmem:[%s4532 + $0x30] sm:$0xf]
        %v4546 = vld [vmem:[%s4532 + $0x34] sm:$0xf]
        %v4547 = vld [vmem:[%s4532 + $0x38] sm:$0xf]
        %v4548 = vld [vmem:[%s4532 + $0x3c] sm:$0xf]
        %s4549 = scalar_lea.vmem %s6, 7
        %v4550 = vld [vmem:[%s4549] sm:$0x1]
        %v4552 = vlaneseq
        %v4553 = vshrl.u32 %v4552, 7
        %v4554 = vsub.s32 0, %v4553
        %v4555 = vrot.slane %v4550, %v4554
        %v4573 = vunpack.c.l.b16 %v4533
        %v4574 = vunpack.c.l.b16 %v4534
        %v4575 = vunpack.c.l.b16 %v4535
        %v4576 = vunpack.c.l.b16 %v4536
        %v4577 = vunpack.c.l.b16 %v4537
        %v4578 = vunpack.c.l.b16 %v4538
        %v4579 = vunpack.c.l.b16 %v4539
        %v4580 = vunpack.c.l.b16 %v4540
        %v4581 = vunpack.c.l.b16 %v4541
        %v4582 = vunpack.c.l.b16 %v4542
        %v4583 = vunpack.c.l.b16 %v4543
        %v4584 = vunpack.c.l.b16 %v4544
        %v4585 = vunpack.c.l.b16 %v4545
        %v4586 = vunpack.c.l.b16 %v4546
        %v4587 = vunpack.c.l.b16 %v4547
        %v4588 = vunpack.c.l.b16 %v4548
        %v4589 = vpack.c.b16 %v4574, %v4573
        %v4590 = vpack.c.b16 %v4576, %v4575
        %v4591 = vpack.c.b16 %v4578, %v4577
        %v4592 = vpack.c.b16 %v4580, %v4579
        %v4593 = vpack.c.b16 %v4582, %v4581
        %v4594 = vpack.c.b16 %v4584, %v4583
        %v4595 = vpack.c.b16 %v4586, %v4585
        %v4596 = vpack.c.b16 %v4588, %v4587
        %4605 = vmatprep.subr.bf16.mxu0 0
        %4606 = vmatpush1.bf16.msra.mxu0 %v4589
        %4607 = vmatprep.subr.bf16.mxu0 0
        %4608 = vmatpush1.bf16.msra.mxu0 %v4590
        %4609 = vmatprep.subr.bf16.mxu0 0
        %4610 = vmatpush1.bf16.msra.mxu0 %v4591
        %4611 = vmatprep.subr.bf16.mxu0 0
        %4612 = vmatpush1.bf16.msra.mxu0 %v4592
        %4613 = vmatprep.subr.bf16.mxu0 0
        %4614 = vmatpush1.bf16.msra.mxu0 %v4593
        %4615 = vmatprep.subr.bf16.mxu0 0
        %4616 = vmatpush1.bf16.msra.mxu0 %v4594
        %4617 = vmatprep.subr.bf16.mxu0 0
        %4618 = vmatpush1.bf16.msra.mxu0 %v4595
        %4619 = vmatprep.subr.bf16.mxu0 0
        %4620 = vmatpush1.bf16.msra.mxu0 %v4596
        %4621 = vmatprep.subr.bf16.mxu0 0
        %4622 = vmatpush1.bf16.msra.mxu0 0
        %4623 = vmatprep.subr.bf16.mxu0 0
        %4624 = vmatpush1.bf16.msra.mxu0 0
        %4625 = vmatprep.subr.bf16.mxu0 0
        %4626 = vmatpush1.bf16.msra.mxu0 0
        %4627 = vmatprep.subr.bf16.mxu0 0
        %4628 = vmatpush1.bf16.msra.mxu0 0
        %4629 = vmatprep.subr.bf16.mxu0 0
        %4630 = vmatpush1.bf16.msra.mxu0 0
        %4631 = vmatprep.subr.bf16.mxu0 0
        %4632 = vmatpush1.bf16.msra.mxu0 0
        %4633 = vmatprep.subr.bf16.mxu0 0
        %4634 = vmatpush1.bf16.msra.mxu0 0
        %4635 = vmatprep.subr.bf16.mxu0 0
        %4636 = vmatpush1.bf16.msra.mxu0 0
        %4637 = vmatprep.mubr.bf16.mxu0 0
        %4638 = vmatmul.mubr.bf16.gmra.mrb[0].mxu0 %v409
        %v4639 = vpop.f32.mrb[0].mxu0
        %v4640 = vadd.f32 %v4555, %v4639
        %v4641 = vpop.f32.mrb[0].mxu0
        %v4642 = vpop.f32.mrb[0].mxu0
        %v4643 = vpop.f32.mrb[0].mxu0
        %4644 = vdwg.mxu0
        %v4646 = vsel %vm759, %v4418, 0
        %v4649 = vsel %vm759, %v4527, 0
        %4651 = vmatprep.subr.mxu0 0.0
        %4652 = vmatpush1.xpose.msra.mxu0 %v4649
        %4653 = vmatprep.subr.mxu0 0.0
        %4654 = vmatpush1.xpose.msra.mxu0 0.0
        %4655 = vmatprep.subr.mxu0 0.0
        %4656 = vmatpush1.xpose.msra.mxu0 0.0
        %4657 = vmatprep.subr.mxu0 0.0
        %4658 = vmatpush1.xpose.msra.mxu0 0.0
        %4659 = vmatprep.subr.mxu0 0.0
        %4660 = vmatpush1.xpose.msra.mxu0 0.0
        %4661 = vmatprep.subr.mxu0 0.0
        %4662 = vmatpush1.xpose.msra.mxu0 0.0
        %4663 = vmatprep.subr.mxu0 0.0
        %4664 = vmatpush1.xpose.msra.mxu0 0.0
        %4665 = vmatprep.subr.mxu0 0.0
        %4666 = vmatpush1.xpose.msra.mxu0 0.0
        %4667 = vmatprep.subr.mxu0 0.0
        %4668 = vmatpush1.xpose.msra.mxu0 0.0
        %4669 = vmatprep.subr.mxu0 0.0
        %4670 = vmatpush1.xpose.msra.mxu0 0.0
        %4671 = vmatprep.subr.mxu0 0.0
        %4672 = vmatpush1.xpose.msra.mxu0 0.0
        %4673 = vmatprep.subr.mxu0 0.0
        %4674 = vmatpush1.xpose.msra.mxu0 0.0
        %4675 = vmatprep.subr.mxu0 0.0
        %4676 = vmatpush1.xpose.msra.mxu0 0.0
        %4677 = vmatprep.subr.mxu0 0.0
        %4678 = vmatpush1.xpose.msra.mxu0 0.0
        %4679 = vmatprep.subr.mxu0 0.0
        %4680 = vmatpush1.xpose.msra.mxu0 0.0
        %4681 = vmatprep.subr.mxu0 0.0
        %4682 = vmatpush1.xpose.msra.mxu0 0.0
        %4683 = vmatprep.subr.mxu0 0.0
        %4684 = vmatpush1.xpose.msra.mxu0 0.0
        %4685 = vmatprep.subr.mxu0 0.0
        %4686 = vmatpush1.xpose.msra.mxu0 0.0
        %4687 = vmatprep.subr.mxu0 0.0
        %4688 = vmatpush1.xpose.msra.mxu0 0.0
        %4689 = vmatprep.subr.mxu0 0.0
        %4690 = vmatpush1.xpose.msra.mxu0 0.0
        %4691 = vmatprep.subr.mxu0 0.0
        %4692 = vmatpush1.xpose.msra.mxu0 0.0
        %4693 = vmatprep.subr.mxu0 0.0
        %4694 = vmatpush1.xpose.msra.mxu0 0.0
        %4695 = vmatprep.subr.mxu0 0.0
        %4696 = vmatpush1.xpose.msra.mxu0 0.0
        %4697 = vmatprep.subr.mxu0 0.0
        %4698 = vmatpush1.xpose.msra.mxu0 0.0
        %4699 = vmatprep.subr.mxu0 0.0
        %4700 = vmatpush1.xpose.msra.mxu0 0.0
        %4701 = vmatprep.subr.mxu0 0.0
        %4702 = vmatpush1.xpose.msra.mxu0 0.0
        %4703 = vmatprep.subr.mxu0 0.0
        %4704 = vmatpush1.xpose.msra.mxu0 0.0
        %4705 = vmatprep.subr.mxu0 0.0
        %4706 = vmatpush1.xpose.msra.mxu0 0.0
        %4707 = vmatprep.subr.mxu0 0.0
        %4708 = vmatpush1.xpose.msra.mxu0 0.0
        %4709 = vmatprep.subr.mxu0 0.0
        %4710 = vmatpush1.xpose.msra.mxu0 0.0
        %4711 = vmatprep.subr.mxu0 0.0
        %4712 = vmatpush1.xpose.msra.mxu0 0.0
        %4713 = vmatprep.subr.mxu0 0.0
        %4714 = vmatpush1.xpose.msra.mxu0 0.0
        %4715 = vmatprep.mubr.f32.mxu0 0.0
        %4716 = vmatmul.mubr.f32.gmra.mrb[0].mxu0 %v4646
        %v4717 = vpop.f32.mrb[0].mxu0
        %v4718 = vadd.f32 %v757, %v4717
        %v4719 = vpop.f32.mrb[0].mxu0
        %4720 = vdwg.mxu0
        %v4721 = vsel %vm836, %v4718, -inf
        %4722 = vmax.xlane.f32.xlu0 %v4721
        %v4723 = vpop.xlane.xlu0 %4722
        %v4724 = vsub.f32 %v4718, %v4723
        %v4725 = vmul.f32 %v4724, 1.442695
        %v4726 = vpow.pop %v4725
        %v4727 = vsel %vm836, %v4726, 0.0
        %4728 = vadd.xlane.f32.xlu0 %v4727
        %v4729 = vpop.xlane.xlu0 %4728
        %v4730 = vrcp.pop %v4729
        %v4731 = vmul.f32 %v4726, %v4730
        %v4732 = vadd.f32 %v4177, %v4731
        %v4734 = vsel %vm836, %v4731, 0
        %4736 = vmatprep.subr.mxu0 0.0
        %4737 = vmatpush1.msra.mxu0 %v4640
        %4738 = vmatprep.subr.mxu0 0.0
        %4739 = vmatpush1.msra.mxu0 0.0
        %4740 = vmatprep.subr.mxu0 0.0
        %4741 = vmatpush1.msra.mxu0 0.0
        %4742 = vmatprep.subr.mxu0 0.0
        %4743 = vmatpush1.msra.mxu0 0.0
        %4744 = vmatprep.subr.mxu0 0.0
        %4745 = vmatpush1.msra.mxu0 0.0
        %4746 = vmatprep.subr.mxu0 0.0
        %4747 = vmatpush1.msra.mxu0 0.0
        %4748 = vmatprep.subr.mxu0 0.0
        %4749 = vmatpush1.msra.mxu0 0.0
        %4750 = vmatprep.subr.mxu0 0.0
        %4751 = vmatpush1.msra.mxu0 0.0
        %4752 = vmatprep.subr.mxu0 0.0
        %4753 = vmatpush1.msra.mxu0 0.0
        %4754 = vmatprep.subr.mxu0 0.0
        %4755 = vmatpush1.msra.mxu0 0.0
        %4756 = vmatprep.subr.mxu0 0.0
        %4757 = vmatpush1.msra.mxu0 0.0
        %4758 = vmatprep.subr.mxu0 0.0
        %4759 = vmatpush1.msra.mxu0 0.0
        %4760 = vmatprep.subr.mxu0 0.0
        %4761 = vmatpush1.msra.mxu0 0.0
        %4762 = vmatprep.subr.mxu0 0.0
        %4763 = vmatpush1.msra.mxu0 0.0
        %4764 = vmatprep.subr.mxu0 0.0
        %4765 = vmatpush1.msra.mxu0 0.0
        %4766 = vmatprep.subr.mxu0 0.0
        %4767 = vmatpush1.msra.mxu0 0.0
        %4768 = vmatprep.subr.mxu0 0.0
        %4769 = vmatpush1.msra.mxu0 0.0
        %4770 = vmatprep.subr.mxu0 0.0
        %4771 = vmatpush1.msra.mxu0 0.0
        %4772 = vmatprep.subr.mxu0 0.0
        %4773 = vmatpush1.msra.mxu0 0.0
        %4774 = vmatprep.subr.mxu0 0.0
        %4775 = vmatpush1.msra.mxu0 0.0
        %4776 = vmatprep.subr.mxu0 0.0
        %4777 = vmatpush1.msra.mxu0 0.0
        %4778 = vmatprep.subr.mxu0 0.0
        %4779 = vmatpush1.msra.mxu0 0.0
        %4780 = vmatprep.subr.mxu0 0.0
        %4781 = vmatpush1.msra.mxu0 0.0
        %4782 = vmatprep.subr.mxu0 0.0
        %4783 = vmatpush1.msra.mxu0 0.0
        %4784 = vmatprep.subr.mxu0 0.0
        %4785 = vmatpush1.msra.mxu0 0.0
        %4786 = vmatprep.subr.mxu0 0.0
        %4787 = vmatpush1.msra.mxu0 0.0
        %4788 = vmatprep.subr.mxu0 0.0
        %4789 = vmatpush1.msra.mxu0 0.0
        %4790 = vmatprep.subr.mxu0 0.0
        %4791 = vmatpush1.msra.mxu0 0.0
        %4792 = vmatprep.subr.mxu0 0.0
        %4793 = vmatpush1.msra.mxu0 0.0
        %4794 = vmatprep.subr.mxu0 0.0
        %4795 = vmatpush1.msra.mxu0 0.0
        %4796 = vmatprep.subr.mxu0 0.0
        %4797 = vmatpush1.msra.mxu0 0.0
        %4798 = vmatprep.subr.mxu0 0.0
        %4799 = vmatpush1.msra.mxu0 0.0
        %4800 = vmatprep.mubr.f32.mxu0 0.0
        %4801 = vmatmul.mubr.f32.gmra.mrb[0].mxu0 %v4734
        %v4802 = vpop.f32.mrb[0].mxu0
        %v4803 = vadd.f32 0.0, %v4802
        %v4804 = vpop.f32.mrb[0].mxu0
        %4805 = vdwg.mxu0
        %v4806 = vpack.c.bf16 %v4803, %v4803
        %s4807 = scalar_lea.vmem %s7, 56
        %v4808 = vld [vmem:[%s4807] sm:$0xf]
        %v4809 = vld [vmem:[%s4807 + $0x4] sm:$0xf]
        %v4812 = vunpack.c.l.b16 %v4808
        %v4813 = vunpack.c.l.b16 %v4809
        %v4814 = vpack.c.b16 %v4813, %v4812
        %v4817 = vsel %vm759, %v4806, 0
        %4819 = vmatprep.subr.bf16.mxu0 0
        %4820 = vmatpush1.bf16.msra.mxu0 %v4814
        %4821 = vmatprep.subr.bf16.mxu0 0
        %4822 = vmatpush1.bf16.msra.mxu0 0
        %4823 = vmatprep.subr.bf16.mxu0 0
        %4824 = vmatpush1.bf16.msra.mxu0 0
        %4825 = vmatprep.subr.bf16.mxu0 0
        %4826 = vmatpush1.bf16.msra.mxu0 0
        %4827 = vmatprep.subr.bf16.mxu0 0
        %4828 = vmatpush1.bf16.msra.mxu0 0
        %4829 = vmatprep.subr.bf16.mxu0 0
        %4830 = vmatpush1.bf16.msra.mxu0 0
        %4831 = vmatprep.subr.bf16.mxu0 0
        %4832 = vmatpush1.bf16.msra.mxu0 0
        %4833 = vmatprep.subr.bf16.mxu0 0
        %4834 = vmatpush1.bf16.msra.mxu0 0
        %4835 = vmatprep.subr.bf16.mxu0 0
        %4836 = vmatpush1.bf16.msra.mxu0 0
        %4837 = vmatprep.subr.bf16.mxu0 0
        %4838 = vmatpush1.bf16.msra.mxu0 0
        %4839 = vmatprep.subr.bf16.mxu0 0
        %4840 = vmatpush1.bf16.msra.mxu0 0
        %4841 = vmatprep.subr.bf16.mxu0 0
        %4842 = vmatpush1.bf16.msra.mxu0 0
        %4843 = vmatprep.subr.bf16.mxu0 0
        %4844 = vmatpush1.bf16.msra.mxu0 0
        %4845 = vmatprep.subr.bf16.mxu0 0
        %4846 = vmatpush1.bf16.msra.mxu0 0
        %4847 = vmatprep.subr.bf16.mxu0 0
        %4848 = vmatpush1.bf16.msra.mxu0 0
        %4849 = vmatprep.subr.bf16.mxu0 0
        %4850 = vmatpush1.bf16.msra.mxu0 0
        %4851 = vmatprep.mubr.bf16.mxu0 0
        %4852 = vmatmul.mubr.bf16.gmra.mrb[0].mxu0 %v4817
        %v4853 = vpop.f32.mrb[0].mxu0
        %v4854 = vadd.f32 0.0, %v4853
        %v4855 = vpop.f32.mrb[0].mxu0
        %v4856 = vpop.f32.mrb[0].mxu0
        %v4857 = vpop.f32.mrb[0].mxu0
        %4858 = vdwg.mxu0
        %v4859 = vadd.f32 %v4304, %v4854
        %4860 = vst [vmem:[%s406] sm:$0xff] %v4859
        %v4861 = vmul.f32 %v4732, 0.125
        %4862 = vst.msk [vmem:[%s395] sm:$0xff] %vm836, %v4861
        %p4863 = scmp.lt.s32.totalorder %s26, 1
        %s4864 = scalar_select %p4863, %s26, 1
        %s4865 = smul.addr %s4864, 8
        %s4866 = scalar_lea.vmem %s10, %s4865
        %s4867 = sand.u32 %s280, 1
        %s4868 = scalar_lea.sflag [#allocation3], %s4867
        %s4869 = sand.u32 %s280, 1
        %s4870 = smul.addr %s4869, 8
        %s4871 = scalar_lea.vmem [#allocation2], %s4870
        // Predicated region
        $region61: #{forward.3} parent=59 // pred_check
          %p4872 = pneg %p264
        $region62: #{forward.3} parent=59 // pred_check_branch
          %4874 = sbr.rel (%p4872) target = $region64
        $region63: #{forward.3} parent=59 // pred_region
          _
        $region64: #{forward.3} parent=59 // pred_fallthru
          _
        // Predicated region
        $region65: #{forward.3} parent=59 // pred_check
          %p4875 = pneg %p290
        $region66: #{forward.3} parent=59 // pred_check_branch
          %4877 = sbr.rel (%p4875) target = $region68
        $region67: #{forward.3} parent=59 // pred_region
          %s4879 = ssub.s32 128, 128
          %4880 = vsyncadd %s4868, %s4879
          %s4881 = smul.addr %s26, 128
          %s4882 = scalar_lea.hbm %s11, %s4881
          %s4884 = sshll.u32 %s4871, 4
          %s4885 = int_to_ptr.vmem [resolvable:$true] %s4884
          %4887 = dma.vmem_to_hbm [thread:$0]  %s4885, 128, %s4882, %s4868
        $region68: #{forward.3} parent=59 // pred_fallthru
          _
      $region60: #{forward.3} parent=5 // pred_fallthru
        _
      %p4888 = scmp.le.s32.totalorder 2, %s21
      // Predicated region
      $region69: #{forward.3} parent=5 // pred_check
        %p4889 = pneg %p4888
      $region70: #{forward.3} parent=5 // pred_check_branch
        %4891 = sbr.rel (%p4889) target = $region72
      $region71: #{forward.3} parent=5 // pred_region
        %s4892 = ssub.s32 %s21, 2
        // Predicated region
        $region73: #{forward.3} parent=71 // pred_check
          %p4893 = pneg %p270
        $region74: #{forward.3} parent=71 // pred_check_branch
          %4895 = sbr.rel (%p4893) target = $region76
        $region75: #{forward.3} parent=71 // pred_region
          %p4896 = scmp.lt.s32.totalorder %s27, 1
          %s4897 = scalar_select %p4896, %s27, 1
          %s4898 = smul.addr %s4897, 8
          %s4899 = scalar_lea.vmem %s10, %s4898
        $region76: #{forward.3} parent=71 // pred_fallthru
          _
        // Predicated region
        $region77: #{forward.3} parent=71 // pred_check
          %p4900 = pneg %p296
        $region78: #{forward.3} parent=71 // pred_check_branch
          %4902 = sbr.rel (%p4900) target = $region80
        $region79: #{forward.3} parent=71 // pred_region
          %s4903 = sand.u32 %s281, 1
          %s4904 = scalar_lea.sflag [#allocation3], %s4903
          %s4905 = sand.u32 %s281, 1
          %s4906 = smul.addr %s4905, 8
          %s4907 = scalar_lea.vmem [#allocation2], %s4906
          %4908 = dma.done %s4904, 128
        $region80: #{forward.3} parent=71 // pred_fallthru
          _
      $region72: #{forward.3} parent=5 // pred_fallthru
        _
    $region6: #{forward.3} parent=1 // loop_footer
      %s25 = sadd.s32 1, %s21
    $region7: #{forward.3} parent=1 // loop_footer_branch
      %20 = sbr.rel target = $region3
    $region8: #{forward.3} parent=1 // loop_exit
      _
    %4909 = vsyncpa [#allocation3], 1
    %s4910 = scalar_lea.sflag [#allocation3], 1
    %4911 = vsyncpa %s4910, 1

</llo_original>
